<compile_context>
chip_gen: v5e
topology: v5e:2x2
jax: 0.10.0
libtpu: 0.0.40
codegen_flags: <defaults>
</compile_context>

<pallas_src>
import functools

import jax
import jax.numpy as jnp
from jax import lax
from jax.experimental import pallas as pl
from jax.experimental.pallas import tpu as pltpu

# ---------------------------------------------------------------------------
# Model hyper-parameters (PyTorch module defaults; small vocab for the demo).
# ---------------------------------------------------------------------------
VOCAB_SIZE = 32
EMBED_DIM = 128
NUM_CLASSES = 4
MAX_SEQ_LEN = 207
N_HEADS = 4
FFN_DIM = 512
N_LAYERS = 2
LN_EPS = 1e-5
OUT_PAD = 128          # classifier output padded to one full lane width


def _round_up(x, m):
    return (x + m - 1) // m * m


def _pick_block_b(batch, sp):
    """Sequences per grid step: divide batch, respect (8,128) block rule,
    aim for >=128 matmul rows, keep >=2 grid steps for v7x megacore."""
    cands = [tb for tb in range(1, batch + 1)
             if batch % tb == 0 and (tb % 8 == 0 or tb == batch)
             and tb * sp <= 2048]
    if not cands:
        return batch
    multi = [tb for tb in cands if batch // tb >= 2] or cands
    good = [tb for tb in multi if tb * sp <= 512] or multi
    return max(good)


# ---------------------------------------------------------------------------
# Fused forward kernel (one grid step == TB sequences of the batch)
# ---------------------------------------------------------------------------
def _transformer_kernel(tb, sp, s_true, n_heads,
                        ids_ref,                        # [TB*Sp, 1] int32 (VMEM)
                        emb_ref, pos_ref,               # [VP, D] bf16, [Sp, D] f32
                        inproj_w_ref, inproj_b_ref,     # [L, D, 3D] bf16, [L, 1, 3D] f32
                        outproj_w_ref, outproj_b_ref,   # [L, D, D] bf16,  [L, 1, D] f32
                        ln1_g_ref, ln1_b_ref,           # [L, 1, D] f32
                        ln2_g_ref, ln2_b_ref,           # [L, 1, D] f32
                        ff1_w_ref, ff1_b_ref,           # [L, D, F] bf16,  [L, 1, F] f32
                        ff2_w_ref, ff2_b_ref,           # [L, F, D] bf16,  [L, 1, D] f32
                        fc_w_ref, fc_b_ref,             # [D, 128] bf16,   [1, 128] f32
                        out_ref):                       # [TB, 128] f32
    D = pos_ref.shape[-1]
    VP = emb_ref.shape[0]
    L = inproj_w_ref.shape[0]
    hd = D // n_heads
    rows = tb * sp
    scale = float(hd) ** -0.5
    cdt = emb_ref.dtype                                  # bf16 MXU-input dtype

    # ---- embedding gather as a one-hot MXU matmul + positional encoding ----
    ids = ids_ref[...]                                   # [rows, 1] int32
    onehot = (ids == lax.broadcasted_iota(jnp.int32, (rows, VP), 1)).astype(cdt)
    x = jnp.dot(onehot, emb_ref[...], preferred_element_type=jnp.float32)
    x = (x.reshape(tb, sp, D) + pos_ref[...][None]).reshape(rows, D)   # f32

    lane = lax.broadcasted_iota(jnp.int32, (1, 1, D), 2)
    if s_true < sp:                                      # mask padded keys
        key_iota = lax.broadcasted_iota(jnp.int32, (1, 1, sp), 2)
        key_bias = jnp.where(key_iota < s_true, 0.0, -1e30).astype(jnp.float32)
    else:
        key_bias = None

    def layer_norm(y, g, b):                             # rows x D, f32
        mu = jnp.mean(y, axis=-1, keepdims=True)
        yc = y - mu
        var = jnp.mean(yc * yc, axis=-1, keepdims=True)
        return yc * lax.rsqrt(var + LN_EPS) * g + b

    for l in range(L):                                   # unrolled (L == 2)
        # ---- fused QKV projection on the whole [rows, D] slab (MXU) --------
        qkv = jnp.dot(x.astype(cdt), inproj_w_ref[l],
                      preferred_element_type=jnp.float32) + inproj_b_ref[l]
        q = (qkv[:, 0 * D:1 * D] * scale).reshape(tb, sp, D).astype(cdt)
        k = qkv[:, 1 * D:2 * D].reshape(tb, sp, D).astype(cdt)
        v = qkv[:, 2 * D:3 * D].reshape(tb, sp, D).astype(cdt)

        # ---- attention: batched over TB sequences; heads via lane masks ----
        # (k * m_h) zeros all lanes outside head h, so the full-D contraction
        # equals q_h @ k_h^T; (v * m_h) makes P@V land exactly in head h's
        # lane slice of ctx -> no 32-lane slicing, no concatenate, no relayout.
        ctx = jnp.zeros((tb, sp, D), jnp.float32)
        for h in range(n_heads):
            m_h = ((lane >= h * hd) & (lane < (h + 1) * hd)).astype(cdt)
            sc = jnp.einsum("bqd,bkd->bqk", q, k * m_h,
                            preferred_element_type=jnp.float32)
            if key_bias is not None:
                sc = sc + key_bias
            sc = sc - jnp.max(sc, axis=-1, keepdims=True)
            p = jnp.exp(sc)
            p = p * pl.reciprocal(jnp.sum(p, axis=-1, keepdims=True), approx=True)
            ctx = ctx + jnp.einsum("bqk,bkd->bqd", p.astype(cdt), v * m_h,
                                   preferred_element_type=jnp.float32)

        attn = jnp.dot(ctx.reshape(rows, D).astype(cdt), outproj_w_ref[l],
                       preferred_element_type=jnp.float32) + outproj_b_ref[l]
        x = layer_norm(x + attn, ln1_g_ref[l], ln1_b_ref[l])

        # ---- feed-forward ---------------------------------------------------
        hid = jnp.dot(x.astype(cdt), ff1_w_ref[l],
                      preferred_element_type=jnp.float32) + ff1_b_ref[l]
        hid = jnp.maximum(hid, 0.0)
        ff = jnp.dot(hid.astype(cdt), ff2_w_ref[l],
                     preferred_element_type=jnp.float32) + ff2_b_ref[l]
        x = layer_norm(x + ff, ln2_g_ref[l], ln2_b_ref[l])

    # ---- per-sequence masked mean-pool as one constant-matrix MXU matmul ----
    col = lax.broadcasted_iota(jnp.int32, (tb, rows), 1)
    row = lax.broadcasted_iota(jnp.int32, (tb, rows), 0)
    pool = jnp.where((col >= row * sp) & (col < row * sp + s_true),
                     1.0 / s_true, 0.0).astype(jnp.float32)
    pooled = jnp.dot(pool, x, preferred_element_type=jnp.float32)     # [tb, D]

    logits = jnp.dot(pooled.astype(cdt), fc_w_ref[...],
                     preferred_element_type=jnp.float32) + fc_b_ref[...]
    out_ref[...] = logits.astype(out_ref.dtype)


def _whole_spec(shape):
    """Full-array VMEM block, constant index map (weight stays resident)."""
    zeros = (0,) * len(shape)
    return pl.BlockSpec(shape, lambda b, _z=zeros: _z)


@jax.jit
def transformer_forward(params, ids):
    """ids: [B, S] integer tokens -> logits [B, NUM_CLASSES]."""
    B, S = ids.shape
    D = EMBED_DIM
    Sp = _round_up(S, 8)                                 # sublane-aligned seq
    TB = _pick_block_b(B, Sp)                            # sequences per step
    rows = TB * Sp

    # Padded token slots get id -1 -> all-zero one-hot -> zero embedding;
    # they are masked out of the softmax and excluded from the mean pool.
    ids_p = jnp.pad(ids.astype(jnp.int32), ((0, 0), (0, Sp - S)),
                    constant_values=-1)
    ids2d = ids_p.reshape(B * Sp, 1)

    pos_p = jnp.pad(params["pos"][:S], ((0, Sp - S), (0, 0)))          # [Sp, D]

    weights = (
        params["emb"], pos_p,
        params["inproj_w"], params["inproj_b"],
        params["outproj_w"], params["outproj_b"],
        params["ln1_g"], params["ln1_b"],
        params["ln2_g"], params["ln2_b"],
        params["ff1_w"], params["ff1_b"],
        params["ff2_w"], params["ff2_b"],
        params["fc_w"], params["fc_b"],
    )
    kernel = functools.partial(_transformer_kernel, TB, Sp, S, N_HEADS)
    out = pl.pallas_call(
        kernel,
        out_shape=jax.ShapeDtypeStruct((B, OUT_PAD), jnp.float32),
        grid_spec=pltpu.PrefetchScalarGridSpec(
            num_scalar_prefetch=0,
            grid=(B // TB,),
            in_specs=[pl.BlockSpec((rows, 1), lambda b: (b, 0))]
                     + [_whole_spec(w.shape) for w in weights],
            out_specs=pl.BlockSpec((TB, OUT_PAD), lambda b: (b, 0)),
        ),
        compiler_params=pltpu.CompilerParams(
            dimension_semantics=("parallel",)),
    )(ids2d, *weights)
    return out[:, :NUM_CLASSES]


# ---------------------------------------------------------------------------
# Parameters (kernel layout: [in, out] weights, bf16 MXU operands, padding)
# ---------------------------------------------------------------------------
def init_params(key):
    keys = iter(jax.random.split(key, 16))

    def nrm(shape, std=0.02):
        return (std * jax.random.normal(next(keys), shape)).astype(jnp.float32)

    D, F, L = EMBED_DIM, FFN_DIM, N_LAYERS
    VP = _round_up(VOCAB_SIZE, 128)                      # vocab padded for one-hot
    bf16 = jnp.bfloat16

    emb = jnp.zeros((VP, D), jnp.float32).at[:VOCAB_SIZE].set(nrm((VOCAB_SIZE, D), 1.0))
    fc_w = jnp.zeros((D, OUT_PAD), jnp.float32).at[:, :NUM_CLASSES].set(
        nrm((D, NUM_CLASSES), 0.05))
    fc_b = jnp.zeros((1, OUT_PAD), jnp.float32).at[0, :NUM_CLASSES].set(
        nrm((NUM_CLASSES,), 0.05))

    return {
        "emb": emb.astype(bf16),                         # [VP, D]
        "pos": nrm((MAX_SEQ_LEN, D), 0.02),              # f32
        "inproj_w": nrm((L, D, 3 * D)).astype(bf16),     # x @ W (already [in, out])
        "inproj_b": nrm((L, 1, 3 * D)),
        "outproj_w": nrm((L, D, D)).astype(bf16),
        "outproj_b": nrm((L, 1, D)),
        "ln1_g": jnp.ones((L, 1, D), jnp.float32),
        "ln1_b": jnp.zeros((L, 1, D), jnp.float32),
        "ln2_g": jnp.ones((L, 1, D), jnp.float32),
        "ln2_b": jnp.zeros((L, 1, D), jnp.float32),
        "ff1_w": nrm((L, D, F)).astype(bf16),
        "ff1_b": nrm((L, 1, F)),
        "ff2_w": nrm((L, F, D)).astype(bf16),
        "ff2_b": nrm((L, 1, D)),
        "fc_w": fc_w.astype(bf16),
        "fc_b": fc_b,
    }


# ---------------------------------------------------------------------------
# Pure-JAX reference (same math as nn.TransformerEncoderLayer, eval mode)
# ---------------------------------------------------------------------------
def transformer_reference(params, ids):
    B, S = ids.shape
    D, H = EMBED_DIM, N_HEADS
    hd = D // H
    hp = "highest"
    f32 = jnp.float32
    x = params["emb"].astype(f32)[ids] + params["pos"][None, :S, :]

    def layer_norm(y, g, beta):
        mu = y.mean(-1, keepdims=True)
        var = ((y - mu) ** 2).mean(-1, keepdims=True)
        return (y - mu) / jnp.sqrt(var + LN_EPS) * g + beta

    for l in range(N_LAYERS):
        qkv = jnp.einsum("bsd,de->bse", x, params["inproj_w"][l].astype(f32),
                         precision=hp) + params["inproj_b"][l, 0]
        q, k, v = jnp.split(qkv, 3, axis=-1)
        q = q.reshape(B, S, H, hd)
        k = k.reshape(B, S, H, hd)
        v = v.reshape(B, S, H, hd)
        sc = jnp.einsum("bqhd,bkhd->bhqk", q, k, precision=hp) / (hd ** 0.5)
        p = jax.nn.softmax(sc, axis=-1)
        ctx = jnp.einsum("bhqk,bkhd->bqhd", p, v,
                         precision=hp).reshape(B, S, D)
        attn = jnp.einsum("bsd,de->bse", ctx, params["outproj_w"][l].astype(f32),
                          precision=hp) + params["outproj_b"][l, 0]
        x = layer_norm(x + attn, params["ln1_g"][l, 0], params["ln1_b"][l, 0])
        h = jnp.einsum("bsd,df->bsf", x, params["ff1_w"][l].astype(f32),
                       precision=hp) + params["ff1_b"][l, 0]
        h = jax.nn.relu(h)
        h = jnp.einsum("bsf,fd->bsd", h, params["ff2_w"][l].astype(f32),
                       precision=hp) + params["ff2_b"][l, 0]
        x = layer_norm(x + h, params["ln2_g"][l, 0], params["ln2_b"][l, 0])

    pooled = x.mean(axis=1)
    logits = jnp.einsum("bd,dc->bc", pooled, params["fc_w"].astype(f32),
                        precision=hp) + params["fc_b"][0]
    return logits[:, :NUM_CLASSES]


if __name__ == "__main__":
    key = jax.random.PRNGKey(0)
    pkey, xkey = jax.random.split(key)
    params = init_params(pkey)

    B, S = 16, 16          # -> TB=8 sequences/step, grid=(2,), 128 matmul rows
    ids = jax.random.randint(xkey, (B, S), 0, VOCAB_SIZE, dtype=jnp.int32)

    out = jax.block_until_ready(transformer_forward(params, ids))
    assert out.shape == (B, NUM_CLASSES), out.shape

    ref = jax.block_until_ready(transformer_reference(params, ids))
    max_err = float(jnp.max(jnp.abs(out - ref)))
    # bf16 MXU operands + approx reciprocal vs f32 "highest" reference.
    assert jnp.allclose(out, ref, atol=2e-2, rtol=2e-2), max_err

    print("KERNEL_OK")
</pallas_src>

<mosaic_0001>
module attributes {stable_mosaic.version = 11 : i64} {
  func.func @_transformer_kernel(%arg0: i32, %arg1: memref<128x1xi32, #tpu.memory_space<vmem>>, %arg2: memref<128x128xbf16, #tpu.memory_space<vmem>>, %arg3: memref<16x128xf32, #tpu.memory_space<vmem>>, %arg4: memref<2x128x384xbf16, #tpu.memory_space<vmem>>, %arg5: memref<2x1x384xf32, #tpu.memory_space<vmem>>, %arg6: memref<2x128x128xbf16, #tpu.memory_space<vmem>>, %arg7: memref<2x1x128xf32, #tpu.memory_space<vmem>>, %arg8: memref<2x1x128xf32, #tpu.memory_space<vmem>>, %arg9: memref<2x1x128xf32, #tpu.memory_space<vmem>>, %arg10: memref<2x1x128xf32, #tpu.memory_space<vmem>>, %arg11: memref<2x1x128xf32, #tpu.memory_space<vmem>>, %arg12: memref<2x128x512xbf16, #tpu.memory_space<vmem>>, %arg13: memref<2x1x512xf32, #tpu.memory_space<vmem>>, %arg14: memref<2x512x128xbf16, #tpu.memory_space<vmem>>, %arg15: memref<2x1x128xf32, #tpu.memory_space<vmem>>, %arg16: memref<128x128xbf16, #tpu.memory_space<vmem>>, %arg17: memref<1x128xf32, #tpu.memory_space<vmem>>, %arg18: memref<8x128xf32, #tpu.memory_space<vmem>>) attributes {dimension_semantics = [#tpu.dimension_semantics<parallel>], iteration_bounds = array<i64: 2>, scalar_prefetch = 0 : i64, scratch_operands = 0 : i64, tpu.core_type = #tpu.core_type<tc>, window_params = [{transform_indices = @transform_0, window_bounds = array<i64: 128, 1>}, {pipeline_mode = #tpu.pipeline_mode<synchronous>, transform_indices = @transform_1, window_bounds = array<i64: 128, 128>}, {pipeline_mode = #tpu.pipeline_mode<synchronous>, transform_indices = @transform_2, window_bounds = array<i64: 16, 128>}, {pipeline_mode = #tpu.pipeline_mode<synchronous>, transform_indices = @transform_3, window_bounds = array<i64: 2, 128, 384>}, {pipeline_mode = #tpu.pipeline_mode<synchronous>, transform_indices = @transform_4, window_bounds = array<i64: 2, 1, 384>}, {pipeline_mode = #tpu.pipeline_mode<synchronous>, transform_indices = @transform_5, window_bounds = array<i64: 2, 128, 128>}, {pipeline_mode = #tpu.pipeline_mode<synchronous>, transform_indices = @transform_6, window_bounds = array<i64: 2, 1, 128>}, {pipeline_mode = #tpu.pipeline_mode<synchronous>, transform_indices = @transform_7, window_bounds = array<i64: 2, 1, 128>}, {pipeline_mode = #tpu.pipeline_mode<synchronous>, transform_indices = @transform_8, window_bounds = array<i64: 2, 1, 128>}, {pipeline_mode = #tpu.pipeline_mode<synchronous>, transform_indices = @transform_9, window_bounds = array<i64: 2, 1, 128>}, {pipeline_mode = #tpu.pipeline_mode<synchronous>, transform_indices = @transform_10, window_bounds = array<i64: 2, 1, 128>}, {pipeline_mode = #tpu.pipeline_mode<synchronous>, transform_indices = @transform_11, window_bounds = array<i64: 2, 128, 512>}, {pipeline_mode = #tpu.pipeline_mode<synchronous>, transform_indices = @transform_12, window_bounds = array<i64: 2, 1, 512>}, {pipeline_mode = #tpu.pipeline_mode<synchronous>, transform_indices = @transform_13, window_bounds = array<i64: 2, 512, 128>}, {pipeline_mode = #tpu.pipeline_mode<synchronous>, transform_indices = @transform_14, window_bounds = array<i64: 2, 1, 128>}, {pipeline_mode = #tpu.pipeline_mode<synchronous>, transform_indices = @transform_15, window_bounds = array<i64: 128, 128>}, {pipeline_mode = #tpu.pipeline_mode<synchronous>, transform_indices = @transform_16, window_bounds = array<i64: 1, 128>}, {transform_indices = @transform_17, window_bounds = array<i64: 8, 128>}]} {
    %c0 = arith.constant 0 : index
    %c0_0 = arith.constant 0 : index
    %0 = vector.load %arg1[%c0, %c0_0] : memref<128x1xi32, #tpu.memory_space<vmem>>, vector<128x1xi32>
    %1 = tpu.iota {dimensions = array<i32: 1>} : vector<128x128xi32>
    %2 = vector.broadcast %0 : vector<128x1xi32> to vector<128x128xi32>
    %3 = arith.cmpi eq, %2, %1 : vector<128x128xi32>
    %4 = arith.extui %3 : vector<128x128xi1> to vector<128x128xi32>
    %5 = arith.sitofp %4 : vector<128x128xi32> to vector<128x128xf32>
    %6 = arith.truncf %5 : vector<128x128xf32> to vector<128x128xbf16>
    %c0_1 = arith.constant 0 : index
    %c0_2 = arith.constant 0 : index
    %7 = vector.load %arg2[%c0_1, %c0_2] : memref<128x128xbf16, #tpu.memory_space<vmem>>, vector<128x128xbf16>
    %cst = arith.constant dense<0.000000e+00> : vector<128x128xf32>
    %8 = tpu.matmul %6, %7, %cst {dimension_numbers = #tpu.dot_dimension_numbers<[1], [0], [0], [1], [0, 0, 1, 1], [], []>} : vector<128x128xbf16>, vector<128x128xbf16>, vector<128x128xf32> -> vector<128x128xf32>
    %9 = vector.shape_cast %8 : vector<128x128xf32> to vector<8x16x128xf32>
    %c0_3 = arith.constant 0 : index
    %c0_4 = arith.constant 0 : index
    %10 = vector.load %arg3[%c0_3, %c0_4] : memref<16x128xf32, #tpu.memory_space<vmem>>, vector<16x128xf32>
    %11 = vector.shape_cast %10 : vector<16x128xf32> to vector<1x16x128xf32>
    %12 = vector.broadcast %11 : vector<1x16x128xf32> to vector<8x16x128xf32>
    %13 = arith.addf %9, %12 : vector<8x16x128xf32>
    %14 = vector.shape_cast %13 : vector<8x16x128xf32> to vector<128x128xf32>
    %15 = tpu.iota {dimensions = array<i32: 2>} : vector<1x1x128xi32>
    %16 = arith.truncf %14 : vector<128x128xf32> to vector<128x128xbf16>
    %c0_5 = arith.constant 0 : index
    %c0_6 = arith.constant 0 : index
    %c0_7 = arith.constant 0 : index
    %17 = vector.load %arg4[%c0_5, %c0_6, %c0_7] : memref<2x128x384xbf16, #tpu.memory_space<vmem>>, vector<1x128x384xbf16>
    %18 = vector.shape_cast %17 : vector<1x128x384xbf16> to vector<128x384xbf16>
    %cst_8 = arith.constant dense<0.000000e+00> : vector<128x384xf32>
    %19 = tpu.matmul %16, %18, %cst_8 {dimension_numbers = #tpu.dot_dimension_numbers<[1], [0], [0], [1], [0, 0, 1, 1], [], []>} : vector<128x128xbf16>, vector<128x384xbf16>, vector<128x384xf32> -> vector<128x384xf32>
    %c0_9 = arith.constant 0 : index
    %c0_10 = arith.constant 0 : index
    %c0_11 = arith.constant 0 : index
    %20 = vector.load %arg5[%c0_9, %c0_10, %c0_11] : memref<2x1x384xf32, #tpu.memory_space<vmem>>, vector<1x1x384xf32>
    %21 = vector.shape_cast %20 : vector<1x1x384xf32> to vector<1x384xf32>
    %22 = vector.broadcast %21 : vector<1x384xf32> to vector<128x384xf32>
    %23 = arith.addf %19, %22 : vector<128x384xf32>
    %24 = vector.extract_strided_slice %23 {offsets = [0, 0], sizes = [128, 128], strides = [1, 1]} : vector<128x384xf32> to vector<128x128xf32>
    %cst_12 = arith.constant 0.176776692 : f32
    %25 = vector.broadcast %cst_12 : f32 to vector<128x128xf32>
    %26 = arith.mulf %24, %25 : vector<128x128xf32>
    %27 = vector.shape_cast %26 : vector<128x128xf32> to vector<8x16x128xf32>
    %28 = arith.truncf %27 : vector<8x16x128xf32> to vector<8x16x128xbf16>
    %29 = vector.extract_strided_slice %23 {offsets = [0, 128], sizes = [128, 128], strides = [1, 1]} : vector<128x384xf32> to vector<128x128xf32>
    %30 = vector.shape_cast %29 : vector<128x128xf32> to vector<8x16x128xf32>
    %31 = arith.truncf %30 : vector<8x16x128xf32> to vector<8x16x128xbf16>
    %32 = vector.extract_strided_slice %23 {offsets = [0, 256], sizes = [128, 128], strides = [1, 1]} : vector<128x384xf32> to vector<128x128xf32>
    %33 = vector.shape_cast %32 : vector<128x128xf32> to vector<8x16x128xf32>
    %34 = arith.truncf %33 : vector<8x16x128xf32> to vector<8x16x128xbf16>
    %cst_13 = arith.constant 0.000000e+00 : f32
    %35 = vector.broadcast %cst_13 : f32 to vector<8x16x128xf32>
    %c0_i32 = arith.constant 0 : i32
    %36 = vector.broadcast %c0_i32 : i32 to vector<1x1x128xi32>
    %37 = arith.cmpi sge, %15, %36 : vector<1x1x128xi32>
    %c32_i32 = arith.constant 32 : i32
    %38 = vector.broadcast %c32_i32 : i32 to vector<1x1x128xi32>
    %39 = arith.cmpi slt, %15, %38 : vector<1x1x128xi32>
    %40 = arith.andi %37, %39 : vector<1x1x128xi1>
    %41 = arith.extui %40 : vector<1x1x128xi1> to vector<1x1x128xi32>
    %42 = arith.sitofp %41 : vector<1x1x128xi32> to vector<1x1x128xf32>
    %43 = arith.truncf %42 : vector<1x1x128xf32> to vector<1x1x128xbf16>
    %44 = vector.broadcast %43 : vector<1x1x128xbf16> to vector<8x16x128xbf16>
    %45 = arith.mulf %31, %44 : vector<8x16x128xbf16>
    "tpu.trace_start"() <{level = 10 : i32, message = "bqd,bkd->bqk"}> : () -> ()
    %cst_14 = arith.constant dense<0.000000e+00> : vector<8x16x16xf32>
    %46 = tpu.matmul %28, %45, %cst_14 {dimension_numbers = #tpu.dot_dimension_numbers<[2], [2], [1], [1], [0, 0, 0, 1, 1, 1], [0], [0]>} : vector<8x16x128xbf16>, vector<8x16x128xbf16>, vector<8x16x16xf32> -> vector<8x16x16xf32>
    "tpu.trace_stop"() : () -> ()
    %cst_15 = arith.constant dense<0xFF800000> : vector<8x16xf32>
    %47 = vector.multi_reduction <maximumf>, %46, %cst_15 [2] : vector<8x16x16xf32> to vector<8x16xf32>
    %48 = vector.shape_cast %47 : vector<8x16xf32> to vector<8x16x1xf32>
    %49 = vector.broadcast %48 : vector<8x16x1xf32> to vector<8x16x16xf32>
    %50 = arith.subf %46, %49 : vector<8x16x16xf32>
    %51 = math.exp %50 : vector<8x16x16xf32>
    %cst_16 = arith.constant dense<0.000000e+00> : vector<8x16xf32>
    %52 = vector.multi_reduction <add>, %51, %cst_16 [2] : vector<8x16x16xf32> to vector<8x16xf32>
    %53 = vector.shape_cast %52 : vector<8x16xf32> to vector<8x16x1xf32>
    %54 = tpu.reciprocal %53 {approx = true} : vector<8x16x1xf32> -> vector<8x16x1xf32>
    %55 = vector.broadcast %54 : vector<8x16x1xf32> to vector<8x16x16xf32>
    %56 = arith.mulf %51, %55 : vector<8x16x16xf32>
    %57 = arith.truncf %56 : vector<8x16x16xf32> to vector<8x16x16xbf16>
    %58 = vector.broadcast %43 : vector<1x1x128xbf16> to vector<8x16x128xbf16>
    %59 = arith.mulf %34, %58 : vector<8x16x128xbf16>
    "tpu.trace_start"() <{level = 10 : i32, message = "bqk,bkd->bqd"}> : () -> ()
    %cst_17 = arith.constant dense<0.000000e+00> : vector<8x16x128xf32>
    %60 = tpu.matmul %57, %59, %cst_17 {dimension_numbers = #tpu.dot_dimension_numbers<[2], [1], [1], [2], [0, 0, 0, 1, 1, 2], [0], [0]>} : vector<8x16x16xbf16>, vector<8x16x128xbf16>, vector<8x16x128xf32> -> vector<8x16x128xf32>
    "tpu.trace_stop"() : () -> ()
    %61 = arith.addf %35, %60 : vector<8x16x128xf32>
    %c32_i32_18 = arith.constant 32 : i32
    %62 = vector.broadcast %c32_i32_18 : i32 to vector<1x1x128xi32>
    %63 = arith.cmpi sge, %15, %62 : vector<1x1x128xi32>
    %c64_i32 = arith.constant 64 : i32
    %64 = vector.broadcast %c64_i32 : i32 to vector<1x1x128xi32>
    %65 = arith.cmpi slt, %15, %64 : vector<1x1x128xi32>
    %66 = arith.andi %63, %65 : vector<1x1x128xi1>
    %67 = arith.extui %66 : vector<1x1x128xi1> to vector<1x1x128xi32>
    %68 = arith.sitofp %67 : vector<1x1x128xi32> to vector<1x1x128xf32>
    %69 = arith.truncf %68 : vector<1x1x128xf32> to vector<1x1x128xbf16>
    %70 = vector.broadcast %69 : vector<1x1x128xbf16> to vector<8x16x128xbf16>
    %71 = arith.mulf %31, %70 : vector<8x16x128xbf16>
    "tpu.trace_start"() <{level = 10 : i32, message = "bqd,bkd->bqk"}> : () -> ()
    %cst_19 = arith.constant dense<0.000000e+00> : vector<8x16x16xf32>
    %72 = tpu.matmul %28, %71, %cst_19 {dimension_numbers = #tpu.dot_dimension_numbers<[2], [2], [1], [1], [0, 0, 0, 1, 1, 1], [0], [0]>} : vector<8x16x128xbf16>, vector<8x16x128xbf16>, vector<8x16x16xf32> -> vector<8x16x16xf32>
    "tpu.trace_stop"() : () -> ()
    %cst_20 = arith.constant dense<0xFF800000> : vector<8x16xf32>
    %73 = vector.multi_reduction <maximumf>, %72, %cst_20 [2] : vector<8x16x16xf32> to vector<8x16xf32>
    %74 = vector.shape_cast %73 : vector<8x16xf32> to vector<8x16x1xf32>
    %75 = vector.broadcast %74 : vector<8x16x1xf32> to vector<8x16x16xf32>
    %76 = arith.subf %72, %75 : vector<8x16x16xf32>
    %77 = math.exp %76 : vector<8x16x16xf32>
    %cst_21 = arith.constant dense<0.000000e+00> : vector<8x16xf32>
    %78 = vector.multi_reduction <add>, %77, %cst_21 [2] : vector<8x16x16xf32> to vector<8x16xf32>
    %79 = vector.shape_cast %78 : vector<8x16xf32> to vector<8x16x1xf32>
    %80 = tpu.reciprocal %79 {approx = true} : vector<8x16x1xf32> -> vector<8x16x1xf32>
    %81 = vector.broadcast %80 : vector<8x16x1xf32> to vector<8x16x16xf32>
    %82 = arith.mulf %77, %81 : vector<8x16x16xf32>
    %83 = arith.truncf %82 : vector<8x16x16xf32> to vector<8x16x16xbf16>
    %84 = vector.broadcast %69 : vector<1x1x128xbf16> to vector<8x16x128xbf16>
    %85 = arith.mulf %34, %84 : vector<8x16x128xbf16>
    "tpu.trace_start"() <{level = 10 : i32, message = "bqk,bkd->bqd"}> : () -> ()
    %cst_22 = arith.constant dense<0.000000e+00> : vector<8x16x128xf32>
    %86 = tpu.matmul %83, %85, %cst_22 {dimension_numbers = #tpu.dot_dimension_numbers<[2], [1], [1], [2], [0, 0, 0, 1, 1, 2], [0], [0]>} : vector<8x16x16xbf16>, vector<8x16x128xbf16>, vector<8x16x128xf32> -> vector<8x16x128xf32>
    "tpu.trace_stop"() : () -> ()
    %87 = arith.addf %61, %86 : vector<8x16x128xf32>
    %c64_i32_23 = arith.constant 64 : i32
    %88 = vector.broadcast %c64_i32_23 : i32 to vector<1x1x128xi32>
    %89 = arith.cmpi sge, %15, %88 : vector<1x1x128xi32>
    %c96_i32 = arith.constant 96 : i32
    %90 = vector.broadcast %c96_i32 : i32 to vector<1x1x128xi32>
    %91 = arith.cmpi slt, %15, %90 : vector<1x1x128xi32>
    %92 = arith.andi %89, %91 : vector<1x1x128xi1>
    %93 = arith.extui %92 : vector<1x1x128xi1> to vector<1x1x128xi32>
    %94 = arith.sitofp %93 : vector<1x1x128xi32> to vector<1x1x128xf32>
    %95 = arith.truncf %94 : vector<1x1x128xf32> to vector<1x1x128xbf16>
    %96 = vector.broadcast %95 : vector<1x1x128xbf16> to vector<8x16x128xbf16>
    %97 = arith.mulf %31, %96 : vector<8x16x128xbf16>
    "tpu.trace_start"() <{level = 10 : i32, message = "bqd,bkd->bqk"}> : () -> ()
    %cst_24 = arith.constant dense<0.000000e+00> : vector<8x16x16xf32>
    %98 = tpu.matmul %28, %97, %cst_24 {dimension_numbers = #tpu.dot_dimension_numbers<[2], [2], [1], [1], [0, 0, 0, 1, 1, 1], [0], [0]>} : vector<8x16x128xbf16>, vector<8x16x128xbf16>, vector<8x16x16xf32> -> vector<8x16x16xf32>
    "tpu.trace_stop"() : () -> ()
    %cst_25 = arith.constant dense<0xFF800000> : vector<8x16xf32>
    %99 = vector.multi_reduction <maximumf>, %98, %cst_25 [2] : vector<8x16x16xf32> to vector<8x16xf32>
    %100 = vector.shape_cast %99 : vector<8x16xf32> to vector<8x16x1xf32>
    %101 = vector.broadcast %100 : vector<8x16x1xf32> to vector<8x16x16xf32>
    %102 = arith.subf %98, %101 : vector<8x16x16xf32>
    %103 = math.exp %102 : vector<8x16x16xf32>
    %cst_26 = arith.constant dense<0.000000e+00> : vector<8x16xf32>
    %104 = vector.multi_reduction <add>, %103, %cst_26 [2] : vector<8x16x16xf32> to vector<8x16xf32>
    %105 = vector.shape_cast %104 : vector<8x16xf32> to vector<8x16x1xf32>
    %106 = tpu.reciprocal %105 {approx = true} : vector<8x16x1xf32> -> vector<8x16x1xf32>
    %107 = vector.broadcast %106 : vector<8x16x1xf32> to vector<8x16x16xf32>
    %108 = arith.mulf %103, %107 : vector<8x16x16xf32>
    %109 = arith.truncf %108 : vector<8x16x16xf32> to vector<8x16x16xbf16>
    %110 = vector.broadcast %95 : vector<1x1x128xbf16> to vector<8x16x128xbf16>
    %111 = arith.mulf %34, %110 : vector<8x16x128xbf16>
    "tpu.trace_start"() <{level = 10 : i32, message = "bqk,bkd->bqd"}> : () -> ()
    %cst_27 = arith.constant dense<0.000000e+00> : vector<8x16x128xf32>
    %112 = tpu.matmul %109, %111, %cst_27 {dimension_numbers = #tpu.dot_dimension_numbers<[2], [1], [1], [2], [0, 0, 0, 1, 1, 2], [0], [0]>} : vector<8x16x16xbf16>, vector<8x16x128xbf16>, vector<8x16x128xf32> -> vector<8x16x128xf32>
    "tpu.trace_stop"() : () -> ()
    %113 = arith.addf %87, %112 : vector<8x16x128xf32>
    %c96_i32_28 = arith.constant 96 : i32
    %114 = vector.broadcast %c96_i32_28 : i32 to vector<1x1x128xi32>
    %115 = arith.cmpi sge, %15, %114 : vector<1x1x128xi32>
    %c128_i32 = arith.constant 128 : i32
    %116 = vector.broadcast %c128_i32 : i32 to vector<1x1x128xi32>
    %117 = arith.cmpi slt, %15, %116 : vector<1x1x128xi32>
    %118 = arith.andi %115, %117 : vector<1x1x128xi1>
    %119 = arith.extui %118 : vector<1x1x128xi1> to vector<1x1x128xi32>
    %120 = arith.sitofp %119 : vector<1x1x128xi32> to vector<1x1x128xf32>
    %121 = arith.truncf %120 : vector<1x1x128xf32> to vector<1x1x128xbf16>
    %122 = vector.broadcast %121 : vector<1x1x128xbf16> to vector<8x16x128xbf16>
    %123 = arith.mulf %31, %122 : vector<8x16x128xbf16>
    "tpu.trace_start"() <{level = 10 : i32, message = "bqd,bkd->bqk"}> : () -> ()
    %cst_29 = arith.constant dense<0.000000e+00> : vector<8x16x16xf32>
    %124 = tpu.matmul %28, %123, %cst_29 {dimension_numbers = #tpu.dot_dimension_numbers<[2], [2], [1], [1], [0, 0, 0, 1, 1, 1], [0], [0]>} : vector<8x16x128xbf16>, vector<8x16x128xbf16>, vector<8x16x16xf32> -> vector<8x16x16xf32>
    "tpu.trace_stop"() : () -> ()
    %cst_30 = arith.constant dense<0xFF800000> : vector<8x16xf32>
    %125 = vector.multi_reduction <maximumf>, %124, %cst_30 [2] : vector<8x16x16xf32> to vector<8x16xf32>
    %126 = vector.shape_cast %125 : vector<8x16xf32> to vector<8x16x1xf32>
    %127 = vector.broadcast %126 : vector<8x16x1xf32> to vector<8x16x16xf32>
    %128 = arith.subf %124, %127 : vector<8x16x16xf32>
    %129 = math.exp %128 : vector<8x16x16xf32>
    %cst_31 = arith.constant dense<0.000000e+00> : vector<8x16xf32>
    %130 = vector.multi_reduction <add>, %129, %cst_31 [2] : vector<8x16x16xf32> to vector<8x16xf32>
    %131 = vector.shape_cast %130 : vector<8x16xf32> to vector<8x16x1xf32>
    %132 = tpu.reciprocal %131 {approx = true} : vector<8x16x1xf32> -> vector<8x16x1xf32>
    %133 = vector.broadcast %132 : vector<8x16x1xf32> to vector<8x16x16xf32>
    %134 = arith.mulf %129, %133 : vector<8x16x16xf32>
    %135 = arith.truncf %134 : vector<8x16x16xf32> to vector<8x16x16xbf16>
    %136 = vector.broadcast %121 : vector<1x1x128xbf16> to vector<8x16x128xbf16>
    %137 = arith.mulf %34, %136 : vector<8x16x128xbf16>
    "tpu.trace_start"() <{level = 10 : i32, message = "bqk,bkd->bqd"}> : () -> ()
    %cst_32 = arith.constant dense<0.000000e+00> : vector<8x16x128xf32>
    %138 = tpu.matmul %135, %137, %cst_32 {dimension_numbers = #tpu.dot_dimension_numbers<[2], [1], [1], [2], [0, 0, 0, 1, 1, 2], [0], [0]>} : vector<8x16x16xbf16>, vector<8x16x128xbf16>, vector<8x16x128xf32> -> vector<8x16x128xf32>
    "tpu.trace_stop"() : () -> ()
    %139 = arith.addf %113, %138 : vector<8x16x128xf32>
    %140 = vector.shape_cast %139 : vector<8x16x128xf32> to vector<128x128xf32>
    %141 = arith.truncf %140 : vector<128x128xf32> to vector<128x128xbf16>
    %c0_33 = arith.constant 0 : index
    %c0_34 = arith.constant 0 : index
    %c0_35 = arith.constant 0 : index
    %142 = vector.load %arg6[%c0_33, %c0_34, %c0_35] : memref<2x128x128xbf16, #tpu.memory_space<vmem>>, vector<1x128x128xbf16>
    %143 = vector.shape_cast %142 : vector<1x128x128xbf16> to vector<128x128xbf16>
    %cst_36 = arith.constant dense<0.000000e+00> : vector<128x128xf32>
    %144 = tpu.matmul %141, %143, %cst_36 {dimension_numbers = #tpu.dot_dimension_numbers<[1], [0], [0], [1], [0, 0, 1, 1], [], []>} : vector<128x128xbf16>, vector<128x128xbf16>, vector<128x128xf32> -> vector<128x128xf32>
    %c0_37 = arith.constant 0 : index
    %c0_38 = arith.constant 0 : index
    %c0_39 = arith.constant 0 : index
    %145 = vector.load %arg7[%c0_37, %c0_38, %c0_39] : memref<2x1x128xf32, #tpu.memory_space<vmem>>, vector<1x1x128xf32>
    %146 = vector.shape_cast %145 : vector<1x1x128xf32> to vector<1x128xf32>
    %147 = vector.broadcast %146 : vector<1x128xf32> to vector<128x128xf32>
    %148 = arith.addf %144, %147 : vector<128x128xf32>
    %149 = arith.addf %14, %148 : vector<128x128xf32>
    %c0_40 = arith.constant 0 : index
    %c0_41 = arith.constant 0 : index
    %c0_42 = arith.constant 0 : index
    %150 = vector.load %arg8[%c0_40, %c0_41, %c0_42] : memref<2x1x128xf32, #tpu.memory_space<vmem>>, vector<1x1x128xf32>
    %151 = vector.shape_cast %150 : vector<1x1x128xf32> to vector<1x128xf32>
    %c0_43 = arith.constant 0 : index
    %c0_44 = arith.constant 0 : index
    %c0_45 = arith.constant 0 : index
    %152 = vector.load %arg9[%c0_43, %c0_44, %c0_45] : memref<2x1x128xf32, #tpu.memory_space<vmem>>, vector<1x1x128xf32>
    %153 = vector.shape_cast %152 : vector<1x1x128xf32> to vector<1x128xf32>
    %cst_46 = arith.constant dense<0.000000e+00> : vector<128xf32>
    %154 = vector.multi_reduction <add>, %149, %cst_46 [1] : vector<128x128xf32> to vector<128xf32>
    %155 = vector.shape_cast %154 : vector<128xf32> to vector<128x1xf32>
    %cst_47 = arith.constant 1.280000e+02 : f32
    %156 = vector.broadcast %cst_47 : f32 to vector<128x1xf32>
    %157 = arith.divf %155, %156 : vector<128x1xf32>
    %158 = vector.broadcast %157 : vector<128x1xf32> to vector<128x128xf32>
    %159 = arith.subf %149, %158 : vector<128x128xf32>
    %160 = arith.mulf %159, %159 : vector<128x128xf32>
    %cst_48 = arith.constant dense<0.000000e+00> : vector<128xf32>
    %161 = vector.multi_reduction <add>, %160, %cst_48 [1] : vector<128x128xf32> to vector<128xf32>
    %162 = vector.shape_cast %161 : vector<128xf32> to vector<128x1xf32>
    %cst_49 = arith.constant 1.280000e+02 : f32
    %163 = vector.broadcast %cst_49 : f32 to vector<128x1xf32>
    %164 = arith.divf %162, %163 : vector<128x1xf32>
    %cst_50 = arith.constant 9.99999974E-6 : f32
    %165 = vector.broadcast %cst_50 : f32 to vector<128x1xf32>
    %166 = arith.addf %164, %165 : vector<128x1xf32>
    %167 = math.rsqrt %166 : vector<128x1xf32>
    %168 = vector.broadcast %167 : vector<128x1xf32> to vector<128x128xf32>
    %169 = arith.mulf %159, %168 : vector<128x128xf32>
    %170 = vector.broadcast %151 : vector<1x128xf32> to vector<128x128xf32>
    %171 = arith.mulf %169, %170 : vector<128x128xf32>
    %172 = vector.broadcast %153 : vector<1x128xf32> to vector<128x128xf32>
    %173 = arith.addf %171, %172 : vector<128x128xf32>
    %174 = arith.truncf %173 : vector<128x128xf32> to vector<128x128xbf16>
    %c0_51 = arith.constant 0 : index
    %c0_52 = arith.constant 0 : index
    %c0_53 = arith.constant 0 : index
    %175 = vector.load %arg12[%c0_51, %c0_52, %c0_53] : memref<2x128x512xbf16, #tpu.memory_space<vmem>>, vector<1x128x512xbf16>
    %176 = vector.shape_cast %175 : vector<1x128x512xbf16> to vector<128x512xbf16>
    %cst_54 = arith.constant dense<0.000000e+00> : vector<128x512xf32>
    %177 = tpu.matmul %174, %176, %cst_54 {dimension_numbers = #tpu.dot_dimension_numbers<[1], [0], [0], [1], [0, 0, 1, 1], [], []>} : vector<128x128xbf16>, vector<128x512xbf16>, vector<128x512xf32> -> vector<128x512xf32>
    %c0_55 = arith.constant 0 : index
    %c0_56 = arith.constant 0 : index
    %c0_57 = arith.constant 0 : index
    %178 = vector.load %arg13[%c0_55, %c0_56, %c0_57] : memref<2x1x512xf32, #tpu.memory_space<vmem>>, vector<1x1x512xf32>
    %179 = vector.shape_cast %178 : vector<1x1x512xf32> to vector<1x512xf32>
    %180 = vector.broadcast %179 : vector<1x512xf32> to vector<128x512xf32>
    %181 = arith.addf %177, %180 : vector<128x512xf32>
    %cst_58 = arith.constant 0.000000e+00 : f32
    %182 = vector.broadcast %cst_58 : f32 to vector<128x512xf32>
    %183 = arith.maximumf %181, %182 : vector<128x512xf32>
    %184 = arith.truncf %183 : vector<128x512xf32> to vector<128x512xbf16>
    %c0_59 = arith.constant 0 : index
    %c0_60 = arith.constant 0 : index
    %c0_61 = arith.constant 0 : index
    %185 = vector.load %arg14[%c0_59, %c0_60, %c0_61] : memref<2x512x128xbf16, #tpu.memory_space<vmem>>, vector<1x512x128xbf16>
    %186 = vector.shape_cast %185 : vector<1x512x128xbf16> to vector<512x128xbf16>
    %cst_62 = arith.constant dense<0.000000e+00> : vector<128x128xf32>
    %187 = tpu.matmul %184, %186, %cst_62 {dimension_numbers = #tpu.dot_dimension_numbers<[1], [0], [0], [1], [0, 0, 1, 1], [], []>} : vector<128x512xbf16>, vector<512x128xbf16>, vector<128x128xf32> -> vector<128x128xf32>
    %c0_63 = arith.constant 0 : index
    %c0_64 = arith.constant 0 : index
    %c0_65 = arith.constant 0 : index
    %188 = vector.load %arg15[%c0_63, %c0_64, %c0_65] : memref<2x1x128xf32, #tpu.memory_space<vmem>>, vector<1x1x128xf32>
    %189 = vector.shape_cast %188 : vector<1x1x128xf32> to vector<1x128xf32>
    %190 = vector.broadcast %189 : vector<1x128xf32> to vector<128x128xf32>
    %191 = arith.addf %187, %190 : vector<128x128xf32>
    %192 = arith.addf %173, %191 : vector<128x128xf32>
    %c0_66 = arith.constant 0 : index
    %c0_67 = arith.constant 0 : index
    %c0_68 = arith.constant 0 : index
    %193 = vector.load %arg10[%c0_66, %c0_67, %c0_68] : memref<2x1x128xf32, #tpu.memory_space<vmem>>, vector<1x1x128xf32>
    %194 = vector.shape_cast %193 : vector<1x1x128xf32> to vector<1x128xf32>
    %c0_69 = arith.constant 0 : index
    %c0_70 = arith.constant 0 : index
    %c0_71 = arith.constant 0 : index
    %195 = vector.load %arg11[%c0_69, %c0_70, %c0_71] : memref<2x1x128xf32, #tpu.memory_space<vmem>>, vector<1x1x128xf32>
    %196 = vector.shape_cast %195 : vector<1x1x128xf32> to vector<1x128xf32>
    %cst_72 = arith.constant dense<0.000000e+00> : vector<128xf32>
    %197 = vector.multi_reduction <add>, %192, %cst_72 [1] : vector<128x128xf32> to vector<128xf32>
    %198 = vector.shape_cast %197 : vector<128xf32> to vector<128x1xf32>
    %cst_73 = arith.constant 1.280000e+02 : f32
    %199 = vector.broadcast %cst_73 : f32 to vector<128x1xf32>
    %200 = arith.divf %198, %199 : vector<128x1xf32>
    %201 = vector.broadcast %200 : vector<128x1xf32> to vector<128x128xf32>
    %202 = arith.subf %192, %201 : vector<128x128xf32>
    %203 = arith.mulf %202, %202 : vector<128x128xf32>
    %cst_74 = arith.constant dense<0.000000e+00> : vector<128xf32>
    %204 = vector.multi_reduction <add>, %203, %cst_74 [1] : vector<128x128xf32> to vector<128xf32>
    %205 = vector.shape_cast %204 : vector<128xf32> to vector<128x1xf32>
    %cst_75 = arith.constant 1.280000e+02 : f32
    %206 = vector.broadcast %cst_75 : f32 to vector<128x1xf32>
    %207 = arith.divf %205, %206 : vector<128x1xf32>
    %cst_76 = arith.constant 9.99999974E-6 : f32
    %208 = vector.broadcast %cst_76 : f32 to vector<128x1xf32>
    %209 = arith.addf %207, %208 : vector<128x1xf32>
    %210 = math.rsqrt %209 : vector<128x1xf32>
    %211 = vector.broadcast %210 : vector<128x1xf32> to vector<128x128xf32>
    %212 = arith.mulf %202, %211 : vector<128x128xf32>
    %213 = vector.broadcast %194 : vector<1x128xf32> to vector<128x128xf32>
    %214 = arith.mulf %212, %213 : vector<128x128xf32>
    %215 = vector.broadcast %196 : vector<1x128xf32> to vector<128x128xf32>
    %216 = arith.addf %214, %215 : vector<128x128xf32>
    %217 = arith.truncf %216 : vector<128x128xf32> to vector<128x128xbf16>
    %c1 = arith.constant 1 : index
    %c0_77 = arith.constant 0 : index
    %c0_78 = arith.constant 0 : index
    %218 = vector.load %arg4[%c1, %c0_77, %c0_78] : memref<2x128x384xbf16, #tpu.memory_space<vmem>>, vector<1x128x384xbf16>
    %219 = vector.shape_cast %218 : vector<1x128x384xbf16> to vector<128x384xbf16>
    %cst_79 = arith.constant dense<0.000000e+00> : vector<128x384xf32>
    %220 = tpu.matmul %217, %219, %cst_79 {dimension_numbers = #tpu.dot_dimension_numbers<[1], [0], [0], [1], [0, 0, 1, 1], [], []>} : vector<128x128xbf16>, vector<128x384xbf16>, vector<128x384xf32> -> vector<128x384xf32>
    %c1_80 = arith.constant 1 : index
    %c0_81 = arith.constant 0 : index
    %c0_82 = arith.constant 0 : index
    %221 = vector.load %arg5[%c1_80, %c0_81, %c0_82] : memref<2x1x384xf32, #tpu.memory_space<vmem>>, vector<1x1x384xf32>
    %222 = vector.shape_cast %221 : vector<1x1x384xf32> to vector<1x384xf32>
    %223 = vector.broadcast %222 : vector<1x384xf32> to vector<128x384xf32>
    %224 = arith.addf %220, %223 : vector<128x384xf32>
    %225 = vector.extract_strided_slice %224 {offsets = [0, 0], sizes = [128, 128], strides = [1, 1]} : vector<128x384xf32> to vector<128x128xf32>
    %cst_83 = arith.constant 0.176776692 : f32
    %226 = vector.broadcast %cst_83 : f32 to vector<128x128xf32>
    %227 = arith.mulf %225, %226 : vector<128x128xf32>
    %228 = vector.shape_cast %227 : vector<128x128xf32> to vector<8x16x128xf32>
    %229 = arith.truncf %228 : vector<8x16x128xf32> to vector<8x16x128xbf16>
    %230 = vector.extract_strided_slice %224 {offsets = [0, 128], sizes = [128, 128], strides = [1, 1]} : vector<128x384xf32> to vector<128x128xf32>
    %231 = vector.shape_cast %230 : vector<128x128xf32> to vector<8x16x128xf32>
    %232 = arith.truncf %231 : vector<8x16x128xf32> to vector<8x16x128xbf16>
    %233 = vector.extract_strided_slice %224 {offsets = [0, 256], sizes = [128, 128], strides = [1, 1]} : vector<128x384xf32> to vector<128x128xf32>
    %234 = vector.shape_cast %233 : vector<128x128xf32> to vector<8x16x128xf32>
    %235 = arith.truncf %234 : vector<8x16x128xf32> to vector<8x16x128xbf16>
    %cst_84 = arith.constant 0.000000e+00 : f32
    %236 = vector.broadcast %cst_84 : f32 to vector<8x16x128xf32>
    %c0_i32_85 = arith.constant 0 : i32
    %237 = vector.broadcast %c0_i32_85 : i32 to vector<1x1x128xi32>
    %238 = arith.cmpi sge, %15, %237 : vector<1x1x128xi32>
    %c32_i32_86 = arith.constant 32 : i32
    %239 = vector.broadcast %c32_i32_86 : i32 to vector<1x1x128xi32>
    %240 = arith.cmpi slt, %15, %239 : vector<1x1x128xi32>
    %241 = arith.andi %238, %240 : vector<1x1x128xi1>
    %242 = arith.extui %241 : vector<1x1x128xi1> to vector<1x1x128xi32>
    %243 = arith.sitofp %242 : vector<1x1x128xi32> to vector<1x1x128xf32>
    %244 = arith.truncf %243 : vector<1x1x128xf32> to vector<1x1x128xbf16>
    %245 = vector.broadcast %244 : vector<1x1x128xbf16> to vector<8x16x128xbf16>
    %246 = arith.mulf %232, %245 : vector<8x16x128xbf16>
    "tpu.trace_start"() <{level = 10 : i32, message = "bqd,bkd->bqk"}> : () -> ()
    %cst_87 = arith.constant dense<0.000000e+00> : vector<8x16x16xf32>
    %247 = tpu.matmul %229, %246, %cst_87 {dimension_numbers = #tpu.dot_dimension_numbers<[2], [2], [1], [1], [0, 0, 0, 1, 1, 1], [0], [0]>} : vector<8x16x128xbf16>, vector<8x16x128xbf16>, vector<8x16x16xf32> -> vector<8x16x16xf32>
    "tpu.trace_stop"() : () -> ()
    %cst_88 = arith.constant dense<0xFF800000> : vector<8x16xf32>
    %248 = vector.multi_reduction <maximumf>, %247, %cst_88 [2] : vector<8x16x16xf32> to vector<8x16xf32>
    %249 = vector.shape_cast %248 : vector<8x16xf32> to vector<8x16x1xf32>
    %250 = vector.broadcast %249 : vector<8x16x1xf32> to vector<8x16x16xf32>
    %251 = arith.subf %247, %250 : vector<8x16x16xf32>
    %252 = math.exp %251 : vector<8x16x16xf32>
    %cst_89 = arith.constant dense<0.000000e+00> : vector<8x16xf32>
    %253 = vector.multi_reduction <add>, %252, %cst_89 [2] : vector<8x16x16xf32> to vector<8x16xf32>
    %254 = vector.shape_cast %253 : vector<8x16xf32> to vector<8x16x1xf32>
    %255 = tpu.reciprocal %254 {approx = true} : vector<8x16x1xf32> -> vector<8x16x1xf32>
    %256 = vector.broadcast %255 : vector<8x16x1xf32> to vector<8x16x16xf32>
    %257 = arith.mulf %252, %256 : vector<8x16x16xf32>
    %258 = arith.truncf %257 : vector<8x16x16xf32> to vector<8x16x16xbf16>
    %259 = vector.broadcast %244 : vector<1x1x128xbf16> to vector<8x16x128xbf16>
    %260 = arith.mulf %235, %259 : vector<8x16x128xbf16>
    "tpu.trace_start"() <{level = 10 : i32, message = "bqk,bkd->bqd"}> : () -> ()
    %cst_90 = arith.constant dense<0.000000e+00> : vector<8x16x128xf32>
    %261 = tpu.matmul %258, %260, %cst_90 {dimension_numbers = #tpu.dot_dimension_numbers<[2], [1], [1], [2], [0, 0, 0, 1, 1, 2], [0], [0]>} : vector<8x16x16xbf16>, vector<8x16x128xbf16>, vector<8x16x128xf32> -> vector<8x16x128xf32>
    "tpu.trace_stop"() : () -> ()
    %262 = arith.addf %236, %261 : vector<8x16x128xf32>
    %c32_i32_91 = arith.constant 32 : i32
    %263 = vector.broadcast %c32_i32_91 : i32 to vector<1x1x128xi32>
    %264 = arith.cmpi sge, %15, %263 : vector<1x1x128xi32>
    %c64_i32_92 = arith.constant 64 : i32
    %265 = vector.broadcast %c64_i32_92 : i32 to vector<1x1x128xi32>
    %266 = arith.cmpi slt, %15, %265 : vector<1x1x128xi32>
    %267 = arith.andi %264, %266 : vector<1x1x128xi1>
    %268 = arith.extui %267 : vector<1x1x128xi1> to vector<1x1x128xi32>
    %269 = arith.sitofp %268 : vector<1x1x128xi32> to vector<1x1x128xf32>
    %270 = arith.truncf %269 : vector<1x1x128xf32> to vector<1x1x128xbf16>
    %271 = vector.broadcast %270 : vector<1x1x128xbf16> to vector<8x16x128xbf16>
    %272 = arith.mulf %232, %271 : vector<8x16x128xbf16>
    "tpu.trace_start"() <{level = 10 : i32, message = "bqd,bkd->bqk"}> : () -> ()
    %cst_93 = arith.constant dense<0.000000e+00> : vector<8x16x16xf32>
    %273 = tpu.matmul %229, %272, %cst_93 {dimension_numbers = #tpu.dot_dimension_numbers<[2], [2], [1], [1], [0, 0, 0, 1, 1, 1], [0], [0]>} : vector<8x16x128xbf16>, vector<8x16x128xbf16>, vector<8x16x16xf32> -> vector<8x16x16xf32>
    "tpu.trace_stop"() : () -> ()
    %cst_94 = arith.constant dense<0xFF800000> : vector<8x16xf32>
    %274 = vector.multi_reduction <maximumf>, %273, %cst_94 [2] : vector<8x16x16xf32> to vector<8x16xf32>
    %275 = vector.shape_cast %274 : vector<8x16xf32> to vector<8x16x1xf32>
    %276 = vector.broadcast %275 : vector<8x16x1xf32> to vector<8x16x16xf32>
    %277 = arith.subf %273, %276 : vector<8x16x16xf32>
    %278 = math.exp %277 : vector<8x16x16xf32>
    %cst_95 = arith.constant dense<0.000000e+00> : vector<8x16xf32>
    %279 = vector.multi_reduction <add>, %278, %cst_95 [2] : vector<8x16x16xf32> to vector<8x16xf32>
    %280 = vector.shape_cast %279 : vector<8x16xf32> to vector<8x16x1xf32>
    %281 = tpu.reciprocal %280 {approx = true} : vector<8x16x1xf32> -> vector<8x16x1xf32>
    %282 = vector.broadcast %281 : vector<8x16x1xf32> to vector<8x16x16xf32>
    %283 = arith.mulf %278, %282 : vector<8x16x16xf32>
    %284 = arith.truncf %283 : vector<8x16x16xf32> to vector<8x16x16xbf16>
    %285 = vector.broadcast %270 : vector<1x1x128xbf16> to vector<8x16x128xbf16>
    %286 = arith.mulf %235, %285 : vector<8x16x128xbf16>
    "tpu.trace_start"() <{level = 10 : i32, message = "bqk,bkd->bqd"}> : () -> ()
    %cst_96 = arith.constant dense<0.000000e+00> : vector<8x16x128xf32>
    %287 = tpu.matmul %284, %286, %cst_96 {dimension_numbers = #tpu.dot_dimension_numbers<[2], [1], [1], [2], [0, 0, 0, 1, 1, 2], [0], [0]>} : vector<8x16x16xbf16>, vector<8x16x128xbf16>, vector<8x16x128xf32> -> vector<8x16x128xf32>
    "tpu.trace_stop"() : () -> ()
    %288 = arith.addf %262, %287 : vector<8x16x128xf32>
    %c64_i32_97 = arith.constant 64 : i32
    %289 = vector.broadcast %c64_i32_97 : i32 to vector<1x1x128xi32>
    %290 = arith.cmpi sge, %15, %289 : vector<1x1x128xi32>
    %c96_i32_98 = arith.constant 96 : i32
    %291 = vector.broadcast %c96_i32_98 : i32 to vector<1x1x128xi32>
    %292 = arith.cmpi slt, %15, %291 : vector<1x1x128xi32>
    %293 = arith.andi %290, %292 : vector<1x1x128xi1>
    %294 = arith.extui %293 : vector<1x1x128xi1> to vector<1x1x128xi32>
    %295 = arith.sitofp %294 : vector<1x1x128xi32> to vector<1x1x128xf32>
    %296 = arith.truncf %295 : vector<1x1x128xf32> to vector<1x1x128xbf16>
    %297 = vector.broadcast %296 : vector<1x1x128xbf16> to vector<8x16x128xbf16>
    %298 = arith.mulf %232, %297 : vector<8x16x128xbf16>
    "tpu.trace_start"() <{level = 10 : i32, message = "bqd,bkd->bqk"}> : () -> ()
    %cst_99 = arith.constant dense<0.000000e+00> : vector<8x16x16xf32>
    %299 = tpu.matmul %229, %298, %cst_99 {dimension_numbers = #tpu.dot_dimension_numbers<[2], [2], [1], [1], [0, 0, 0, 1, 1, 1], [0], [0]>} : vector<8x16x128xbf16>, vector<8x16x128xbf16>, vector<8x16x16xf32> -> vector<8x16x16xf32>
    "tpu.trace_stop"() : () -> ()
    %cst_100 = arith.constant dense<0xFF800000> : vector<8x16xf32>
    %300 = vector.multi_reduction <maximumf>, %299, %cst_100 [2] : vector<8x16x16xf32> to vector<8x16xf32>
    %301 = vector.shape_cast %300 : vector<8x16xf32> to vector<8x16x1xf32>
    %302 = vector.broadcast %301 : vector<8x16x1xf32> to vector<8x16x16xf32>
    %303 = arith.subf %299, %302 : vector<8x16x16xf32>
    %304 = math.exp %303 : vector<8x16x16xf32>
    %cst_101 = arith.constant dense<0.000000e+00> : vector<8x16xf32>
    %305 = vector.multi_reduction <add>, %304, %cst_101 [2] : vector<8x16x16xf32> to vector<8x16xf32>
    %306 = vector.shape_cast %305 : vector<8x16xf32> to vector<8x16x1xf32>
    %307 = tpu.reciprocal %306 {approx = true} : vector<8x16x1xf32> -> vector<8x16x1xf32>
    %308 = vector.broadcast %307 : vector<8x16x1xf32> to vector<8x16x16xf32>
    %309 = arith.mulf %304, %308 : vector<8x16x16xf32>
    %310 = arith.truncf %309 : vector<8x16x16xf32> to vector<8x16x16xbf16>
    %311 = vector.broadcast %296 : vector<1x1x128xbf16> to vector<8x16x128xbf16>
    %312 = arith.mulf %235, %311 : vector<8x16x128xbf16>
    "tpu.trace_start"() <{level = 10 : i32, message = "bqk,bkd->bqd"}> : () -> ()
    %cst_102 = arith.constant dense<0.000000e+00> : vector<8x16x128xf32>
    %313 = tpu.matmul %310, %312, %cst_102 {dimension_numbers = #tpu.dot_dimension_numbers<[2], [1], [1], [2], [0, 0, 0, 1, 1, 2], [0], [0]>} : vector<8x16x16xbf16>, vector<8x16x128xbf16>, vector<8x16x128xf32> -> vector<8x16x128xf32>
    "tpu.trace_stop"() : () -> ()
    %314 = arith.addf %288, %313 : vector<8x16x128xf32>
    %c96_i32_103 = arith.constant 96 : i32
    %315 = vector.broadcast %c96_i32_103 : i32 to vector<1x1x128xi32>
    %316 = arith.cmpi sge, %15, %315 : vector<1x1x128xi32>
    %c128_i32_104 = arith.constant 128 : i32
    %317 = vector.broadcast %c128_i32_104 : i32 to vector<1x1x128xi32>
    %318 = arith.cmpi slt, %15, %317 : vector<1x1x128xi32>
    %319 = arith.andi %316, %318 : vector<1x1x128xi1>
    %320 = arith.extui %319 : vector<1x1x128xi1> to vector<1x1x128xi32>
    %321 = arith.sitofp %320 : vector<1x1x128xi32> to vector<1x1x128xf32>
    %322 = arith.truncf %321 : vector<1x1x128xf32> to vector<1x1x128xbf16>
    %323 = vector.broadcast %322 : vector<1x1x128xbf16> to vector<8x16x128xbf16>
    %324 = arith.mulf %232, %323 : vector<8x16x128xbf16>
    "tpu.trace_start"() <{level = 10 : i32, message = "bqd,bkd->bqk"}> : () -> ()
    %cst_105 = arith.constant dense<0.000000e+00> : vector<8x16x16xf32>
    %325 = tpu.matmul %229, %324, %cst_105 {dimension_numbers = #tpu.dot_dimension_numbers<[2], [2], [1], [1], [0, 0, 0, 1, 1, 1], [0], [0]>} : vector<8x16x128xbf16>, vector<8x16x128xbf16>, vector<8x16x16xf32> -> vector<8x16x16xf32>
    "tpu.trace_stop"() : () -> ()
    %cst_106 = arith.constant dense<0xFF800000> : vector<8x16xf32>
    %326 = vector.multi_reduction <maximumf>, %325, %cst_106 [2] : vector<8x16x16xf32> to vector<8x16xf32>
    %327 = vector.shape_cast %326 : vector<8x16xf32> to vector<8x16x1xf32>
    %328 = vector.broadcast %327 : vector<8x16x1xf32> to vector<8x16x16xf32>
    %329 = arith.subf %325, %328 : vector<8x16x16xf32>
    %330 = math.exp %329 : vector<8x16x16xf32>
    %cst_107 = arith.constant dense<0.000000e+00> : vector<8x16xf32>
    %331 = vector.multi_reduction <add>, %330, %cst_107 [2] : vector<8x16x16xf32> to vector<8x16xf32>
    %332 = vector.shape_cast %331 : vector<8x16xf32> to vector<8x16x1xf32>
    %333 = tpu.reciprocal %332 {approx = true} : vector<8x16x1xf32> -> vector<8x16x1xf32>
    %334 = vector.broadcast %333 : vector<8x16x1xf32> to vector<8x16x16xf32>
    %335 = arith.mulf %330, %334 : vector<8x16x16xf32>
    %336 = arith.truncf %335 : vector<8x16x16xf32> to vector<8x16x16xbf16>
    %337 = vector.broadcast %322 : vector<1x1x128xbf16> to vector<8x16x128xbf16>
    %338 = arith.mulf %235, %337 : vector<8x16x128xbf16>
    "tpu.trace_start"() <{level = 10 : i32, message = "bqk,bkd->bqd"}> : () -> ()
    %cst_108 = arith.constant dense<0.000000e+00> : vector<8x16x128xf32>
    %339 = tpu.matmul %336, %338, %cst_108 {dimension_numbers = #tpu.dot_dimension_numbers<[2], [1], [1], [2], [0, 0, 0, 1, 1, 2], [0], [0]>} : vector<8x16x16xbf16>, vector<8x16x128xbf16>, vector<8x16x128xf32> -> vector<8x16x128xf32>
    "tpu.trace_stop"() : () -> ()
    %340 = arith.addf %314, %339 : vector<8x16x128xf32>
    %341 = vector.shape_cast %340 : vector<8x16x128xf32> to vector<128x128xf32>
    %342 = arith.truncf %341 : vector<128x128xf32> to vector<128x128xbf16>
    %c1_109 = arith.constant 1 : index
    %c0_110 = arith.constant 0 : index
    %c0_111 = arith.constant 0 : index
    %343 = vector.load %arg6[%c1_109, %c0_110, %c0_111] : memref<2x128x128xbf16, #tpu.memory_space<vmem>>, vector<1x128x128xbf16>
    %344 = vector.shape_cast %343 : vector<1x128x128xbf16> to vector<128x128xbf16>
    %cst_112 = arith.constant dense<0.000000e+00> : vector<128x128xf32>
    %345 = tpu.matmul %342, %344, %cst_112 {dimension_numbers = #tpu.dot_dimension_numbers<[1], [0], [0], [1], [0, 0, 1, 1], [], []>} : vector<128x128xbf16>, vector<128x128xbf16>, vector<128x128xf32> -> vector<128x128xf32>
    %c1_113 = arith.constant 1 : index
    %c0_114 = arith.constant 0 : index
    %c0_115 = arith.constant 0 : index
    %346 = vector.load %arg7[%c1_113, %c0_114, %c0_115] : memref<2x1x128xf32, #tpu.memory_space<vmem>>, vector<1x1x128xf32>
    %347 = vector.shape_cast %346 : vector<1x1x128xf32> to vector<1x128xf32>
    %348 = vector.broadcast %347 : vector<1x128xf32> to vector<128x128xf32>
    %349 = arith.addf %345, %348 : vector<128x128xf32>
    %350 = arith.addf %216, %349 : vector<128x128xf32>
    %c1_116 = arith.constant 1 : index
    %c0_117 = arith.constant 0 : index
    %c0_118 = arith.constant 0 : index
    %351 = vector.load %arg8[%c1_116, %c0_117, %c0_118] : memref<2x1x128xf32, #tpu.memory_space<vmem>>, vector<1x1x128xf32>
    %352 = vector.shape_cast %351 : vector<1x1x128xf32> to vector<1x128xf32>
    %c1_119 = arith.constant 1 : index
    %c0_120 = arith.constant 0 : index
    %c0_121 = arith.constant 0 : index
    %353 = vector.load %arg9[%c1_119, %c0_120, %c0_121] : memref<2x1x128xf32, #tpu.memory_space<vmem>>, vector<1x1x128xf32>
    %354 = vector.shape_cast %353 : vector<1x1x128xf32> to vector<1x128xf32>
    %cst_122 = arith.constant dense<0.000000e+00> : vector<128xf32>
    %355 = vector.multi_reduction <add>, %350, %cst_122 [1] : vector<128x128xf32> to vector<128xf32>
    %356 = vector.shape_cast %355 : vector<128xf32> to vector<128x1xf32>
    %cst_123 = arith.constant 1.280000e+02 : f32
    %357 = vector.broadcast %cst_123 : f32 to vector<128x1xf32>
    %358 = arith.divf %356, %357 : vector<128x1xf32>
    %359 = vector.broadcast %358 : vector<128x1xf32> to vector<128x128xf32>
    %360 = arith.subf %350, %359 : vector<128x128xf32>
    %361 = arith.mulf %360, %360 : vector<128x128xf32>
    %cst_124 = arith.constant dense<0.000000e+00> : vector<128xf32>
    %362 = vector.multi_reduction <add>, %361, %cst_124 [1] : vector<128x128xf32> to vector<128xf32>
    %363 = vector.shape_cast %362 : vector<128xf32> to vector<128x1xf32>
    %cst_125 = arith.constant 1.280000e+02 : f32
    %364 = vector.broadcast %cst_125 : f32 to vector<128x1xf32>
    %365 = arith.divf %363, %364 : vector<128x1xf32>
    %cst_126 = arith.constant 9.99999974E-6 : f32
    %366 = vector.broadcast %cst_126 : f32 to vector<128x1xf32>
    %367 = arith.addf %365, %366 : vector<128x1xf32>
    %368 = math.rsqrt %367 : vector<128x1xf32>
    %369 = vector.broadcast %368 : vector<128x1xf32> to vector<128x128xf32>
    %370 = arith.mulf %360, %369 : vector<128x128xf32>
    %371 = vector.broadcast %352 : vector<1x128xf32> to vector<128x128xf32>
    %372 = arith.mulf %370, %371 : vector<128x128xf32>
    %373 = vector.broadcast %354 : vector<1x128xf32> to vector<128x128xf32>
    %374 = arith.addf %372, %373 : vector<128x128xf32>
    %375 = arith.truncf %374 : vector<128x128xf32> to vector<128x128xbf16>
    %c1_127 = arith.constant 1 : index
    %c0_128 = arith.constant 0 : index
    %c0_129 = arith.constant 0 : index
    %376 = vector.load %arg12[%c1_127, %c0_128, %c0_129] : memref<2x128x512xbf16, #tpu.memory_space<vmem>>, vector<1x128x512xbf16>
    %377 = vector.shape_cast %376 : vector<1x128x512xbf16> to vector<128x512xbf16>
    %cst_130 = arith.constant dense<0.000000e+00> : vector<128x512xf32>
    %378 = tpu.matmul %375, %377, %cst_130 {dimension_numbers = #tpu.dot_dimension_numbers<[1], [0], [0], [1], [0, 0, 1, 1], [], []>} : vector<128x128xbf16>, vector<128x512xbf16>, vector<128x512xf32> -> vector<128x512xf32>
    %c1_131 = arith.constant 1 : index
    %c0_132 = arith.constant 0 : index
    %c0_133 = arith.constant 0 : index
    %379 = vector.load %arg13[%c1_131, %c0_132, %c0_133] : memref<2x1x512xf32, #tpu.memory_space<vmem>>, vector<1x1x512xf32>
    %380 = vector.shape_cast %379 : vector<1x1x512xf32> to vector<1x512xf32>
    %381 = vector.broadcast %380 : vector<1x512xf32> to vector<128x512xf32>
    %382 = arith.addf %378, %381 : vector<128x512xf32>
    %cst_134 = arith.constant 0.000000e+00 : f32
    %383 = vector.broadcast %cst_134 : f32 to vector<128x512xf32>
    %384 = arith.maximumf %382, %383 : vector<128x512xf32>
    %385 = arith.truncf %384 : vector<128x512xf32> to vector<128x512xbf16>
    %c1_135 = arith.constant 1 : index
    %c0_136 = arith.constant 0 : index
    %c0_137 = arith.constant 0 : index
    %386 = vector.load %arg14[%c1_135, %c0_136, %c0_137] : memref<2x512x128xbf16, #tpu.memory_space<vmem>>, vector<1x512x128xbf16>
    %387 = vector.shape_cast %386 : vector<1x512x128xbf16> to vector<512x128xbf16>
    %cst_138 = arith.constant dense<0.000000e+00> : vector<128x128xf32>
    %388 = tpu.matmul %385, %387, %cst_138 {dimension_numbers = #tpu.dot_dimension_numbers<[1], [0], [0], [1], [0, 0, 1, 1], [], []>} : vector<128x512xbf16>, vector<512x128xbf16>, vector<128x128xf32> -> vector<128x128xf32>
    %c1_139 = arith.constant 1 : index
    %c0_140 = arith.constant 0 : index
    %c0_141 = arith.constant 0 : index
    %389 = vector.load %arg15[%c1_139, %c0_140, %c0_141] : memref<2x1x128xf32, #tpu.memory_space<vmem>>, vector<1x1x128xf32>
    %390 = vector.shape_cast %389 : vector<1x1x128xf32> to vector<1x128xf32>
    %391 = vector.broadcast %390 : vector<1x128xf32> to vector<128x128xf32>
    %392 = arith.addf %388, %391 : vector<128x128xf32>
    %393 = arith.addf %374, %392 : vector<128x128xf32>
    %c1_142 = arith.constant 1 : index
    %c0_143 = arith.constant 0 : index
    %c0_144 = arith.constant 0 : index
    %394 = vector.load %arg10[%c1_142, %c0_143, %c0_144] : memref<2x1x128xf32, #tpu.memory_space<vmem>>, vector<1x1x128xf32>
    %395 = vector.shape_cast %394 : vector<1x1x128xf32> to vector<1x128xf32>
    %c1_145 = arith.constant 1 : index
    %c0_146 = arith.constant 0 : index
    %c0_147 = arith.constant 0 : index
    %396 = vector.load %arg11[%c1_145, %c0_146, %c0_147] : memref<2x1x128xf32, #tpu.memory_space<vmem>>, vector<1x1x128xf32>
    %397 = vector.shape_cast %396 : vector<1x1x128xf32> to vector<1x128xf32>
    %cst_148 = arith.constant dense<0.000000e+00> : vector<128xf32>
    %398 = vector.multi_reduction <add>, %393, %cst_148 [1] : vector<128x128xf32> to vector<128xf32>
    %399 = vector.shape_cast %398 : vector<128xf32> to vector<128x1xf32>
    %cst_149 = arith.constant 1.280000e+02 : f32
    %400 = vector.broadcast %cst_149 : f32 to vector<128x1xf32>
    %401 = arith.divf %399, %400 : vector<128x1xf32>
    %402 = vector.broadcast %401 : vector<128x1xf32> to vector<128x128xf32>
    %403 = arith.subf %393, %402 : vector<128x128xf32>
    %404 = arith.mulf %403, %403 : vector<128x128xf32>
    %cst_150 = arith.constant dense<0.000000e+00> : vector<128xf32>
    %405 = vector.multi_reduction <add>, %404, %cst_150 [1] : vector<128x128xf32> to vector<128xf32>
    %406 = vector.shape_cast %405 : vector<128xf32> to vector<128x1xf32>
    %cst_151 = arith.constant 1.280000e+02 : f32
    %407 = vector.broadcast %cst_151 : f32 to vector<128x1xf32>
    %408 = arith.divf %406, %407 : vector<128x1xf32>
    %cst_152 = arith.constant 9.99999974E-6 : f32
    %409 = vector.broadcast %cst_152 : f32 to vector<128x1xf32>
    %410 = arith.addf %408, %409 : vector<128x1xf32>
    %411 = math.rsqrt %410 : vector<128x1xf32>
    %412 = vector.broadcast %411 : vector<128x1xf32> to vector<128x128xf32>
    %413 = arith.mulf %403, %412 : vector<128x128xf32>
    %414 = vector.broadcast %395 : vector<1x128xf32> to vector<128x128xf32>
    %415 = arith.mulf %413, %414 : vector<128x128xf32>
    %416 = vector.broadcast %397 : vector<1x128xf32> to vector<128x128xf32>
    %417 = arith.addf %415, %416 : vector<128x128xf32>
    %418 = tpu.iota {dimensions = array<i32: 1>} : vector<8x128xi32>
    %419 = tpu.iota {dimensions = array<i32: 0>} : vector<8x128xi32>
    %c16_i32 = arith.constant 16 : i32
    %420 = vector.broadcast %c16_i32 : i32 to vector<8x128xi32>
    %421 = arith.muli %419, %420 : vector<8x128xi32>
    %422 = arith.cmpi sge, %418, %421 : vector<8x128xi32>
    %c16_i32_153 = arith.constant 16 : i32
    %423 = vector.broadcast %c16_i32_153 : i32 to vector<8x128xi32>
    %424 = arith.muli %419, %423 : vector<8x128xi32>
    %c16_i32_154 = arith.constant 16 : i32
    %425 = vector.broadcast %c16_i32_154 : i32 to vector<8x128xi32>
    %426 = arith.addi %424, %425 : vector<8x128xi32>
    %427 = arith.cmpi slt, %418, %426 : vector<8x128xi32>
    %428 = arith.andi %422, %427 : vector<8x128xi1>
    %cst_155 = arith.constant 6.250000e-02 : f32
    %cst_156 = arith.constant 0.000000e+00 : f32
    %429 = vector.broadcast %cst_155 : f32 to vector<8x128xf32>
    %430 = vector.broadcast %cst_156 : f32 to vector<8x128xf32>
    %431 = arith.select %428, %429, %430 : vector<8x128xi1>, vector<8x128xf32>
    %cst_157 = arith.constant dense<0.000000e+00> : vector<8x128xf32>
    %432 = tpu.matmul %431, %417, %cst_157 {dimension_numbers = #tpu.dot_dimension_numbers<[1], [0], [0], [1], [0, 0, 1, 1], [], []>} : vector<8x128xf32>, vector<128x128xf32>, vector<8x128xf32> -> vector<8x128xf32>
    %433 = arith.truncf %432 : vector<8x128xf32> to vector<8x128xbf16>
    %c0_158 = arith.constant 0 : index
    %c0_159 = arith.constant 0 : index
    %434 = vector.load %arg16[%c0_158, %c0_159] : memref<128x128xbf16, #tpu.memory_space<vmem>>, vector<128x128xbf16>
    %cst_160 = arith.constant dense<0.000000e+00> : vector<8x128xf32>
    %435 = tpu.matmul %433, %434, %cst_160 {dimension_numbers = #tpu.dot_dimension_numbers<[1], [0], [0], [1], [0, 0, 1, 1], [], []>} : vector<8x128xbf16>, vector<128x128xbf16>, vector<8x128xf32> -> vector<8x128xf32>
    %c0_161 = arith.constant 0 : index
    %c0_162 = arith.constant 0 : index
    %436 = vector.load %arg17[%c0_161, %c0_162] : memref<1x128xf32, #tpu.memory_space<vmem>>, vector<1x128xf32>
    %437 = vector.broadcast %436 : vector<1x128xf32> to vector<8x128xf32>
    %438 = arith.addf %435, %437 : vector<8x128xf32>
    %c0_163 = arith.constant 0 : index
    %c0_164 = arith.constant 0 : index
    %439 = vector.load %arg18[%c0_163, %c0_164] : memref<8x128xf32, #tpu.memory_space<vmem>>, vector<8x128xf32>
    tpu.vector_store %arg18[%c0_163, %c0_164], %438 {strides = array<i32>} : memref<8x128xf32, #tpu.memory_space<vmem>>, vector<8x128xf32>,
    return
  }
  func.func @transform_0(%arg0: i32) -> (i32, i32) {
    %c0_i32 = arith.constant 0 : i32
    %c0_i32_0 = arith.constant 0 : i32
    return %arg0, %c0_i32 : i32, i32
  }
  func.func @transform_1(%arg0: i32) -> (i32, i32) {
    %c0_i32 = arith.constant 0 : i32
    %c0_i32_0 = arith.constant 0 : i32
    %c0_i32_1 = arith.constant 0 : i32
    return %c0_i32, %c0_i32_0 : i32, i32
  }
  func.func @transform_2(%arg0: i32) -> (i32, i32) {
    %c0_i32 = arith.constant 0 : i32
    %c0_i32_0 = arith.constant 0 : i32
    %c0_i32_1 = arith.constant 0 : i32
    return %c0_i32, %c0_i32_0 : i32, i32
  }
  func.func @transform_3(%arg0: i32) -> (i32, i32, i32) {
    %c0_i32 = arith.constant 0 : i32
    %c0_i32_0 = arith.constant 0 : i32
    %c0_i32_1 = arith.constant 0 : i32
    %c0_i32_2 = arith.constant 0 : i32
    return %c0_i32, %c0_i32_0, %c0_i32_1 : i32, i32, i32
  }
  func.func @transform_4(%arg0: i32) -> (i32, i32, i32) {
    %c0_i32 = arith.constant 0 : i32
    %c0_i32_0 = arith.constant 0 : i32
    %c0_i32_1 = arith.constant 0 : i32
    %c0_i32_2 = arith.constant 0 : i32
    return %c0_i32, %c0_i32_0, %c0_i32_1 : i32, i32, i32
  }
  func.func @transform_5(%arg0: i32) -> (i32, i32, i32) {
    %c0_i32 = arith.constant 0 : i32
    %c0_i32_0 = arith.constant 0 : i32
    %c0_i32_1 = arith.constant 0 : i32
    %c0_i32_2 = arith.constant 0 : i32
    return %c0_i32, %c0_i32_0, %c0_i32_1 : i32, i32, i32
  }
  func.func @transform_6(%arg0: i32) -> (i32, i32, i32) {
    %c0_i32 = arith.constant 0 : i32
    %c0_i32_0 = arith.constant 0 : i32
    %c0_i32_1 = arith.constant 0 : i32
    %c0_i32_2 = arith.constant 0 : i32
    return %c0_i32, %c0_i32_0, %c0_i32_1 : i32, i32, i32
  }
  func.func @transform_7(%arg0: i32) -> (i32, i32, i32) {
    %c0_i32 = arith.constant 0 : i32
    %c0_i32_0 = arith.constant 0 : i32
    %c0_i32_1 = arith.constant 0 : i32
    %c0_i32_2 = arith.constant 0 : i32
    return %c0_i32, %c0_i32_0, %c0_i32_1 : i32, i32, i32
  }
  func.func @transform_8(%arg0: i32) -> (i32, i32, i32) {
    %c0_i32 = arith.constant 0 : i32
    %c0_i32_0 = arith.constant 0 : i32
    %c0_i32_1 = arith.constant 0 : i32
    %c0_i32_2 = arith.constant 0 : i32
    return %c0_i32, %c0_i32_0, %c0_i32_1 : i32, i32, i32
  }
  func.func @transform_9(%arg0: i32) -> (i32, i32, i32) {
    %c0_i32 = arith.constant 0 : i32
    %c0_i32_0 = arith.constant 0 : i32
    %c0_i32_1 = arith.constant 0 : i32
    %c0_i32_2 = arith.constant 0 : i32
    return %c0_i32, %c0_i32_0, %c0_i32_1 : i32, i32, i32
  }
  func.func @transform_10(%arg0: i32) -> (i32, i32, i32) {
    %c0_i32 = arith.constant 0 : i32
    %c0_i32_0 = arith.constant 0 : i32
    %c0_i32_1 = arith.constant 0 : i32
    %c0_i32_2 = arith.constant 0 : i32
    return %c0_i32, %c0_i32_0, %c0_i32_1 : i32, i32, i32
  }
  func.func @transform_11(%arg0: i32) -> (i32, i32, i32) {
    %c0_i32 = arith.constant 0 : i32
    %c0_i32_0 = arith.constant 0 : i32
    %c0_i32_1 = arith.constant 0 : i32
    %c0_i32_2 = arith.constant 0 : i32
    return %c0_i32, %c0_i32_0, %c0_i32_1 : i32, i32, i32
  }
  func.func @transform_12(%arg0: i32) -> (i32, i32, i32) {
    %c0_i32 = arith.constant 0 : i32
    %c0_i32_0 = arith.constant 0 : i32
    %c0_i32_1 = arith.constant 0 : i32
    %c0_i32_2 = arith.constant 0 : i32
    return %c0_i32, %c0_i32_0, %c0_i32_1 : i32, i32, i32
  }
  func.func @transform_13(%arg0: i32) -> (i32, i32, i32) {
    %c0_i32 = arith.constant 0 : i32
    %c0_i32_0 = arith.constant 0 : i32
    %c0_i32_1 = arith.constant 0 : i32
    %c0_i32_2 = arith.constant 0 : i32
    return %c0_i32, %c0_i32_0, %c0_i32_1 : i32, i32, i32
  }
  func.func @transform_14(%arg0: i32) -> (i32, i32, i32) {
    %c0_i32 = arith.constant 0 : i32
    %c0_i32_0 = arith.constant 0 : i32
    %c0_i32_1 = arith.constant 0 : i32
    %c0_i32_2 = arith.constant 0 : i32
    return %c0_i32, %c0_i32_0, %c0_i32_1 : i32, i32, i32
  }
  func.func @transform_15(%arg0: i32) -> (i32, i32) {
    %c0_i32 = arith.constant 0 : i32
    %c0_i32_0 = arith.constant 0 : i32
    %c0_i32_1 = arith.constant 0 : i32
    return %c0_i32, %c0_i32_0 : i32, i32
  }
  func.func @transform_16(%arg0: i32) -> (i32, i32) {
    %c0_i32 = arith.constant 0 : i32
    %c0_i32_0 = arith.constant 0 : i32
    %c0_i32_1 = arith.constant 0 : i32
    return %c0_i32, %c0_i32_0 : i32, i32
  }
  func.func @transform_17(%arg0: i32) -> (i32, i32) {
    %c0_i32 = arith.constant 0 : i32
    %c0_i32_0 = arith.constant 0 : i32
    return %arg0, %c0_i32 : i32, i32
  }
}

</mosaic_0001>

<llo_original>
// kernel: transformer_forward.1
$region0: #{transformer_forward.1}
  #allocation0 [shape = 'u32[]', space=smem, size = 0x4, offset = 0x4, fixed_abs, tag = 'smem constant byte address 0x4 - core index']
  #allocation1 [shape = 'u32[72,128]{1,0:T(1,128)}', space=vmem, size = 0x9000, scoped, tag = 'internal scratch']
  %s0 = inlined_call_operand.vmem [shape: s32[256,1], index: 0, kind: input, shape index: {}]
  %s1 = inlined_call_operand.vmem [shape: bf16[128,128], index: 1, kind: input, shape index: {}]
  %s2 = inlined_call_operand.vmem [shape: f32[16,128], index: 2, kind: input, shape index: {}]
  %s3 = inlined_call_operand.hbm [shape: bf16[2,128,384], index: 3, kind: input, shape index: {}]
  %s4 = inlined_call_operand.vmem [shape: f32[2,1,384], index: 4, kind: input, shape index: {}]
  %s5 = inlined_call_operand.vmem [shape: bf16[2,128,128], index: 5, kind: input, shape index: {}]
  %s6 = inlined_call_operand.vmem [shape: f32[2,1,128], index: 6, kind: input, shape index: {}]
  %s7 = inlined_call_operand.vmem [shape: f32[2,1,128], index: 7, kind: input, shape index: {}]
  %s8 = inlined_call_operand.vmem [shape: f32[2,1,128], index: 8, kind: input, shape index: {}]
  %s9 = inlined_call_operand.vmem [shape: f32[2,1,128], index: 9, kind: input, shape index: {}]
  %s10 = inlined_call_operand.hbm [shape: f32[2,1,128], index: 10, kind: input, shape index: {}]
  %s11 = inlined_call_operand.hbm [shape: bf16[2,128,512], index: 11, kind: input, shape index: {}]
  %s12 = inlined_call_operand.vmem [shape: f32[2,1,512], index: 12, kind: input, shape index: {}]
  %s13 = inlined_call_operand.hbm [shape: bf16[2,512,128], index: 13, kind: input, shape index: {}]
  %s14 = inlined_call_operand.hbm [shape: f32[2,1,128], index: 14, kind: input, shape index: {}]
  %s15 = inlined_call_operand.vmem [shape: bf16[128,128], index: 15, kind: input, shape index: {}]
  %s16 = inlined_call_operand.hbm [shape: f32[1,128], index: 16, kind: input, shape index: {}]
  %s17 = inlined_call_operand.vmem [shape: f32[16,128], index: 17, kind: output, shape index: {}]
  %s18 = sld [smem:[#allocation0]]
  $region125: #{transformer_forward.1} parent=0
    _
  %s20 = ssub.s32 1, %s18
  %s21 = scalar_select 0, %s20, %s18
  $region1: #{transformer_forward.1} parent=0
    #allocation2 [shape = 'u8[196608]{0}', space=vmem, size = 0x30000, scoped, tag = 'input window, operand 3, single buffered']
    #allocation3 [shape = 's32[2]{0}', space=sflag, size = 0x8, scoped, tag = 'scoped memory for transformer_forward.1']
    #allocation4 [shape = 'u8[1024]{0}', space=vmem, size = 0x400, scoped, tag = 'input window, operand 10, single buffered']
    #allocation5 [shape = 's32[1]{0}', space=sflag, size = 0x4, scoped, tag = 'scoped memory for transformer_forward.1']
    #allocation6 [shape = 'u8[262144]{0}', space=vmem, size = 0x40000, scoped, tag = 'input window, operand 11, single buffered']
    #allocation7 [shape = 'u8[262144]{0}', space=vmem, size = 0x40000, scoped, tag = 'input window, operand 13, single buffered']
    #allocation8 [shape = 's32[1]{0}', space=sflag, size = 0x4, scoped, tag = 'scoped memory for transformer_forward.1']
    #allocation9 [shape = 'u8[1024]{0}', space=vmem, size = 0x400, scoped, tag = 'input window, operand 14, single buffered']
    #allocation10 [shape = 'u8[512]{0}', space=vmem, size = 0x400, scoped, tag = 'input window, operand 16, single buffered']
    #allocation11 [shape = 's32[1]{0}', space=sflag, size = 0x4, scoped, tag = 'scoped memory for transformer_forward.1']
    %22 = vsyncpa [#allocation3], 0
    %23 = vsyncpa [#allocation5], 0
    %24 = vsyncpa [#allocation8], 0
    %25 = vsyncpa [#allocation11], 0
    loop: start=0, step=1, limit=4
    $region2: #{transformer_forward.1} parent=1 // loop_pre_header
      _
    $region3: #{transformer_forward.1} parent=1 // loop_header
      %s27 = sphi 0, %s31
      %p28 = scmp.ge.s32.totalorder %s27, 4
      %s37 = sphi 0, %s39
      %s40 = sphi 0, %s37
      %s41 = sphi 0, %s40
      %s57 = sphi 0, %s41
      %s61 = sphi 0, %s61
      %s63 = sphi 0, %s61
      %s64 = sphi 0, %s63
      %s78 = sphi 0, %s64
      %s82 = sphi 0, %s82
      %s84 = sphi 0, %s82
      %s85 = sphi 0, %s84
      %s99 = sphi 0, %s85
      %s103 = sphi 0, %s103
      %s105 = sphi 0, %s103
      %s106 = sphi 0, %s105
      %s120 = sphi 0, %s106
      %s124 = sphi 0, %s124
      %s126 = sphi 0, %s124
      %s127 = sphi 0, %s126
      %s141 = sphi 0, %s127
      %s145 = sphi 0, %s145
      %s147 = sphi 0, %s145
      %s148 = sphi 0, %s147
      %s162 = sphi 0, %s148
      %s166 = sphi 0, %s166
      %s168 = sphi 0, %s166
      %s169 = sphi 0, %s168
      %s183 = sphi 0, %s169
      %s187 = sphi 0, %s187
      %s189 = sphi 0, %s187
      %s190 = sphi 0, %s189
      %s204 = sphi 0, %s190
      %s208 = sphi 0, %s208
      %s210 = sphi 0, %s208
      %s211 = sphi 0, %s210
      %s225 = sphi 0, %s211
      %s229 = sphi 0, %s229
      %s231 = sphi 0, %s229
      %s232 = sphi 0, %s231
      %s246 = sphi 0, %s232
      %s250 = sphi 0, %s250
      %s252 = sphi 0, %s250
      %s253 = sphi 0, %s252
      %s267 = sphi 0, %s253
      %s271 = sphi 0, %s271
      %s273 = sphi 0, %s271
      %s274 = sphi 0, %s273
      %s288 = sphi 0, %s274
      %s292 = sphi 0, %s292
      %s294 = sphi 0, %s292
      %s295 = sphi 0, %s294
      %s309 = sphi 0, %s295
      %s313 = sphi 0, %s313
      %s315 = sphi 0, %s313
      %s316 = sphi 0, %s315
      %s330 = sphi 0, %s316
      %s334 = sphi 0, %s334
      %s336 = sphi 0, %s334
      %s337 = sphi 0, %s336
      %s351 = sphi 0, %s337
      %s355 = sphi 0, %s355
      %s357 = sphi 0, %s355
      %s358 = sphi 0, %s357
      %s372 = sphi 0, %s358
      %s376 = sphi 0, %s376
      %s378 = sphi 0, %s376
      %s379 = sphi 0, %s378
      %s393 = sphi 0, %s379
      %s399 = sphi 0, %s401
      %s402 = sphi 0, %s399
      %s403 = sphi 0, %s402
      %s419 = sphi 0, %s403
    $region4: #{transformer_forward.1} parent=1 // loop_header_branch
      %30 = sbr.rel (%p28) target = $region8
    $region5: #{transformer_forward.1} parent=1 // loop_body
      %s32 = ssub.s32 %s27, 1
      %s33 = ssub.s32 %s27, 2
      %s34 = sadd.s32 %s27, 1
      %s35 = ssub.s32 %s27, %s34
      %p36 = scmp.eq.s32.totalorder %s35, 0
      %s38 = sadd.s32 %s37, 1
      %s39 = scalar_select %p36, %s37, %s38
      %p42 = pneg %p36
      %p43 = scmp.eq.s32.totalorder %s27, 1
      %p44 = por %p42, %p43
      %p45 = scmp.ne.s32.totalorder %s37, %s40
      %p46 = scmp.eq.s32.totalorder %s27, 0
      %p47 = por %p45, %p46
      %p48 = scmp.ne.s32.totalorder %s37, %s40
      %p49 = scmp.eq.s32.totalorder %s32, 1
      %p50 = por %p48, %p49
      %p51 = scmp.ne.s32.totalorder %s40, %s41
      %p52 = scmp.eq.s32.totalorder %s32, 0
      %p53 = por %p51, %p52
      %p54 = scmp.ne.s32.totalorder %s40, %s41
      %p55 = scmp.eq.s32.totalorder %s33, 1
      %p56 = por %p54, %p55
      %p58 = scmp.ne.s32.totalorder %s41, %s57
      %p59 = scmp.eq.s32.totalorder %s33, 0
      %p60 = por %p58, %p59
      %s62 = sadd.s32 %s61, 1
      %p65 = scmp.eq.s32.totalorder %s27, 1
      %p66 = scmp.ne.s32.totalorder %s61, %s63
      %p67 = scmp.eq.s32.totalorder %s27, 0
      %p68 = por %p66, %p67
      %p69 = scmp.ne.s32.totalorder %s61, %s63
      %p70 = scmp.eq.s32.totalorder %s32, 1
      %p71 = por %p69, %p70
      %p72 = scmp.ne.s32.totalorder %s63, %s64
      %p73 = scmp.eq.s32.totalorder %s32, 0
      %p74 = por %p72, %p73
      %p75 = scmp.ne.s32.totalorder %s63, %s64
      %p76 = scmp.eq.s32.totalorder %s33, 1
      %p77 = por %p75, %p76
      %p79 = scmp.ne.s32.totalorder %s64, %s78
      %p80 = scmp.eq.s32.totalorder %s33, 0
      %p81 = por %p79, %p80
      %s83 = sadd.s32 %s82, 1
      %p86 = scmp.eq.s32.totalorder %s27, 1
      %p87 = scmp.ne.s32.totalorder %s82, %s84
      %p88 = scmp.eq.s32.totalorder %s27, 0
      %p89 = por %p87, %p88
      %p90 = scmp.ne.s32.totalorder %s82, %s84
      %p91 = scmp.eq.s32.totalorder %s32, 1
      %p92 = por %p90, %p91
      %p93 = scmp.ne.s32.totalorder %s84, %s85
      %p94 = scmp.eq.s32.totalorder %s32, 0
      %p95 = por %p93, %p94
      %p96 = scmp.ne.s32.totalorder %s84, %s85
      %p97 = scmp.eq.s32.totalorder %s33, 1
      %p98 = por %p96, %p97
      %p100 = scmp.ne.s32.totalorder %s85, %s99
      %p101 = scmp.eq.s32.totalorder %s33, 0
      %p102 = por %p100, %p101
      %s104 = sadd.s32 %s103, 1
      %p107 = scmp.eq.s32.totalorder %s27, 1
      %p108 = scmp.ne.s32.totalorder %s103, %s105
      %p109 = scmp.eq.s32.totalorder %s27, 0
      %p110 = por %p108, %p109
      %p111 = scmp.ne.s32.totalorder %s103, %s105
      %p112 = scmp.eq.s32.totalorder %s32, 1
      %p113 = por %p111, %p112
      %p114 = scmp.ne.s32.totalorder %s105, %s106
      %p115 = scmp.eq.s32.totalorder %s32, 0
      %p116 = por %p114, %p115
      %p117 = scmp.ne.s32.totalorder %s105, %s106
      %p118 = scmp.eq.s32.totalorder %s33, 1
      %p119 = por %p117, %p118
      %p121 = scmp.ne.s32.totalorder %s106, %s120
      %p122 = scmp.eq.s32.totalorder %s33, 0
      %p123 = por %p121, %p122
      %s125 = sadd.s32 %s124, 1
      %p128 = scmp.eq.s32.totalorder %s27, 1
      %p129 = scmp.ne.s32.totalorder %s124, %s126
      %p130 = scmp.eq.s32.totalorder %s27, 0
      %p131 = por %p129, %p130
      %p132 = scmp.ne.s32.totalorder %s124, %s126
      %p133 = scmp.eq.s32.totalorder %s32, 1
      %p134 = por %p132, %p133
      %p135 = scmp.ne.s32.totalorder %s126, %s127
      %p136 = scmp.eq.s32.totalorder %s32, 0
      %p137 = por %p135, %p136
      %p138 = scmp.ne.s32.totalorder %s126, %s127
      %p139 = scmp.eq.s32.totalorder %s33, 1
      %p140 = por %p138, %p139
      %p142 = scmp.ne.s32.totalorder %s127, %s141
      %p143 = scmp.eq.s32.totalorder %s33, 0
      %p144 = por %p142, %p143
      %s146 = sadd.s32 %s145, 1
      %p149 = scmp.eq.s32.totalorder %s27, 1
      %p150 = scmp.ne.s32.totalorder %s145, %s147
      %p151 = scmp.eq.s32.totalorder %s27, 0
      %p152 = por %p150, %p151
      %p153 = scmp.ne.s32.totalorder %s145, %s147
      %p154 = scmp.eq.s32.totalorder %s32, 1
      %p155 = por %p153, %p154
      %p156 = scmp.ne.s32.totalorder %s147, %s148
      %p157 = scmp.eq.s32.totalorder %s32, 0
      %p158 = por %p156, %p157
      %p159 = scmp.ne.s32.totalorder %s147, %s148
      %p160 = scmp.eq.s32.totalorder %s33, 1
      %p161 = por %p159, %p160
      %p163 = scmp.ne.s32.totalorder %s148, %s162
      %p164 = scmp.eq.s32.totalorder %s33, 0
      %p165 = por %p163, %p164
      %s167 = sadd.s32 %s166, 1
      %p170 = scmp.eq.s32.totalorder %s27, 1
      %p171 = scmp.ne.s32.totalorder %s166, %s168
      %p172 = scmp.eq.s32.totalorder %s27, 0
      %p173 = por %p171, %p172
      %p174 = scmp.ne.s32.totalorder %s166, %s168
      %p175 = scmp.eq.s32.totalorder %s32, 1
      %p176 = por %p174, %p175
      %p177 = scmp.ne.s32.totalorder %s168, %s169
      %p178 = scmp.eq.s32.totalorder %s32, 0
      %p179 = por %p177, %p178
      %p180 = scmp.ne.s32.totalorder %s168, %s169
      %p181 = scmp.eq.s32.totalorder %s33, 1
      %p182 = por %p180, %p181
      %p184 = scmp.ne.s32.totalorder %s169, %s183
      %p185 = scmp.eq.s32.totalorder %s33, 0
      %p186 = por %p184, %p185
      %s188 = sadd.s32 %s187, 1
      %p191 = scmp.eq.s32.totalorder %s27, 1
      %p192 = scmp.ne.s32.totalorder %s187, %s189
      %p193 = scmp.eq.s32.totalorder %s27, 0
      %p194 = por %p192, %p193
      %p195 = scmp.ne.s32.totalorder %s187, %s189
      %p196 = scmp.eq.s32.totalorder %s32, 1
      %p197 = por %p195, %p196
      %p198 = scmp.ne.s32.totalorder %s189, %s190
      %p199 = scmp.eq.s32.totalorder %s32, 0
      %p200 = por %p198, %p199
      %p201 = scmp.ne.s32.totalorder %s189, %s190
      %p202 = scmp.eq.s32.totalorder %s33, 1
      %p203 = por %p201, %p202
      %p205 = scmp.ne.s32.totalorder %s190, %s204
      %p206 = scmp.eq.s32.totalorder %s33, 0
      %p207 = por %p205, %p206
      %s209 = sadd.s32 %s208, 1
      %p212 = scmp.eq.s32.totalorder %s27, 1
      %p213 = scmp.ne.s32.totalorder %s208, %s210
      %p214 = scmp.eq.s32.totalorder %s27, 0
      %p215 = por %p213, %p214
      %p216 = scmp.ne.s32.totalorder %s208, %s210
      %p217 = scmp.eq.s32.totalorder %s32, 1
      %p218 = por %p216, %p217
      %p219 = scmp.ne.s32.totalorder %s210, %s211
      %p220 = scmp.eq.s32.totalorder %s32, 0
      %p221 = por %p219, %p220
      %p222 = scmp.ne.s32.totalorder %s210, %s211
      %p223 = scmp.eq.s32.totalorder %s33, 1
      %p224 = por %p222, %p223
      %p226 = scmp.ne.s32.totalorder %s211, %s225
      %p227 = scmp.eq.s32.totalorder %s33, 0
      %p228 = por %p226, %p227
      %s230 = sadd.s32 %s229, 1
      %p233 = scmp.eq.s32.totalorder %s27, 1
      %p234 = scmp.ne.s32.totalorder %s229, %s231
      %p235 = scmp.eq.s32.totalorder %s27, 0
      %p236 = por %p234, %p235
      %p237 = scmp.ne.s32.totalorder %s229, %s231
      %p238 = scmp.eq.s32.totalorder %s32, 1
      %p239 = por %p237, %p238
      %p240 = scmp.ne.s32.totalorder %s231, %s232
      %p241 = scmp.eq.s32.totalorder %s32, 0
      %p242 = por %p240, %p241
      %p243 = scmp.ne.s32.totalorder %s231, %s232
      %p244 = scmp.eq.s32.totalorder %s33, 1
      %p245 = por %p243, %p244
      %p247 = scmp.ne.s32.totalorder %s232, %s246
      %p248 = scmp.eq.s32.totalorder %s33, 0
      %p249 = por %p247, %p248
      %s251 = sadd.s32 %s250, 1
      %p254 = scmp.eq.s32.totalorder %s27, 1
      %p255 = scmp.ne.s32.totalorder %s250, %s252
      %p256 = scmp.eq.s32.totalorder %s27, 0
      %p257 = por %p255, %p256
      %p258 = scmp.ne.s32.totalorder %s250, %s252
      %p259 = scmp.eq.s32.totalorder %s32, 1
      %p260 = por %p258, %p259
      %p261 = scmp.ne.s32.totalorder %s252, %s253
      %p262 = scmp.eq.s32.totalorder %s32, 0
      %p263 = por %p261, %p262
      %p264 = scmp.ne.s32.totalorder %s252, %s253
      %p265 = scmp.eq.s32.totalorder %s33, 1
      %p266 = por %p264, %p265
      %p268 = scmp.ne.s32.totalorder %s253, %s267
      %p269 = scmp.eq.s32.totalorder %s33, 0
      %p270 = por %p268, %p269
      %s272 = sadd.s32 %s271, 1
      %p275 = scmp.eq.s32.totalorder %s27, 1
      %p276 = scmp.ne.s32.totalorder %s271, %s273
      %p277 = scmp.eq.s32.totalorder %s27, 0
      %p278 = por %p276, %p277
      %p279 = scmp.ne.s32.totalorder %s271, %s273
      %p280 = scmp.eq.s32.totalorder %s32, 1
      %p281 = por %p279, %p280
      %p282 = scmp.ne.s32.totalorder %s273, %s274
      %p283 = scmp.eq.s32.totalorder %s32, 0
      %p284 = por %p282, %p283
      %p285 = scmp.ne.s32.totalorder %s273, %s274
      %p286 = scmp.eq.s32.totalorder %s33, 1
      %p287 = por %p285, %p286
      %p289 = scmp.ne.s32.totalorder %s274, %s288
      %p290 = scmp.eq.s32.totalorder %s33, 0
      %p291 = por %p289, %p290
      %s293 = sadd.s32 %s292, 1
      %p296 = scmp.eq.s32.totalorder %s27, 1
      %p297 = scmp.ne.s32.totalorder %s292, %s294
      %p298 = scmp.eq.s32.totalorder %s27, 0
      %p299 = por %p297, %p298
      %p300 = scmp.ne.s32.totalorder %s292, %s294
      %p301 = scmp.eq.s32.totalorder %s32, 1
      %p302 = por %p300, %p301
      %p303 = scmp.ne.s32.totalorder %s294, %s295
      %p304 = scmp.eq.s32.totalorder %s32, 0
      %p305 = por %p303, %p304
      %p306 = scmp.ne.s32.totalorder %s294, %s295
      %p307 = scmp.eq.s32.totalorder %s33, 1
      %p308 = por %p306, %p307
      %p310 = scmp.ne.s32.totalorder %s295, %s309
      %p311 = scmp.eq.s32.totalorder %s33, 0
      %p312 = por %p310, %p311
      %s314 = sadd.s32 %s313, 1
      %p317 = scmp.eq.s32.totalorder %s27, 1
      %p318 = scmp.ne.s32.totalorder %s313, %s315
      %p319 = scmp.eq.s32.totalorder %s27, 0
      %p320 = por %p318, %p319
      %p321 = scmp.ne.s32.totalorder %s313, %s315
      %p322 = scmp.eq.s32.totalorder %s32, 1
      %p323 = por %p321, %p322
      %p324 = scmp.ne.s32.totalorder %s315, %s316
      %p325 = scmp.eq.s32.totalorder %s32, 0
      %p326 = por %p324, %p325
      %p327 = scmp.ne.s32.totalorder %s315, %s316
      %p328 = scmp.eq.s32.totalorder %s33, 1
      %p329 = por %p327, %p328
      %p331 = scmp.ne.s32.totalorder %s316, %s330
      %p332 = scmp.eq.s32.totalorder %s33, 0
      %p333 = por %p331, %p332
      %s335 = sadd.s32 %s334, 1
      %p338 = scmp.eq.s32.totalorder %s27, 1
      %p339 = scmp.ne.s32.totalorder %s334, %s336
      %p340 = scmp.eq.s32.totalorder %s27, 0
      %p341 = por %p339, %p340
      %p342 = scmp.ne.s32.totalorder %s334, %s336
      %p343 = scmp.eq.s32.totalorder %s32, 1
      %p344 = por %p342, %p343
      %p345 = scmp.ne.s32.totalorder %s336, %s337
      %p346 = scmp.eq.s32.totalorder %s32, 0
      %p347 = por %p345, %p346
      %p348 = scmp.ne.s32.totalorder %s336, %s337
      %p349 = scmp.eq.s32.totalorder %s33, 1
      %p350 = por %p348, %p349
      %p352 = scmp.ne.s32.totalorder %s337, %s351
      %p353 = scmp.eq.s32.totalorder %s33, 0
      %p354 = por %p352, %p353
      %s356 = sadd.s32 %s355, 1
      %p359 = scmp.eq.s32.totalorder %s27, 1
      %p360 = scmp.ne.s32.totalorder %s355, %s357
      %p361 = scmp.eq.s32.totalorder %s27, 0
      %p362 = por %p360, %p361
      %p363 = scmp.ne.s32.totalorder %s355, %s357
      %p364 = scmp.eq.s32.totalorder %s32, 1
      %p365 = por %p363, %p364
      %p366 = scmp.ne.s32.totalorder %s357, %s358
      %p367 = scmp.eq.s32.totalorder %s32, 0
      %p368 = por %p366, %p367
      %p369 = scmp.ne.s32.totalorder %s357, %s358
      %p370 = scmp.eq.s32.totalorder %s33, 1
      %p371 = por %p369, %p370
      %p373 = scmp.ne.s32.totalorder %s358, %s372
      %p374 = scmp.eq.s32.totalorder %s33, 0
      %p375 = por %p373, %p374
      %s377 = sadd.s32 %s376, 1
      %p380 = scmp.eq.s32.totalorder %s27, 1
      %p381 = scmp.ne.s32.totalorder %s376, %s378
      %p382 = scmp.eq.s32.totalorder %s27, 0
      %p383 = por %p381, %p382
      %p384 = scmp.ne.s32.totalorder %s376, %s378
      %p385 = scmp.eq.s32.totalorder %s32, 1
      %p386 = por %p384, %p385
      %p387 = scmp.ne.s32.totalorder %s378, %s379
      %p388 = scmp.eq.s32.totalorder %s32, 0
      %p389 = por %p387, %p388
      %p390 = scmp.ne.s32.totalorder %s378, %s379
      %p391 = scmp.eq.s32.totalorder %s33, 1
      %p392 = por %p390, %p391
      %p394 = scmp.ne.s32.totalorder %s379, %s393
      %p395 = scmp.eq.s32.totalorder %s33, 0
      %p396 = por %p394, %p395
      %s397 = ssub.s32 %s27, %s34
      %p398 = scmp.eq.s32.totalorder %s397, 0
      %s400 = sadd.s32 %s399, 1
      %s401 = scalar_select %p398, %s399, %s400
      %p404 = pneg %p398
      %p405 = scmp.eq.s32.totalorder %s27, 1
      %p406 = por %p404, %p405
      %p407 = scmp.ne.s32.totalorder %s399, %s402
      %p408 = scmp.eq.s32.totalorder %s27, 0
      %p409 = por %p407, %p408
      %p410 = scmp.ne.s32.totalorder %s399, %s402
      %p411 = scmp.eq.s32.totalorder %s32, 1
      %p412 = por %p410, %p411
      %p413 = scmp.ne.s32.totalorder %s402, %s403
      %p414 = scmp.eq.s32.totalorder %s32, 0
      %p415 = por %p413, %p414
      %p416 = scmp.ne.s32.totalorder %s402, %s403
      %p417 = scmp.eq.s32.totalorder %s33, 1
      %p418 = por %p416, %p417
      %p420 = scmp.ne.s32.totalorder %s403, %s419
      %p421 = scmp.eq.s32.totalorder %s33, 0
      %p422 = por %p420, %p421
      %p423 = scmp.le.s32.totalorder 1, %s27
      %p424 = scmp.lt.s32.totalorder %s27, 3
      %p425 = pnand %p423, %p424
      %p426 = pneg %p425
      // Predicated region
      $region9: #{transformer_forward.1} parent=5 // pred_check
        _
      $region10: #{transformer_forward.1} parent=5 // pred_check_branch
        %428 = sbr.rel (%p425) target = $region12
      $region11: #{transformer_forward.1} parent=5 // pred_region
        %s429 = ssub.s32 %s27, 1
        // Predicated region
        $region13: #{transformer_forward.1} parent=11 // pred_check
          %p430 = pneg %p74
        $region14: #{transformer_forward.1} parent=11 // pred_check_branch
          %432 = sbr.rel (%p430) target = $region16
        $region15: #{transformer_forward.1} parent=11 // pred_region
          _
        $region16: #{transformer_forward.1} parent=11 // pred_fallthru
          _
        // Predicated region
        $region17: #{transformer_forward.1} parent=11 // pred_check
          %p433 = pneg %p95
        $region18: #{transformer_forward.1} parent=11 // pred_check_branch
          %435 = sbr.rel (%p433) target = $region20
        $region19: #{transformer_forward.1} parent=11 // pred_region
          _
        $region20: #{transformer_forward.1} parent=11 // pred_fallthru
          _
        // Predicated region
        $region21: #{transformer_forward.1} parent=11 // pred_check
          %p436 = pneg %p116
        $region22: #{transformer_forward.1} parent=11 // pred_check_branch
          %438 = sbr.rel (%p436) target = $region24
        $region23: #{transformer_forward.1} parent=11 // pred_region
          %440 = vsyncadd [#allocation3], 0
          %s441 = sshll.u32 %s3, 4
          %s442 = int_to_ptr.hbm [resolvable:$true] %s441
          %s443 = sshll.u32 [#allocation2], 4
          %s444 = int_to_ptr.vmem [resolvable:$true] %s443
          %449 = dma.hbm_to_vmem [thread:$0]  %s442, 6144, %s444, [#allocation3], 192, 192, 12
        $region24: #{transformer_forward.1} parent=11 // pred_fallthru
          _
        // Predicated region
        $region25: #{transformer_forward.1} parent=11 // pred_check
          %p450 = pneg %p137
        $region26: #{transformer_forward.1} parent=11 // pred_check_branch
          %452 = sbr.rel (%p450) target = $region28
        $region27: #{transformer_forward.1} parent=11 // pred_region
          _
        $region28: #{transformer_forward.1} parent=11 // pred_fallthru
          _
        // Predicated region
        $region29: #{transformer_forward.1} parent=11 // pred_check
          %p453 = pneg %p158
        $region30: #{transformer_forward.1} parent=11 // pred_check_branch
          %455 = sbr.rel (%p453) target = $region32
        $region31: #{transformer_forward.1} parent=11 // pred_region
          _
        $region32: #{transformer_forward.1} parent=11 // pred_fallthru
          _
        // Predicated region
        $region33: #{transformer_forward.1} parent=11 // pred_check
          %p456 = pneg %p179
        $region34: #{transformer_forward.1} parent=11 // pred_check_branch
          %458 = sbr.rel (%p456) target = $region36
        $region35: #{transformer_forward.1} parent=11 // pred_region
          _
        $region36: #{transformer_forward.1} parent=11 // pred_fallthru
          _
        // Predicated region
        $region37: #{transformer_forward.1} parent=11 // pred_check
          %p459 = pneg %p200
        $region38: #{transformer_forward.1} parent=11 // pred_check_branch
          %461 = sbr.rel (%p459) target = $region40
        $region39: #{transformer_forward.1} parent=11 // pred_region
          _
        $region40: #{transformer_forward.1} parent=11 // pred_fallthru
          _
        // Predicated region
        $region41: #{transformer_forward.1} parent=11 // pred_check
          %p462 = pneg %p221
        $region42: #{transformer_forward.1} parent=11 // pred_check_branch
          %464 = sbr.rel (%p462) target = $region44
        $region43: #{transformer_forward.1} parent=11 // pred_region
          _
        $region44: #{transformer_forward.1} parent=11 // pred_fallthru
          _
        // Predicated region
        $region45: #{transformer_forward.1} parent=11 // pred_check
          %p465 = pneg %p242
        $region46: #{transformer_forward.1} parent=11 // pred_check_branch
          %467 = sbr.rel (%p465) target = $region48
        $region47: #{transformer_forward.1} parent=11 // pred_region
          _
        $region48: #{transformer_forward.1} parent=11 // pred_fallthru
          _
        // Predicated region
        $region49: #{transformer_forward.1} parent=11 // pred_check
          %p468 = pneg %p263
        $region50: #{transformer_forward.1} parent=11 // pred_check_branch
          %470 = sbr.rel (%p468) target = $region52
        $region51: #{transformer_forward.1} parent=11 // pred_region
          %472 = vsyncadd [#allocation5], 0
          %s473 = sshll.u32 %s10, 4
          %s474 = int_to_ptr.hbm [resolvable:$true] %s473
          %s475 = sshll.u32 [#allocation4], 4
          %s476 = int_to_ptr.vmem [resolvable:$true] %s475
          %481 = dma.hbm_to_vmem [thread:$0]  %s474, 32, %s476, [#allocation5], 16, 16, 1
        $region52: #{transformer_forward.1} parent=11 // pred_fallthru
          _
        // Predicated region
        $region53: #{transformer_forward.1} parent=11 // pred_check
          %p482 = pneg %p284
        $region54: #{transformer_forward.1} parent=11 // pred_check_branch
          %484 = sbr.rel (%p482) target = $region56
        $region55: #{transformer_forward.1} parent=11 // pred_region
          %486 = vsyncadd [#allocation5], 0
          %s487 = sshll.u32 %s11, 4
          %s488 = int_to_ptr.hbm [resolvable:$true] %s487
          %s489 = sshll.u32 [#allocation6], 4
          %s490 = int_to_ptr.vmem [resolvable:$true] %s489
          %495 = dma.hbm_to_vmem [thread:$0]  %s488, 8192, %s490, [#allocation5], 256, 256, 16
        $region56: #{transformer_forward.1} parent=11 // pred_fallthru
          _
        // Predicated region
        $region57: #{transformer_forward.1} parent=11 // pred_check
          %p496 = pneg %p305
        $region58: #{transformer_forward.1} parent=11 // pred_check_branch
          %498 = sbr.rel (%p496) target = $region60
        $region59: #{transformer_forward.1} parent=11 // pred_region
          _
        $region60: #{transformer_forward.1} parent=11 // pred_fallthru
          _
        // Predicated region
        $region61: #{transformer_forward.1} parent=11 // pred_check
          %p499 = pneg %p326
        $region62: #{transformer_forward.1} parent=11 // pred_check_branch
          %501 = sbr.rel (%p499) target = $region64
        $region63: #{transformer_forward.1} parent=11 // pred_region
          %503 = vsyncadd [#allocation8], 0
          %s504 = sshll.u32 %s13, 4
          %s505 = int_to_ptr.hbm [resolvable:$true] %s504
          %s506 = sshll.u32 [#allocation7], 4
          %s507 = int_to_ptr.vmem [resolvable:$true] %s506
          %512 = dma.hbm_to_vmem [thread:$0]  %s505, 8192, %s507, [#allocation8], 64, 64, 4
        $region64: #{transformer_forward.1} parent=11 // pred_fallthru
          _
        // Predicated region
        $region65: #{transformer_forward.1} parent=11 // pred_check
          %p513 = pneg %p347
        $region66: #{transformer_forward.1} parent=11 // pred_check_branch
          %515 = sbr.rel (%p513) target = $region68
        $region67: #{transformer_forward.1} parent=11 // pred_region
          %517 = vsyncadd [#allocation8], 0
          %s518 = sshll.u32 %s14, 4
          %s519 = int_to_ptr.hbm [resolvable:$true] %s518
          %s520 = sshll.u32 [#allocation9], 4
          %s521 = int_to_ptr.vmem [resolvable:$true] %s520
          %526 = dma.hbm_to_vmem [thread:$0]  %s519, 32, %s521, [#allocation8], 16, 16, 1
        $region68: #{transformer_forward.1} parent=11 // pred_fallthru
          _
        // Predicated region
        $region69: #{transformer_forward.1} parent=11 // pred_check
          %p527 = pneg %p368
        $region70: #{transformer_forward.1} parent=11 // pred_check_branch
          %529 = sbr.rel (%p527) target = $region72
        $region71: #{transformer_forward.1} parent=11 // pred_region
          _
        $region72: #{transformer_forward.1} parent=11 // pred_fallthru
          _
        // Predicated region
        $region73: #{transformer_forward.1} parent=11 // pred_check
          %p530 = pneg %p389
        $region74: #{transformer_forward.1} parent=11 // pred_check_branch
          %532 = sbr.rel (%p530) target = $region76
        $region75: #{transformer_forward.1} parent=11 // pred_region
          %534 = vsyncadd [#allocation11], 0
          %s536 = sshll.u32 %s16, 4
          %s537 = int_to_ptr.hbm [resolvable:$true] %s536
          %s538 = sshll.u32 [#allocation10], 4
          %s539 = int_to_ptr.vmem [resolvable:$true] %s538
          %541 = dma.hbm_to_vmem [thread:$0]  %s537, 16, %s539, [#allocation11]
        $region76: #{transformer_forward.1} parent=11 // pred_fallthru
          _
      $region12: #{transformer_forward.1} parent=5 // pred_fallthru
        _
      %p542 = scmp.lt.s32.totalorder %s27, 2
      // Predicated region
      $region77: #{transformer_forward.1} parent=5 // pred_check
        %p543 = pneg %p542
      $region78: #{transformer_forward.1} parent=5 // pred_check_branch
        %545 = sbr.rel (%p543) target = $region80
      $region79: #{transformer_forward.1} parent=5 // pred_region
        // Predicated region
        $region81: #{transformer_forward.1} parent=79 // pred_check
          %p546 = pneg %p47
        $region82: #{transformer_forward.1} parent=79 // pred_check_branch
          %548 = sbr.rel (%p546) target = $region84
        $region83: #{transformer_forward.1} parent=79 // pred_region
          %s549 = smul.u32 16, %s27
          %p550 = scmp.lt.s32.totalorder %s549, 31
          %s551 = scalar_select %p550, %s549, 31
          %s552 = smul.addr %s551, 8
          %s553 = scalar_lea.vmem %s0, %s552
          %s554 = smul.u32 16, %s27
        $region84: #{transformer_forward.1} parent=79 // pred_fallthru
          _
      $region80: #{transformer_forward.1} parent=5 // pred_fallthru
        _
      %p555 = scmp.le.s32.totalorder 1, %s27
      %p556 = scmp.lt.s32.totalorder %s27, 3
      %p557 = pnand %p555, %p556
      %p558 = pneg %p557
      // Predicated region
      $region85: #{transformer_forward.1} parent=5 // pred_check
        _
      $region86: #{transformer_forward.1} parent=5 // pred_check_branch
        %560 = sbr.rel (%p557) target = $region88
      $region87: #{transformer_forward.1} parent=5 // pred_region
        %s561 = ssub.s32 %s27, 1
        // Predicated region
        $region89: #{transformer_forward.1} parent=87 // pred_check
          %p562 = pneg %p116
        $region90: #{transformer_forward.1} parent=87 // pred_check_branch
          %564 = sbr.rel (%p562) target = $region92
        $region91: #{transformer_forward.1} parent=87 // pred_region
          %566 = dma.done [#allocation3], 6144
        $region92: #{transformer_forward.1} parent=87 // pred_fallthru
          _
        // Predicated region
        $region93: #{transformer_forward.1} parent=87 // pred_check
          %p567 = pneg %p263
        $region94: #{transformer_forward.1} parent=87 // pred_check_branch
          %569 = sbr.rel (%p567) target = $region96
        $region95: #{transformer_forward.1} parent=87 // pred_region
          %571 = dma.done [#allocation5], 32
        $region96: #{transformer_forward.1} parent=87 // pred_fallthru
          _
        // Predicated region
        $region97: #{transformer_forward.1} parent=87 // pred_check
          %p572 = pneg %p284
        $region98: #{transformer_forward.1} parent=87 // pred_check_branch
          %574 = sbr.rel (%p572) target = $region100
        $region99: #{transformer_forward.1} parent=87 // pred_region
          %576 = dma.done [#allocation5], 8192
        $region100: #{transformer_forward.1} parent=87 // pred_fallthru
          _
        // Predicated region
        $region101: #{transformer_forward.1} parent=87 // pred_check
          %p577 = pneg %p326
        $region102: #{transformer_forward.1} parent=87 // pred_check_branch
          %579 = sbr.rel (%p577) target = $region104
        $region103: #{transformer_forward.1} parent=87 // pred_region
          %581 = dma.done [#allocation8], 8192
        $region104: #{transformer_forward.1} parent=87 // pred_fallthru
          _
        // Predicated region
        $region105: #{transformer_forward.1} parent=87 // pred_check
          %p582 = pneg %p347
        $region106: #{transformer_forward.1} parent=87 // pred_check_branch
          %584 = sbr.rel (%p582) target = $region108
        $region107: #{transformer_forward.1} parent=87 // pred_region
          %586 = dma.done [#allocation8], 32
        $region108: #{transformer_forward.1} parent=87 // pred_fallthru
          _
        // Predicated region
        $region109: #{transformer_forward.1} parent=87 // pred_check
          %p587 = pneg %p389
        $region110: #{transformer_forward.1} parent=87 // pred_check_branch
          %589 = sbr.rel (%p587) target = $region112
        $region111: #{transformer_forward.1} parent=87 // pred_region
          %591 = dma.done [#allocation11], 16
        $region112: #{transformer_forward.1} parent=87 // pred_fallthru
          _
        %s592 = smul.u32 16, %s32
        %p593 = scmp.lt.s32.totalorder %s592, 31
        %s594 = scalar_select %p593, %s592, 31
        %s595 = smul.addr %s594, 8
        %s596 = scalar_lea.vmem %s0, %s595
        %p597 = pneg %p53
        %p598 = pneg %p50
        %p599 = pneg %p74
        %p600 = pneg %p71
        %p601 = pneg %p95
        %p602 = pneg %p92
        %p603 = pneg %p116
        %p604 = pneg %p113
        %p605 = pneg %p137
        %p606 = pneg %p134
        %p607 = pneg %p158
        %p608 = pneg %p155
        %p609 = pneg %p179
        %p610 = pneg %p176
        %p611 = pneg %p200
        %p612 = pneg %p197
        %p613 = pneg %p221
        %p614 = pneg %p218
        %p615 = pneg %p242
        %p616 = pneg %p239
        %p617 = pneg %p263
        %p618 = pneg %p260
        %p619 = pneg %p284
        %p620 = pneg %p281
        %p621 = pneg %p305
        %p622 = pneg %p302
        %p623 = pneg %p326
        %p624 = pneg %p323
        %p625 = pneg %p347
        %p626 = pneg %p344
        %p627 = pneg %p368
        %p628 = pneg %p365
        %p629 = pneg %p389
        %p630 = pneg %p386
        %p631 = pneg %p415
        %p632 = pneg %p412
        %p633 = scmp.lt.s32.totalorder %s32, 1
        %s634 = scalar_select %p633, %s32, 1
        %s635 = smul.addr %s634, 8
        %s636 = scalar_lea.vmem %s17, %s635
        %s637 = smul.u32 16, %s32
        %p638 = scmp.lt.s32.totalorder %s637, 31
        %s639 = scalar_select %p638, %s637, 31
        %s640 = smul.addr %s639, 8
        %s641 = scalar_lea.vmem %s0, %s640
        %s642 = smul.u32 16, %s32
        %p643 = scmp.lt.s32.totalorder %s32, 1
        %s644 = scalar_select %p643, %s32, 1
        %s645 = smul.addr %s644, 8
        %s646 = scalar_lea.vmem %s17, %s645
        %v648 = vld [vmem:[%s641] sm:$0xff]
        %v649 = vld [vmem:[%s641 + $0x8] sm:$0xff]
        %v650 = vld [vmem:[%s641 + $0x10] sm:$0xff]
        %v651 = vld [vmem:[%s641 + $0x18] sm:$0xff]
        %v652 = vld [vmem:[%s641 + $0x20] sm:$0xff]
        %v653 = vld [vmem:[%s641 + $0x28] sm:$0xff]
        %v654 = vld [vmem:[%s641 + $0x30] sm:$0xff]
        %v655 = vld [vmem:[%s641 + $0x38] sm:$0xff]
        %v656 = vld [vmem:[%s641 + $0x40] sm:$0xff]
        %v657 = vld [vmem:[%s641 + $0x48] sm:$0xff]
        %v658 = vld [vmem:[%s641 + $0x50] sm:$0xff]
        %v659 = vld [vmem:[%s641 + $0x58] sm:$0xff]
        %v660 = vld [vmem:[%s641 + $0x60] sm:$0xff]
        %v661 = vld [vmem:[%s641 + $0x68] sm:$0xff]
        %v662 = vld [vmem:[%s641 + $0x70] sm:$0xff]
        %v663 = vld [vmem:[%s641 + $0x78] sm:$0xff]
        %v664 = vlaneseq
        %v665 = vand.u32 %v664, 127
        %666 = vset.pattern.permute.xlu0 0
        %667 = vperm.xlu0 %666, %v648
        %v668 = vpop.permute.xlu0 %667
        %669 = vset.pattern.permute.xlu0 0
        %670 = vperm.xlu0 %669, %v649
        %v671 = vpop.permute.xlu0 %670
        %672 = vset.pattern.permute.xlu0 0
        %673 = vperm.xlu0 %672, %v650
        %v674 = vpop.permute.xlu0 %673
        %675 = vset.pattern.permute.xlu0 0
        %676 = vperm.xlu0 %675, %v651
        %v677 = vpop.permute.xlu0 %676
        %678 = vset.pattern.permute.xlu0 0
        %679 = vperm.xlu0 %678, %v652
        %v680 = vpop.permute.xlu0 %679
        %681 = vset.pattern.permute.xlu0 0
        %682 = vperm.xlu0 %681, %v653
        %v683 = vpop.permute.xlu0 %682
        %684 = vset.pattern.permute.xlu0 0
        %685 = vperm.xlu0 %684, %v654
        %v686 = vpop.permute.xlu0 %685
        %687 = vset.pattern.permute.xlu0 0
        %688 = vperm.xlu0 %687, %v655
        %v689 = vpop.permute.xlu0 %688
        %690 = vset.pattern.permute.xlu0 0
        %691 = vperm.xlu0 %690, %v656
        %v692 = vpop.permute.xlu0 %691
        %693 = vset.pattern.permute.xlu0 0
        %694 = vperm.xlu0 %693, %v657
        %v695 = vpop.permute.xlu0 %694
        %696 = vset.pattern.permute.xlu0 0
        %697 = vperm.xlu0 %696, %v658
        %v698 = vpop.permute.xlu0 %697
        %699 = vset.pattern.permute.xlu0 0
        %700 = vperm.xlu0 %699, %v659
        %v701 = vpop.permute.xlu0 %700
        %702 = vset.pattern.permute.xlu0 0
        %703 = vperm.xlu0 %702, %v660
        %v704 = vpop.permute.xlu0 %703
        %705 = vset.pattern.permute.xlu0 0
        %706 = vperm.xlu0 %705, %v661
        %v707 = vpop.permute.xlu0 %706
        %708 = vset.pattern.permute.xlu0 0
        %709 = vperm.xlu0 %708, %v662
        %v710 = vpop.permute.xlu0 %709
        %711 = vset.pattern.permute.xlu0 0
        %712 = vperm.xlu0 %711, %v663
        %v713 = vpop.permute.xlu0 %712
        %vm714 = vcmp.eq.s32.totalorder %v668, %v665
        %vm715 = vcmp.eq.s32.totalorder %v671, %v665
        %vm716 = vcmp.eq.s32.totalorder %v674, %v665
        %vm717 = vcmp.eq.s32.totalorder %v677, %v665
        %vm718 = vcmp.eq.s32.totalorder %v680, %v665
        %vm719 = vcmp.eq.s32.totalorder %v683, %v665
        %vm720 = vcmp.eq.s32.totalorder %v686, %v665
        %vm721 = vcmp.eq.s32.totalorder %v689, %v665
        %vm722 = vcmp.eq.s32.totalorder %v692, %v665
        %vm723 = vcmp.eq.s32.totalorder %v695, %v665
        %vm724 = vcmp.eq.s32.totalorder %v698, %v665
        %vm725 = vcmp.eq.s32.totalorder %v701, %v665
        %vm726 = vcmp.eq.s32.totalorder %v704, %v665
        %vm727 = vcmp.eq.s32.totalorder %v707, %v665
        %vm728 = vcmp.eq.s32.totalorder %v710, %v665
        %vm729 = vcmp.eq.s32.totalorder %v713, %v665
        %v730 = vsel %vm714, 1, 0
        %v731 = vsel %vm715, 1, 0
        %v732 = vsel %vm716, 1, 0
        %v733 = vsel %vm717, 1, 0
        %v734 = vsel %vm718, 1, 0
        %v735 = vsel %vm719, 1, 0
        %v736 = vsel %vm720, 1, 0
        %v737 = vsel %vm721, 1, 0
        %v738 = vsel %vm722, 1, 0
        %v739 = vsel %vm723, 1, 0
        %v740 = vsel %vm724, 1, 0
        %v741 = vsel %vm725, 1, 0
        %v742 = vsel %vm726, 1, 0
        %v743 = vsel %vm727, 1, 0
        %v744 = vsel %vm728, 1, 0
        %v745 = vsel %vm729, 1, 0
        %v746 = vcvt.s32.f32 %v730
        %v747 = vcvt.s32.f32 %v731
        %v748 = vcvt.s32.f32 %v732
        %v749 = vcvt.s32.f32 %v733
        %v750 = vcvt.s32.f32 %v734
        %v751 = vcvt.s32.f32 %v735
        %v752 = vcvt.s32.f32 %v736
        %v753 = vcvt.s32.f32 %v737
        %v754 = vcvt.s32.f32 %v738
        %v755 = vcvt.s32.f32 %v739
        %v756 = vcvt.s32.f32 %v740
        %v757 = vcvt.s32.f32 %v741
        %v758 = vcvt.s32.f32 %v742
        %v759 = vcvt.s32.f32 %v743
        %v760 = vcvt.s32.f32 %v744
        %v761 = vcvt.s32.f32 %v745
        %v762 = vpack.c.bf16 %v747, %v746
        %v763 = vpack.c.bf16 %v749, %v748
        %v764 = vpack.c.bf16 %v751, %v750
        %v765 = vpack.c.bf16 %v753, %v752
        %v766 = vpack.c.bf16 %v755, %v754
        %v767 = vpack.c.bf16 %v757, %v756
        %v768 = vpack.c.bf16 %v759, %v758
        %v769 = vpack.c.bf16 %v761, %v760
        %v770 = vld [vmem:[%s1] sm:$0xf]
        %v771 = vld [vmem:[%s1 + $0x4] sm:$0xf]
        %v772 = vld [vmem:[%s1 + $0x8] sm:$0xf]
        %v773 = vld [vmem:[%s1 + $0xc] sm:$0xf]
        %v774 = vld [vmem:[%s1 + $0x10] sm:$0xf]
        %v775 = vld [vmem:[%s1 + $0x14] sm:$0xf]
        %v776 = vld [vmem:[%s1 + $0x18] sm:$0xf]
        %v777 = vld [vmem:[%s1 + $0x1c] sm:$0xf]
        %v778 = vld [vmem:[%s1 + $0x20] sm:$0xf]
        %v779 = vld [vmem:[%s1 + $0x24] sm:$0xf]
        %v780 = vld [vmem:[%s1 + $0x28] sm:$0xf]
        %v781 = vld [vmem:[%s1 + $0x2c] sm:$0xf]
        %v782 = vld [vmem:[%s1 + $0x30] sm:$0xf]
        %v783 = vld [vmem:[%s1 + $0x34] sm:$0xf]
        %v784 = vld [vmem:[%s1 + $0x38] sm:$0xf]
        %v785 = vld [vmem:[%s1 + $0x3c] sm:$0xf]
        %v802 = vunpack.c.l.b16 %v770
        %v803 = vunpack.c.l.b16 %v771
        %v804 = vunpack.c.l.b16 %v772
        %v805 = vunpack.c.l.b16 %v773
        %v806 = vunpack.c.l.b16 %v774
        %v807 = vunpack.c.l.b16 %v775
        %v808 = vunpack.c.l.b16 %v776
        %v809 = vunpack.c.l.b16 %v777
        %v810 = vunpack.c.l.b16 %v778
        %v811 = vunpack.c.l.b16 %v779
        %v812 = vunpack.c.l.b16 %v780
        %v813 = vunpack.c.l.b16 %v781
        %v814 = vunpack.c.l.b16 %v782
        %v815 = vunpack.c.l.b16 %v783
        %v816 = vunpack.c.l.b16 %v784
        %v817 = vunpack.c.l.b16 %v785
        %v818 = vpack.c.b16 %v803, %v802
        %v819 = vpack.c.b16 %v805, %v804
        %v820 = vpack.c.b16 %v807, %v806
        %v821 = vpack.c.b16 %v809, %v808
        %v822 = vpack.c.b16 %v811, %v810
        %v823 = vpack.c.b16 %v813, %v812
        %v824 = vpack.c.b16 %v815, %v814
        %v825 = vpack.c.b16 %v817, %v816
        %834 = vmatpush.bf16.msra.mxu0 %v825
        %835 = vmatpush.bf16.msra.mxu0 %v824
        %836 = vmatpush.bf16.msra.mxu0 %v823
        %837 = vmatpush.bf16.msra.mxu0 %v822
        %838 = vmatpush.bf16.msra.mxu0 %v821
        %839 = vmatpush.bf16.msra.mxu0 %v820
        %840 = vmatpush.bf16.msra.mxu0 %v819
        %841 = vmatpush.bf16.msra.mxu0 %v818
        %842 = vmatmul.bf16.gmra.mxu0 %v762
        %v843 = vpop.f32.mrf.mxu0
        %v844 = vadd.f32 0.0, %v843
        %v845 = vpop.f32.mrf.mxu0
        %v846 = vadd.f32 0.0, %v845
        %847 = vmatmul.bf16.gmra.mxu0 %v763
        %v848 = vpop.f32.mrf.mxu0
        %v849 = vadd.f32 0.0, %v848
        %v850 = vpop.f32.mrf.mxu0
        %v851 = vadd.f32 0.0, %v850
        %852 = vmatmul.bf16.gmra.mxu0 %v764
        %v853 = vpop.f32.mrf.mxu0
        %v854 = vadd.f32 0.0, %v853
        %v855 = vpop.f32.mrf.mxu0
        %v856 = vadd.f32 0.0, %v855
        %857 = vmatmul.bf16.gmra.mxu0 %v765
        %v858 = vpop.f32.mrf.mxu0
        %v859 = vadd.f32 0.0, %v858
        %v860 = vpop.f32.mrf.mxu0
        %v861 = vadd.f32 0.0, %v860
        %862 = vmatmul.bf16.gmra.mxu0 %v766
        %v863 = vpop.f32.mrf.mxu0
        %v864 = vadd.f32 0.0, %v863
        %v865 = vpop.f32.mrf.mxu0
        %v866 = vadd.f32 0.0, %v865
        %867 = vmatmul.bf16.gmra.mxu0 %v767
        %v868 = vpop.f32.mrf.mxu0
        %v869 = vadd.f32 0.0, %v868
        %v870 = vpop.f32.mrf.mxu0
        %v871 = vadd.f32 0.0, %v870
        %872 = vmatmul.bf16.gmra.mxu0 %v768
        %v873 = vpop.f32.mrf.mxu0
        %v874 = vadd.f32 0.0, %v873
        %v875 = vpop.f32.mrf.mxu0
        %v876 = vadd.f32 0.0, %v875
        %877 = vmatmul.bf16.gmra.mxu0 %v769
        %v878 = vpop.f32.mrf.mxu0
        %v879 = vadd.f32 0.0, %v878
        %v880 = vpop.f32.mrf.mxu0
        %v881 = vadd.f32 0.0, %v880
        %882 = vdwg.mxu0
        %v883 = vld [vmem:[%s2] sm:$0xff]
        %v884 = vld [vmem:[%s2 + $0x8] sm:$0xff]
        %v885 = vadd.f32 %v844, %v883
        %v886 = vadd.f32 %v846, %v884
        %v887 = vadd.f32 %v849, %v883
        %v888 = vadd.f32 %v851, %v884
        %v889 = vadd.f32 %v854, %v883
        %v890 = vadd.f32 %v856, %v884
        %v891 = vadd.f32 %v859, %v883
        %v892 = vadd.f32 %v861, %v884
        %v893 = vadd.f32 %v864, %v883
        %v894 = vadd.f32 %v866, %v884
        %v895 = vadd.f32 %v869, %v883
        %v896 = vadd.f32 %v871, %v884
        %v897 = vadd.f32 %v874, %v883
        %v898 = vadd.f32 %v876, %v884
        %v899 = vadd.f32 %v879, %v883
        %v900 = vadd.f32 %v881, %v884
        %v901 = vpack.c.bf16 %v886, %v885
        %v902 = vpack.c.bf16 %v888, %v887
        %v903 = vpack.c.bf16 %v890, %v889
        %v904 = vpack.c.bf16 %v892, %v891
        %v905 = vpack.c.bf16 %v894, %v893
        %v906 = vpack.c.bf16 %v896, %v895
        %v907 = vpack.c.bf16 %v898, %v897
        %v908 = vpack.c.bf16 %v900, %v899
        %v909 = vld [vmem:[#allocation2] sm:$0xff]
        %v910 = vld [vmem:[#allocation2 + $0x8] sm:$0xf]
        %v911 = vld [vmem:[#allocation2 + $0xc] sm:$0xff]
        %v912 = vld [vmem:[#allocation2 + $0x14] sm:$0xf]
        %v913 = vld [vmem:[#allocation2 + $0x18] sm:$0xff]
        %v914 = vld [vmem:[#allocation2 + $0x20] sm:$0xf]
        %v915 = vld [vmem:[#allocation2 + $0x24] sm:$0xff]
        %v916 = vld [vmem:[#allocation2 + $0x2c] sm:$0xf]
        %v917 = vld [vmem:[#allocation2 + $0x30] sm:$0xff]
        %v918 = vld [vmem:[#allocation2 + $0x38] sm:$0xf]
        %v919 = vld [vmem:[#allocation2 + $0x3c] sm:$0xff]
        %v920 = vld [vmem:[#allocation2 + $0x44] sm:$0xf]
        %v921 = vld [vmem:[#allocation2 + $0x48] sm:$0xff]
        %v922 = vld [vmem:[#allocation2 + $0x50] sm:$0xf]
        %v923 = vld [vmem:[#allocation2 + $0x54] sm:$0xff]
        %v924 = vld [vmem:[#allocation2 + $0x5c] sm:$0xf]
        %v925 = vld [vmem:[#allocation2 + $0x60] sm:$0xff]
        %v926 = vld [vmem:[#allocation2 + $0x68] sm:$0xf]
        %v927 = vld [vmem:[#allocation2 + $0x6c] sm:$0xff]
        %v928 = vld [vmem:[#allocation2 + $0x74] sm:$0xf]
        %v929 = vld [vmem:[#allocation2 + $0x78] sm:$0xff]
        %v930 = vld [vmem:[#allocation2 + $0x80] sm:$0xf]
        %v931 = vld [vmem:[#allocation2 + $0x84] sm:$0xff]
        %v932 = vld [vmem:[#allocation2 + $0x8c] sm:$0xf]
        %v933 = vld [vmem:[#allocation2 + $0x90] sm:$0xff]
        %v934 = vld [vmem:[#allocation2 + $0x98] sm:$0xf]
        %v935 = vld [vmem:[#allocation2 + $0x9c] sm:$0xff]
        %v936 = vld [vmem:[#allocation2 + $0xa4] sm:$0xf]
        %v937 = vld [vmem:[#allocation2 + $0xa8] sm:$0xff]
        %v938 = vld [vmem:[#allocation2 + $0xb0] sm:$0xf]
        %v939 = vld [vmem:[#allocation2 + $0xb4] sm:$0xff]
        %v940 = vld [vmem:[#allocation2 + $0xbc] sm:$0xf]
        %v941 = vld [vmem:[%s4] sm:$0x7]
        %v943 = vperm.slane %v941, 0
        %v944 = vperm.slane %v941, 1
        %v945 = vperm.slane %v941, 2
        %v981 = vunpack.c.l.b16 %v909
        %v982 = vunpack.c.h.b16 %v909
        %v983 = vunpack.c.l.b16 %v910
        %v984 = vunpack.c.l.b16 %v911
        %v985 = vunpack.c.h.b16 %v911
        %v986 = vunpack.c.l.b16 %v912
        %v987 = vunpack.c.l.b16 %v913
        %v988 = vunpack.c.h.b16 %v913
        %v989 = vunpack.c.l.b16 %v914
        %v990 = vunpack.c.l.b16 %v915
        %v991 = vunpack.c.h.b16 %v915
        %v992 = vunpack.c.l.b16 %v916
        %v993 = vunpack.c.l.b16 %v917
        %v994 = vunpack.c.h.b16 %v917
        %v995 = vunpack.c.l.b16 %v918
        %v996 = vunpack.c.l.b16 %v919
        %v997 = vunpack.c.h.b16 %v919
        %v998 = vunpack.c.l.b16 %v920
        %v999 = vunpack.c.l.b16 %v921
        %v1000 = vunpack.c.h.b16 %v921
        %v1001 = vunpack.c.l.b16 %v922
        %v1002 = vunpack.c.l.b16 %v923
        %v1003 = vunpack.c.h.b16 %v923
        %v1004 = vunpack.c.l.b16 %v924
        %v1005 = vunpack.c.l.b16 %v925
        %v1006 = vunpack.c.h.b16 %v925
        %v1007 = vunpack.c.l.b16 %v926
        %v1008 = vunpack.c.l.b16 %v927
        %v1009 = vunpack.c.h.b16 %v927
        %v1010 = vunpack.c.l.b16 %v928
        %v1011 = vunpack.c.l.b16 %v929
        %v1012 = vunpack.c.h.b16 %v929
        %v1013 = vunpack.c.l.b16 %v930
        %v1014 = vunpack.c.l.b16 %v931
        %v1015 = vunpack.c.h.b16 %v931
        %v1016 = vunpack.c.l.b16 %v932
        %v1017 = vunpack.c.l.b16 %v933
        %v1018 = vunpack.c.h.b16 %v933
        %v1019 = vunpack.c.l.b16 %v934
        %v1020 = vunpack.c.l.b16 %v935
        %v1021 = vunpack.c.h.b16 %v935
        %v1022 = vunpack.c.l.b16 %v936
        %v1023 = vunpack.c.l.b16 %v937
        %v1024 = vunpack.c.h.b16 %v937
        %v1025 = vunpack.c.l.b16 %v938
        %v1026 = vunpack.c.l.b16 %v939
        %v1027 = vunpack.c.h.b16 %v939
        %v1028 = vunpack.c.l.b16 %v940
        %v1029 = vpack.c.b16 %v984, %v981
        %v1030 = vpack.c.b16 %v985, %v982
        %v1031 = vpack.c.b16 %v986, %v983
        %v1032 = vpack.c.b16 %v990, %v987
        %v1033 = vpack.c.b16 %v991, %v988
        %v1034 = vpack.c.b16 %v992, %v989
        %v1035 = vpack.c.b16 %v996, %v993
        %v1036 = vpack.c.b16 %v997, %v994
        %v1037 = vpack.c.b16 %v998, %v995
        %v1038 = vpack.c.b16 %v1002, %v999
        %v1039 = vpack.c.b16 %v1003, %v1000
        %v1040 = vpack.c.b16 %v1004, %v1001
        %v1041 = vpack.c.b16 %v1008, %v1005
        %v1042 = vpack.c.b16 %v1009, %v1006
        %v1043 = vpack.c.b16 %v1010, %v1007
        %v1044 = vpack.c.b16 %v1014, %v1011
        %v1045 = vpack.c.b16 %v1015, %v1012
        %v1046 = vpack.c.b16 %v1016, %v1013
        %v1047 = vpack.c.b16 %v1020, %v1017
        %v1048 = vpack.c.b16 %v1021, %v1018
        %v1049 = vpack.c.b16 %v1022, %v1019
        %v1050 = vpack.c.b16 %v1026, %v1023
        %v1051 = vpack.c.b16 %v1027, %v1024
        %v1052 = vpack.c.b16 %v1028, %v1025
        %1077 = vmatpush.bf16.msra.mxu0 %v1050
        %1078 = vmatpush.bf16.msra.mxu0 %v1047
        %1079 = vmatpush.bf16.msra.mxu0 %v1044
        %1080 = vmatpush.bf16.msra.mxu0 %v1041
        %1081 = vmatpush.bf16.msra.mxu0 %v1038
        %1082 = vmatpush.bf16.msra.mxu0 %v1035
        %1083 = vmatpush.bf16.msra.mxu0 %v1032
        %1084 = vmatpush.bf16.msra.mxu0 %v1029
        %1085 = vmatmul.bf16.gmra.mxu0 %v901
        %v1086 = vpop.f32.mrf.mxu0
        %v1087 = vadd.f32 %v943, %v1086
        %v1088 = vpop.f32.mrf.mxu0
        %v1089 = vadd.f32 %v943, %v1088
        %1090 = vmatmul.bf16.gmra.mxu0 %v902
        %v1091 = vpop.f32.mrf.mxu0
        %v1092 = vadd.f32 %v943, %v1091
        %v1093 = vpop.f32.mrf.mxu0
        %v1094 = vadd.f32 %v943, %v1093
        %1095 = vmatmul.bf16.gmra.mxu0 %v903
        %v1096 = vpop.f32.mrf.mxu0
        %v1097 = vadd.f32 %v943, %v1096
        %v1098 = vpop.f32.mrf.mxu0
        %v1099 = vadd.f32 %v943, %v1098
        %1100 = vmatmul.bf16.gmra.mxu0 %v904
        %v1101 = vpop.f32.mrf.mxu0
        %v1102 = vadd.f32 %v943, %v1101
        %v1103 = vpop.f32.mrf.mxu0
        %v1104 = vadd.f32 %v943, %v1103
        %1105 = vmatmul.bf16.gmra.mxu0 %v905
        %v1106 = vpop.f32.mrf.mxu0
        %v1107 = vadd.f32 %v943, %v1106
        %v1108 = vpop.f32.mrf.mxu0
        %v1109 = vadd.f32 %v943, %v1108
        %1110 = vmatmul.bf16.gmra.mxu0 %v906
        %v1111 = vpop.f32.mrf.mxu0
        %v1112 = vadd.f32 %v943, %v1111
        %v1113 = vpop.f32.mrf.mxu0
        %v1114 = vadd.f32 %v943, %v1113
        %1115 = vmatmul.bf16.gmra.mxu0 %v907
        %v1116 = vpop.f32.mrf.mxu0
        %v1117 = vadd.f32 %v943, %v1116
        %v1118 = vpop.f32.mrf.mxu0
        %v1119 = vadd.f32 %v943, %v1118
        %1120 = vmatmul.bf16.gmra.mxu0 %v908
        %v1121 = vpop.f32.mrf.mxu0
        %v1122 = vadd.f32 %v943, %v1121
        %v1123 = vpop.f32.mrf.mxu0
        %v1124 = vadd.f32 %v943, %v1123
        %1125 = vdwg.mxu0
        %1126 = vmatpush.bf16.msra.mxu0 %v1051
        %1127 = vmatpush.bf16.msra.mxu0 %v1048
        %1128 = vmatpush.bf16.msra.mxu0 %v1045
        %1129 = vmatpush.bf16.msra.mxu0 %v1042
        %1130 = vmatpush.bf16.msra.mxu0 %v1039
        %1131 = vmatpush.bf16.msra.mxu0 %v1036
        %1132 = vmatpush.bf16.msra.mxu0 %v1033
        %1133 = vmatpush.bf16.msra.mxu0 %v1030
        %1134 = vmatmul.bf16.gmra.mxu0 %v901
        %v1135 = vpop.f32.mrf.mxu0
        %v1136 = vadd.f32 %v944, %v1135
        %v1137 = vpop.f32.mrf.mxu0
        %v1138 = vadd.f32 %v944, %v1137
        %1139 = vmatmul.bf16.gmra.mxu0 %v902
        %v1140 = vpop.f32.mrf.mxu0
        %v1141 = vadd.f32 %v944, %v1140
        %v1142 = vpop.f32.mrf.mxu0
        %v1143 = vadd.f32 %v944, %v1142
        %1144 = vmatmul.bf16.gmra.mxu0 %v903
        %v1145 = vpop.f32.mrf.mxu0
        %v1146 = vadd.f32 %v944, %v1145
        %v1147 = vpop.f32.mrf.mxu0
        %v1148 = vadd.f32 %v944, %v1147
        %1149 = vmatmul.bf16.gmra.mxu0 %v904
        %v1150 = vpop.f32.mrf.mxu0
        %v1151 = vadd.f32 %v944, %v1150
        %v1152 = vpop.f32.mrf.mxu0
        %v1153 = vadd.f32 %v944, %v1152
        %1154 = vmatmul.bf16.gmra.mxu0 %v905
        %v1155 = vpop.f32.mrf.mxu0
        %v1156 = vadd.f32 %v944, %v1155
        %v1157 = vpop.f32.mrf.mxu0
        %v1158 = vadd.f32 %v944, %v1157
        %1159 = vmatmul.bf16.gmra.mxu0 %v906
        %v1160 = vpop.f32.mrf.mxu0
        %v1161 = vadd.f32 %v944, %v1160
        %v1162 = vpop.f32.mrf.mxu0
        %v1163 = vadd.f32 %v944, %v1162
        %1164 = vmatmul.bf16.gmra.mxu0 %v907
        %v1165 = vpop.f32.mrf.mxu0
        %v1166 = vadd.f32 %v944, %v1165
        %v1167 = vpop.f32.mrf.mxu0
        %v1168 = vadd.f32 %v944, %v1167
        %1169 = vmatmul.bf16.gmra.mxu0 %v908
        %v1170 = vpop.f32.mrf.mxu0
        %v1171 = vadd.f32 %v944, %v1170
        %v1172 = vpop.f32.mrf.mxu0
        %v1173 = vadd.f32 %v944, %v1172
        %1174 = vdwg.mxu0
        %1175 = vmatpush.bf16.msra.mxu0 %v1052
        %1176 = vmatpush.bf16.msra.mxu0 %v1049
        %1177 = vmatpush.bf16.msra.mxu0 %v1046
        %1178 = vmatpush.bf16.msra.mxu0 %v1043
        %1179 = vmatpush.bf16.msra.mxu0 %v1040
        %1180 = vmatpush.bf16.msra.mxu0 %v1037
        %1181 = vmatpush.bf16.msra.mxu0 %v1034
        %1182 = vmatpush.bf16.msra.mxu0 %v1031
        %1183 = vmatmul.bf16.gmra.mxu0 %v901
        %v1184 = vpop.f32.mrf.mxu0
        %v1185 = vadd.f32 %v945, %v1184
        %v1186 = vpop.f32.mrf.mxu0
        %v1187 = vadd.f32 %v945, %v1186
        %1188 = vmatmul.bf16.gmra.mxu0 %v902
        %v1189 = vpop.f32.mrf.mxu0
        %v1190 = vadd.f32 %v945, %v1189
        %v1191 = vpop.f32.mrf.mxu0
        %v1192 = vadd.f32 %v945, %v1191
        %1193 = vmatmul.bf16.gmra.mxu0 %v903
        %v1194 = vpop.f32.mrf.mxu0
        %v1195 = vadd.f32 %v945, %v1194
        %v1196 = vpop.f32.mrf.mxu0
        %v1197 = vadd.f32 %v945, %v1196
        %1198 = vmatmul.bf16.gmra.mxu0 %v904
        %v1199 = vpop.f32.mrf.mxu0
        %v1200 = vadd.f32 %v945, %v1199
        %v1201 = vpop.f32.mrf.mxu0
        %v1202 = vadd.f32 %v945, %v1201
        %1203 = vmatmul.bf16.gmra.mxu0 %v905
        %v1204 = vpop.f32.mrf.mxu0
        %v1205 = vadd.f32 %v945, %v1204
        %v1206 = vpop.f32.mrf.mxu0
        %v1207 = vadd.f32 %v945, %v1206
        %1208 = vmatmul.bf16.gmra.mxu0 %v906
        %v1209 = vpop.f32.mrf.mxu0
        %v1210 = vadd.f32 %v945, %v1209
        %v1211 = vpop.f32.mrf.mxu0
        %v1212 = vadd.f32 %v945, %v1211
        %1213 = vmatmul.bf16.gmra.mxu0 %v907
        %v1214 = vpop.f32.mrf.mxu0
        %v1215 = vadd.f32 %v945, %v1214
        %v1216 = vpop.f32.mrf.mxu0
        %v1217 = vadd.f32 %v945, %v1216
        %1218 = vmatmul.bf16.gmra.mxu0 %v908
        %v1219 = vpop.f32.mrf.mxu0
        %v1220 = vadd.f32 %v945, %v1219
        %v1221 = vpop.f32.mrf.mxu0
        %v1222 = vadd.f32 %v945, %v1221
        %1223 = vdwg.mxu0
        %v1224 = vmul.f32 %v1087, 0.17677669
        %v1225 = vmul.f32 %v1089, 0.17677669
        %v1226 = vmul.f32 %v1092, 0.17677669
        %v1227 = vmul.f32 %v1094, 0.17677669
        %v1228 = vmul.f32 %v1097, 0.17677669
        %v1229 = vmul.f32 %v1099, 0.17677669
        %v1230 = vmul.f32 %v1102, 0.17677669
        %v1231 = vmul.f32 %v1104, 0.17677669
        %v1232 = vmul.f32 %v1107, 0.17677669
        %v1233 = vmul.f32 %v1109, 0.17677669
        %v1234 = vmul.f32 %v1112, 0.17677669
        %v1235 = vmul.f32 %v1114, 0.17677669
        %v1236 = vmul.f32 %v1117, 0.17677669
        %v1237 = vmul.f32 %v1119, 0.17677669
        %v1238 = vmul.f32 %v1122, 0.17677669
        %v1239 = vmul.f32 %v1124, 0.17677669
        %v1240 = vpack.c.bf16 %v1224, %v1224
        %v1241 = vpack.c.bf16 %v1225, %v1225
        %v1242 = vpack.c.bf16 %v1226, %v1226
        %v1243 = vpack.c.bf16 %v1227, %v1227
        %v1244 = vpack.c.bf16 %v1228, %v1228
        %v1245 = vpack.c.bf16 %v1229, %v1229
        %v1246 = vpack.c.bf16 %v1230, %v1230
        %v1247 = vpack.c.bf16 %v1231, %v1231
        %v1248 = vpack.c.bf16 %v1232, %v1232
        %v1249 = vpack.c.bf16 %v1233, %v1233
        %v1250 = vpack.c.bf16 %v1234, %v1234
        %v1251 = vpack.c.bf16 %v1235, %v1235
        %v1252 = vpack.c.bf16 %v1236, %v1236
        %v1253 = vpack.c.bf16 %v1237, %v1237
        %v1254 = vpack.c.bf16 %v1238, %v1238
        %v1255 = vpack.c.bf16 %v1239, %v1239
        %v1256 = vpack.c.bf16 %v1136, %v1136
        %v1257 = vpack.c.bf16 %v1138, %v1138
        %v1258 = vpack.c.bf16 %v1141, %v1141
        %v1259 = vpack.c.bf16 %v1143, %v1143
        %v1260 = vpack.c.bf16 %v1146, %v1146
        %v1261 = vpack.c.bf16 %v1148, %v1148
        %v1262 = vpack.c.bf16 %v1151, %v1151
        %v1263 = vpack.c.bf16 %v1153, %v1153
        %v1264 = vpack.c.bf16 %v1156, %v1156
        %v1265 = vpack.c.bf16 %v1158, %v1158
        %v1266 = vpack.c.bf16 %v1161, %v1161
        %v1267 = vpack.c.bf16 %v1163, %v1163
        %v1268 = vpack.c.bf16 %v1166, %v1166
        %v1269 = vpack.c.bf16 %v1168, %v1168
        %v1270 = vpack.c.bf16 %v1171, %v1171
        %v1271 = vpack.c.bf16 %v1173, %v1173
        %v1272 = vpack.c.bf16 %v1185, %v1185
        %v1273 = vpack.c.bf16 %v1187, %v1187
        %v1274 = vpack.c.bf16 %v1190, %v1190
        %v1275 = vpack.c.bf16 %v1192, %v1192
        %v1276 = vpack.c.bf16 %v1195, %v1195
        %v1277 = vpack.c.bf16 %v1197, %v1197
        %v1278 = vpack.c.bf16 %v1200, %v1200
        %v1279 = vpack.c.bf16 %v1202, %v1202
        %v1280 = vpack.c.bf16 %v1205, %v1205
        %v1281 = vpack.c.bf16 %v1207, %v1207
        %v1282 = vpack.c.bf16 %v1210, %v1210
        %v1283 = vpack.c.bf16 %v1212, %v1212
        %v1284 = vpack.c.bf16 %v1215, %v1215
        %v1285 = vpack.c.bf16 %v1217, %v1217
        %v1286 = vpack.c.bf16 %v1220, %v1220
        %v1287 = vpack.c.bf16 %v1222, %v1222
        %vm1288 = vcmp.ge.s32.totalorder %v665, 0
        %vm1289 = vcmp.lt.s32.totalorder %v665, 32
        %vm1290 = vmand %vm1288, %vm1289
        %v1291 = vsel %vm1290, 1, 0
        %v1292 = vcvt.s32.f32 %v1291
        %v1293 = vpack.c.bf16 %v1292, %v1292
        %v1294 = vunpack.c.l.bf16 %v1256
        %v1295 = vunpack.c.l.bf16 %v1257
        %v1296 = vunpack.c.l.bf16 %v1258
        %v1297 = vunpack.c.l.bf16 %v1259
        %v1298 = vunpack.c.l.bf16 %v1260
        %v1299 = vunpack.c.l.bf16 %v1261
        %v1300 = vunpack.c.l.bf16 %v1262
        %v1301 = vunpack.c.l.bf16 %v1263
        %v1302 = vunpack.c.l.bf16 %v1264
        %v1303 = vunpack.c.l.bf16 %v1265
        %v1304 = vunpack.c.l.bf16 %v1266
        %v1305 = vunpack.c.l.bf16 %v1267
        %v1306 = vunpack.c.l.bf16 %v1268
        %v1307 = vunpack.c.l.bf16 %v1269
        %v1308 = vunpack.c.l.bf16 %v1270
        %v1309 = vunpack.c.l.bf16 %v1271
        %v1310 = vunpack.c.l.bf16 %v1293
        %v1311 = vmul.f32 %v1294, %v1310
        %v1312 = vmul.f32 %v1295, %v1310
        %v1313 = vmul.f32 %v1296, %v1310
        %v1314 = vmul.f32 %v1297, %v1310
        %v1315 = vmul.f32 %v1298, %v1310
        %v1316 = vmul.f32 %v1299, %v1310
        %v1317 = vmul.f32 %v1300, %v1310
        %v1318 = vmul.f32 %v1301, %v1310
        %v1319 = vmul.f32 %v1302, %v1310
        %v1320 = vmul.f32 %v1303, %v1310
        %v1321 = vmul.f32 %v1304, %v1310
        %v1322 = vmul.f32 %v1305, %v1310
        %v1323 = vmul.f32 %v1306, %v1310
        %v1324 = vmul.f32 %v1307, %v1310
        %v1325 = vmul.f32 %v1308, %v1310
        %v1326 = vmul.f32 %v1309, %v1310
        %v1327 = vpack.c.bf16 %v1311, %v1311
        %v1328 = vpack.c.bf16 %v1312, %v1312
        %v1329 = vpack.c.bf16 %v1313, %v1313
        %v1330 = vpack.c.bf16 %v1314, %v1314
        %v1331 = vpack.c.bf16 %v1315, %v1315
        %v1332 = vpack.c.bf16 %v1316, %v1316
        %v1333 = vpack.c.bf16 %v1317, %v1317
        %v1334 = vpack.c.bf16 %v1318, %v1318
        %v1335 = vpack.c.bf16 %v1319, %v1319
        %v1336 = vpack.c.bf16 %v1320, %v1320
        %v1337 = vpack.c.bf16 %v1321, %v1321
        %v1338 = vpack.c.bf16 %v1322, %v1322
        %v1339 = vpack.c.bf16 %v1323, %v1323
        %v1340 = vpack.c.bf16 %v1324, %v1324
        %v1341 = vpack.c.bf16 %v1325, %v1325
        %v1342 = vpack.c.bf16 %v1326, %v1326
        %v1345 = vunpack.c.l.b16 %v1240
        %v1346 = vunpack.c.l.b16 %v1241
        %v1347 = vpack.c.b16 %v1346, %v1345
        %v1351 = vunpack.c.l.b16 %v1327
        %v1352 = vunpack.c.l.b16 %v1328
        %v1353 = vpack.c.b16 %v1352, %v1351
        %1355 = vmatpush.bf16.xpose.msra.mxu0 0
        %1356 = vmatpush.bf16.xpose.msra.mxu0 0
        %1357 = vmatpush.bf16.xpose.msra.mxu0 0
        %1358 = vmatpush.bf16.xpose.msra.mxu0 0
        %1359 = vmatpush.bf16.xpose.msra.mxu0 0
        %1360 = vmatpush.bf16.xpose.msra.mxu0 0
        %1361 = vmatpush.bf16.xpose.msra.mxu0 0
        %1362 = vmatpush.bf16.xpose.msra.mxu0 %v1353
        %1363 = vmatmul.bf16.gmra.mxu0 %v1347
        %v1364 = vpop.f32.mrf.mxu0
        %v1365 = vadd.f32 0.0, %v1364
        %v1366 = vpop.f32.mrf.mxu0
        %v1367 = vadd.f32 0.0, %v1366
        %1368 = vdwg.mxu0
        %v1371 = vunpack.c.l.b16 %v1242
        %v1372 = vunpack.c.l.b16 %v1243
        %v1373 = vpack.c.b16 %v1372, %v1371
        %v1377 = vunpack.c.l.b16 %v1329
        %v1378 = vunpack.c.l.b16 %v1330
        %v1379 = vpack.c.b16 %v1378, %v1377
        %1381 = vmatpush.bf16.xpose.msra.mxu0 0
        %1382 = vmatpush.bf16.xpose.msra.mxu0 0
        %1383 = vmatpush.bf16.xpose.msra.mxu0 0
        %1384 = vmatpush.bf16.xpose.msra.mxu0 0
        %1385 = vmatpush.bf16.xpose.msra.mxu0 0
        %1386 = vmatpush.bf16.xpose.msra.mxu0 0
        %1387 = vmatpush.bf16.xpose.msra.mxu0 0
        %1388 = vmatpush.bf16.xpose.msra.mxu0 %v1379
        %1389 = vmatmul.bf16.gmra.mxu0 %v1373
        %v1390 = vpop.f32.mrf.mxu0
        %v1391 = vadd.f32 0.0, %v1390
        %v1392 = vpop.f32.mrf.mxu0
        %v1393 = vadd.f32 0.0, %v1392
        %1394 = vdwg.mxu0
        %v1397 = vunpack.c.l.b16 %v1244
        %v1398 = vunpack.c.l.b16 %v1245
        %v1399 = vpack.c.b16 %v1398, %v1397
        %v1403 = vunpack.c.l.b16 %v1331
        %v1404 = vunpack.c.l.b16 %v1332
        %v1405 = vpack.c.b16 %v1404, %v1403
        %1407 = vmatpush.bf16.xpose.msra.mxu0 0
        %1408 = vmatpush.bf16.xpose.msra.mxu0 0
        %1409 = vmatpush.bf16.xpose.msra.mxu0 0
        %1410 = vmatpush.bf16.xpose.msra.mxu0 0
        %1411 = vmatpush.bf16.xpose.msra.mxu0 0
        %1412 = vmatpush.bf16.xpose.msra.mxu0 0
        %1413 = vmatpush.bf16.xpose.msra.mxu0 0
        %1414 = vmatpush.bf16.xpose.msra.mxu0 %v1405
        %1415 = vmatmul.bf16.gmra.mxu0 %v1399
        %v1416 = vpop.f32.mrf.mxu0
        %v1417 = vadd.f32 0.0, %v1416
        %v1418 = vpop.f32.mrf.mxu0
        %v1419 = vadd.f32 0.0, %v1418
        %1420 = vdwg.mxu0
        %v1423 = vunpack.c.l.b16 %v1246
        %v1424 = vunpack.c.l.b16 %v1247
        %v1425 = vpack.c.b16 %v1424, %v1423
        %v1429 = vunpack.c.l.b16 %v1333
        %v1430 = vunpack.c.l.b16 %v1334
        %v1431 = vpack.c.b16 %v1430, %v1429
        %1433 = vmatpush.bf16.xpose.msra.mxu0 0
        %1434 = vmatpush.bf16.xpose.msra.mxu0 0
        %1435 = vmatpush.bf16.xpose.msra.mxu0 0
        %1436 = vmatpush.bf16.xpose.msra.mxu0 0
        %1437 = vmatpush.bf16.xpose.msra.mxu0 0
        %1438 = vmatpush.bf16.xpose.msra.mxu0 0
        %1439 = vmatpush.bf16.xpose.msra.mxu0 0
        %1440 = vmatpush.bf16.xpose.msra.mxu0 %v1431
        %1441 = vmatmul.bf16.gmra.mxu0 %v1425
        %v1442 = vpop.f32.mrf.mxu0
        %v1443 = vadd.f32 0.0, %v1442
        %v1444 = vpop.f32.mrf.mxu0
        %v1445 = vadd.f32 0.0, %v1444
        %1446 = vdwg.mxu0
        %v1449 = vunpack.c.l.b16 %v1248
        %v1450 = vunpack.c.l.b16 %v1249
        %v1451 = vpack.c.b16 %v1450, %v1449
        %v1455 = vunpack.c.l.b16 %v1335
        %v1456 = vunpack.c.l.b16 %v1336
        %v1457 = vpack.c.b16 %v1456, %v1455
        %1459 = vmatpush.bf16.xpose.msra.mxu0 0
        %1460 = vmatpush.bf16.xpose.msra.mxu0 0
        %1461 = vmatpush.bf16.xpose.msra.mxu0 0
        %1462 = vmatpush.bf16.xpose.msra.mxu0 0
        %1463 = vmatpush.bf16.xpose.msra.mxu0 0
        %1464 = vmatpush.bf16.xpose.msra.mxu0 0
        %1465 = vmatpush.bf16.xpose.msra.mxu0 0
        %1466 = vmatpush.bf16.xpose.msra.mxu0 %v1457
        %1467 = vmatmul.bf16.gmra.mxu0 %v1451
        %v1468 = vpop.f32.mrf.mxu0
        %v1469 = vadd.f32 0.0, %v1468
        %v1470 = vpop.f32.mrf.mxu0
        %v1471 = vadd.f32 0.0, %v1470
        %1472 = vdwg.mxu0
        %v1475 = vunpack.c.l.b16 %v1250
        %v1476 = vunpack.c.l.b16 %v1251
        %v1477 = vpack.c.b16 %v1476, %v1475
        %v1481 = vunpack.c.l.b16 %v1337
        %v1482 = vunpack.c.l.b16 %v1338
        %v1483 = vpack.c.b16 %v1482, %v1481
        %1485 = vmatpush.bf16.xpose.msra.mxu0 0
        %1486 = vmatpush.bf16.xpose.msra.mxu0 0
        %1487 = vmatpush.bf16.xpose.msra.mxu0 0
        %1488 = vmatpush.bf16.xpose.msra.mxu0 0
        %1489 = vmatpush.bf16.xpose.msra.mxu0 0
        %1490 = vmatpush.bf16.xpose.msra.mxu0 0
        %1491 = vmatpush.bf16.xpose.msra.mxu0 0
        %1492 = vmatpush.bf16.xpose.msra.mxu0 %v1483
        %1493 = vmatmul.bf16.gmra.mxu0 %v1477
        %v1494 = vpop.f32.mrf.mxu0
        %v1495 = vadd.f32 0.0, %v1494
        %v1496 = vpop.f32.mrf.mxu0
        %v1497 = vadd.f32 0.0, %v1496
        %1498 = vdwg.mxu0
        %v1501 = vunpack.c.l.b16 %v1252
        %v1502 = vunpack.c.l.b16 %v1253
        %v1503 = vpack.c.b16 %v1502, %v1501
        %v1507 = vunpack.c.l.b16 %v1339
        %v1508 = vunpack.c.l.b16 %v1340
        %v1509 = vpack.c.b16 %v1508, %v1507
        %1511 = vmatpush.bf16.xpose.msra.mxu0 0
        %1512 = vmatpush.bf16.xpose.msra.mxu0 0
        %1513 = vmatpush.bf16.xpose.msra.mxu0 0
        %1514 = vmatpush.bf16.xpose.msra.mxu0 0
        %1515 = vmatpush.bf16.xpose.msra.mxu0 0
        %1516 = vmatpush.bf16.xpose.msra.mxu0 0
        %1517 = vmatpush.bf16.xpose.msra.mxu0 0
        %1518 = vmatpush.bf16.xpose.msra.mxu0 %v1509
        %1519 = vmatmul.bf16.gmra.mxu0 %v1503
        %v1520 = vpop.f32.mrf.mxu0
        %v1521 = vadd.f32 0.0, %v1520
        %v1522 = vpop.f32.mrf.mxu0
        %v1523 = vadd.f32 0.0, %v1522
        %1524 = vdwg.mxu0
        %v1527 = vunpack.c.l.b16 %v1254
        %v1528 = vunpack.c.l.b16 %v1255
        %v1529 = vpack.c.b16 %v1528, %v1527
        %v1533 = vunpack.c.l.b16 %v1341
        %v1534 = vunpack.c.l.b16 %v1342
        %v1535 = vpack.c.b16 %v1534, %v1533
        %1537 = vmatpush.bf16.xpose.msra.mxu0 0
        %1538 = vmatpush.bf16.xpose.msra.mxu0 0
        %1539 = vmatpush.bf16.xpose.msra.mxu0 0
        %1540 = vmatpush.bf16.xpose.msra.mxu0 0
        %1541 = vmatpush.bf16.xpose.msra.mxu0 0
        %1542 = vmatpush.bf16.xpose.msra.mxu0 0
        %1543 = vmatpush.bf16.xpose.msra.mxu0 0
        %1544 = vmatpush.bf16.xpose.msra.mxu0 %v1535
        %1545 = vmatmul.bf16.gmra.mxu0 %v1529
        %v1546 = vpop.f32.mrf.mxu0
        %v1547 = vadd.f32 0.0, %v1546
        %v1548 = vpop.f32.mrf.mxu0
        %v1549 = vadd.f32 0.0, %v1548
        %1550 = vdwg.mxu0
        %vm1551 = vcmask 130048
        %v1552 = vsel %vm1551, %v1365, -inf
        %1553 = vmax.xlane.f32.xlu0 %v1552
        %v1554 = vpop.xlane.xlu0 %1553
        %v1555 = vsel %vm1551, %v1367, -inf
        %1556 = vmax.xlane.f32.xlu0 %v1555
        %v1557 = vpop.xlane.xlu0 %1556
        %v1558 = vsel %vm1551, %v1391, -inf
        %1559 = vmax.xlane.f32.xlu0 %v1558
        %v1560 = vpop.xlane.xlu0 %1559
        %v1561 = vsel %vm1551, %v1393, -inf
        %1562 = vmax.xlane.f32.xlu0 %v1561
        %v1563 = vpop.xlane.xlu0 %1562
        %v1564 = vsel %vm1551, %v1417, -inf
        %1565 = vmax.xlane.f32.xlu0 %v1564
        %v1566 = vpop.xlane.xlu0 %1565
        %v1567 = vsel %vm1551, %v1419, -inf
        %1568 = vmax.xlane.f32.xlu0 %v1567
        %v1569 = vpop.xlane.xlu0 %1568
        %v1570 = vsel %vm1551, %v1443, -inf
        %1571 = vmax.xlane.f32.xlu0 %v1570
        %v1572 = vpop.xlane.xlu0 %1571
        %v1573 = vsel %vm1551, %v1445, -inf
        %1574 = vmax.xlane.f32.xlu0 %v1573
        %v1575 = vpop.xlane.xlu0 %1574
        %v1576 = vsel %vm1551, %v1469, -inf
        %1577 = vmax.xlane.f32.xlu0 %v1576
        %v1578 = vpop.xlane.xlu0 %1577
        %v1579 = vsel %vm1551, %v1471, -inf
        %1580 = vmax.xlane.f32.xlu0 %v1579
        %v1581 = vpop.xlane.xlu0 %1580
        %v1582 = vsel %vm1551, %v1495, -inf
        %1583 = vmax.xlane.f32.xlu0 %v1582
        %v1584 = vpop.xlane.xlu0 %1583
        %v1585 = vsel %vm1551, %v1497, -inf
        %1586 = vmax.xlane.f32.xlu0 %v1585
        %v1587 = vpop.xlane.xlu0 %1586
        %v1588 = vsel %vm1551, %v1521, -inf
        %1589 = vmax.xlane.f32.xlu0 %v1588
        %v1590 = vpop.xlane.xlu0 %1589
        %v1591 = vsel %vm1551, %v1523, -inf
        %1592 = vmax.xlane.f32.xlu0 %v1591
        %v1593 = vpop.xlane.xlu0 %1592
        %v1594 = vsel %vm1551, %v1547, -inf
        %1595 = vmax.xlane.f32.xlu0 %v1594
        %v1596 = vpop.xlane.xlu0 %1595
        %v1597 = vsel %vm1551, %v1549, -inf
        %1598 = vmax.xlane.f32.xlu0 %v1597
        %v1599 = vpop.xlane.xlu0 %1598
        %v1600 = vsub.f32 %v1365, %v1554
        %v1601 = vsub.f32 %v1367, %v1557
        %v1602 = vsub.f32 %v1391, %v1560
        %v1603 = vsub.f32 %v1393, %v1563
        %v1604 = vsub.f32 %v1417, %v1566
        %v1605 = vsub.f32 %v1419, %v1569
        %v1606 = vsub.f32 %v1443, %v1572
        %v1607 = vsub.f32 %v1445, %v1575
        %v1608 = vsub.f32 %v1469, %v1578
        %v1609 = vsub.f32 %v1471, %v1581
        %v1610 = vsub.f32 %v1495, %v1584
        %v1611 = vsub.f32 %v1497, %v1587
        %v1612 = vsub.f32 %v1521, %v1590
        %v1613 = vsub.f32 %v1523, %v1593
        %v1614 = vsub.f32 %v1547, %v1596
        %v1615 = vsub.f32 %v1549, %v1599
        %v1616 = vmul.f32 %v1600, 1.442695
        %v1617 = vpow.pop %v1616
        %v1618 = vmul.f32 %v1601, 1.442695
        %v1619 = vpow.pop %v1618
        %v1620 = vmul.f32 %v1602, 1.442695
        %v1621 = vpow.pop %v1620
        %v1622 = vmul.f32 %v1603, 1.442695
        %v1623 = vpow.pop %v1622
        %v1624 = vmul.f32 %v1604, 1.442695
        %v1625 = vpow.pop %v1624
        %v1626 = vmul.f32 %v1605, 1.442695
        %v1627 = vpow.pop %v1626
        %v1628 = vmul.f32 %v1606, 1.442695
        %v1629 = vpow.pop %v1628
        %v1630 = vmul.f32 %v1607, 1.442695
        %v1631 = vpow.pop %v1630
        %v1632 = vmul.f32 %v1608, 1.442695
        %v1633 = vpow.pop %v1632
        %v1634 = vmul.f32 %v1609, 1.442695
        %v1635 = vpow.pop %v1634
        %v1636 = vmul.f32 %v1610, 1.442695
        %v1637 = vpow.pop %v1636
        %v1638 = vmul.f32 %v1611, 1.442695
        %v1639 = vpow.pop %v1638
        %v1640 = vmul.f32 %v1612, 1.442695
        %v1641 = vpow.pop %v1640
        %v1642 = vmul.f32 %v1613, 1.442695
        %v1643 = vpow.pop %v1642
        %v1644 = vmul.f32 %v1614, 1.442695
        %v1645 = vpow.pop %v1644
        %v1646 = vmul.f32 %v1615, 1.442695
        %v1647 = vpow.pop %v1646
        %v1648 = vsel %vm1551, %v1617, 0.0
        %1649 = vadd.xlane.f32.xlu0 %v1648
        %v1650 = vpop.xlane.xlu0 %1649
        %v1651 = vsel %vm1551, %v1619, 0.0
        %1652 = vadd.xlane.f32.xlu0 %v1651
        %v1653 = vpop.xlane.xlu0 %1652
        %v1654 = vsel %vm1551, %v1621, 0.0
        %1655 = vadd.xlane.f32.xlu0 %v1654
        %v1656 = vpop.xlane.xlu0 %1655
        %v1657 = vsel %vm1551, %v1623, 0.0
        %1658 = vadd.xlane.f32.xlu0 %v1657
        %v1659 = vpop.xlane.xlu0 %1658
        %v1660 = vsel %vm1551, %v1625, 0.0
        %1661 = vadd.xlane.f32.xlu0 %v1660
        %v1662 = vpop.xlane.xlu0 %1661
        %v1663 = vsel %vm1551, %v1627, 0.0
        %1664 = vadd.xlane.f32.xlu0 %v1663
        %v1665 = vpop.xlane.xlu0 %1664
        %v1666 = vsel %vm1551, %v1629, 0.0
        %1667 = vadd.xlane.f32.xlu0 %v1666
        %v1668 = vpop.xlane.xlu0 %1667
        %v1669 = vsel %vm1551, %v1631, 0.0
        %1670 = vadd.xlane.f32.xlu0 %v1669
        %v1671 = vpop.xlane.xlu0 %1670
        %v1672 = vsel %vm1551, %v1633, 0.0
        %1673 = vadd.xlane.f32.xlu0 %v1672
        %v1674 = vpop.xlane.xlu0 %1673
        %v1675 = vsel %vm1551, %v1635, 0.0
        %1676 = vadd.xlane.f32.xlu0 %v1675
        %v1677 = vpop.xlane.xlu0 %1676
        %v1678 = vsel %vm1551, %v1637, 0.0
        %1679 = vadd.xlane.f32.xlu0 %v1678
        %v1680 = vpop.xlane.xlu0 %1679
        %v1681 = vsel %vm1551, %v1639, 0.0
        %1682 = vadd.xlane.f32.xlu0 %v1681
        %v1683 = vpop.xlane.xlu0 %1682
        %v1684 = vsel %vm1551, %v1641, 0.0
        %1685 = vadd.xlane.f32.xlu0 %v1684
        %v1686 = vpop.xlane.xlu0 %1685
        %v1687 = vsel %vm1551, %v1643, 0.0
        %1688 = vadd.xlane.f32.xlu0 %v1687
        %v1689 = vpop.xlane.xlu0 %1688
        %v1690 = vsel %vm1551, %v1645, 0.0
        %1691 = vadd.xlane.f32.xlu0 %v1690
        %v1692 = vpop.xlane.xlu0 %1691
        %v1693 = vsel %vm1551, %v1647, 0.0
        %1694 = vadd.xlane.f32.xlu0 %v1693
        %v1695 = vpop.xlane.xlu0 %1694
        %v1696 = vrcp.pop %v1650
        %v1697 = vrcp.pop %v1653
        %v1698 = vrcp.pop %v1656
        %v1699 = vrcp.pop %v1659
        %v1700 = vrcp.pop %v1662
        %v1701 = vrcp.pop %v1665
        %v1702 = vrcp.pop %v1668
        %v1703 = vrcp.pop %v1671
        %v1704 = vrcp.pop %v1674
        %v1705 = vrcp.pop %v1677
        %v1706 = vrcp.pop %v1680
        %v1707 = vrcp.pop %v1683
        %v1708 = vrcp.pop %v1686
        %v1709 = vrcp.pop %v1689
        %v1710 = vrcp.pop %v1692
        %v1711 = vrcp.pop %v1695
        %v1712 = vmul.f32 %v1617, %v1696
        %v1713 = vmul.f32 %v1619, %v1697
        %v1714 = vmul.f32 %v1621, %v1698
        %v1715 = vmul.f32 %v1623, %v1699
        %v1716 = vmul.f32 %v1625, %v1700
        %v1717 = vmul.f32 %v1627, %v1701
        %v1718 = vmul.f32 %v1629, %v1702
        %v1719 = vmul.f32 %v1631, %v1703
        %v1720 = vmul.f32 %v1633, %v1704
        %v1721 = vmul.f32 %v1635, %v1705
        %v1722 = vmul.f32 %v1637, %v1706
        %v1723 = vmul.f32 %v1639, %v1707
        %v1724 = vmul.f32 %v1641, %v1708
        %v1725 = vmul.f32 %v1643, %v1709
        %v1726 = vmul.f32 %v1645, %v1710
        %v1727 = vmul.f32 %v1647, %v1711
        %v1728 = vpack.c.bf16 %v1712, %v1712
        %v1729 = vpack.c.bf16 %v1713, %v1713
        %v1730 = vpack.c.bf16 %v1714, %v1714
        %v1731 = vpack.c.bf16 %v1715, %v1715
        %v1732 = vpack.c.bf16 %v1716, %v1716
        %v1733 = vpack.c.bf16 %v1717, %v1717
        %v1734 = vpack.c.bf16 %v1718, %v1718
        %v1735 = vpack.c.bf16 %v1719, %v1719
        %v1736 = vpack.c.bf16 %v1720, %v1720
        %v1737 = vpack.c.bf16 %v1721, %v1721
        %v1738 = vpack.c.bf16 %v1722, %v1722
        %v1739 = vpack.c.bf16 %v1723, %v1723
        %v1740 = vpack.c.bf16 %v1724, %v1724
        %v1741 = vpack.c.bf16 %v1725, %v1725
        %v1742 = vpack.c.bf16 %v1726, %v1726
        %v1743 = vpack.c.bf16 %v1727, %v1727
        %v1744 = vunpack.c.l.bf16 %v1272
        %v1745 = vunpack.c.l.bf16 %v1273
        %v1746 = vunpack.c.l.bf16 %v1274
        %v1747 = vunpack.c.l.bf16 %v1275
        %v1748 = vunpack.c.l.bf16 %v1276
        %v1749 = vunpack.c.l.bf16 %v1277
        %v1750 = vunpack.c.l.bf16 %v1278
        %v1751 = vunpack.c.l.bf16 %v1279
        %v1752 = vunpack.c.l.bf16 %v1280
        %v1753 = vunpack.c.l.bf16 %v1281
        %v1754 = vunpack.c.l.bf16 %v1282
        %v1755 = vunpack.c.l.bf16 %v1283
        %v1756 = vunpack.c.l.bf16 %v1284
        %v1757 = vunpack.c.l.bf16 %v1285
        %v1758 = vunpack.c.l.bf16 %v1286
        %v1759 = vunpack.c.l.bf16 %v1287
        %v1760 = vmul.f32 %v1744, %v1310
        %v1761 = vmul.f32 %v1745, %v1310
        %v1762 = vmul.f32 %v1746, %v1310
        %v1763 = vmul.f32 %v1747, %v1310
        %v1764 = vmul.f32 %v1748, %v1310
        %v1765 = vmul.f32 %v1749, %v1310
        %v1766 = vmul.f32 %v1750, %v1310
        %v1767 = vmul.f32 %v1751, %v1310
        %v1768 = vmul.f32 %v1752, %v1310
        %v1769 = vmul.f32 %v1753, %v1310
        %v1770 = vmul.f32 %v1754, %v1310
        %v1771 = vmul.f32 %v1755, %v1310
        %v1772 = vmul.f32 %v1756, %v1310
        %v1773 = vmul.f32 %v1757, %v1310
        %v1774 = vmul.f32 %v1758, %v1310
        %v1775 = vmul.f32 %v1759, %v1310
        %v1776 = vpack.c.bf16 %v1760, %v1760
        %v1777 = vpack.c.bf16 %v1761, %v1761
        %v1778 = vpack.c.bf16 %v1762, %v1762
        %v1779 = vpack.c.bf16 %v1763, %v1763
        %v1780 = vpack.c.bf16 %v1764, %v1764
        %v1781 = vpack.c.bf16 %v1765, %v1765
        %v1782 = vpack.c.bf16 %v1766, %v1766
        %v1783 = vpack.c.bf16 %v1767, %v1767
        %v1784 = vpack.c.bf16 %v1768, %v1768
        %v1785 = vpack.c.bf16 %v1769, %v1769
        %v1786 = vpack.c.bf16 %v1770, %v1770
        %v1787 = vpack.c.bf16 %v1771, %v1771
        %v1788 = vpack.c.bf16 %v1772, %v1772
        %v1789 = vpack.c.bf16 %v1773, %v1773
        %v1790 = vpack.c.bf16 %v1774, %v1774
        %v1791 = vpack.c.bf16 %v1775, %v1775
        %vm1792 = vcmp.ge.s32.totalorder %v665, 32
        %vm1793 = vcmp.lt.s32.totalorder %v665, 64
        %vm1794 = vmand %vm1792, %vm1793
        %v1795 = vsel %vm1794, 1, 0
        %v1796 = vcvt.s32.f32 %v1795
        %v1797 = vpack.c.bf16 %v1796, %v1796
        %v1798 = vunpack.c.l.bf16 %v1797
        %v1799 = vmul.f32 %v1294, %v1798
        %v1800 = vmul.f32 %v1295, %v1798
        %v1801 = vmul.f32 %v1296, %v1798
        %v1802 = vmul.f32 %v1297, %v1798
        %v1803 = vmul.f32 %v1298, %v1798
        %v1804 = vmul.f32 %v1299, %v1798
        %v1805 = vmul.f32 %v1300, %v1798
        %v1806 = vmul.f32 %v1301, %v1798
        %v1807 = vmul.f32 %v1302, %v1798
        %v1808 = vmul.f32 %v1303, %v1798
        %v1809 = vmul.f32 %v1304, %v1798
        %v1810 = vmul.f32 %v1305, %v1798
        %v1811 = vmul.f32 %v1306, %v1798
        %v1812 = vmul.f32 %v1307, %v1798
        %v1813 = vmul.f32 %v1308, %v1798
        %v1814 = vmul.f32 %v1309, %v1798
        %v1815 = vpack.c.bf16 %v1799, %v1799
        %v1816 = vpack.c.bf16 %v1800, %v1800
        %v1817 = vpack.c.bf16 %v1801, %v1801
        %v1818 = vpack.c.bf16 %v1802, %v1802
        %v1819 = vpack.c.bf16 %v1803, %v1803
        %v1820 = vpack.c.bf16 %v1804, %v1804
        %v1821 = vpack.c.bf16 %v1805, %v1805
        %v1822 = vpack.c.bf16 %v1806, %v1806
        %v1823 = vpack.c.bf16 %v1807, %v1807
        %v1824 = vpack.c.bf16 %v1808, %v1808
        %v1825 = vpack.c.bf16 %v1809, %v1809
        %v1826 = vpack.c.bf16 %v1810, %v1810
        %v1827 = vpack.c.bf16 %v1811, %v1811
        %v1828 = vpack.c.bf16 %v1812, %v1812
        %v1829 = vpack.c.bf16 %v1813, %v1813
        %v1830 = vpack.c.bf16 %v1814, %v1814
        %v1833 = vunpack.c.l.b16 %v1815
        %v1834 = vunpack.c.l.b16 %v1816
        %v1835 = vpack.c.b16 %v1834, %v1833
        %1837 = vmatpush.bf16.xpose.msra.mxu0 0
        %1838 = vmatpush.bf16.xpose.msra.mxu0 0
        %1839 = vmatpush.bf16.xpose.msra.mxu0 0
        %1840 = vmatpush.bf16.xpose.msra.mxu0 0
        %1841 = vmatpush.bf16.xpose.msra.mxu0 0
        %1842 = vmatpush.bf16.xpose.msra.mxu0 0
        %1843 = vmatpush.bf16.xpose.msra.mxu0 0
        %1844 = vmatpush.bf16.xpose.msra.mxu0 %v1835
        %1845 = vmatmul.bf16.gmra.mxu0 %v1347
        %v1846 = vpop.f32.mrf.mxu0
        %v1847 = vadd.f32 0.0, %v1846
        %v1848 = vpop.f32.mrf.mxu0
        %v1849 = vadd.f32 0.0, %v1848
        %1850 = vdwg.mxu0
        %v1853 = vunpack.c.l.b16 %v1817
        %v1854 = vunpack.c.l.b16 %v1818
        %v1855 = vpack.c.b16 %v1854, %v1853
        %1857 = vmatpush.bf16.xpose.msra.mxu0 0
        %1858 = vmatpush.bf16.xpose.msra.mxu0 0
        %1859 = vmatpush.bf16.xpose.msra.mxu0 0
        %1860 = vmatpush.bf16.xpose.msra.mxu0 0
        %1861 = vmatpush.bf16.xpose.msra.mxu0 0
        %1862 = vmatpush.bf16.xpose.msra.mxu0 0
        %1863 = vmatpush.bf16.xpose.msra.mxu0 0
        %1864 = vmatpush.bf16.xpose.msra.mxu0 %v1855
        %1865 = vmatmul.bf16.gmra.mxu0 %v1373
        %v1866 = vpop.f32.mrf.mxu0
        %v1867 = vadd.f32 0.0, %v1866
        %v1868 = vpop.f32.mrf.mxu0
        %v1869 = vadd.f32 0.0, %v1868
        %1870 = vdwg.mxu0
        %v1873 = vunpack.c.l.b16 %v1819
        %v1874 = vunpack.c.l.b16 %v1820
        %v1875 = vpack.c.b16 %v1874, %v1873
        %1877 = vmatpush.bf16.xpose.msra.mxu0 0
        %1878 = vmatpush.bf16.xpose.msra.mxu0 0
        %1879 = vmatpush.bf16.xpose.msra.mxu0 0
        %1880 = vmatpush.bf16.xpose.msra.mxu0 0
        %1881 = vmatpush.bf16.xpose.msra.mxu0 0
        %1882 = vmatpush.bf16.xpose.msra.mxu0 0
        %1883 = vmatpush.bf16.xpose.msra.mxu0 0
        %1884 = vmatpush.bf16.xpose.msra.mxu0 %v1875
        %1885 = vmatmul.bf16.gmra.mxu0 %v1399
        %v1886 = vpop.f32.mrf.mxu0
        %v1887 = vadd.f32 0.0, %v1886
        %v1888 = vpop.f32.mrf.mxu0
        %v1889 = vadd.f32 0.0, %v1888
        %1890 = vdwg.mxu0
        %v1893 = vunpack.c.l.b16 %v1821
        %v1894 = vunpack.c.l.b16 %v1822
        %v1895 = vpack.c.b16 %v1894, %v1893
        %1897 = vmatpush.bf16.xpose.msra.mxu0 0
        %1898 = vmatpush.bf16.xpose.msra.mxu0 0
        %1899 = vmatpush.bf16.xpose.msra.mxu0 0
        %1900 = vmatpush.bf16.xpose.msra.mxu0 0
        %1901 = vmatpush.bf16.xpose.msra.mxu0 0
        %1902 = vmatpush.bf16.xpose.msra.mxu0 0
        %1903 = vmatpush.bf16.xpose.msra.mxu0 0
        %1904 = vmatpush.bf16.xpose.msra.mxu0 %v1895
        %1905 = vmatmul.bf16.gmra.mxu0 %v1425
        %v1906 = vpop.f32.mrf.mxu0
        %v1907 = vadd.f32 0.0, %v1906
        %v1908 = vpop.f32.mrf.mxu0
        %v1909 = vadd.f32 0.0, %v1908
        %1910 = vdwg.mxu0
        %v1913 = vunpack.c.l.b16 %v1823
        %v1914 = vunpack.c.l.b16 %v1824
        %v1915 = vpack.c.b16 %v1914, %v1913
        %1917 = vmatpush.bf16.xpose.msra.mxu0 0
        %1918 = vmatpush.bf16.xpose.msra.mxu0 0
        %1919 = vmatpush.bf16.xpose.msra.mxu0 0
        %1920 = vmatpush.bf16.xpose.msra.mxu0 0
        %1921 = vmatpush.bf16.xpose.msra.mxu0 0
        %1922 = vmatpush.bf16.xpose.msra.mxu0 0
        %1923 = vmatpush.bf16.xpose.msra.mxu0 0
        %1924 = vmatpush.bf16.xpose.msra.mxu0 %v1915
        %1925 = vmatmul.bf16.gmra.mxu0 %v1451
        %v1926 = vpop.f32.mrf.mxu0
        %v1927 = vadd.f32 0.0, %v1926
        %v1928 = vpop.f32.mrf.mxu0
        %v1929 = vadd.f32 0.0, %v1928
        %1930 = vdwg.mxu0
        %v1933 = vunpack.c.l.b16 %v1825
        %v1934 = vunpack.c.l.b16 %v1826
        %v1935 = vpack.c.b16 %v1934, %v1933
        %1937 = vmatpush.bf16.xpose.msra.mxu0 0
        %1938 = vmatpush.bf16.xpose.msra.mxu0 0
        %1939 = vmatpush.bf16.xpose.msra.mxu0 0
        %1940 = vmatpush.bf16.xpose.msra.mxu0 0
        %1941 = vmatpush.bf16.xpose.msra.mxu0 0
        %1942 = vmatpush.bf16.xpose.msra.mxu0 0
        %1943 = vmatpush.bf16.xpose.msra.mxu0 0
        %1944 = vmatpush.bf16.xpose.msra.mxu0 %v1935
        %1945 = vmatmul.bf16.gmra.mxu0 %v1477
        %v1946 = vpop.f32.mrf.mxu0
        %v1947 = vadd.f32 0.0, %v1946
        %v1948 = vpop.f32.mrf.mxu0
        %v1949 = vadd.f32 0.0, %v1948
        %1950 = vdwg.mxu0
        %v1953 = vunpack.c.l.b16 %v1827
        %v1954 = vunpack.c.l.b16 %v1828
        %v1955 = vpack.c.b16 %v1954, %v1953
        %1957 = vmatpush.bf16.xpose.msra.mxu0 0
        %1958 = vmatpush.bf16.xpose.msra.mxu0 0
        %1959 = vmatpush.bf16.xpose.msra.mxu0 0
        %1960 = vmatpush.bf16.xpose.msra.mxu0 0
        %1961 = vmatpush.bf16.xpose.msra.mxu0 0
        %1962 = vmatpush.bf16.xpose.msra.mxu0 0
        %1963 = vmatpush.bf16.xpose.msra.mxu0 0
        %1964 = vmatpush.bf16.xpose.msra.mxu0 %v1955
        %1965 = vmatmul.bf16.gmra.mxu0 %v1503
        %v1966 = vpop.f32.mrf.mxu0
        %v1967 = vadd.f32 0.0, %v1966
        %v1968 = vpop.f32.mrf.mxu0
        %v1969 = vadd.f32 0.0, %v1968
        %1970 = vdwg.mxu0
        %v1973 = vunpack.c.l.b16 %v1829
        %v1974 = vunpack.c.l.b16 %v1830
        %v1975 = vpack.c.b16 %v1974, %v1973
        %1977 = vmatpush.bf16.xpose.msra.mxu0 0
        %1978 = vmatpush.bf16.xpose.msra.mxu0 0
        %1979 = vmatpush.bf16.xpose.msra.mxu0 0
        %1980 = vmatpush.bf16.xpose.msra.mxu0 0
        %1981 = vmatpush.bf16.xpose.msra.mxu0 0
        %1982 = vmatpush.bf16.xpose.msra.mxu0 0
        %1983 = vmatpush.bf16.xpose.msra.mxu0 0
        %1984 = vmatpush.bf16.xpose.msra.mxu0 %v1975
        %1985 = vmatmul.bf16.gmra.mxu0 %v1529
        %v1986 = vpop.f32.mrf.mxu0
        %v1987 = vadd.f32 0.0, %v1986
        %v1988 = vpop.f32.mrf.mxu0
        %v1989 = vadd.f32 0.0, %v1988
        %1990 = vdwg.mxu0
        %v1991 = vsel %vm1551, %v1847, -inf
        %1992 = vmax.xlane.f32.xlu0 %v1991
        %v1993 = vpop.xlane.xlu0 %1992
        %v1994 = vsel %vm1551, %v1849, -inf
        %1995 = vmax.xlane.f32.xlu0 %v1994
        %v1996 = vpop.xlane.xlu0 %1995
        %v1997 = vsel %vm1551, %v1867, -inf
        %1998 = vmax.xlane.f32.xlu0 %v1997
        %v1999 = vpop.xlane.xlu0 %1998
        %v2000 = vsel %vm1551, %v1869, -inf
        %2001 = vmax.xlane.f32.xlu0 %v2000
        %v2002 = vpop.xlane.xlu0 %2001
        %v2003 = vsel %vm1551, %v1887, -inf
        %2004 = vmax.xlane.f32.xlu0 %v2003
        %v2005 = vpop.xlane.xlu0 %2004
        %v2006 = vsel %vm1551, %v1889, -inf
        %2007 = vmax.xlane.f32.xlu0 %v2006
        %v2008 = vpop.xlane.xlu0 %2007
        %v2009 = vsel %vm1551, %v1907, -inf
        %2010 = vmax.xlane.f32.xlu0 %v2009
        %v2011 = vpop.xlane.xlu0 %2010
        %v2012 = vsel %vm1551, %v1909, -inf
        %2013 = vmax.xlane.f32.xlu0 %v2012
        %v2014 = vpop.xlane.xlu0 %2013
        %v2015 = vsel %vm1551, %v1927, -inf
        %2016 = vmax.xlane.f32.xlu0 %v2015
        %v2017 = vpop.xlane.xlu0 %2016
        %v2018 = vsel %vm1551, %v1929, -inf
        %2019 = vmax.xlane.f32.xlu0 %v2018
        %v2020 = vpop.xlane.xlu0 %2019
        %v2021 = vsel %vm1551, %v1947, -inf
        %2022 = vmax.xlane.f32.xlu0 %v2021
        %v2023 = vpop.xlane.xlu0 %2022
        %v2024 = vsel %vm1551, %v1949, -inf
        %2025 = vmax.xlane.f32.xlu0 %v2024
        %v2026 = vpop.xlane.xlu0 %2025
        %v2027 = vsel %vm1551, %v1967, -inf
        %2028 = vmax.xlane.f32.xlu0 %v2027
        %v2029 = vpop.xlane.xlu0 %2028
        %v2030 = vsel %vm1551, %v1969, -inf
        %2031 = vmax.xlane.f32.xlu0 %v2030
        %v2032 = vpop.xlane.xlu0 %2031
        %v2033 = vsel %vm1551, %v1987, -inf
        %2034 = vmax.xlane.f32.xlu0 %v2033
        %v2035 = vpop.xlane.xlu0 %2034
        %v2036 = vsel %vm1551, %v1989, -inf
        %2037 = vmax.xlane.f32.xlu0 %v2036
        %v2038 = vpop.xlane.xlu0 %2037
        %v2039 = vsub.f32 %v1847, %v1993
        %v2040 = vsub.f32 %v1849, %v1996
        %v2041 = vsub.f32 %v1867, %v1999
        %v2042 = vsub.f32 %v1869, %v2002
        %v2043 = vsub.f32 %v1887, %v2005
        %v2044 = vsub.f32 %v1889, %v2008
        %v2045 = vsub.f32 %v1907, %v2011
        %v2046 = vsub.f32 %v1909, %v2014
        %v2047 = vsub.f32 %v1927, %v2017
        %v2048 = vsub.f32 %v1929, %v2020
        %v2049 = vsub.f32 %v1947, %v2023
        %v2050 = vsub.f32 %v1949, %v2026
        %v2051 = vsub.f32 %v1967, %v2029
        %v2052 = vsub.f32 %v1969, %v2032
        %v2053 = vsub.f32 %v1987, %v2035
        %v2054 = vsub.f32 %v1989, %v2038
        %v2055 = vmul.f32 %v2039, 1.442695
        %v2056 = vpow.pop %v2055
        %v2057 = vmul.f32 %v2040, 1.442695
        %v2058 = vpow.pop %v2057
        %v2059 = vmul.f32 %v2041, 1.442695
        %v2060 = vpow.pop %v2059
        %v2061 = vmul.f32 %v2042, 1.442695
        %v2062 = vpow.pop %v2061
        %v2063 = vmul.f32 %v2043, 1.442695
        %v2064 = vpow.pop %v2063
        %v2065 = vmul.f32 %v2044, 1.442695
        %v2066 = vpow.pop %v2065
        %v2067 = vmul.f32 %v2045, 1.442695
        %v2068 = vpow.pop %v2067
        %v2069 = vmul.f32 %v2046, 1.442695
        %v2070 = vpow.pop %v2069
        %v2071 = vmul.f32 %v2047, 1.442695
        %v2072 = vpow.pop %v2071
        %v2073 = vmul.f32 %v2048, 1.442695
        %v2074 = vpow.pop %v2073
        %v2075 = vmul.f32 %v2049, 1.442695
        %v2076 = vpow.pop %v2075
        %v2077 = vmul.f32 %v2050, 1.442695
        %v2078 = vpow.pop %v2077
        %v2079 = vmul.f32 %v2051, 1.442695
        %v2080 = vpow.pop %v2079
        %v2081 = vmul.f32 %v2052, 1.442695
        %v2082 = vpow.pop %v2081
        %v2083 = vmul.f32 %v2053, 1.442695
        %v2084 = vpow.pop %v2083
        %v2085 = vmul.f32 %v2054, 1.442695
        %v2086 = vpow.pop %v2085
        %v2087 = vsel %vm1551, %v2056, 0.0
        %2088 = vadd.xlane.f32.xlu0 %v2087
        %v2089 = vpop.xlane.xlu0 %2088
        %v2090 = vsel %vm1551, %v2058, 0.0
        %2091 = vadd.xlane.f32.xlu0 %v2090
        %v2092 = vpop.xlane.xlu0 %2091
        %v2093 = vsel %vm1551, %v2060, 0.0
        %2094 = vadd.xlane.f32.xlu0 %v2093
        %v2095 = vpop.xlane.xlu0 %2094
        %v2096 = vsel %vm1551, %v2062, 0.0
        %2097 = vadd.xlane.f32.xlu0 %v2096
        %v2098 = vpop.xlane.xlu0 %2097
        %v2099 = vsel %vm1551, %v2064, 0.0
        %2100 = vadd.xlane.f32.xlu0 %v2099
        %v2101 = vpop.xlane.xlu0 %2100
        %v2102 = vsel %vm1551, %v2066, 0.0
        %2103 = vadd.xlane.f32.xlu0 %v2102
        %v2104 = vpop.xlane.xlu0 %2103
        %v2105 = vsel %vm1551, %v2068, 0.0
        %2106 = vadd.xlane.f32.xlu0 %v2105
        %v2107 = vpop.xlane.xlu0 %2106
        %v2108 = vsel %vm1551, %v2070, 0.0
        %2109 = vadd.xlane.f32.xlu0 %v2108
        %v2110 = vpop.xlane.xlu0 %2109
        %v2111 = vsel %vm1551, %v2072, 0.0
        %2112 = vadd.xlane.f32.xlu0 %v2111
        %v2113 = vpop.xlane.xlu0 %2112
        %v2114 = vsel %vm1551, %v2074, 0.0
        %2115 = vadd.xlane.f32.xlu0 %v2114
        %v2116 = vpop.xlane.xlu0 %2115
        %v2117 = vsel %vm1551, %v2076, 0.0
        %2118 = vadd.xlane.f32.xlu0 %v2117
        %v2119 = vpop.xlane.xlu0 %2118
        %v2120 = vsel %vm1551, %v2078, 0.0
        %2121 = vadd.xlane.f32.xlu0 %v2120
        %v2122 = vpop.xlane.xlu0 %2121
        %v2123 = vsel %vm1551, %v2080, 0.0
        %2124 = vadd.xlane.f32.xlu0 %v2123
        %v2125 = vpop.xlane.xlu0 %2124
        %v2126 = vsel %vm1551, %v2082, 0.0
        %2127 = vadd.xlane.f32.xlu0 %v2126
        %v2128 = vpop.xlane.xlu0 %2127
        %v2129 = vsel %vm1551, %v2084, 0.0
        %2130 = vadd.xlane.f32.xlu0 %v2129
        %v2131 = vpop.xlane.xlu0 %2130
        %v2132 = vsel %vm1551, %v2086, 0.0
        %2133 = vadd.xlane.f32.xlu0 %v2132
        %v2134 = vpop.xlane.xlu0 %2133
        %v2135 = vrcp.pop %v2089
        %v2136 = vrcp.pop %v2092
        %v2137 = vrcp.pop %v2095
        %v2138 = vrcp.pop %v2098
        %v2139 = vrcp.pop %v2101
        %v2140 = vrcp.pop %v2104
        %v2141 = vrcp.pop %v2107
        %v2142 = vrcp.pop %v2110
        %v2143 = vrcp.pop %v2113
        %v2144 = vrcp.pop %v2116
        %v2145 = vrcp.pop %v2119
        %v2146 = vrcp.pop %v2122
        %v2147 = vrcp.pop %v2125
        %v2148 = vrcp.pop %v2128
        %v2149 = vrcp.pop %v2131
        %v2150 = vrcp.pop %v2134
        %v2151 = vmul.f32 %v2056, %v2135
        %v2152 = vmul.f32 %v2058, %v2136
        %v2153 = vmul.f32 %v2060, %v2137
        %v2154 = vmul.f32 %v2062, %v2138
        %v2155 = vmul.f32 %v2064, %v2139
        %v2156 = vmul.f32 %v2066, %v2140
        %v2157 = vmul.f32 %v2068, %v2141
        %v2158 = vmul.f32 %v2070, %v2142
        %v2159 = vmul.f32 %v2072, %v2143
        %v2160 = vmul.f32 %v2074, %v2144
        %v2161 = vmul.f32 %v2076, %v2145
        %v2162 = vmul.f32 %v2078, %v2146
        %v2163 = vmul.f32 %v2080, %v2147
        %v2164 = vmul.f32 %v2082, %v2148
        %v2165 = vmul.f32 %v2084, %v2149
        %v2166 = vmul.f32 %v2086, %v2150
        %v2167 = vpack.c.bf16 %v2151, %v2151
        %v2168 = vpack.c.bf16 %v2152, %v2152
        %v2169 = vpack.c.bf16 %v2153, %v2153
        %v2170 = vpack.c.bf16 %v2154, %v2154
        %v2171 = vpack.c.bf16 %v2155, %v2155
        %v2172 = vpack.c.bf16 %v2156, %v2156
        %v2173 = vpack.c.bf16 %v2157, %v2157
        %v2174 = vpack.c.bf16 %v2158, %v2158
        %v2175 = vpack.c.bf16 %v2159, %v2159
        %v2176 = vpack.c.bf16 %v2160, %v2160
        %v2177 = vpack.c.bf16 %v2161, %v2161
        %v2178 = vpack.c.bf16 %v2162, %v2162
        %v2179 = vpack.c.bf16 %v2163, %v2163
        %v2180 = vpack.c.bf16 %v2164, %v2164
        %v2181 = vpack.c.bf16 %v2165, %v2165
        %v2182 = vpack.c.bf16 %v2166, %v2166
        %v2183 = vmul.f32 %v1744, %v1798
        %v2184 = vmul.f32 %v1745, %v1798
        %v2185 = vmul.f32 %v1746, %v1798
        %v2186 = vmul.f32 %v1747, %v1798
        %v2187 = vmul.f32 %v1748, %v1798
        %v2188 = vmul.f32 %v1749, %v1798
        %v2189 = vmul.f32 %v1750, %v1798
        %v2190 = vmul.f32 %v1751, %v1798
        %v2191 = vmul.f32 %v1752, %v1798
        %v2192 = vmul.f32 %v1753, %v1798
        %v2193 = vmul.f32 %v1754, %v1798
        %v2194 = vmul.f32 %v1755, %v1798
        %v2195 = vmul.f32 %v1756, %v1798
        %v2196 = vmul.f32 %v1757, %v1798
        %v2197 = vmul.f32 %v1758, %v1798
        %v2198 = vmul.f32 %v1759, %v1798
        %v2199 = vpack.c.bf16 %v2183, %v2183
        %v2200 = vpack.c.bf16 %v2184, %v2184
        %v2201 = vpack.c.bf16 %v2185, %v2185
        %v2202 = vpack.c.bf16 %v2186, %v2186
        %v2203 = vpack.c.bf16 %v2187, %v2187
        %v2204 = vpack.c.bf16 %v2188, %v2188
        %v2205 = vpack.c.bf16 %v2189, %v2189
        %v2206 = vpack.c.bf16 %v2190, %v2190
        %v2207 = vpack.c.bf16 %v2191, %v2191
        %v2208 = vpack.c.bf16 %v2192, %v2192
        %v2209 = vpack.c.bf16 %v2193, %v2193
        %v2210 = vpack.c.bf16 %v2194, %v2194
        %v2211 = vpack.c.bf16 %v2195, %v2195
        %v2212 = vpack.c.bf16 %v2196, %v2196
        %v2213 = vpack.c.bf16 %v2197, %v2197
        %v2214 = vpack.c.bf16 %v2198, %v2198
        %v2217 = vunpack.c.l.b16 %v2167
        %v2218 = vunpack.c.l.b16 %v2168
        %v2219 = vpack.c.b16 %v2218, %v2217
        %v2222 = vunpack.c.l.b16 %v2199
        %v2223 = vunpack.c.l.b16 %v2200
        %v2224 = vpack.c.b16 %v2223, %v2222
        %v2227 = vsel %vm1551, %v2219, 0
        %2229 = vmatpush.bf16.msra.mxu0 0
        %2230 = vmatpush.bf16.msra.mxu0 0
        %2231 = vmatpush.bf16.msra.mxu0 0
        %2232 = vmatpush.bf16.msra.mxu0 0
        %2233 = vmatpush.bf16.msra.mxu0 0
        %2234 = vmatpush.bf16.msra.mxu0 0
        %2235 = vmatpush.bf16.msra.mxu0 0
        %2236 = vmatpush.bf16.msra.mxu0 %v2224
        %2237 = vmatmul.bf16.gmra.mxu0 %v2227
        %v2238 = vpop.f32.mrf.mxu0
        %v2239 = vadd.f32 0.0, %v2238
        %v2240 = vpop.f32.mrf.mxu0
        %v2241 = vadd.f32 0.0, %v2240
        %2242 = vdwg.mxu0
        %v2245 = vunpack.c.l.b16 %v2169
        %v2246 = vunpack.c.l.b16 %v2170
        %v2247 = vpack.c.b16 %v2246, %v2245
        %v2250 = vunpack.c.l.b16 %v2201
        %v2251 = vunpack.c.l.b16 %v2202
        %v2252 = vpack.c.b16 %v2251, %v2250
        %v2255 = vsel %vm1551, %v2247, 0
        %2257 = vmatpush.bf16.msra.mxu0 0
        %2258 = vmatpush.bf16.msra.mxu0 0
        %2259 = vmatpush.bf16.msra.mxu0 0
        %2260 = vmatpush.bf16.msra.mxu0 0
        %2261 = vmatpush.bf16.msra.mxu0 0
        %2262 = vmatpush.bf16.msra.mxu0 0
        %2263 = vmatpush.bf16.msra.mxu0 0
        %2264 = vmatpush.bf16.msra.mxu0 %v2252
        %2265 = vmatmul.bf16.gmra.mxu0 %v2255
        %v2266 = vpop.f32.mrf.mxu0
        %v2267 = vadd.f32 0.0, %v2266
        %v2268 = vpop.f32.mrf.mxu0
        %v2269 = vadd.f32 0.0, %v2268
        %2270 = vdwg.mxu0
        %v2273 = vunpack.c.l.b16 %v2171
        %v2274 = vunpack.c.l.b16 %v2172
        %v2275 = vpack.c.b16 %v2274, %v2273
        %v2278 = vunpack.c.l.b16 %v2203
        %v2279 = vunpack.c.l.b16 %v2204
        %v2280 = vpack.c.b16 %v2279, %v2278
        %v2283 = vsel %vm1551, %v2275, 0
        %2285 = vmatpush.bf16.msra.mxu0 0
        %2286 = vmatpush.bf16.msra.mxu0 0
        %2287 = vmatpush.bf16.msra.mxu0 0
        %2288 = vmatpush.bf16.msra.mxu0 0
        %2289 = vmatpush.bf16.msra.mxu0 0
        %2290 = vmatpush.bf16.msra.mxu0 0
        %2291 = vmatpush.bf16.msra.mxu0 0
        %2292 = vmatpush.bf16.msra.mxu0 %v2280
        %2293 = vmatmul.bf16.gmra.mxu0 %v2283
        %v2294 = vpop.f32.mrf.mxu0
        %v2295 = vadd.f32 0.0, %v2294
        %v2296 = vpop.f32.mrf.mxu0
        %v2297 = vadd.f32 0.0, %v2296
        %2298 = vdwg.mxu0
        %v2301 = vunpack.c.l.b16 %v2173
        %v2302 = vunpack.c.l.b16 %v2174
        %v2303 = vpack.c.b16 %v2302, %v2301
        %v2306 = vunpack.c.l.b16 %v2205
        %v2307 = vunpack.c.l.b16 %v2206
        %v2308 = vpack.c.b16 %v2307, %v2306
        %v2311 = vsel %vm1551, %v2303, 0
        %2313 = vmatpush.bf16.msra.mxu0 0
        %2314 = vmatpush.bf16.msra.mxu0 0
        %2315 = vmatpush.bf16.msra.mxu0 0
        %2316 = vmatpush.bf16.msra.mxu0 0
        %2317 = vmatpush.bf16.msra.mxu0 0
        %2318 = vmatpush.bf16.msra.mxu0 0
        %2319 = vmatpush.bf16.msra.mxu0 0
        %2320 = vmatpush.bf16.msra.mxu0 %v2308
        %2321 = vmatmul.bf16.gmra.mxu0 %v2311
        %v2322 = vpop.f32.mrf.mxu0
        %v2323 = vadd.f32 0.0, %v2322
        %v2324 = vpop.f32.mrf.mxu0
        %v2325 = vadd.f32 0.0, %v2324
        %2326 = vdwg.mxu0
        %v2329 = vunpack.c.l.b16 %v2175
        %v2330 = vunpack.c.l.b16 %v2176
        %v2331 = vpack.c.b16 %v2330, %v2329
        %v2334 = vunpack.c.l.b16 %v2207
        %v2335 = vunpack.c.l.b16 %v2208
        %v2336 = vpack.c.b16 %v2335, %v2334
        %v2339 = vsel %vm1551, %v2331, 0
        %2341 = vmatpush.bf16.msra.mxu0 0
        %2342 = vmatpush.bf16.msra.mxu0 0
        %2343 = vmatpush.bf16.msra.mxu0 0
        %2344 = vmatpush.bf16.msra.mxu0 0
        %2345 = vmatpush.bf16.msra.mxu0 0
        %2346 = vmatpush.bf16.msra.mxu0 0
        %2347 = vmatpush.bf16.msra.mxu0 0
        %2348 = vmatpush.bf16.msra.mxu0 %v2336
        %2349 = vmatmul.bf16.gmra.mxu0 %v2339
        %v2350 = vpop.f32.mrf.mxu0
        %v2351 = vadd.f32 0.0, %v2350
        %v2352 = vpop.f32.mrf.mxu0
        %v2353 = vadd.f32 0.0, %v2352
        %2354 = vdwg.mxu0
        %v2357 = vunpack.c.l.b16 %v2177
        %v2358 = vunpack.c.l.b16 %v2178
        %v2359 = vpack.c.b16 %v2358, %v2357
        %v2362 = vunpack.c.l.b16 %v2209
        %v2363 = vunpack.c.l.b16 %v2210
        %v2364 = vpack.c.b16 %v2363, %v2362
        %v2367 = vsel %vm1551, %v2359, 0
        %2369 = vmatpush.bf16.msra.mxu0 0
        %2370 = vmatpush.bf16.msra.mxu0 0
        %2371 = vmatpush.bf16.msra.mxu0 0
        %2372 = vmatpush.bf16.msra.mxu0 0
        %2373 = vmatpush.bf16.msra.mxu0 0
        %2374 = vmatpush.bf16.msra.mxu0 0
        %2375 = vmatpush.bf16.msra.mxu0 0
        %2376 = vmatpush.bf16.msra.mxu0 %v2364
        %2377 = vmatmul.bf16.gmra.mxu0 %v2367
        %v2378 = vpop.f32.mrf.mxu0
        %v2379 = vadd.f32 0.0, %v2378
        %v2380 = vpop.f32.mrf.mxu0
        %v2381 = vadd.f32 0.0, %v2380
        %2382 = vdwg.mxu0
        %v2385 = vunpack.c.l.b16 %v2179
        %v2386 = vunpack.c.l.b16 %v2180
        %v2387 = vpack.c.b16 %v2386, %v2385
        %v2390 = vunpack.c.l.b16 %v2211
        %v2391 = vunpack.c.l.b16 %v2212
        %v2392 = vpack.c.b16 %v2391, %v2390
        %v2395 = vsel %vm1551, %v2387, 0
        %2397 = vmatpush.bf16.msra.mxu0 0
        %2398 = vmatpush.bf16.msra.mxu0 0
        %2399 = vmatpush.bf16.msra.mxu0 0
        %2400 = vmatpush.bf16.msra.mxu0 0
        %2401 = vmatpush.bf16.msra.mxu0 0
        %2402 = vmatpush.bf16.msra.mxu0 0
        %2403 = vmatpush.bf16.msra.mxu0 0
        %2404 = vmatpush.bf16.msra.mxu0 %v2392
        %2405 = vmatmul.bf16.gmra.mxu0 %v2395
        %v2406 = vpop.f32.mrf.mxu0
        %v2407 = vadd.f32 0.0, %v2406
        %v2408 = vpop.f32.mrf.mxu0
        %v2409 = vadd.f32 0.0, %v2408
        %2410 = vdwg.mxu0
        %v2413 = vunpack.c.l.b16 %v2181
        %v2414 = vunpack.c.l.b16 %v2182
        %v2415 = vpack.c.b16 %v2414, %v2413
        %v2418 = vunpack.c.l.b16 %v2213
        %v2419 = vunpack.c.l.b16 %v2214
        %v2420 = vpack.c.b16 %v2419, %v2418
        %v2423 = vsel %vm1551, %v2415, 0
        %2425 = vmatpush.bf16.msra.mxu0 0
        %2426 = vmatpush.bf16.msra.mxu0 0
        %2427 = vmatpush.bf16.msra.mxu0 0
        %2428 = vmatpush.bf16.msra.mxu0 0
        %2429 = vmatpush.bf16.msra.mxu0 0
        %2430 = vmatpush.bf16.msra.mxu0 0
        %2431 = vmatpush.bf16.msra.mxu0 0
        %2432 = vmatpush.bf16.msra.mxu0 %v2420
        %2433 = vmatmul.bf16.gmra.mxu0 %v2423
        %v2434 = vpop.f32.mrf.mxu0
        %v2435 = vadd.f32 0.0, %v2434
        %v2436 = vpop.f32.mrf.mxu0
        %v2437 = vadd.f32 0.0, %v2436
        %2438 = vdwg.mxu0
        %v2441 = vunpack.c.l.b16 %v1728
        %v2442 = vunpack.c.l.b16 %v1729
        %v2443 = vpack.c.b16 %v2442, %v2441
        %v2446 = vunpack.c.l.b16 %v1776
        %v2447 = vunpack.c.l.b16 %v1777
        %v2448 = vpack.c.b16 %v2447, %v2446
        %v2451 = vsel %vm1551, %v2443, 0
        %2453 = vmatpush.bf16.msra.mxu0 0
        %2454 = vmatpush.bf16.msra.mxu0 0
        %2455 = vmatpush.bf16.msra.mxu0 0
        %2456 = vmatpush.bf16.msra.mxu0 0
        %2457 = vmatpush.bf16.msra.mxu0 0
        %2458 = vmatpush.bf16.msra.mxu0 0
        %2459 = vmatpush.bf16.msra.mxu0 0
        %2460 = vmatpush.bf16.msra.mxu0 %v2448
        %2461 = vmatmul.bf16.gmra.mxu0 %v2451
        %v2462 = vpop.f32.mrf.mxu0
        %v2463 = vadd.f32 %v2239, %v2462
        %v2464 = vpop.f32.mrf.mxu0
        %v2465 = vadd.f32 %v2241, %v2464
        %2466 = vdwg.mxu0
        %v2469 = vunpack.c.l.b16 %v1730
        %v2470 = vunpack.c.l.b16 %v1731
        %v2471 = vpack.c.b16 %v2470, %v2469
        %v2474 = vunpack.c.l.b16 %v1778
        %v2475 = vunpack.c.l.b16 %v1779
        %v2476 = vpack.c.b16 %v2475, %v2474
        %v2479 = vsel %vm1551, %v2471, 0
        %2481 = vmatpush.bf16.msra.mxu0 0
        %2482 = vmatpush.bf16.msra.mxu0 0
        %2483 = vmatpush.bf16.msra.mxu0 0
        %2484 = vmatpush.bf16.msra.mxu0 0
        %2485 = vmatpush.bf16.msra.mxu0 0
        %2486 = vmatpush.bf16.msra.mxu0 0
        %2487 = vmatpush.bf16.msra.mxu0 0
        %2488 = vmatpush.bf16.msra.mxu0 %v2476
        %2489 = vmatmul.bf16.gmra.mxu0 %v2479
        %v2490 = vpop.f32.mrf.mxu0
        %v2491 = vadd.f32 %v2267, %v2490
        %v2492 = vpop.f32.mrf.mxu0
        %v2493 = vadd.f32 %v2269, %v2492
        %2494 = vdwg.mxu0
        %v2497 = vunpack.c.l.b16 %v1732
        %v2498 = vunpack.c.l.b16 %v1733
        %v2499 = vpack.c.b16 %v2498, %v2497
        %v2502 = vunpack.c.l.b16 %v1780
        %v2503 = vunpack.c.l.b16 %v1781
        %v2504 = vpack.c.b16 %v2503, %v2502
        %v2507 = vsel %vm1551, %v2499, 0
        %2509 = vmatpush.bf16.msra.mxu0 0
        %2510 = vmatpush.bf16.msra.mxu0 0
        %2511 = vmatpush.bf16.msra.mxu0 0
        %2512 = vmatpush.bf16.msra.mxu0 0
        %2513 = vmatpush.bf16.msra.mxu0 0
        %2514 = vmatpush.bf16.msra.mxu0 0
        %2515 = vmatpush.bf16.msra.mxu0 0
        %2516 = vmatpush.bf16.msra.mxu0 %v2504
        %2517 = vmatmul.bf16.gmra.mxu0 %v2507
        %v2518 = vpop.f32.mrf.mxu0
        %v2519 = vadd.f32 %v2295, %v2518
        %v2520 = vpop.f32.mrf.mxu0
        %v2521 = vadd.f32 %v2297, %v2520
        %2522 = vdwg.mxu0
        %v2525 = vunpack.c.l.b16 %v1734
        %v2526 = vunpack.c.l.b16 %v1735
        %v2527 = vpack.c.b16 %v2526, %v2525
        %v2530 = vunpack.c.l.b16 %v1782
        %v2531 = vunpack.c.l.b16 %v1783
        %v2532 = vpack.c.b16 %v2531, %v2530
        %v2535 = vsel %vm1551, %v2527, 0
        %2537 = vmatpush.bf16.msra.mxu0 0
        %2538 = vmatpush.bf16.msra.mxu0 0
        %2539 = vmatpush.bf16.msra.mxu0 0
        %2540 = vmatpush.bf16.msra.mxu0 0
        %2541 = vmatpush.bf16.msra.mxu0 0
        %2542 = vmatpush.bf16.msra.mxu0 0
        %2543 = vmatpush.bf16.msra.mxu0 0
        %2544 = vmatpush.bf16.msra.mxu0 %v2532
        %2545 = vmatmul.bf16.gmra.mxu0 %v2535
        %v2546 = vpop.f32.mrf.mxu0
        %v2547 = vadd.f32 %v2323, %v2546
        %v2548 = vpop.f32.mrf.mxu0
        %v2549 = vadd.f32 %v2325, %v2548
        %2550 = vdwg.mxu0
        %v2553 = vunpack.c.l.b16 %v1736
        %v2554 = vunpack.c.l.b16 %v1737
        %v2555 = vpack.c.b16 %v2554, %v2553
        %v2558 = vunpack.c.l.b16 %v1784
        %v2559 = vunpack.c.l.b16 %v1785
        %v2560 = vpack.c.b16 %v2559, %v2558
        %v2563 = vsel %vm1551, %v2555, 0
        %2565 = vmatpush.bf16.msra.mxu0 0
        %2566 = vmatpush.bf16.msra.mxu0 0
        %2567 = vmatpush.bf16.msra.mxu0 0
        %2568 = vmatpush.bf16.msra.mxu0 0
        %2569 = vmatpush.bf16.msra.mxu0 0
        %2570 = vmatpush.bf16.msra.mxu0 0
        %2571 = vmatpush.bf16.msra.mxu0 0
        %2572 = vmatpush.bf16.msra.mxu0 %v2560
        %2573 = vmatmul.bf16.gmra.mxu0 %v2563
        %v2574 = vpop.f32.mrf.mxu0
        %v2575 = vadd.f32 %v2351, %v2574
        %v2576 = vpop.f32.mrf.mxu0
        %v2577 = vadd.f32 %v2353, %v2576
        %2578 = vdwg.mxu0
        %v2581 = vunpack.c.l.b16 %v1738
        %v2582 = vunpack.c.l.b16 %v1739
        %v2583 = vpack.c.b16 %v2582, %v2581
        %v2586 = vunpack.c.l.b16 %v1786
        %v2587 = vunpack.c.l.b16 %v1787
        %v2588 = vpack.c.b16 %v2587, %v2586
        %v2591 = vsel %vm1551, %v2583, 0
        %2593 = vmatpush.bf16.msra.mxu0 0
        %2594 = vmatpush.bf16.msra.mxu0 0
        %2595 = vmatpush.bf16.msra.mxu0 0
        %2596 = vmatpush.bf16.msra.mxu0 0
        %2597 = vmatpush.bf16.msra.mxu0 0
        %2598 = vmatpush.bf16.msra.mxu0 0
        %2599 = vmatpush.bf16.msra.mxu0 0
        %2600 = vmatpush.bf16.msra.mxu0 %v2588
        %2601 = vmatmul.bf16.gmra.mxu0 %v2591
        %v2602 = vpop.f32.mrf.mxu0
        %v2603 = vadd.f32 %v2379, %v2602
        %v2604 = vpop.f32.mrf.mxu0
        %v2605 = vadd.f32 %v2381, %v2604
        %2606 = vdwg.mxu0
        %v2609 = vunpack.c.l.b16 %v1740
        %v2610 = vunpack.c.l.b16 %v1741
        %v2611 = vpack.c.b16 %v2610, %v2609
        %v2614 = vunpack.c.l.b16 %v1788
        %v2615 = vunpack.c.l.b16 %v1789
        %v2616 = vpack.c.b16 %v2615, %v2614
        %v2619 = vsel %vm1551, %v2611, 0
        %2621 = vmatpush.bf16.msra.mxu0 0
        %2622 = vmatpush.bf16.msra.mxu0 0
        %2623 = vmatpush.bf16.msra.mxu0 0
        %2624 = vmatpush.bf16.msra.mxu0 0
        %2625 = vmatpush.bf16.msra.mxu0 0
        %2626 = vmatpush.bf16.msra.mxu0 0
        %2627 = vmatpush.bf16.msra.mxu0 0
        %2628 = vmatpush.bf16.msra.mxu0 %v2616
        %2629 = vmatmul.bf16.gmra.mxu0 %v2619
        %v2630 = vpop.f32.mrf.mxu0
        %v2631 = vadd.f32 %v2407, %v2630
        %v2632 = vpop.f32.mrf.mxu0
        %v2633 = vadd.f32 %v2409, %v2632
        %2634 = vdwg.mxu0
        %v2637 = vunpack.c.l.b16 %v1742
        %v2638 = vunpack.c.l.b16 %v1743
        %v2639 = vpack.c.b16 %v2638, %v2637
        %v2642 = vunpack.c.l.b16 %v1790
        %v2643 = vunpack.c.l.b16 %v1791
        %v2644 = vpack.c.b16 %v2643, %v2642
        %v2647 = vsel %vm1551, %v2639, 0
        %2649 = vmatpush.bf16.msra.mxu0 0
        %2650 = vmatpush.bf16.msra.mxu0 0
        %2651 = vmatpush.bf16.msra.mxu0 0
        %2652 = vmatpush.bf16.msra.mxu0 0
        %2653 = vmatpush.bf16.msra.mxu0 0
        %2654 = vmatpush.bf16.msra.mxu0 0
        %2655 = vmatpush.bf16.msra.mxu0 0
        %2656 = vmatpush.bf16.msra.mxu0 %v2644
        %2657 = vmatmul.bf16.gmra.mxu0 %v2647
        %v2658 = vpop.f32.mrf.mxu0
        %v2659 = vadd.f32 %v2435, %v2658
        %v2660 = vpop.f32.mrf.mxu0
        %v2661 = vadd.f32 %v2437, %v2660
        %2662 = vdwg.mxu0
        %vm2663 = vcmp.ge.s32.totalorder %v665, 64
        %vm2664 = vcmp.lt.s32.totalorder %v665, 96
        %vm2665 = vmand %vm2663, %vm2664
        %v2666 = vsel %vm2665, 1, 0
        %v2667 = vcvt.s32.f32 %v2666
        %v2668 = vpack.c.bf16 %v2667, %v2667
        %v2669 = vunpack.c.l.bf16 %v2668
        %v2670 = vmul.f32 %v1294, %v2669
        %v2671 = vmul.f32 %v1295, %v2669
        %v2672 = vmul.f32 %v1296, %v2669
        %v2673 = vmul.f32 %v1297, %v2669
        %v2674 = vmul.f32 %v1298, %v2669
        %v2675 = vmul.f32 %v1299, %v2669
        %v2676 = vmul.f32 %v1300, %v2669
        %v2677 = vmul.f32 %v1301, %v2669
        %v2678 = vmul.f32 %v1302, %v2669
        %v2679 = vmul.f32 %v1303, %v2669
        %v2680 = vmul.f32 %v1304, %v2669
        %v2681 = vmul.f32 %v1305, %v2669
        %v2682 = vmul.f32 %v1306, %v2669
        %v2683 = vmul.f32 %v1307, %v2669
        %v2684 = vmul.f32 %v1308, %v2669
        %v2685 = vmul.f32 %v1309, %v2669
        %v2686 = vpack.c.bf16 %v2670, %v2670
        %v2687 = vpack.c.bf16 %v2671, %v2671
        %v2688 = vpack.c.bf16 %v2672, %v2672
        %v2689 = vpack.c.bf16 %v2673, %v2673
        %v2690 = vpack.c.bf16 %v2674, %v2674
        %v2691 = vpack.c.bf16 %v2675, %v2675
        %v2692 = vpack.c.bf16 %v2676, %v2676
        %v2693 = vpack.c.bf16 %v2677, %v2677
        %v2694 = vpack.c.bf16 %v2678, %v2678
        %v2695 = vpack.c.bf16 %v2679, %v2679
        %v2696 = vpack.c.bf16 %v2680, %v2680
        %v2697 = vpack.c.bf16 %v2681, %v2681
        %v2698 = vpack.c.bf16 %v2682, %v2682
        %v2699 = vpack.c.bf16 %v2683, %v2683
        %v2700 = vpack.c.bf16 %v2684, %v2684
        %v2701 = vpack.c.bf16 %v2685, %v2685
        %v2704 = vunpack.c.l.b16 %v2686
        %v2705 = vunpack.c.l.b16 %v2687
        %v2706 = vpack.c.b16 %v2705, %v2704
        %2708 = vmatpush.bf16.xpose.msra.mxu0 0
        %2709 = vmatpush.bf16.xpose.msra.mxu0 0
        %2710 = vmatpush.bf16.xpose.msra.mxu0 0
        %2711 = vmatpush.bf16.xpose.msra.mxu0 0
        %2712 = vmatpush.bf16.xpose.msra.mxu0 0
        %2713 = vmatpush.bf16.xpose.msra.mxu0 0
        %2714 = vmatpush.bf16.xpose.msra.mxu0 0
        %2715 = vmatpush.bf16.xpose.msra.mxu0 %v2706
        %2716 = vmatmul.bf16.gmra.mxu0 %v1347
        %v2717 = vpop.f32.mrf.mxu0
        %v2718 = vadd.f32 0.0, %v2717
        %v2719 = vpop.f32.mrf.mxu0
        %v2720 = vadd.f32 0.0, %v2719
        %2721 = vdwg.mxu0
        %v2724 = vunpack.c.l.b16 %v2688
        %v2725 = vunpack.c.l.b16 %v2689
        %v2726 = vpack.c.b16 %v2725, %v2724
        %2728 = vmatpush.bf16.xpose.msra.mxu0 0
        %2729 = vmatpush.bf16.xpose.msra.mxu0 0
        %2730 = vmatpush.bf16.xpose.msra.mxu0 0
        %2731 = vmatpush.bf16.xpose.msra.mxu0 0
        %2732 = vmatpush.bf16.xpose.msra.mxu0 0
        %2733 = vmatpush.bf16.xpose.msra.mxu0 0
        %2734 = vmatpush.bf16.xpose.msra.mxu0 0
        %2735 = vmatpush.bf16.xpose.msra.mxu0 %v2726
        %2736 = vmatmul.bf16.gmra.mxu0 %v1373
        %v2737 = vpop.f32.mrf.mxu0
        %v2738 = vadd.f32 0.0, %v2737
        %v2739 = vpop.f32.mrf.mxu0
        %v2740 = vadd.f32 0.0, %v2739
        %2741 = vdwg.mxu0
        %v2744 = vunpack.c.l.b16 %v2690
        %v2745 = vunpack.c.l.b16 %v2691
        %v2746 = vpack.c.b16 %v2745, %v2744
        %2748 = vmatpush.bf16.xpose.msra.mxu0 0
        %2749 = vmatpush.bf16.xpose.msra.mxu0 0
        %2750 = vmatpush.bf16.xpose.msra.mxu0 0
        %2751 = vmatpush.bf16.xpose.msra.mxu0 0
        %2752 = vmatpush.bf16.xpose.msra.mxu0 0
        %2753 = vmatpush.bf16.xpose.msra.mxu0 0
        %2754 = vmatpush.bf16.xpose.msra.mxu0 0
        %2755 = vmatpush.bf16.xpose.msra.mxu0 %v2746
        %2756 = vmatmul.bf16.gmra.mxu0 %v1399
        %v2757 = vpop.f32.mrf.mxu0
        %v2758 = vadd.f32 0.0, %v2757
        %v2759 = vpop.f32.mrf.mxu0
        %v2760 = vadd.f32 0.0, %v2759
        %2761 = vdwg.mxu0
        %v2764 = vunpack.c.l.b16 %v2692
        %v2765 = vunpack.c.l.b16 %v2693
        %v2766 = vpack.c.b16 %v2765, %v2764
        %2768 = vmatpush.bf16.xpose.msra.mxu0 0
        %2769 = vmatpush.bf16.xpose.msra.mxu0 0
        %2770 = vmatpush.bf16.xpose.msra.mxu0 0
        %2771 = vmatpush.bf16.xpose.msra.mxu0 0
        %2772 = vmatpush.bf16.xpose.msra.mxu0 0
        %2773 = vmatpush.bf16.xpose.msra.mxu0 0
        %2774 = vmatpush.bf16.xpose.msra.mxu0 0
        %2775 = vmatpush.bf16.xpose.msra.mxu0 %v2766
        %2776 = vmatmul.bf16.gmra.mxu0 %v1425
        %v2777 = vpop.f32.mrf.mxu0
        %v2778 = vadd.f32 0.0, %v2777
        %v2779 = vpop.f32.mrf.mxu0
        %v2780 = vadd.f32 0.0, %v2779
        %2781 = vdwg.mxu0
        %v2784 = vunpack.c.l.b16 %v2694
        %v2785 = vunpack.c.l.b16 %v2695
        %v2786 = vpack.c.b16 %v2785, %v2784
        %2788 = vmatpush.bf16.xpose.msra.mxu0 0
        %2789 = vmatpush.bf16.xpose.msra.mxu0 0
        %2790 = vmatpush.bf16.xpose.msra.mxu0 0
        %2791 = vmatpush.bf16.xpose.msra.mxu0 0
        %2792 = vmatpush.bf16.xpose.msra.mxu0 0
        %2793 = vmatpush.bf16.xpose.msra.mxu0 0
        %2794 = vmatpush.bf16.xpose.msra.mxu0 0
        %2795 = vmatpush.bf16.xpose.msra.mxu0 %v2786
        %2796 = vmatmul.bf16.gmra.mxu0 %v1451
        %v2797 = vpop.f32.mrf.mxu0
        %v2798 = vadd.f32 0.0, %v2797
        %v2799 = vpop.f32.mrf.mxu0
        %v2800 = vadd.f32 0.0, %v2799
        %2801 = vdwg.mxu0
        %v2804 = vunpack.c.l.b16 %v2696
        %v2805 = vunpack.c.l.b16 %v2697
        %v2806 = vpack.c.b16 %v2805, %v2804
        %2808 = vmatpush.bf16.xpose.msra.mxu0 0
        %2809 = vmatpush.bf16.xpose.msra.mxu0 0
        %2810 = vmatpush.bf16.xpose.msra.mxu0 0
        %2811 = vmatpush.bf16.xpose.msra.mxu0 0
        %2812 = vmatpush.bf16.xpose.msra.mxu0 0
        %2813 = vmatpush.bf16.xpose.msra.mxu0 0
        %2814 = vmatpush.bf16.xpose.msra.mxu0 0
        %2815 = vmatpush.bf16.xpose.msra.mxu0 %v2806
        %2816 = vmatmul.bf16.gmra.mxu0 %v1477
        %v2817 = vpop.f32.mrf.mxu0
        %v2818 = vadd.f32 0.0, %v2817
        %v2819 = vpop.f32.mrf.mxu0
        %v2820 = vadd.f32 0.0, %v2819
        %2821 = vdwg.mxu0
        %v2824 = vunpack.c.l.b16 %v2698
        %v2825 = vunpack.c.l.b16 %v2699
        %v2826 = vpack.c.b16 %v2825, %v2824
        %2828 = vmatpush.bf16.xpose.msra.mxu0 0
        %2829 = vmatpush.bf16.xpose.msra.mxu0 0
        %2830 = vmatpush.bf16.xpose.msra.mxu0 0
        %2831 = vmatpush.bf16.xpose.msra.mxu0 0
        %2832 = vmatpush.bf16.xpose.msra.mxu0 0
        %2833 = vmatpush.bf16.xpose.msra.mxu0 0
        %2834 = vmatpush.bf16.xpose.msra.mxu0 0
        %2835 = vmatpush.bf16.xpose.msra.mxu0 %v2826
        %2836 = vmatmul.bf16.gmra.mxu0 %v1503
        %v2837 = vpop.f32.mrf.mxu0
        %v2838 = vadd.f32 0.0, %v2837
        %v2839 = vpop.f32.mrf.mxu0
        %v2840 = vadd.f32 0.0, %v2839
        %2841 = vdwg.mxu0
        %v2844 = vunpack.c.l.b16 %v2700
        %v2845 = vunpack.c.l.b16 %v2701
        %v2846 = vpack.c.b16 %v2845, %v2844
        %2848 = vmatpush.bf16.xpose.msra.mxu0 0
        %2849 = vmatpush.bf16.xpose.msra.mxu0 0
        %2850 = vmatpush.bf16.xpose.msra.mxu0 0
        %2851 = vmatpush.bf16.xpose.msra.mxu0 0
        %2852 = vmatpush.bf16.xpose.msra.mxu0 0
        %2853 = vmatpush.bf16.xpose.msra.mxu0 0
        %2854 = vmatpush.bf16.xpose.msra.mxu0 0
        %2855 = vmatpush.bf16.xpose.msra.mxu0 %v2846
        %2856 = vmatmul.bf16.gmra.mxu0 %v1529
        %v2857 = vpop.f32.mrf.mxu0
        %v2858 = vadd.f32 0.0, %v2857
        %v2859 = vpop.f32.mrf.mxu0
        %v2860 = vadd.f32 0.0, %v2859
        %2861 = vdwg.mxu0
        %v2862 = vsel %vm1551, %v2718, -inf
        %2863 = vmax.xlane.f32.xlu0 %v2862
        %v2864 = vpop.xlane.xlu0 %2863
        %v2865 = vsel %vm1551, %v2720, -inf
        %2866 = vmax.xlane.f32.xlu0 %v2865
        %v2867 = vpop.xlane.xlu0 %2866
        %v2868 = vsel %vm1551, %v2738, -inf
        %2869 = vmax.xlane.f32.xlu0 %v2868
        %v2870 = vpop.xlane.xlu0 %2869
        %v2871 = vsel %vm1551, %v2740, -inf
        %2872 = vmax.xlane.f32.xlu0 %v2871
        %v2873 = vpop.xlane.xlu0 %2872
        %v2874 = vsel %vm1551, %v2758, -inf
        %2875 = vmax.xlane.f32.xlu0 %v2874
        %v2876 = vpop.xlane.xlu0 %2875
        %v2877 = vsel %vm1551, %v2760, -inf
        %2878 = vmax.xlane.f32.xlu0 %v2877
        %v2879 = vpop.xlane.xlu0 %2878
        %v2880 = vsel %vm1551, %v2778, -inf
        %2881 = vmax.xlane.f32.xlu0 %v2880
        %v2882 = vpop.xlane.xlu0 %2881
        %v2883 = vsel %vm1551, %v2780, -inf
        %2884 = vmax.xlane.f32.xlu0 %v2883
        %v2885 = vpop.xlane.xlu0 %2884
        %v2886 = vsel %vm1551, %v2798, -inf
        %2887 = vmax.xlane.f32.xlu0 %v2886
        %v2888 = vpop.xlane.xlu0 %2887
        %v2889 = vsel %vm1551, %v2800, -inf
        %2890 = vmax.xlane.f32.xlu0 %v2889
        %v2891 = vpop.xlane.xlu0 %2890
        %v2892 = vsel %vm1551, %v2818, -inf
        %2893 = vmax.xlane.f32.xlu0 %v2892
        %v2894 = vpop.xlane.xlu0 %2893
        %v2895 = vsel %vm1551, %v2820, -inf
        %2896 = vmax.xlane.f32.xlu0 %v2895
        %v2897 = vpop.xlane.xlu0 %2896
        %v2898 = vsel %vm1551, %v2838, -inf
        %2899 = vmax.xlane.f32.xlu0 %v2898
        %v2900 = vpop.xlane.xlu0 %2899
        %v2901 = vsel %vm1551, %v2840, -inf
        %2902 = vmax.xlane.f32.xlu0 %v2901
        %v2903 = vpop.xlane.xlu0 %2902
        %v2904 = vsel %vm1551, %v2858, -inf
        %2905 = vmax.xlane.f32.xlu0 %v2904
        %v2906 = vpop.xlane.xlu0 %2905
        %v2907 = vsel %vm1551, %v2860, -inf
        %2908 = vmax.xlane.f32.xlu0 %v2907
        %v2909 = vpop.xlane.xlu0 %2908
        %v2910 = vsub.f32 %v2718, %v2864
        %v2911 = vsub.f32 %v2720, %v2867
        %v2912 = vsub.f32 %v2738, %v2870
        %v2913 = vsub.f32 %v2740, %v2873
        %v2914 = vsub.f32 %v2758, %v2876
        %v2915 = vsub.f32 %v2760, %v2879
        %v2916 = vsub.f32 %v2778, %v2882
        %v2917 = vsub.f32 %v2780, %v2885
        %v2918 = vsub.f32 %v2798, %v2888
        %v2919 = vsub.f32 %v2800, %v2891
        %v2920 = vsub.f32 %v2818, %v2894
        %v2921 = vsub.f32 %v2820, %v2897
        %v2922 = vsub.f32 %v2838, %v2900
        %v2923 = vsub.f32 %v2840, %v2903
        %v2924 = vsub.f32 %v2858, %v2906
        %v2925 = vsub.f32 %v2860, %v2909
        %v2926 = vmul.f32 %v2910, 1.442695
        %v2927 = vpow.pop %v2926
        %v2928 = vmul.f32 %v2911, 1.442695
        %v2929 = vpow.pop %v2928
        %v2930 = vmul.f32 %v2912, 1.442695
        %v2931 = vpow.pop %v2930
        %v2932 = vmul.f32 %v2913, 1.442695
        %v2933 = vpow.pop %v2932
        %v2934 = vmul.f32 %v2914, 1.442695
        %v2935 = vpow.pop %v2934
        %v2936 = vmul.f32 %v2915, 1.442695
        %v2937 = vpow.pop %v2936
        %v2938 = vmul.f32 %v2916, 1.442695
        %v2939 = vpow.pop %v2938
        %v2940 = vmul.f32 %v2917, 1.442695
        %v2941 = vpow.pop %v2940
        %v2942 = vmul.f32 %v2918, 1.442695
        %v2943 = vpow.pop %v2942
        %v2944 = vmul.f32 %v2919, 1.442695
        %v2945 = vpow.pop %v2944
        %v2946 = vmul.f32 %v2920, 1.442695
        %v2947 = vpow.pop %v2946
        %v2948 = vmul.f32 %v2921, 1.442695
        %v2949 = vpow.pop %v2948
        %v2950 = vmul.f32 %v2922, 1.442695
        %v2951 = vpow.pop %v2950
        %v2952 = vmul.f32 %v2923, 1.442695
        %v2953 = vpow.pop %v2952
        %v2954 = vmul.f32 %v2924, 1.442695
        %v2955 = vpow.pop %v2954
        %v2956 = vmul.f32 %v2925, 1.442695
        %v2957 = vpow.pop %v2956
        %v2958 = vsel %vm1551, %v2927, 0.0
        %2959 = vadd.xlane.f32.xlu0 %v2958
        %v2960 = vpop.xlane.xlu0 %2959
        %v2961 = vsel %vm1551, %v2929, 0.0
        %2962 = vadd.xlane.f32.xlu0 %v2961
        %v2963 = vpop.xlane.xlu0 %2962
        %v2964 = vsel %vm1551, %v2931, 0.0
        %2965 = vadd.xlane.f32.xlu0 %v2964
        %v2966 = vpop.xlane.xlu0 %2965
        %v2967 = vsel %vm1551, %v2933, 0.0
        %2968 = vadd.xlane.f32.xlu0 %v2967
        %v2969 = vpop.xlane.xlu0 %2968
        %v2970 = vsel %vm1551, %v2935, 0.0
        %2971 = vadd.xlane.f32.xlu0 %v2970
        %v2972 = vpop.xlane.xlu0 %2971
        %v2973 = vsel %vm1551, %v2937, 0.0
        %2974 = vadd.xlane.f32.xlu0 %v2973
        %v2975 = vpop.xlane.xlu0 %2974
        %v2976 = vsel %vm1551, %v2939, 0.0
        %2977 = vadd.xlane.f32.xlu0 %v2976
        %v2978 = vpop.xlane.xlu0 %2977
        %v2979 = vsel %vm1551, %v2941, 0.0
        %2980 = vadd.xlane.f32.xlu0 %v2979
        %v2981 = vpop.xlane.xlu0 %2980
        %v2982 = vsel %vm1551, %v2943, 0.0
        %2983 = vadd.xlane.f32.xlu0 %v2982
        %v2984 = vpop.xlane.xlu0 %2983
        %v2985 = vsel %vm1551, %v2945, 0.0
        %2986 = vadd.xlane.f32.xlu0 %v2985
        %v2987 = vpop.xlane.xlu0 %2986
        %v2988 = vsel %vm1551, %v2947, 0.0
        %2989 = vadd.xlane.f32.xlu0 %v2988
        %v2990 = vpop.xlane.xlu0 %2989
        %v2991 = vsel %vm1551, %v2949, 0.0
        %2992 = vadd.xlane.f32.xlu0 %v2991
        %v2993 = vpop.xlane.xlu0 %2992
        %v2994 = vsel %vm1551, %v2951, 0.0
        %2995 = vadd.xlane.f32.xlu0 %v2994
        %v2996 = vpop.xlane.xlu0 %2995
        %v2997 = vsel %vm1551, %v2953, 0.0
        %2998 = vadd.xlane.f32.xlu0 %v2997
        %v2999 = vpop.xlane.xlu0 %2998
        %v3000 = vsel %vm1551, %v2955, 0.0
        %3001 = vadd.xlane.f32.xlu0 %v3000
        %v3002 = vpop.xlane.xlu0 %3001
        %v3003 = vsel %vm1551, %v2957, 0.0
        %3004 = vadd.xlane.f32.xlu0 %v3003
        %v3005 = vpop.xlane.xlu0 %3004
        %v3006 = vrcp.pop %v2960
        %v3007 = vrcp.pop %v2963
        %v3008 = vrcp.pop %v2966
        %v3009 = vrcp.pop %v2969
        %v3010 = vrcp.pop %v2972
        %v3011 = vrcp.pop %v2975
        %v3012 = vrcp.pop %v2978
        %v3013 = vrcp.pop %v2981
        %v3014 = vrcp.pop %v2984
        %v3015 = vrcp.pop %v2987
        %v3016 = vrcp.pop %v2990
        %v3017 = vrcp.pop %v2993
        %v3018 = vrcp.pop %v2996
        %v3019 = vrcp.pop %v2999
        %v3020 = vrcp.pop %v3002
        %v3021 = vrcp.pop %v3005
        %v3022 = vmul.f32 %v2927, %v3006
        %v3023 = vmul.f32 %v2929, %v3007
        %v3024 = vmul.f32 %v2931, %v3008
        %v3025 = vmul.f32 %v2933, %v3009
        %v3026 = vmul.f32 %v2935, %v3010
        %v3027 = vmul.f32 %v2937, %v3011
        %v3028 = vmul.f32 %v2939, %v3012
        %v3029 = vmul.f32 %v2941, %v3013
        %v3030 = vmul.f32 %v2943, %v3014
        %v3031 = vmul.f32 %v2945, %v3015
        %v3032 = vmul.f32 %v2947, %v3016
        %v3033 = vmul.f32 %v2949, %v3017
        %v3034 = vmul.f32 %v2951, %v3018
        %v3035 = vmul.f32 %v2953, %v3019
        %v3036 = vmul.f32 %v2955, %v3020
        %v3037 = vmul.f32 %v2957, %v3021
        %v3038 = vpack.c.bf16 %v3022, %v3022
        %v3039 = vpack.c.bf16 %v3023, %v3023
        %v3040 = vpack.c.bf16 %v3024, %v3024
        %v3041 = vpack.c.bf16 %v3025, %v3025
        %v3042 = vpack.c.bf16 %v3026, %v3026
        %v3043 = vpack.c.bf16 %v3027, %v3027
        %v3044 = vpack.c.bf16 %v3028, %v3028
        %v3045 = vpack.c.bf16 %v3029, %v3029
        %v3046 = vpack.c.bf16 %v3030, %v3030
        %v3047 = vpack.c.bf16 %v3031, %v3031
        %v3048 = vpack.c.bf16 %v3032, %v3032
        %v3049 = vpack.c.bf16 %v3033, %v3033
        %v3050 = vpack.c.bf16 %v3034, %v3034
        %v3051 = vpack.c.bf16 %v3035, %v3035
        %v3052 = vpack.c.bf16 %v3036, %v3036
        %v3053 = vpack.c.bf16 %v3037, %v3037
        %v3054 = vmul.f32 %v1744, %v2669
        %v3055 = vmul.f32 %v1745, %v2669
        %v3056 = vmul.f32 %v1746, %v2669
        %v3057 = vmul.f32 %v1747, %v2669
        %v3058 = vmul.f32 %v1748, %v2669
        %v3059 = vmul.f32 %v1749, %v2669
        %v3060 = vmul.f32 %v1750, %v2669
        %v3061 = vmul.f32 %v1751, %v2669
        %v3062 = vmul.f32 %v1752, %v2669
        %v3063 = vmul.f32 %v1753, %v2669
        %v3064 = vmul.f32 %v1754, %v2669
        %v3065 = vmul.f32 %v1755, %v2669
        %v3066 = vmul.f32 %v1756, %v2669
        %v3067 = vmul.f32 %v1757, %v2669
        %v3068 = vmul.f32 %v1758, %v2669
        %v3069 = vmul.f32 %v1759, %v2669
        %v3070 = vpack.c.bf16 %v3054, %v3054
        %v3071 = vpack.c.bf16 %v3055, %v3055
        %v3072 = vpack.c.bf16 %v3056, %v3056
        %v3073 = vpack.c.bf16 %v3057, %v3057
        %v3074 = vpack.c.bf16 %v3058, %v3058
        %v3075 = vpack.c.bf16 %v3059, %v3059
        %v3076 = vpack.c.bf16 %v3060, %v3060
        %v3077 = vpack.c.bf16 %v3061, %v3061
        %v3078 = vpack.c.bf16 %v3062, %v3062
        %v3079 = vpack.c.bf16 %v3063, %v3063
        %v3080 = vpack.c.bf16 %v3064, %v3064
        %v3081 = vpack.c.bf16 %v3065, %v3065
        %v3082 = vpack.c.bf16 %v3066, %v3066
        %v3083 = vpack.c.bf16 %v3067, %v3067
        %v3084 = vpack.c.bf16 %v3068, %v3068
        %v3085 = vpack.c.bf16 %v3069, %v3069
        %v3088 = vunpack.c.l.b16 %v3038
        %v3089 = vunpack.c.l.b16 %v3039
        %v3090 = vpack.c.b16 %v3089, %v3088
        %v3093 = vunpack.c.l.b16 %v3070
        %v3094 = vunpack.c.l.b16 %v3071
        %v3095 = vpack.c.b16 %v3094, %v3093
        %v3098 = vsel %vm1551, %v3090, 0
        %3100 = vmatpush.bf16.msra.mxu0 0
        %3101 = vmatpush.bf16.msra.mxu0 0
        %3102 = vmatpush.bf16.msra.mxu0 0
        %3103 = vmatpush.bf16.msra.mxu0 0
        %3104 = vmatpush.bf16.msra.mxu0 0
        %3105 = vmatpush.bf16.msra.mxu0 0
        %3106 = vmatpush.bf16.msra.mxu0 0
        %3107 = vmatpush.bf16.msra.mxu0 %v3095
        %3108 = vmatmul.bf16.gmra.mxu0 %v3098
        %v3109 = vpop.f32.mrf.mxu0
        %v3110 = vadd.f32 0.0, %v3109
        %v3111 = vpop.f32.mrf.mxu0
        %v3112 = vadd.f32 0.0, %v3111
        %3113 = vdwg.mxu0
        %v3116 = vunpack.c.l.b16 %v3040
        %v3117 = vunpack.c.l.b16 %v3041
        %v3118 = vpack.c.b16 %v3117, %v3116
        %v3121 = vunpack.c.l.b16 %v3072
        %v3122 = vunpack.c.l.b16 %v3073
        %v3123 = vpack.c.b16 %v3122, %v3121
        %v3126 = vsel %vm1551, %v3118, 0
        %3128 = vmatpush.bf16.msra.mxu0 0
        %3129 = vmatpush.bf16.msra.mxu0 0
        %3130 = vmatpush.bf16.msra.mxu0 0
        %3131 = vmatpush.bf16.msra.mxu0 0
        %3132 = vmatpush.bf16.msra.mxu0 0
        %3133 = vmatpush.bf16.msra.mxu0 0
        %3134 = vmatpush.bf16.msra.mxu0 0
        %3135 = vmatpush.bf16.msra.mxu0 %v3123
        %3136 = vmatmul.bf16.gmra.mxu0 %v3126
        %v3137 = vpop.f32.mrf.mxu0
        %v3138 = vadd.f32 0.0, %v3137
        %v3139 = vpop.f32.mrf.mxu0
        %v3140 = vadd.f32 0.0, %v3139
        %3141 = vdwg.mxu0
        %v3144 = vunpack.c.l.b16 %v3042
        %v3145 = vunpack.c.l.b16 %v3043
        %v3146 = vpack.c.b16 %v3145, %v3144
        %v3149 = vunpack.c.l.b16 %v3074
        %v3150 = vunpack.c.l.b16 %v3075
        %v3151 = vpack.c.b16 %v3150, %v3149
        %v3154 = vsel %vm1551, %v3146, 0
        %3156 = vmatpush.bf16.msra.mxu0 0
        %3157 = vmatpush.bf16.msra.mxu0 0
        %3158 = vmatpush.bf16.msra.mxu0 0
        %3159 = vmatpush.bf16.msra.mxu0 0
        %3160 = vmatpush.bf16.msra.mxu0 0
        %3161 = vmatpush.bf16.msra.mxu0 0
        %3162 = vmatpush.bf16.msra.mxu0 0
        %3163 = vmatpush.bf16.msra.mxu0 %v3151
        %3164 = vmatmul.bf16.gmra.mxu0 %v3154
        %v3165 = vpop.f32.mrf.mxu0
        %v3166 = vadd.f32 0.0, %v3165
        %v3167 = vpop.f32.mrf.mxu0
        %v3168 = vadd.f32 0.0, %v3167
        %3169 = vdwg.mxu0
        %v3172 = vunpack.c.l.b16 %v3044
        %v3173 = vunpack.c.l.b16 %v3045
        %v3174 = vpack.c.b16 %v3173, %v3172
        %v3177 = vunpack.c.l.b16 %v3076
        %v3178 = vunpack.c.l.b16 %v3077
        %v3179 = vpack.c.b16 %v3178, %v3177
        %v3182 = vsel %vm1551, %v3174, 0
        %3184 = vmatpush.bf16.msra.mxu0 0
        %3185 = vmatpush.bf16.msra.mxu0 0
        %3186 = vmatpush.bf16.msra.mxu0 0
        %3187 = vmatpush.bf16.msra.mxu0 0
        %3188 = vmatpush.bf16.msra.mxu0 0
        %3189 = vmatpush.bf16.msra.mxu0 0
        %3190 = vmatpush.bf16.msra.mxu0 0
        %3191 = vmatpush.bf16.msra.mxu0 %v3179
        %3192 = vmatmul.bf16.gmra.mxu0 %v3182
        %v3193 = vpop.f32.mrf.mxu0
        %v3194 = vadd.f32 0.0, %v3193
        %v3195 = vpop.f32.mrf.mxu0
        %v3196 = vadd.f32 0.0, %v3195
        %3197 = vdwg.mxu0
        %v3200 = vunpack.c.l.b16 %v3046
        %v3201 = vunpack.c.l.b16 %v3047
        %v3202 = vpack.c.b16 %v3201, %v3200
        %v3205 = vunpack.c.l.b16 %v3078
        %v3206 = vunpack.c.l.b16 %v3079
        %v3207 = vpack.c.b16 %v3206, %v3205
        %v3210 = vsel %vm1551, %v3202, 0
        %3212 = vmatpush.bf16.msra.mxu0 0
        %3213 = vmatpush.bf16.msra.mxu0 0
        %3214 = vmatpush.bf16.msra.mxu0 0
        %3215 = vmatpush.bf16.msra.mxu0 0
        %3216 = vmatpush.bf16.msra.mxu0 0
        %3217 = vmatpush.bf16.msra.mxu0 0
        %3218 = vmatpush.bf16.msra.mxu0 0
        %3219 = vmatpush.bf16.msra.mxu0 %v3207
        %3220 = vmatmul.bf16.gmra.mxu0 %v3210
        %v3221 = vpop.f32.mrf.mxu0
        %v3222 = vadd.f32 0.0, %v3221
        %v3223 = vpop.f32.mrf.mxu0
        %v3224 = vadd.f32 0.0, %v3223
        %3225 = vdwg.mxu0
        %v3228 = vunpack.c.l.b16 %v3048
        %v3229 = vunpack.c.l.b16 %v3049
        %v3230 = vpack.c.b16 %v3229, %v3228
        %v3233 = vunpack.c.l.b16 %v3080
        %v3234 = vunpack.c.l.b16 %v3081
        %v3235 = vpack.c.b16 %v3234, %v3233
        %v3238 = vsel %vm1551, %v3230, 0
        %3240 = vmatpush.bf16.msra.mxu0 0
        %3241 = vmatpush.bf16.msra.mxu0 0
        %3242 = vmatpush.bf16.msra.mxu0 0
        %3243 = vmatpush.bf16.msra.mxu0 0
        %3244 = vmatpush.bf16.msra.mxu0 0
        %3245 = vmatpush.bf16.msra.mxu0 0
        %3246 = vmatpush.bf16.msra.mxu0 0
        %3247 = vmatpush.bf16.msra.mxu0 %v3235
        %3248 = vmatmul.bf16.gmra.mxu0 %v3238
        %v3249 = vpop.f32.mrf.mxu0
        %v3250 = vadd.f32 0.0, %v3249
        %v3251 = vpop.f32.mrf.mxu0
        %v3252 = vadd.f32 0.0, %v3251
        %3253 = vdwg.mxu0
        %v3256 = vunpack.c.l.b16 %v3050
        %v3257 = vunpack.c.l.b16 %v3051
        %v3258 = vpack.c.b16 %v3257, %v3256
        %v3261 = vunpack.c.l.b16 %v3082
        %v3262 = vunpack.c.l.b16 %v3083
        %v3263 = vpack.c.b16 %v3262, %v3261
        %v3266 = vsel %vm1551, %v3258, 0
        %3268 = vmatpush.bf16.msra.mxu0 0
        %3269 = vmatpush.bf16.msra.mxu0 0
        %3270 = vmatpush.bf16.msra.mxu0 0
        %3271 = vmatpush.bf16.msra.mxu0 0
        %3272 = vmatpush.bf16.msra.mxu0 0
        %3273 = vmatpush.bf16.msra.mxu0 0
        %3274 = vmatpush.bf16.msra.mxu0 0
        %3275 = vmatpush.bf16.msra.mxu0 %v3263
        %3276 = vmatmul.bf16.gmra.mxu0 %v3266
        %v3277 = vpop.f32.mrf.mxu0
        %v3278 = vadd.f32 0.0, %v3277
        %v3279 = vpop.f32.mrf.mxu0
        %v3280 = vadd.f32 0.0, %v3279
        %3281 = vdwg.mxu0
        %v3284 = vunpack.c.l.b16 %v3052
        %v3285 = vunpack.c.l.b16 %v3053
        %v3286 = vpack.c.b16 %v3285, %v3284
        %v3289 = vunpack.c.l.b16 %v3084
        %v3290 = vunpack.c.l.b16 %v3085
        %v3291 = vpack.c.b16 %v3290, %v3289
        %v3294 = vsel %vm1551, %v3286, 0
        %3296 = vmatpush.bf16.msra.mxu0 0
        %3297 = vmatpush.bf16.msra.mxu0 0
        %3298 = vmatpush.bf16.msra.mxu0 0
        %3299 = vmatpush.bf16.msra.mxu0 0
        %3300 = vmatpush.bf16.msra.mxu0 0
        %3301 = vmatpush.bf16.msra.mxu0 0
        %3302 = vmatpush.bf16.msra.mxu0 0
        %3303 = vmatpush.bf16.msra.mxu0 %v3291
        %3304 = vmatmul.bf16.gmra.mxu0 %v3294
        %v3305 = vpop.f32.mrf.mxu0
        %v3306 = vadd.f32 0.0, %v3305
        %v3307 = vpop.f32.mrf.mxu0
        %v3308 = vadd.f32 0.0, %v3307
        %3309 = vdwg.mxu0
        %v3310 = vadd.f32 %v2463, %v3110
        %v3311 = vadd.f32 %v2465, %v3112
        %v3312 = vadd.f32 %v2491, %v3138
        %v3313 = vadd.f32 %v2493, %v3140
        %v3314 = vadd.f32 %v2519, %v3166
        %v3315 = vadd.f32 %v2521, %v3168
        %v3316 = vadd.f32 %v2547, %v3194
        %v3317 = vadd.f32 %v2549, %v3196
        %v3318 = vadd.f32 %v2575, %v3222
        %v3319 = vadd.f32 %v2577, %v3224
        %v3320 = vadd.f32 %v2603, %v3250
        %v3321 = vadd.f32 %v2605, %v3252
        %v3322 = vadd.f32 %v2631, %v3278
        %v3323 = vadd.f32 %v2633, %v3280
        %v3324 = vadd.f32 %v2659, %v3306
        %v3325 = vadd.f32 %v2661, %v3308
        %vm3326 = vcmp.ge.s32.totalorder %v665, 96
        %vm3327 = vcmp.lt.s32.totalorder %v665, 128
        %vm3328 = vmand %vm3326, %vm3327
        %v3329 = vsel %vm3328, 1, 0
        %v3330 = vcvt.s32.f32 %v3329
        %v3331 = vpack.c.bf16 %v3330, %v3330
        %v3332 = vunpack.c.l.bf16 %v3331
        %v3333 = vmul.f32 %v1294, %v3332
        %v3334 = vmul.f32 %v1295, %v3332
        %v3335 = vmul.f32 %v1296, %v3332
        %v3336 = vmul.f32 %v1297, %v3332
        %v3337 = vmul.f32 %v1298, %v3332
        %v3338 = vmul.f32 %v1299, %v3332
        %v3339 = vmul.f32 %v1300, %v3332
        %v3340 = vmul.f32 %v1301, %v3332
        %v3341 = vmul.f32 %v1302, %v3332
        %v3342 = vmul.f32 %v1303, %v3332
        %v3343 = vmul.f32 %v1304, %v3332
        %v3344 = vmul.f32 %v1305, %v3332
        %v3345 = vmul.f32 %v1306, %v3332
        %v3346 = vmul.f32 %v1307, %v3332
        %v3347 = vmul.f32 %v1308, %v3332
        %v3348 = vmul.f32 %v1309, %v3332
        %v3349 = vpack.c.bf16 %v3333, %v3333
        %v3350 = vpack.c.bf16 %v3334, %v3334
        %v3351 = vpack.c.bf16 %v3335, %v3335
        %v3352 = vpack.c.bf16 %v3336, %v3336
        %v3353 = vpack.c.bf16 %v3337, %v3337
        %v3354 = vpack.c.bf16 %v3338, %v3338
        %v3355 = vpack.c.bf16 %v3339, %v3339
        %v3356 = vpack.c.bf16 %v3340, %v3340
        %v3357 = vpack.c.bf16 %v3341, %v3341
        %v3358 = vpack.c.bf16 %v3342, %v3342
        %v3359 = vpack.c.bf16 %v3343, %v3343
        %v3360 = vpack.c.bf16 %v3344, %v3344
        %v3361 = vpack.c.bf16 %v3345, %v3345
        %v3362 = vpack.c.bf16 %v3346, %v3346
        %v3363 = vpack.c.bf16 %v3347, %v3347
        %v3364 = vpack.c.bf16 %v3348, %v3348
        %v3367 = vunpack.c.l.b16 %v3349
        %v3368 = vunpack.c.l.b16 %v3350
        %v3369 = vpack.c.b16 %v3368, %v3367
        %3371 = vmatpush.bf16.xpose.msra.mxu0 0
        %3372 = vmatpush.bf16.xpose.msra.mxu0 0
        %3373 = vmatpush.bf16.xpose.msra.mxu0 0
        %3374 = vmatpush.bf16.xpose.msra.mxu0 0
        %3375 = vmatpush.bf16.xpose.msra.mxu0 0
        %3376 = vmatpush.bf16.xpose.msra.mxu0 0
        %3377 = vmatpush.bf16.xpose.msra.mxu0 0
        %3378 = vmatpush.bf16.xpose.msra.mxu0 %v3369
        %3379 = vmatmul.bf16.gmra.mxu0 %v1347
        %v3380 = vpop.f32.mrf.mxu0
        %v3381 = vadd.f32 0.0, %v3380
        %v3382 = vpop.f32.mrf.mxu0
        %v3383 = vadd.f32 0.0, %v3382
        %3384 = vdwg.mxu0
        %v3387 = vunpack.c.l.b16 %v3351
        %v3388 = vunpack.c.l.b16 %v3352
        %v3389 = vpack.c.b16 %v3388, %v3387
        %3391 = vmatpush.bf16.xpose.msra.mxu0 0
        %3392 = vmatpush.bf16.xpose.msra.mxu0 0
        %3393 = vmatpush.bf16.xpose.msra.mxu0 0
        %3394 = vmatpush.bf16.xpose.msra.mxu0 0
        %3395 = vmatpush.bf16.xpose.msra.mxu0 0
        %3396 = vmatpush.bf16.xpose.msra.mxu0 0
        %3397 = vmatpush.bf16.xpose.msra.mxu0 0
        %3398 = vmatpush.bf16.xpose.msra.mxu0 %v3389
        %3399 = vmatmul.bf16.gmra.mxu0 %v1373
        %v3400 = vpop.f32.mrf.mxu0
        %v3401 = vadd.f32 0.0, %v3400
        %v3402 = vpop.f32.mrf.mxu0
        %v3403 = vadd.f32 0.0, %v3402
        %3404 = vdwg.mxu0
        %v3407 = vunpack.c.l.b16 %v3353
        %v3408 = vunpack.c.l.b16 %v3354
        %v3409 = vpack.c.b16 %v3408, %v3407
        %3411 = vmatpush.bf16.xpose.msra.mxu0 0
        %3412 = vmatpush.bf16.xpose.msra.mxu0 0
        %3413 = vmatpush.bf16.xpose.msra.mxu0 0
        %3414 = vmatpush.bf16.xpose.msra.mxu0 0
        %3415 = vmatpush.bf16.xpose.msra.mxu0 0
        %3416 = vmatpush.bf16.xpose.msra.mxu0 0
        %3417 = vmatpush.bf16.xpose.msra.mxu0 0
        %3418 = vmatpush.bf16.xpose.msra.mxu0 %v3409
        %3419 = vmatmul.bf16.gmra.mxu0 %v1399
        %v3420 = vpop.f32.mrf.mxu0
        %v3421 = vadd.f32 0.0, %v3420
        %v3422 = vpop.f32.mrf.mxu0
        %v3423 = vadd.f32 0.0, %v3422
        %3424 = vdwg.mxu0
        %v3427 = vunpack.c.l.b16 %v3355
        %v3428 = vunpack.c.l.b16 %v3356
        %v3429 = vpack.c.b16 %v3428, %v3427
        %3431 = vmatpush.bf16.xpose.msra.mxu0 0
        %3432 = vmatpush.bf16.xpose.msra.mxu0 0
        %3433 = vmatpush.bf16.xpose.msra.mxu0 0
        %3434 = vmatpush.bf16.xpose.msra.mxu0 0
        %3435 = vmatpush.bf16.xpose.msra.mxu0 0
        %3436 = vmatpush.bf16.xpose.msra.mxu0 0
        %3437 = vmatpush.bf16.xpose.msra.mxu0 0
        %3438 = vmatpush.bf16.xpose.msra.mxu0 %v3429
        %3439 = vmatmul.bf16.gmra.mxu0 %v1425
        %v3440 = vpop.f32.mrf.mxu0
        %v3441 = vadd.f32 0.0, %v3440
        %v3442 = vpop.f32.mrf.mxu0
        %v3443 = vadd.f32 0.0, %v3442
        %3444 = vdwg.mxu0
        %v3447 = vunpack.c.l.b16 %v3357
        %v3448 = vunpack.c.l.b16 %v3358
        %v3449 = vpack.c.b16 %v3448, %v3447
        %3451 = vmatpush.bf16.xpose.msra.mxu0 0
        %3452 = vmatpush.bf16.xpose.msra.mxu0 0
        %3453 = vmatpush.bf16.xpose.msra.mxu0 0
        %3454 = vmatpush.bf16.xpose.msra.mxu0 0
        %3455 = vmatpush.bf16.xpose.msra.mxu0 0
        %3456 = vmatpush.bf16.xpose.msra.mxu0 0
        %3457 = vmatpush.bf16.xpose.msra.mxu0 0
        %3458 = vmatpush.bf16.xpose.msra.mxu0 %v3449
        %3459 = vmatmul.bf16.gmra.mxu0 %v1451
        %v3460 = vpop.f32.mrf.mxu0
        %v3461 = vadd.f32 0.0, %v3460
        %v3462 = vpop.f32.mrf.mxu0
        %v3463 = vadd.f32 0.0, %v3462
        %3464 = vdwg.mxu0
        %v3467 = vunpack.c.l.b16 %v3359
        %v3468 = vunpack.c.l.b16 %v3360
        %v3469 = vpack.c.b16 %v3468, %v3467
        %3471 = vmatpush.bf16.xpose.msra.mxu0 0
        %3472 = vmatpush.bf16.xpose.msra.mxu0 0
        %3473 = vmatpush.bf16.xpose.msra.mxu0 0
        %3474 = vmatpush.bf16.xpose.msra.mxu0 0
        %3475 = vmatpush.bf16.xpose.msra.mxu0 0
        %3476 = vmatpush.bf16.xpose.msra.mxu0 0
        %3477 = vmatpush.bf16.xpose.msra.mxu0 0
        %3478 = vmatpush.bf16.xpose.msra.mxu0 %v3469
        %3479 = vmatmul.bf16.gmra.mxu0 %v1477
        %v3480 = vpop.f32.mrf.mxu0
        %v3481 = vadd.f32 0.0, %v3480
        %v3482 = vpop.f32.mrf.mxu0
        %v3483 = vadd.f32 0.0, %v3482
        %3484 = vdwg.mxu0
        %v3487 = vunpack.c.l.b16 %v3361
        %v3488 = vunpack.c.l.b16 %v3362
        %v3489 = vpack.c.b16 %v3488, %v3487
        %3491 = vmatpush.bf16.xpose.msra.mxu0 0
        %3492 = vmatpush.bf16.xpose.msra.mxu0 0
        %3493 = vmatpush.bf16.xpose.msra.mxu0 0
        %3494 = vmatpush.bf16.xpose.msra.mxu0 0
        %3495 = vmatpush.bf16.xpose.msra.mxu0 0
        %3496 = vmatpush.bf16.xpose.msra.mxu0 0
        %3497 = vmatpush.bf16.xpose.msra.mxu0 0
        %3498 = vmatpush.bf16.xpose.msra.mxu0 %v3489
        %3499 = vmatmul.bf16.gmra.mxu0 %v1503
        %v3500 = vpop.f32.mrf.mxu0
        %v3501 = vadd.f32 0.0, %v3500
        %v3502 = vpop.f32.mrf.mxu0
        %v3503 = vadd.f32 0.0, %v3502
        %3504 = vdwg.mxu0
        %v3507 = vunpack.c.l.b16 %v3363
        %v3508 = vunpack.c.l.b16 %v3364
        %v3509 = vpack.c.b16 %v3508, %v3507
        %3511 = vmatpush.bf16.xpose.msra.mxu0 0
        %3512 = vmatpush.bf16.xpose.msra.mxu0 0
        %3513 = vmatpush.bf16.xpose.msra.mxu0 0
        %3514 = vmatpush.bf16.xpose.msra.mxu0 0
        %3515 = vmatpush.bf16.xpose.msra.mxu0 0
        %3516 = vmatpush.bf16.xpose.msra.mxu0 0
        %3517 = vmatpush.bf16.xpose.msra.mxu0 0
        %3518 = vmatpush.bf16.xpose.msra.mxu0 %v3509
        %3519 = vmatmul.bf16.gmra.mxu0 %v1529
        %v3520 = vpop.f32.mrf.mxu0
        %v3521 = vadd.f32 0.0, %v3520
        %v3522 = vpop.f32.mrf.mxu0
        %v3523 = vadd.f32 0.0, %v3522
        %3524 = vdwg.mxu0
        %v3525 = vsel %vm1551, %v3381, -inf
        %3526 = vmax.xlane.f32.xlu0 %v3525
        %v3527 = vpop.xlane.xlu0 %3526
        %v3528 = vsel %vm1551, %v3383, -inf
        %3529 = vmax.xlane.f32.xlu0 %v3528
        %v3530 = vpop.xlane.xlu0 %3529
        %v3531 = vsel %vm1551, %v3401, -inf
        %3532 = vmax.xlane.f32.xlu0 %v3531
        %v3533 = vpop.xlane.xlu0 %3532
        %v3534 = vsel %vm1551, %v3403, -inf
        %3535 = vmax.xlane.f32.xlu0 %v3534
        %v3536 = vpop.xlane.xlu0 %3535
        %v3537 = vsel %vm1551, %v3421, -inf
        %3538 = vmax.xlane.f32.xlu0 %v3537
        %v3539 = vpop.xlane.xlu0 %3538
        %v3540 = vsel %vm1551, %v3423, -inf
        %3541 = vmax.xlane.f32.xlu0 %v3540
        %v3542 = vpop.xlane.xlu0 %3541
        %v3543 = vsel %vm1551, %v3441, -inf
        %3544 = vmax.xlane.f32.xlu0 %v3543
        %v3545 = vpop.xlane.xlu0 %3544
        %v3546 = vsel %vm1551, %v3443, -inf
        %3547 = vmax.xlane.f32.xlu0 %v3546
        %v3548 = vpop.xlane.xlu0 %3547
        %v3549 = vsel %vm1551, %v3461, -inf
        %3550 = vmax.xlane.f32.xlu0 %v3549
        %v3551 = vpop.xlane.xlu0 %3550
        %v3552 = vsel %vm1551, %v3463, -inf
        %3553 = vmax.xlane.f32.xlu0 %v3552
        %v3554 = vpop.xlane.xlu0 %3553
        %v3555 = vsel %vm1551, %v3481, -inf
        %3556 = vmax.xlane.f32.xlu0 %v3555
        %v3557 = vpop.xlane.xlu0 %3556
        %v3558 = vsel %vm1551, %v3483, -inf
        %3559 = vmax.xlane.f32.xlu0 %v3558
        %v3560 = vpop.xlane.xlu0 %3559
        %v3561 = vsel %vm1551, %v3501, -inf
        %3562 = vmax.xlane.f32.xlu0 %v3561
        %v3563 = vpop.xlane.xlu0 %3562
        %v3564 = vsel %vm1551, %v3503, -inf
        %3565 = vmax.xlane.f32.xlu0 %v3564
        %v3566 = vpop.xlane.xlu0 %3565
        %v3567 = vsel %vm1551, %v3521, -inf
        %3568 = vmax.xlane.f32.xlu0 %v3567
        %v3569 = vpop.xlane.xlu0 %3568
        %v3570 = vsel %vm1551, %v3523, -inf
        %3571 = vmax.xlane.f32.xlu0 %v3570
        %v3572 = vpop.xlane.xlu0 %3571
        %v3573 = vsub.f32 %v3381, %v3527
        %v3574 = vsub.f32 %v3383, %v3530
        %v3575 = vsub.f32 %v3401, %v3533
        %v3576 = vsub.f32 %v3403, %v3536
        %v3577 = vsub.f32 %v3421, %v3539
        %v3578 = vsub.f32 %v3423, %v3542
        %v3579 = vsub.f32 %v3441, %v3545
        %v3580 = vsub.f32 %v3443, %v3548
        %v3581 = vsub.f32 %v3461, %v3551
        %v3582 = vsub.f32 %v3463, %v3554
        %v3583 = vsub.f32 %v3481, %v3557
        %v3584 = vsub.f32 %v3483, %v3560
        %v3585 = vsub.f32 %v3501, %v3563
        %v3586 = vsub.f32 %v3503, %v3566
        %v3587 = vsub.f32 %v3521, %v3569
        %v3588 = vsub.f32 %v3523, %v3572
        %v3589 = vmul.f32 %v3573, 1.442695
        %v3590 = vpow.pop %v3589
        %v3591 = vmul.f32 %v3574, 1.442695
        %v3592 = vpow.pop %v3591
        %v3593 = vmul.f32 %v3575, 1.442695
        %v3594 = vpow.pop %v3593
        %v3595 = vmul.f32 %v3576, 1.442695
        %v3596 = vpow.pop %v3595
        %v3597 = vmul.f32 %v3577, 1.442695
        %v3598 = vpow.pop %v3597
        %v3599 = vmul.f32 %v3578, 1.442695
        %v3600 = vpow.pop %v3599
        %v3601 = vmul.f32 %v3579, 1.442695
        %v3602 = vpow.pop %v3601
        %v3603 = vmul.f32 %v3580, 1.442695
        %v3604 = vpow.pop %v3603
        %v3605 = vmul.f32 %v3581, 1.442695
        %v3606 = vpow.pop %v3605
        %v3607 = vmul.f32 %v3582, 1.442695
        %v3608 = vpow.pop %v3607
        %v3609 = vmul.f32 %v3583, 1.442695
        %v3610 = vpow.pop %v3609
        %v3611 = vmul.f32 %v3584, 1.442695
        %v3612 = vpow.pop %v3611
        %v3613 = vmul.f32 %v3585, 1.442695
        %v3614 = vpow.pop %v3613
        %v3615 = vmul.f32 %v3586, 1.442695
        %v3616 = vpow.pop %v3615
        %v3617 = vmul.f32 %v3587, 1.442695
        %v3618 = vpow.pop %v3617
        %v3619 = vmul.f32 %v3588, 1.442695
        %v3620 = vpow.pop %v3619
        %v3621 = vsel %vm1551, %v3590, 0.0
        %3622 = vadd.xlane.f32.xlu0 %v3621
        %v3623 = vpop.xlane.xlu0 %3622
        %v3624 = vsel %vm1551, %v3592, 0.0
        %3625 = vadd.xlane.f32.xlu0 %v3624
        %v3626 = vpop.xlane.xlu0 %3625
        %v3627 = vsel %vm1551, %v3594, 0.0
        %3628 = vadd.xlane.f32.xlu0 %v3627
        %v3629 = vpop.xlane.xlu0 %3628
        %v3630 = vsel %vm1551, %v3596, 0.0
        %3631 = vadd.xlane.f32.xlu0 %v3630
        %v3632 = vpop.xlane.xlu0 %3631
        %v3633 = vsel %vm1551, %v3598, 0.0
        %3634 = vadd.xlane.f32.xlu0 %v3633
        %v3635 = vpop.xlane.xlu0 %3634
        %v3636 = vsel %vm1551, %v3600, 0.0
        %3637 = vadd.xlane.f32.xlu0 %v3636
        %v3638 = vpop.xlane.xlu0 %3637
        %v3639 = vsel %vm1551, %v3602, 0.0
        %3640 = vadd.xlane.f32.xlu0 %v3639
        %v3641 = vpop.xlane.xlu0 %3640
        %v3642 = vsel %vm1551, %v3604, 0.0
        %3643 = vadd.xlane.f32.xlu0 %v3642
        %v3644 = vpop.xlane.xlu0 %3643
        %v3645 = vsel %vm1551, %v3606, 0.0
        %3646 = vadd.xlane.f32.xlu0 %v3645
        %v3647 = vpop.xlane.xlu0 %3646
        %v3648 = vsel %vm1551, %v3608, 0.0
        %3649 = vadd.xlane.f32.xlu0 %v3648
        %v3650 = vpop.xlane.xlu0 %3649
        %v3651 = vsel %vm1551, %v3610, 0.0
        %3652 = vadd.xlane.f32.xlu0 %v3651
        %v3653 = vpop.xlane.xlu0 %3652
        %v3654 = vsel %vm1551, %v3612, 0.0
        %3655 = vadd.xlane.f32.xlu0 %v3654
        %v3656 = vpop.xlane.xlu0 %3655
        %v3657 = vsel %vm1551, %v3614, 0.0
        %3658 = vadd.xlane.f32.xlu0 %v3657
        %v3659 = vpop.xlane.xlu0 %3658
        %v3660 = vsel %vm1551, %v3616, 0.0
        %3661 = vadd.xlane.f32.xlu0 %v3660
        %v3662 = vpop.xlane.xlu0 %3661
        %v3663 = vsel %vm1551, %v3618, 0.0
        %3664 = vadd.xlane.f32.xlu0 %v3663
        %v3665 = vpop.xlane.xlu0 %3664
        %v3666 = vsel %vm1551, %v3620, 0.0
        %3667 = vadd.xlane.f32.xlu0 %v3666
        %v3668 = vpop.xlane.xlu0 %3667
        %v3669 = vrcp.pop %v3623
        %v3670 = vrcp.pop %v3626
        %v3671 = vrcp.pop %v3629
        %v3672 = vrcp.pop %v3632
        %v3673 = vrcp.pop %v3635
        %v3674 = vrcp.pop %v3638
        %v3675 = vrcp.pop %v3641
        %v3676 = vrcp.pop %v3644
        %v3677 = vrcp.pop %v3647
        %v3678 = vrcp.pop %v3650
        %v3679 = vrcp.pop %v3653
        %v3680 = vrcp.pop %v3656
        %v3681 = vrcp.pop %v3659
        %v3682 = vrcp.pop %v3662
        %v3683 = vrcp.pop %v3665
        %v3684 = vrcp.pop %v3668
        %v3685 = vmul.f32 %v3590, %v3669
        %v3686 = vmul.f32 %v3592, %v3670
        %v3687 = vmul.f32 %v3594, %v3671
        %v3688 = vmul.f32 %v3596, %v3672
        %v3689 = vmul.f32 %v3598, %v3673
        %v3690 = vmul.f32 %v3600, %v3674
        %v3691 = vmul.f32 %v3602, %v3675
        %v3692 = vmul.f32 %v3604, %v3676
        %v3693 = vmul.f32 %v3606, %v3677
        %v3694 = vmul.f32 %v3608, %v3678
        %v3695 = vmul.f32 %v3610, %v3679
        %v3696 = vmul.f32 %v3612, %v3680
        %v3697 = vmul.f32 %v3614, %v3681
        %v3698 = vmul.f32 %v3616, %v3682
        %v3699 = vmul.f32 %v3618, %v3683
        %v3700 = vmul.f32 %v3620, %v3684
        %v3701 = vpack.c.bf16 %v3685, %v3685
        %v3702 = vpack.c.bf16 %v3686, %v3686
        %v3703 = vpack.c.bf16 %v3687, %v3687
        %v3704 = vpack.c.bf16 %v3688, %v3688
        %v3705 = vpack.c.bf16 %v3689, %v3689
        %v3706 = vpack.c.bf16 %v3690, %v3690
        %v3707 = vpack.c.bf16 %v3691, %v3691
        %v3708 = vpack.c.bf16 %v3692, %v3692
        %v3709 = vpack.c.bf16 %v3693, %v3693
        %v3710 = vpack.c.bf16 %v3694, %v3694
        %v3711 = vpack.c.bf16 %v3695, %v3695
        %v3712 = vpack.c.bf16 %v3696, %v3696
        %v3713 = vpack.c.bf16 %v3697, %v3697
        %v3714 = vpack.c.bf16 %v3698, %v3698
        %v3715 = vpack.c.bf16 %v3699, %v3699
        %v3716 = vpack.c.bf16 %v3700, %v3700
        %v3717 = vmul.f32 %v1744, %v3332
        %v3718 = vmul.f32 %v1745, %v3332
        %v3719 = vmul.f32 %v1746, %v3332
        %v3720 = vmul.f32 %v1747, %v3332
        %v3721 = vmul.f32 %v1748, %v3332
        %v3722 = vmul.f32 %v1749, %v3332
        %v3723 = vmul.f32 %v1750, %v3332
        %v3724 = vmul.f32 %v1751, %v3332
        %v3725 = vmul.f32 %v1752, %v3332
        %v3726 = vmul.f32 %v1753, %v3332
        %v3727 = vmul.f32 %v1754, %v3332
        %v3728 = vmul.f32 %v1755, %v3332
        %v3729 = vmul.f32 %v1756, %v3332
        %v3730 = vmul.f32 %v1757, %v3332
        %v3731 = vmul.f32 %v1758, %v3332
        %v3732 = vmul.f32 %v1759, %v3332
        %v3733 = vpack.c.bf16 %v3717, %v3717
        %v3734 = vpack.c.bf16 %v3718, %v3718
        %v3735 = vpack.c.bf16 %v3719, %v3719
        %v3736 = vpack.c.bf16 %v3720, %v3720
        %v3737 = vpack.c.bf16 %v3721, %v3721
        %v3738 = vpack.c.bf16 %v3722, %v3722
        %v3739 = vpack.c.bf16 %v3723, %v3723
        %v3740 = vpack.c.bf16 %v3724, %v3724
        %v3741 = vpack.c.bf16 %v3725, %v3725
        %v3742 = vpack.c.bf16 %v3726, %v3726
        %v3743 = vpack.c.bf16 %v3727, %v3727
        %v3744 = vpack.c.bf16 %v3728, %v3728
        %v3745 = vpack.c.bf16 %v3729, %v3729
        %v3746 = vpack.c.bf16 %v3730, %v3730
        %v3747 = vpack.c.bf16 %v3731, %v3731
        %v3748 = vpack.c.bf16 %v3732, %v3732
        %v3751 = vunpack.c.l.b16 %v3701
        %v3752 = vunpack.c.l.b16 %v3702
        %v3753 = vpack.c.b16 %v3752, %v3751
        %v3756 = vunpack.c.l.b16 %v3733
        %v3757 = vunpack.c.l.b16 %v3734
        %v3758 = vpack.c.b16 %v3757, %v3756
        %v3761 = vsel %vm1551, %v3753, 0
        %3763 = vmatpush.bf16.msra.mxu0 0
        %3764 = vmatpush.bf16.msra.mxu0 0
        %3765 = vmatpush.bf16.msra.mxu0 0
        %3766 = vmatpush.bf16.msra.mxu0 0
        %3767 = vmatpush.bf16.msra.mxu0 0
        %3768 = vmatpush.bf16.msra.mxu0 0
        %3769 = vmatpush.bf16.msra.mxu0 0
        %3770 = vmatpush.bf16.msra.mxu0 %v3758
        %3771 = vmatmul.bf16.gmra.mxu0 %v3761
        %v3772 = vpop.f32.mrf.mxu0
        %v3773 = vadd.f32 0.0, %v3772
        %v3774 = vpop.f32.mrf.mxu0
        %v3775 = vadd.f32 0.0, %v3774
        %3776 = vdwg.mxu0
        %v3779 = vunpack.c.l.b16 %v3703
        %v3780 = vunpack.c.l.b16 %v3704
        %v3781 = vpack.c.b16 %v3780, %v3779
        %v3784 = vunpack.c.l.b16 %v3735
        %v3785 = vunpack.c.l.b16 %v3736
        %v3786 = vpack.c.b16 %v3785, %v3784
        %v3789 = vsel %vm1551, %v3781, 0
        %3791 = vmatpush.bf16.msra.mxu0 0
        %3792 = vmatpush.bf16.msra.mxu0 0
        %3793 = vmatpush.bf16.msra.mxu0 0
        %3794 = vmatpush.bf16.msra.mxu0 0
        %3795 = vmatpush.bf16.msra.mxu0 0
        %3796 = vmatpush.bf16.msra.mxu0 0
        %3797 = vmatpush.bf16.msra.mxu0 0
        %3798 = vmatpush.bf16.msra.mxu0 %v3786
        %3799 = vmatmul.bf16.gmra.mxu0 %v3789
        %v3800 = vpop.f32.mrf.mxu0
        %v3801 = vadd.f32 0.0, %v3800
        %v3802 = vpop.f32.mrf.mxu0
        %v3803 = vadd.f32 0.0, %v3802
        %3804 = vdwg.mxu0
        %v3807 = vunpack.c.l.b16 %v3705
        %v3808 = vunpack.c.l.b16 %v3706
        %v3809 = vpack.c.b16 %v3808, %v3807
        %v3812 = vunpack.c.l.b16 %v3737
        %v3813 = vunpack.c.l.b16 %v3738
        %v3814 = vpack.c.b16 %v3813, %v3812
        %v3817 = vsel %vm1551, %v3809, 0
        %3819 = vmatpush.bf16.msra.mxu0 0
        %3820 = vmatpush.bf16.msra.mxu0 0
        %3821 = vmatpush.bf16.msra.mxu0 0
        %3822 = vmatpush.bf16.msra.mxu0 0
        %3823 = vmatpush.bf16.msra.mxu0 0
        %3824 = vmatpush.bf16.msra.mxu0 0
        %3825 = vmatpush.bf16.msra.mxu0 0
        %3826 = vmatpush.bf16.msra.mxu0 %v3814
        %3827 = vmatmul.bf16.gmra.mxu0 %v3817
        %v3828 = vpop.f32.mrf.mxu0
        %v3829 = vadd.f32 0.0, %v3828
        %v3830 = vpop.f32.mrf.mxu0
        %v3831 = vadd.f32 0.0, %v3830
        %3832 = vdwg.mxu0
        %v3835 = vunpack.c.l.b16 %v3707
        %v3836 = vunpack.c.l.b16 %v3708
        %v3837 = vpack.c.b16 %v3836, %v3835
        %v3840 = vunpack.c.l.b16 %v3739
        %v3841 = vunpack.c.l.b16 %v3740
        %v3842 = vpack.c.b16 %v3841, %v3840
        %v3845 = vsel %vm1551, %v3837, 0
        %3847 = vmatpush.bf16.msra.mxu0 0
        %3848 = vmatpush.bf16.msra.mxu0 0
        %3849 = vmatpush.bf16.msra.mxu0 0
        %3850 = vmatpush.bf16.msra.mxu0 0
        %3851 = vmatpush.bf16.msra.mxu0 0
        %3852 = vmatpush.bf16.msra.mxu0 0
        %3853 = vmatpush.bf16.msra.mxu0 0
        %3854 = vmatpush.bf16.msra.mxu0 %v3842
        %3855 = vmatmul.bf16.gmra.mxu0 %v3845
        %v3856 = vpop.f32.mrf.mxu0
        %v3857 = vadd.f32 0.0, %v3856
        %v3858 = vpop.f32.mrf.mxu0
        %v3859 = vadd.f32 0.0, %v3858
        %3860 = vdwg.mxu0
        %v3863 = vunpack.c.l.b16 %v3709
        %v3864 = vunpack.c.l.b16 %v3710
        %v3865 = vpack.c.b16 %v3864, %v3863
        %v3868 = vunpack.c.l.b16 %v3741
        %v3869 = vunpack.c.l.b16 %v3742
        %v3870 = vpack.c.b16 %v3869, %v3868
        %v3873 = vsel %vm1551, %v3865, 0
        %3875 = vmatpush.bf16.msra.mxu0 0
        %3876 = vmatpush.bf16.msra.mxu0 0
        %3877 = vmatpush.bf16.msra.mxu0 0
        %3878 = vmatpush.bf16.msra.mxu0 0
        %3879 = vmatpush.bf16.msra.mxu0 0
        %3880 = vmatpush.bf16.msra.mxu0 0
        %3881 = vmatpush.bf16.msra.mxu0 0
        %3882 = vmatpush.bf16.msra.mxu0 %v3870
        %3883 = vmatmul.bf16.gmra.mxu0 %v3873
        %v3884 = vpop.f32.mrf.mxu0
        %v3885 = vadd.f32 0.0, %v3884
        %v3886 = vpop.f32.mrf.mxu0
        %v3887 = vadd.f32 0.0, %v3886
        %3888 = vdwg.mxu0
        %v3891 = vunpack.c.l.b16 %v3711
        %v3892 = vunpack.c.l.b16 %v3712
        %v3893 = vpack.c.b16 %v3892, %v3891
        %v3896 = vunpack.c.l.b16 %v3743
        %v3897 = vunpack.c.l.b16 %v3744
        %v3898 = vpack.c.b16 %v3897, %v3896
        %v3901 = vsel %vm1551, %v3893, 0
        %3903 = vmatpush.bf16.msra.mxu0 0
        %3904 = vmatpush.bf16.msra.mxu0 0
        %3905 = vmatpush.bf16.msra.mxu0 0
        %3906 = vmatpush.bf16.msra.mxu0 0
        %3907 = vmatpush.bf16.msra.mxu0 0
        %3908 = vmatpush.bf16.msra.mxu0 0
        %3909 = vmatpush.bf16.msra.mxu0 0
        %3910 = vmatpush.bf16.msra.mxu0 %v3898
        %3911 = vmatmul.bf16.gmra.mxu0 %v3901
        %v3912 = vpop.f32.mrf.mxu0
        %v3913 = vadd.f32 0.0, %v3912
        %v3914 = vpop.f32.mrf.mxu0
        %v3915 = vadd.f32 0.0, %v3914
        %3916 = vdwg.mxu0
        %v3919 = vunpack.c.l.b16 %v3713
        %v3920 = vunpack.c.l.b16 %v3714
        %v3921 = vpack.c.b16 %v3920, %v3919
        %v3924 = vunpack.c.l.b16 %v3745
        %v3925 = vunpack.c.l.b16 %v3746
        %v3926 = vpack.c.b16 %v3925, %v3924
        %v3929 = vsel %vm1551, %v3921, 0
        %3931 = vmatpush.bf16.msra.mxu0 0
        %3932 = vmatpush.bf16.msra.mxu0 0
        %3933 = vmatpush.bf16.msra.mxu0 0
        %3934 = vmatpush.bf16.msra.mxu0 0
        %3935 = vmatpush.bf16.msra.mxu0 0
        %3936 = vmatpush.bf16.msra.mxu0 0
        %3937 = vmatpush.bf16.msra.mxu0 0
        %3938 = vmatpush.bf16.msra.mxu0 %v3926
        %3939 = vmatmul.bf16.gmra.mxu0 %v3929
        %v3940 = vpop.f32.mrf.mxu0
        %v3941 = vadd.f32 0.0, %v3940
        %v3942 = vpop.f32.mrf.mxu0
        %v3943 = vadd.f32 0.0, %v3942
        %3944 = vdwg.mxu0
        %v3947 = vunpack.c.l.b16 %v3715
        %v3948 = vunpack.c.l.b16 %v3716
        %v3949 = vpack.c.b16 %v3948, %v3947
        %v3952 = vunpack.c.l.b16 %v3747
        %v3953 = vunpack.c.l.b16 %v3748
        %v3954 = vpack.c.b16 %v3953, %v3952
        %v3957 = vsel %vm1551, %v3949, 0
        %3959 = vmatpush.bf16.msra.mxu0 0
        %3960 = vmatpush.bf16.msra.mxu0 0
        %3961 = vmatpush.bf16.msra.mxu0 0
        %3962 = vmatpush.bf16.msra.mxu0 0
        %3963 = vmatpush.bf16.msra.mxu0 0
        %3964 = vmatpush.bf16.msra.mxu0 0
        %3965 = vmatpush.bf16.msra.mxu0 0
        %3966 = vmatpush.bf16.msra.mxu0 %v3954
        %3967 = vmatmul.bf16.gmra.mxu0 %v3957
        %v3968 = vpop.f32.mrf.mxu0
        %v3969 = vadd.f32 0.0, %v3968
        %v3970 = vpop.f32.mrf.mxu0
        %v3971 = vadd.f32 0.0, %v3970
        %3972 = vdwg.mxu0
        %v3973 = vadd.f32 %v3310, %v3773
        %v3974 = vadd.f32 %v3311, %v3775
        %v3975 = vadd.f32 %v3312, %v3801
        %v3976 = vadd.f32 %v3313, %v3803
        %v3977 = vadd.f32 %v3314, %v3829
        %v3978 = vadd.f32 %v3315, %v3831
        %v3979 = vadd.f32 %v3316, %v3857
        %v3980 = vadd.f32 %v3317, %v3859
        %v3981 = vadd.f32 %v3318, %v3885
        %v3982 = vadd.f32 %v3319, %v3887
        %v3983 = vadd.f32 %v3320, %v3913
        %v3984 = vadd.f32 %v3321, %v3915
        %v3985 = vadd.f32 %v3322, %v3941
        %v3986 = vadd.f32 %v3323, %v3943
        %v3987 = vadd.f32 %v3324, %v3969
        %v3988 = vadd.f32 %v3325, %v3971
        %v3989 = vpack.c.bf16 %v3974, %v3973
        %v3990 = vpack.c.bf16 %v3976, %v3975
        %v3991 = vpack.c.bf16 %v3978, %v3977
        %v3992 = vpack.c.bf16 %v3980, %v3979
        %v3993 = vpack.c.bf16 %v3982, %v3981
        %v3994 = vpack.c.bf16 %v3984, %v3983
        %v3995 = vpack.c.bf16 %v3986, %v3985
        %v3996 = vpack.c.bf16 %v3988, %v3987
        %v3997 = vld [vmem:[%s5] sm:$0xf]
        %v3998 = vld [vmem:[%s5 + $0x4] sm:$0xf]
        %v3999 = vld [vmem:[%s5 + $0x8] sm:$0xf]
        %v4000 = vld [vmem:[%s5 + $0xc] sm:$0xf]
        %v4001 = vld [vmem:[%s5 + $0x10] sm:$0xf]
        %v4002 = vld [vmem:[%s5 + $0x14] sm:$0xf]
        %v4003 = vld [vmem:[%s5 + $0x18] sm:$0xf]
        %v4004 = vld [vmem:[%s5 + $0x1c] sm:$0xf]
        %v4005 = vld [vmem:[%s5 + $0x20] sm:$0xf]
        %v4006 = vld [vmem:[%s5 + $0x24] sm:$0xf]
        %v4007 = vld [vmem:[%s5 + $0x28] sm:$0xf]
        %v4008 = vld [vmem:[%s5 + $0x2c] sm:$0xf]
        %v4009 = vld [vmem:[%s5 + $0x30] sm:$0xf]
        %v4010 = vld [vmem:[%s5 + $0x34] sm:$0xf]
        %v4011 = vld [vmem:[%s5 + $0x38] sm:$0xf]
        %v4012 = vld [vmem:[%s5 + $0x3c] sm:$0xf]
        %v4013 = vld [vmem:[%s6] sm:$0x1]
        %v4015 = vperm.slane %v4013, 0
        %v4033 = vunpack.c.l.b16 %v3997
        %v4034 = vunpack.c.l.b16 %v3998
        %v4035 = vunpack.c.l.b16 %v3999
        %v4036 = vunpack.c.l.b16 %v4000
        %v4037 = vunpack.c.l.b16 %v4001
        %v4038 = vunpack.c.l.b16 %v4002
        %v4039 = vunpack.c.l.b16 %v4003
        %v4040 = vunpack.c.l.b16 %v4004
        %v4041 = vunpack.c.l.b16 %v4005
        %v4042 = vunpack.c.l.b16 %v4006
        %v4043 = vunpack.c.l.b16 %v4007
        %v4044 = vunpack.c.l.b16 %v4008
        %v4045 = vunpack.c.l.b16 %v4009
        %v4046 = vunpack.c.l.b16 %v4010
        %v4047 = vunpack.c.l.b16 %v4011
        %v4048 = vunpack.c.l.b16 %v4012
        %v4049 = vpack.c.b16 %v4034, %v4033
        %v4050 = vpack.c.b16 %v4036, %v4035
        %v4051 = vpack.c.b16 %v4038, %v4037
        %v4052 = vpack.c.b16 %v4040, %v4039
        %v4053 = vpack.c.b16 %v4042, %v4041
        %v4054 = vpack.c.b16 %v4044, %v4043
        %v4055 = vpack.c.b16 %v4046, %v4045
        %v4056 = vpack.c.b16 %v4048, %v4047
        %4065 = vmatpush.bf16.msra.mxu0 %v4056
        %4066 = vmatpush.bf16.msra.mxu0 %v4055
        %4067 = vmatpush.bf16.msra.mxu0 %v4054
        %4068 = vmatpush.bf16.msra.mxu0 %v4053
        %4069 = vmatpush.bf16.msra.mxu0 %v4052
        %4070 = vmatpush.bf16.msra.mxu0 %v4051
        %4071 = vmatpush.bf16.msra.mxu0 %v4050
        %4072 = vmatpush.bf16.msra.mxu0 %v4049
        %4073 = vmatmul.bf16.gmra.mxu0 %v3989
        %v4074 = vpop.f32.mrf.mxu0
        %v4075 = vadd.f32 %v4015, %v4074
        %v4076 = vpop.f32.mrf.mxu0
        %v4077 = vadd.f32 %v4015, %v4076
        %4078 = vmatmul.bf16.gmra.mxu0 %v3990
        %v4079 = vpop.f32.mrf.mxu0
        %v4080 = vadd.f32 %v4015, %v4079
        %v4081 = vpop.f32.mrf.mxu0
        %v4082 = vadd.f32 %v4015, %v4081
        %4083 = vmatmul.bf16.gmra.mxu0 %v3991
        %v4084 = vpop.f32.mrf.mxu0
        %v4085 = vadd.f32 %v4015, %v4084
        %v4086 = vpop.f32.mrf.mxu0
        %v4087 = vadd.f32 %v4015, %v4086
        %4088 = vmatmul.bf16.gmra.mxu0 %v3992
        %v4089 = vpop.f32.mrf.mxu0
        %v4090 = vadd.f32 %v4015, %v4089
        %v4091 = vpop.f32.mrf.mxu0
        %v4092 = vadd.f32 %v4015, %v4091
        %4093 = vmatmul.bf16.gmra.mxu0 %v3993
        %v4094 = vpop.f32.mrf.mxu0
        %v4095 = vadd.f32 %v4015, %v4094
        %v4096 = vpop.f32.mrf.mxu0
        %v4097 = vadd.f32 %v4015, %v4096
        %4098 = vmatmul.bf16.gmra.mxu0 %v3994
        %v4099 = vpop.f32.mrf.mxu0
        %v4100 = vadd.f32 %v4015, %v4099
        %v4101 = vpop.f32.mrf.mxu0
        %v4102 = vadd.f32 %v4015, %v4101
        %4103 = vmatmul.bf16.gmra.mxu0 %v3995
        %v4104 = vpop.f32.mrf.mxu0
        %v4105 = vadd.f32 %v4015, %v4104
        %v4106 = vpop.f32.mrf.mxu0
        %v4107 = vadd.f32 %v4015, %v4106
        %4108 = vmatmul.bf16.gmra.mxu0 %v3996
        %v4109 = vpop.f32.mrf.mxu0
        %v4110 = vadd.f32 %v4015, %v4109
        %v4111 = vpop.f32.mrf.mxu0
        %v4112 = vadd.f32 %v4015, %v4111
        %4113 = vdwg.mxu0
        %v4114 = vadd.f32 %v885, %v4075
        %v4115 = vadd.f32 %v886, %v4077
        %v4116 = vadd.f32 %v887, %v4080
        %v4117 = vadd.f32 %v888, %v4082
        %v4118 = vadd.f32 %v889, %v4085
        %v4119 = vadd.f32 %v890, %v4087
        %v4120 = vadd.f32 %v891, %v4090
        %v4121 = vadd.f32 %v892, %v4092
        %v4122 = vadd.f32 %v893, %v4095
        %v4123 = vadd.f32 %v894, %v4097
        %v4124 = vadd.f32 %v895, %v4100
        %v4125 = vadd.f32 %v896, %v4102
        %v4126 = vadd.f32 %v897, %v4105
        %v4127 = vadd.f32 %v898, %v4107
        %v4128 = vadd.f32 %v899, %v4110
        %v4129 = vadd.f32 %v900, %v4112
        %v4130 = vld [vmem:[%s7] sm:$0x1]
        %v4131 = vld [vmem:[%s8] sm:$0x1]
        %4132 = vadd.xlane.f32.xlu0 %v4114
        %v4133 = vpop.xlane.xlu0 %4132
        %4134 = vadd.xlane.f32.xlu0 %v4115
        %v4135 = vpop.xlane.xlu0 %4134
        %4136 = vadd.xlane.f32.xlu0 %v4116
        %v4137 = vpop.xlane.xlu0 %4136
        %4138 = vadd.xlane.f32.xlu0 %v4117
        %v4139 = vpop.xlane.xlu0 %4138
        %4140 = vadd.xlane.f32.xlu0 %v4118
        %v4141 = vpop.xlane.xlu0 %4140
        %4142 = vadd.xlane.f32.xlu0 %v4119
        %v4143 = vpop.xlane.xlu0 %4142
        %4144 = vadd.xlane.f32.xlu0 %v4120
        %v4145 = vpop.xlane.xlu0 %4144
        %4146 = vadd.xlane.f32.xlu0 %v4121
        %v4147 = vpop.xlane.xlu0 %4146
        %4148 = vadd.xlane.f32.xlu0 %v4122
        %v4149 = vpop.xlane.xlu0 %4148
        %4150 = vadd.xlane.f32.xlu0 %v4123
        %v4151 = vpop.xlane.xlu0 %4150
        %4152 = vadd.xlane.f32.xlu0 %v4124
        %v4153 = vpop.xlane.xlu0 %4152
        %4154 = vadd.xlane.f32.xlu0 %v4125
        %v4155 = vpop.xlane.xlu0 %4154
        %4156 = vadd.xlane.f32.xlu0 %v4126
        %v4157 = vpop.xlane.xlu0 %4156
        %4158 = vadd.xlane.f32.xlu0 %v4127
        %v4159 = vpop.xlane.xlu0 %4158
        %4160 = vadd.xlane.f32.xlu0 %v4128
        %v4161 = vpop.xlane.xlu0 %4160
        %4162 = vadd.xlane.f32.xlu0 %v4129
        %v4163 = vpop.xlane.xlu0 %4162
        %v4164 = vrcp.pop 128.0
        %v4165 = vmul.f32 128.0, %v4164
        %v4166 = vsub.f32 1.0, %v4165
        %v4167 = vmul.f32 %v4164, %v4166
        %v4168 = vadd.f32 %v4164, %v4167
        %vm4169 = vweird.f32 %v4164
        %v4170 = vsel %vm4169, %v4164, %v4168
        %v4171 = vmul.f32 %v4133, %v4170
        %v4172 = vmul.f32 %v4135, %v4170
        %v4173 = vmul.f32 %v4137, %v4170
        %v4174 = vmul.f32 %v4139, %v4170
        %v4175 = vmul.f32 %v4141, %v4170
        %v4176 = vmul.f32 %v4143, %v4170
        %v4177 = vmul.f32 %v4145, %v4170
        %v4178 = vmul.f32 %v4147, %v4170
        %v4179 = vmul.f32 %v4149, %v4170
        %v4180 = vmul.f32 %v4151, %v4170
        %v4181 = vmul.f32 %v4153, %v4170
        %v4182 = vmul.f32 %v4155, %v4170
        %v4183 = vmul.f32 %v4157, %v4170
        %v4184 = vmul.f32 %v4159, %v4170
        %v4185 = vmul.f32 %v4161, %v4170
        %v4186 = vmul.f32 %v4163, %v4170
        %v4187 = vsub.f32 %v4114, %v4171
        %v4188 = vsub.f32 %v4115, %v4172
        %v4189 = vsub.f32 %v4116, %v4173
        %v4190 = vsub.f32 %v4117, %v4174
        %v4191 = vsub.f32 %v4118, %v4175
        %v4192 = vsub.f32 %v4119, %v4176
        %v4193 = vsub.f32 %v4120, %v4177
        %v4194 = vsub.f32 %v4121, %v4178
        %v4195 = vsub.f32 %v4122, %v4179
        %v4196 = vsub.f32 %v4123, %v4180
        %v4197 = vsub.f32 %v4124, %v4181
        %v4198 = vsub.f32 %v4125, %v4182
        %v4199 = vsub.f32 %v4126, %v4183
        %v4200 = vsub.f32 %v4127, %v4184
        %v4201 = vsub.f32 %v4128, %v4185
        %v4202 = vsub.f32 %v4129, %v4186
        %v4203 = vmul.f32 %v4187, %v4187
        %v4204 = vmul.f32 %v4188, %v4188
        %v4205 = vmul.f32 %v4189, %v4189
        %v4206 = vmul.f32 %v4190, %v4190
        %v4207 = vmul.f32 %v4191, %v4191
        %v4208 = vmul.f32 %v4192, %v4192
        %v4209 = vmul.f32 %v4193, %v4193
        %v4210 = vmul.f32 %v4194, %v4194
        %v4211 = vmul.f32 %v4195, %v4195
        %v4212 = vmul.f32 %v4196, %v4196
        %v4213 = vmul.f32 %v4197, %v4197
        %v4214 = vmul.f32 %v4198, %v4198
        %v4215 = vmul.f32 %v4199, %v4199
        %v4216 = vmul.f32 %v4200, %v4200
        %v4217 = vmul.f32 %v4201, %v4201
        %v4218 = vmul.f32 %v4202, %v4202
        %4219 = vadd.xlane.f32.xlu0 %v4203
        %v4220 = vpop.xlane.xlu0 %4219
        %4221 = vadd.xlane.f32.xlu0 %v4204
        %v4222 = vpop.xlane.xlu0 %4221
        %4223 = vadd.xlane.f32.xlu0 %v4205
        %v4224 = vpop.xlane.xlu0 %4223
        %4225 = vadd.xlane.f32.xlu0 %v4206
        %v4226 = vpop.xlane.xlu0 %4225
        %4227 = vadd.xlane.f32.xlu0 %v4207
        %v4228 = vpop.xlane.xlu0 %4227
        %4229 = vadd.xlane.f32.xlu0 %v4208
        %v4230 = vpop.xlane.xlu0 %4229
        %4231 = vadd.xlane.f32.xlu0 %v4209
        %v4232 = vpop.xlane.xlu0 %4231
        %4233 = vadd.xlane.f32.xlu0 %v4210
        %v4234 = vpop.xlane.xlu0 %4233
        %4235 = vadd.xlane.f32.xlu0 %v4211
        %v4236 = vpop.xlane.xlu0 %4235
        %4237 = vadd.xlane.f32.xlu0 %v4212
        %v4238 = vpop.xlane.xlu0 %4237
        %4239 = vadd.xlane.f32.xlu0 %v4213
        %v4240 = vpop.xlane.xlu0 %4239
        %4241 = vadd.xlane.f32.xlu0 %v4214
        %v4242 = vpop.xlane.xlu0 %4241
        %4243 = vadd.xlane.f32.xlu0 %v4215
        %v4244 = vpop.xlane.xlu0 %4243
        %4245 = vadd.xlane.f32.xlu0 %v4216
        %v4246 = vpop.xlane.xlu0 %4245
        %4247 = vadd.xlane.f32.xlu0 %v4217
        %v4248 = vpop.xlane.xlu0 %4247
        %4249 = vadd.xlane.f32.xlu0 %v4218
        %v4250 = vpop.xlane.xlu0 %4249
        %v4251 = vmul.f32 %v4220, %v4170
        %v4252 = vmul.f32 %v4222, %v4170
        %v4253 = vmul.f32 %v4224, %v4170
        %v4254 = vmul.f32 %v4226, %v4170
        %v4255 = vmul.f32 %v4228, %v4170
        %v4256 = vmul.f32 %v4230, %v4170
        %v4257 = vmul.f32 %v4232, %v4170
        %v4258 = vmul.f32 %v4234, %v4170
        %v4259 = vmul.f32 %v4236, %v4170
        %v4260 = vmul.f32 %v4238, %v4170
        %v4261 = vmul.f32 %v4240, %v4170
        %v4262 = vmul.f32 %v4242, %v4170
        %v4263 = vmul.f32 %v4244, %v4170
        %v4264 = vmul.f32 %v4246, %v4170
        %v4265 = vmul.f32 %v4248, %v4170
        %v4266 = vmul.f32 %v4250, %v4170
        %v4267 = vadd.f32 %v4251, 1e-05
        %v4268 = vadd.f32 %v4252, 1e-05
        %v4269 = vadd.f32 %v4253, 1e-05
        %v4270 = vadd.f32 %v4254, 1e-05
        %v4271 = vadd.f32 %v4255, 1e-05
        %v4272 = vadd.f32 %v4256, 1e-05
        %v4273 = vadd.f32 %v4257, 1e-05
        %v4274 = vadd.f32 %v4258, 1e-05
        %v4275 = vadd.f32 %v4259, 1e-05
        %v4276 = vadd.f32 %v4260, 1e-05
        %v4277 = vadd.f32 %v4261, 1e-05
        %v4278 = vadd.f32 %v4262, 1e-05
        %v4279 = vadd.f32 %v4263, 1e-05
        %v4280 = vadd.f32 %v4264, 1e-05
        %v4281 = vadd.f32 %v4265, 1e-05
        %v4282 = vadd.f32 %v4266, 1e-05
        %v4283 = vrsqrt.pop %v4267
        %v4284 = vmul.f32 %v4283, %v4267
        %v4285 = vmul.f32 %v4284, %v4283
        %v4286 = vmul.f32 0.5, %v4285
        %v4287 = vsub.f32 1.5, %v4286
        %v4288 = vmul.f32 %v4283, %v4287
        %vm4289 = vweird.f32 %v4267
        %vm4290 = vweird.f32 %v4283
        %vm4291 = vmor %vm4289, %vm4290
        %v4292 = vsel %vm4291, %v4283, %v4288
        %v4293 = vrsqrt.pop %v4268
        %v4294 = vmul.f32 %v4293, %v4268
        %v4295 = vmul.f32 %v4294, %v4293
        %v4296 = vmul.f32 0.5, %v4295
        %v4297 = vsub.f32 1.5, %v4296
        %v4298 = vmul.f32 %v4293, %v4297
        %vm4299 = vweird.f32 %v4268
        %vm4300 = vweird.f32 %v4293
        %vm4301 = vmor %vm4299, %vm4300
        %v4302 = vsel %vm4301, %v4293, %v4298
        %v4303 = vrsqrt.pop %v4269
        %v4304 = vmul.f32 %v4303, %v4269
        %v4305 = vmul.f32 %v4304, %v4303
        %v4306 = vmul.f32 0.5, %v4305
        %v4307 = vsub.f32 1.5, %v4306
        %v4308 = vmul.f32 %v4303, %v4307
        %vm4309 = vweird.f32 %v4269
        %vm4310 = vweird.f32 %v4303
        %vm4311 = vmor %vm4309, %vm4310
        %v4312 = vsel %vm4311, %v4303, %v4308
        %v4313 = vrsqrt.pop %v4270
        %v4314 = vmul.f32 %v4313, %v4270
        %v4315 = vmul.f32 %v4314, %v4313
        %v4316 = vmul.f32 0.5, %v4315
        %v4317 = vsub.f32 1.5, %v4316
        %v4318 = vmul.f32 %v4313, %v4317
        %vm4319 = vweird.f32 %v4270
        %vm4320 = vweird.f32 %v4313
        %vm4321 = vmor %vm4319, %vm4320
        %v4322 = vsel %vm4321, %v4313, %v4318
        %v4323 = vrsqrt.pop %v4271
        %v4324 = vmul.f32 %v4323, %v4271
        %v4325 = vmul.f32 %v4324, %v4323
        %v4326 = vmul.f32 0.5, %v4325
        %v4327 = vsub.f32 1.5, %v4326
        %v4328 = vmul.f32 %v4323, %v4327
        %vm4329 = vweird.f32 %v4271
        %vm4330 = vweird.f32 %v4323
        %vm4331 = vmor %vm4329, %vm4330
        %v4332 = vsel %vm4331, %v4323, %v4328
        %v4333 = vrsqrt.pop %v4272
        %v4334 = vmul.f32 %v4333, %v4272
        %v4335 = vmul.f32 %v4334, %v4333
        %v4336 = vmul.f32 0.5, %v4335
        %v4337 = vsub.f32 1.5, %v4336
        %v4338 = vmul.f32 %v4333, %v4337
        %vm4339 = vweird.f32 %v4272
        %vm4340 = vweird.f32 %v4333
        %vm4341 = vmor %vm4339, %vm4340
        %v4342 = vsel %vm4341, %v4333, %v4338
        %v4343 = vrsqrt.pop %v4273
        %v4344 = vmul.f32 %v4343, %v4273
        %v4345 = vmul.f32 %v4344, %v4343
        %v4346 = vmul.f32 0.5, %v4345
        %v4347 = vsub.f32 1.5, %v4346
        %v4348 = vmul.f32 %v4343, %v4347
        %vm4349 = vweird.f32 %v4273
        %vm4350 = vweird.f32 %v4343
        %vm4351 = vmor %vm4349, %vm4350
        %v4352 = vsel %vm4351, %v4343, %v4348
        %v4353 = vrsqrt.pop %v4274
        %v4354 = vmul.f32 %v4353, %v4274
        %v4355 = vmul.f32 %v4354, %v4353
        %v4356 = vmul.f32 0.5, %v4355
        %v4357 = vsub.f32 1.5, %v4356
        %v4358 = vmul.f32 %v4353, %v4357
        %vm4359 = vweird.f32 %v4274
        %vm4360 = vweird.f32 %v4353
        %vm4361 = vmor %vm4359, %vm4360
        %v4362 = vsel %vm4361, %v4353, %v4358
        %v4363 = vrsqrt.pop %v4275
        %v4364 = vmul.f32 %v4363, %v4275
        %v4365 = vmul.f32 %v4364, %v4363
        %v4366 = vmul.f32 0.5, %v4365
        %v4367 = vsub.f32 1.5, %v4366
        %v4368 = vmul.f32 %v4363, %v4367
        %vm4369 = vweird.f32 %v4275
        %vm4370 = vweird.f32 %v4363
        %vm4371 = vmor %vm4369, %vm4370
        %v4372 = vsel %vm4371, %v4363, %v4368
        %v4373 = vrsqrt.pop %v4276
        %v4374 = vmul.f32 %v4373, %v4276
        %v4375 = vmul.f32 %v4374, %v4373
        %v4376 = vmul.f32 0.5, %v4375
        %v4377 = vsub.f32 1.5, %v4376
        %v4378 = vmul.f32 %v4373, %v4377
        %vm4379 = vweird.f32 %v4276
        %vm4380 = vweird.f32 %v4373
        %vm4381 = vmor %vm4379, %vm4380
        %v4382 = vsel %vm4381, %v4373, %v4378
        %v4383 = vrsqrt.pop %v4277
        %v4384 = vmul.f32 %v4383, %v4277
        %v4385 = vmul.f32 %v4384, %v4383
        %v4386 = vmul.f32 0.5, %v4385
        %v4387 = vsub.f32 1.5, %v4386
        %v4388 = vmul.f32 %v4383, %v4387
        %vm4389 = vweird.f32 %v4277
        %vm4390 = vweird.f32 %v4383
        %vm4391 = vmor %vm4389, %vm4390
        %v4392 = vsel %vm4391, %v4383, %v4388
        %v4393 = vrsqrt.pop %v4278
        %v4394 = vmul.f32 %v4393, %v4278
        %v4395 = vmul.f32 %v4394, %v4393
        %v4396 = vmul.f32 0.5, %v4395
        %v4397 = vsub.f32 1.5, %v4396
        %v4398 = vmul.f32 %v4393, %v4397
        %vm4399 = vweird.f32 %v4278
        %vm4400 = vweird.f32 %v4393
        %vm4401 = vmor %vm4399, %vm4400
        %v4402 = vsel %vm4401, %v4393, %v4398
        %v4403 = vrsqrt.pop %v4279
        %v4404 = vmul.f32 %v4403, %v4279
        %v4405 = vmul.f32 %v4404, %v4403
        %v4406 = vmul.f32 0.5, %v4405
        %v4407 = vsub.f32 1.5, %v4406
        %v4408 = vmul.f32 %v4403, %v4407
        %vm4409 = vweird.f32 %v4279
        %vm4410 = vweird.f32 %v4403
        %vm4411 = vmor %vm4409, %vm4410
        %v4412 = vsel %vm4411, %v4403, %v4408
        %v4413 = vrsqrt.pop %v4280
        %v4414 = vmul.f32 %v4413, %v4280
        %v4415 = vmul.f32 %v4414, %v4413
        %v4416 = vmul.f32 0.5, %v4415
        %v4417 = vsub.f32 1.5, %v4416
        %v4418 = vmul.f32 %v4413, %v4417
        %vm4419 = vweird.f32 %v4280
        %vm4420 = vweird.f32 %v4413
        %vm4421 = vmor %vm4419, %vm4420
        %v4422 = vsel %vm4421, %v4413, %v4418
        %v4423 = vrsqrt.pop %v4281
        %v4424 = vmul.f32 %v4423, %v4281
        %v4425 = vmul.f32 %v4424, %v4423
        %v4426 = vmul.f32 0.5, %v4425
        %v4427 = vsub.f32 1.5, %v4426
        %v4428 = vmul.f32 %v4423, %v4427
        %vm4429 = vweird.f32 %v4281
        %vm4430 = vweird.f32 %v4423
        %vm4431 = vmor %vm4429, %vm4430
        %v4432 = vsel %vm4431, %v4423, %v4428
        %v4433 = vrsqrt.pop %v4282
        %v4434 = vmul.f32 %v4433, %v4282
        %v4435 = vmul.f32 %v4434, %v4433
        %v4436 = vmul.f32 0.5, %v4435
        %v4437 = vsub.f32 1.5, %v4436
        %v4438 = vmul.f32 %v4433, %v4437
        %vm4439 = vweird.f32 %v4282
        %vm4440 = vweird.f32 %v4433
        %vm4441 = vmor %vm4439, %vm4440
        %v4442 = vsel %vm4441, %v4433, %v4438
        %v4443 = vmul.f32 %v4187, %v4292
        %v4444 = vmul.f32 %v4188, %v4302
        %v4445 = vmul.f32 %v4189, %v4312
        %v4446 = vmul.f32 %v4190, %v4322
        %v4447 = vmul.f32 %v4191, %v4332
        %v4448 = vmul.f32 %v4192, %v4342
        %v4449 = vmul.f32 %v4193, %v4352
        %v4450 = vmul.f32 %v4194, %v4362
        %v4451 = vmul.f32 %v4195, %v4372
        %v4452 = vmul.f32 %v4196, %v4382
        %v4453 = vmul.f32 %v4197, %v4392
        %v4454 = vmul.f32 %v4198, %v4402
        %v4455 = vmul.f32 %v4199, %v4412
        %v4456 = vmul.f32 %v4200, %v4422
        %v4457 = vmul.f32 %v4201, %v4432
        %v4458 = vmul.f32 %v4202, %v4442
        %v4460 = vperm.slane %v4130, 0
        %v4462 = vmul.f32 %v4443, %v4460
        %v4463 = vmul.f32 %v4444, %v4460
        %v4464 = vmul.f32 %v4445, %v4460
        %v4465 = vmul.f32 %v4446, %v4460
        %v4466 = vmul.f32 %v4447, %v4460
        %v4467 = vmul.f32 %v4448, %v4460
        %v4468 = vmul.f32 %v4449, %v4460
        %v4469 = vmul.f32 %v4450, %v4460
        %v4470 = vmul.f32 %v4451, %v4460
        %v4471 = vmul.f32 %v4452, %v4460
        %v4472 = vmul.f32 %v4453, %v4460
        %v4473 = vmul.f32 %v4454, %v4460
        %v4474 = vmul.f32 %v4455, %v4460
        %v4475 = vmul.f32 %v4456, %v4460
        %v4476 = vmul.f32 %v4457, %v4460
        %v4477 = vmul.f32 %v4458, %v4460
        %v4479 = vperm.slane %v4131, 0
        %v4481 = vadd.f32 %v4462, %v4479
        %v4482 = vadd.f32 %v4463, %v4479
        %v4483 = vadd.f32 %v4464, %v4479
        %v4484 = vadd.f32 %v4465, %v4479
        %v4485 = vadd.f32 %v4466, %v4479
        %v4486 = vadd.f32 %v4467, %v4479
        %v4487 = vadd.f32 %v4468, %v4479
        %v4488 = vadd.f32 %v4469, %v4479
        %v4489 = vadd.f32 %v4470, %v4479
        %v4490 = vadd.f32 %v4471, %v4479
        %v4491 = vadd.f32 %v4472, %v4479
        %v4492 = vadd.f32 %v4473, %v4479
        %v4493 = vadd.f32 %v4474, %v4479
        %v4494 = vadd.f32 %v4475, %v4479
        %v4495 = vadd.f32 %v4476, %v4479
        %v4496 = vadd.f32 %v4477, %v4479
        %v4497 = vpack.c.bf16 %v4482, %v4481
        %v4498 = vpack.c.bf16 %v4484, %v4483
        %v4499 = vpack.c.bf16 %v4486, %v4485
        %v4500 = vpack.c.bf16 %v4488, %v4487
        %v4501 = vpack.c.bf16 %v4490, %v4489
        %v4502 = vpack.c.bf16 %v4492, %v4491
        %v4503 = vpack.c.bf16 %v4494, %v4493
        %v4504 = vpack.c.bf16 %v4496, %v4495
        %v4505 = vld [vmem:[#allocation6] sm:$0xff]
        %v4506 = vld [vmem:[#allocation6 + $0x8] sm:$0xff]
        %v4507 = vld [vmem:[#allocation6 + $0x10] sm:$0xff]
        %v4508 = vld [vmem:[#allocation6 + $0x18] sm:$0xff]
        %v4509 = vld [vmem:[#allocation6 + $0x20] sm:$0xff]
        %v4510 = vld [vmem:[#allocation6 + $0x28] sm:$0xff]
        %v4511 = vld [vmem:[#allocation6 + $0x30] sm:$0xff]
        %v4512 = vld [vmem:[#allocation6 + $0x38] sm:$0xff]
        %v4513 = vld [vmem:[#allocation6 + $0x40] sm:$0xff]
        %v4514 = vld [vmem:[#allocation6 + $0x48] sm:$0xff]
        %v4515 = vld [vmem:[#allocation6 + $0x50] sm:$0xff]
        %v4516 = vld [vmem:[#allocation6 + $0x58] sm:$0xff]
        %v4517 = vld [vmem:[#allocation6 + $0x60] sm:$0xff]
        %v4518 = vld [vmem:[#allocation6 + $0x68] sm:$0xff]
        %v4519 = vld [vmem:[#allocation6 + $0x70] sm:$0xff]
        %v4520 = vld [vmem:[#allocation6 + $0x78] sm:$0xff]
        %v4521 = vld [vmem:[#allocation6 + $0x80] sm:$0xff]
        %v4522 = vld [vmem:[#allocation6 + $0x88] sm:$0xff]
        %v4523 = vld [vmem:[#allocation6 + $0x90] sm:$0xff]
        %v4524 = vld [vmem:[#allocation6 + $0x98] sm:$0xff]
        %v4525 = vld [vmem:[#allocation6 + $0xa0] sm:$0xff]
        %v4526 = vld [vmem:[#allocation6 + $0xa8] sm:$0xff]
        %v4527 = vld [vmem:[#allocation6 + $0xb0] sm:$0xff]
        %v4528 = vld [vmem:[#allocation6 + $0xb8] sm:$0xff]
        %v4529 = vld [vmem:[#allocation6 + $0xc0] sm:$0xff]
        %v4530 = vld [vmem:[#allocation6 + $0xc8] sm:$0xff]
        %v4531 = vld [vmem:[#allocation6 + $0xd0] sm:$0xff]
        %v4532 = vld [vmem:[#allocation6 + $0xd8] sm:$0xff]
        %v4533 = vld [vmem:[#allocation6 + $0xe0] sm:$0xff]
        %v4534 = vld [vmem:[#allocation6 + $0xe8] sm:$0xff]
        %v4535 = vld [vmem:[#allocation6 + $0xf0] sm:$0xff]
        %v4536 = vld [vmem:[#allocation6 + $0xf8] sm:$0xff]
        %v4537 = vld [vmem:[%s12] sm:$0xf]
        %v4539 = vperm.slane %v4537, 0
        %v4540 = vperm.slane %v4537, 1
        %v4541 = vperm.slane %v4537, 2
        %v4542 = vperm.slane %v4537, 3
        %v4579 = vunpack.c.l.b16 %v4505
        %v4580 = vunpack.c.h.b16 %v4505
        %v4581 = vunpack.c.l.b16 %v4506
        %v4582 = vunpack.c.h.b16 %v4506
        %v4583 = vunpack.c.l.b16 %v4507
        %v4584 = vunpack.c.h.b16 %v4507
        %v4585 = vunpack.c.l.b16 %v4508
        %v4586 = vunpack.c.h.b16 %v4508
        %v4587 = vunpack.c.l.b16 %v4509
        %v4588 = vunpack.c.h.b16 %v4509
        %v4589 = vunpack.c.l.b16 %v4510
        %v4590 = vunpack.c.h.b16 %v4510
        %v4591 = vunpack.c.l.b16 %v4511
        %v4592 = vunpack.c.h.b16 %v4511
        %v4593 = vunpack.c.l.b16 %v4512
        %v4594 = vunpack.c.h.b16 %v4512
        %v4595 = vunpack.c.l.b16 %v4513
        %v4596 = vunpack.c.h.b16 %v4513
        %v4597 = vunpack.c.l.b16 %v4514
        %v4598 = vunpack.c.h.b16 %v4514
        %v4599 = vunpack.c.l.b16 %v4515
        %v4600 = vunpack.c.h.b16 %v4515
        %v4601 = vunpack.c.l.b16 %v4516
        %v4602 = vunpack.c.h.b16 %v4516
        %v4603 = vunpack.c.l.b16 %v4517
        %v4604 = vunpack.c.h.b16 %v4517
        %v4605 = vunpack.c.l.b16 %v4518
        %v4606 = vunpack.c.h.b16 %v4518
        %v4607 = vunpack.c.l.b16 %v4519
        %v4608 = vunpack.c.h.b16 %v4519
        %v4609 = vunpack.c.l.b16 %v4520
        %v4610 = vunpack.c.h.b16 %v4520
        %v4611 = vunpack.c.l.b16 %v4521
        %v4612 = vunpack.c.h.b16 %v4521
        %v4613 = vunpack.c.l.b16 %v4522
        %v4614 = vunpack.c.h.b16 %v4522
        %v4615 = vunpack.c.l.b16 %v4523
        %v4616 = vunpack.c.h.b16 %v4523
        %v4617 = vunpack.c.l.b16 %v4524
        %v4618 = vunpack.c.h.b16 %v4524
        %v4619 = vunpack.c.l.b16 %v4525
        %v4620 = vunpack.c.h.b16 %v4525
        %v4621 = vunpack.c.l.b16 %v4526
        %v4622 = vunpack.c.h.b16 %v4526
        %v4623 = vunpack.c.l.b16 %v4527
        %v4624 = vunpack.c.h.b16 %v4527
        %v4625 = vunpack.c.l.b16 %v4528
        %v4626 = vunpack.c.h.b16 %v4528
        %v4627 = vunpack.c.l.b16 %v4529
        %v4628 = vunpack.c.h.b16 %v4529
        %v4629 = vunpack.c.l.b16 %v4530
        %v4630 = vunpack.c.h.b16 %v4530
        %v4631 = vunpack.c.l.b16 %v4531
        %v4632 = vunpack.c.h.b16 %v4531
        %v4633 = vunpack.c.l.b16 %v4532
        %v4634 = vunpack.c.h.b16 %v4532
        %v4635 = vunpack.c.l.b16 %v4533
        %v4636 = vunpack.c.h.b16 %v4533
        %v4637 = vunpack.c.l.b16 %v4534
        %v4638 = vunpack.c.h.b16 %v4534
        %v4639 = vunpack.c.l.b16 %v4535
        %v4640 = vunpack.c.h.b16 %v4535
        %v4641 = vunpack.c.l.b16 %v4536
        %v4642 = vunpack.c.h.b16 %v4536
        %v4643 = vpack.c.b16 %v4583, %v4579
        %v4644 = vpack.c.b16 %v4584, %v4580
        %v4645 = vpack.c.b16 %v4585, %v4581
        %v4646 = vpack.c.b16 %v4586, %v4582
        %v4647 = vpack.c.b16 %v4591, %v4587
        %v4648 = vpack.c.b16 %v4592, %v4588
        %v4649 = vpack.c.b16 %v4593, %v4589
        %v4650 = vpack.c.b16 %v4594, %v4590
        %v4651 = vpack.c.b16 %v4599, %v4595
        %v4652 = vpack.c.b16 %v4600, %v4596
        %v4653 = vpack.c.b16 %v4601, %v4597
        %v4654 = vpack.c.b16 %v4602, %v4598
        %v4655 = vpack.c.b16 %v4607, %v4603
        %v4656 = vpack.c.b16 %v4608, %v4604
        %v4657 = vpack.c.b16 %v4609, %v4605
        %v4658 = vpack.c.b16 %v4610, %v4606
        %v4659 = vpack.c.b16 %v4615, %v4611
        %v4660 = vpack.c.b16 %v4616, %v4612
        %v4661 = vpack.c.b16 %v4617, %v4613
        %v4662 = vpack.c.b16 %v4618, %v4614
        %v4663 = vpack.c.b16 %v4623, %v4619
        %v4664 = vpack.c.b16 %v4624, %v4620
        %v4665 = vpack.c.b16 %v4625, %v4621
        %v4666 = vpack.c.b16 %v4626, %v4622
        %v4667 = vpack.c.b16 %v4631, %v4627
        %v4668 = vpack.c.b16 %v4632, %v4628
        %v4669 = vpack.c.b16 %v4633, %v4629
        %v4670 = vpack.c.b16 %v4634, %v4630
        %v4671 = vpack.c.b16 %v4639, %v4635
        %v4672 = vpack.c.b16 %v4640, %v4636
        %v4673 = vpack.c.b16 %v4641, %v4637
        %v4674 = vpack.c.b16 %v4642, %v4638
        %4707 = vmatpush.bf16.msra.mxu0 %v4671
        %4708 = vmatpush.bf16.msra.mxu0 %v4667
        %4709 = vmatpush.bf16.msra.mxu0 %v4663
        %4710 = vmatpush.bf16.msra.mxu0 %v4659
        %4711 = vmatpush.bf16.msra.mxu0 %v4655
        %4712 = vmatpush.bf16.msra.mxu0 %v4651
        %4713 = vmatpush.bf16.msra.mxu0 %v4647
        %4714 = vmatpush.bf16.msra.mxu0 %v4643
        %4715 = vmatmul.bf16.gmra.mxu0 %v4497
        %v4716 = vpop.f32.mrf.mxu0
        %v4717 = vadd.f32 %v4539, %v4716
        %v4718 = vpop.f32.mrf.mxu0
        %v4719 = vadd.f32 %v4539, %v4718
        %4720 = vmatmul.bf16.gmra.mxu0 %v4498
        %v4721 = vpop.f32.mrf.mxu0
        %v4722 = vadd.f32 %v4539, %v4721
        %v4723 = vpop.f32.mrf.mxu0
        %v4724 = vadd.f32 %v4539, %v4723
        %4725 = vmatmul.bf16.gmra.mxu0 %v4499
        %v4726 = vpop.f32.mrf.mxu0
        %v4727 = vadd.f32 %v4539, %v4726
        %v4728 = vpop.f32.mrf.mxu0
        %v4729 = vadd.f32 %v4539, %v4728
        %4730 = vmatmul.bf16.gmra.mxu0 %v4500
        %v4731 = vpop.f32.mrf.mxu0
        %v4732 = vadd.f32 %v4539, %v4731
        %v4733 = vpop.f32.mrf.mxu0
        %v4734 = vadd.f32 %v4539, %v4733
        %4735 = vmatmul.bf16.gmra.mxu0 %v4501
        %v4736 = vpop.f32.mrf.mxu0
        %v4737 = vadd.f32 %v4539, %v4736
        %v4738 = vpop.f32.mrf.mxu0
        %v4739 = vadd.f32 %v4539, %v4738
        %4740 = vmatmul.bf16.gmra.mxu0 %v4502
        %v4741 = vpop.f32.mrf.mxu0
        %v4742 = vadd.f32 %v4539, %v4741
        %v4743 = vpop.f32.mrf.mxu0
        %v4744 = vadd.f32 %v4539, %v4743
        %4745 = vmatmul.bf16.gmra.mxu0 %v4503
        %v4746 = vpop.f32.mrf.mxu0
        %v4747 = vadd.f32 %v4539, %v4746
        %v4748 = vpop.f32.mrf.mxu0
        %v4749 = vadd.f32 %v4539, %v4748
        %4750 = vmatmul.bf16.gmra.mxu0 %v4504
        %v4751 = vpop.f32.mrf.mxu0
        %v4752 = vadd.f32 %v4539, %v4751
        %v4753 = vpop.f32.mrf.mxu0
        %v4754 = vadd.f32 %v4539, %v4753
        %4755 = vdwg.mxu0
        %4756 = vmatpush.bf16.msra.mxu0 %v4672
        %4757 = vmatpush.bf16.msra.mxu0 %v4668
        %4758 = vmatpush.bf16.msra.mxu0 %v4664
        %4759 = vmatpush.bf16.msra.mxu0 %v4660
        %4760 = vmatpush.bf16.msra.mxu0 %v4656
        %4761 = vmatpush.bf16.msra.mxu0 %v4652
        %4762 = vmatpush.bf16.msra.mxu0 %v4648
        %4763 = vmatpush.bf16.msra.mxu0 %v4644
        %4764 = vmatmul.bf16.gmra.mxu0 %v4497
        %v4765 = vpop.f32.mrf.mxu0
        %v4766 = vadd.f32 %v4540, %v4765
        %v4767 = vpop.f32.mrf.mxu0
        %v4768 = vadd.f32 %v4540, %v4767
        %4769 = vmatmul.bf16.gmra.mxu0 %v4498
        %v4770 = vpop.f32.mrf.mxu0
        %v4771 = vadd.f32 %v4540, %v4770
        %v4772 = vpop.f32.mrf.mxu0
        %v4773 = vadd.f32 %v4540, %v4772
        %4774 = vmatmul.bf16.gmra.mxu0 %v4499
        %v4775 = vpop.f32.mrf.mxu0
        %v4776 = vadd.f32 %v4540, %v4775
        %v4777 = vpop.f32.mrf.mxu0
        %v4778 = vadd.f32 %v4540, %v4777
        %4779 = vmatmul.bf16.gmra.mxu0 %v4500
        %v4780 = vpop.f32.mrf.mxu0
        %v4781 = vadd.f32 %v4540, %v4780
        %v4782 = vpop.f32.mrf.mxu0
        %v4783 = vadd.f32 %v4540, %v4782
        %4784 = vmatmul.bf16.gmra.mxu0 %v4501
        %v4785 = vpop.f32.mrf.mxu0
        %v4786 = vadd.f32 %v4540, %v4785
        %v4787 = vpop.f32.mrf.mxu0
        %v4788 = vadd.f32 %v4540, %v4787
        %4789 = vmatmul.bf16.gmra.mxu0 %v4502
        %v4790 = vpop.f32.mrf.mxu0
        %v4791 = vadd.f32 %v4540, %v4790
        %v4792 = vpop.f32.mrf.mxu0
        %v4793 = vadd.f32 %v4540, %v4792
        %4794 = vmatmul.bf16.gmra.mxu0 %v4503
        %v4795 = vpop.f32.mrf.mxu0
        %v4796 = vadd.f32 %v4540, %v4795
        %v4797 = vpop.f32.mrf.mxu0
        %v4798 = vadd.f32 %v4540, %v4797
        %4799 = vmatmul.bf16.gmra.mxu0 %v4504
        %v4800 = vpop.f32.mrf.mxu0
        %v4801 = vadd.f32 %v4540, %v4800
        %v4802 = vpop.f32.mrf.mxu0
        %v4803 = vadd.f32 %v4540, %v4802
        %4804 = vdwg.mxu0
        %4805 = vmatpush.bf16.msra.mxu0 %v4673
        %4806 = vmatpush.bf16.msra.mxu0 %v4669
        %4807 = vmatpush.bf16.msra.mxu0 %v4665
        %4808 = vmatpush.bf16.msra.mxu0 %v4661
        %4809 = vmatpush.bf16.msra.mxu0 %v4657
        %4810 = vmatpush.bf16.msra.mxu0 %v4653
        %4811 = vmatpush.bf16.msra.mxu0 %v4649
        %4812 = vmatpush.bf16.msra.mxu0 %v4645
        %4813 = vmatmul.bf16.gmra.mxu0 %v4497
        %v4814 = vpop.f32.mrf.mxu0
        %v4815 = vadd.f32 %v4541, %v4814
        %v4816 = vpop.f32.mrf.mxu0
        %v4817 = vadd.f32 %v4541, %v4816
        %4818 = vmatmul.bf16.gmra.mxu0 %v4498
        %v4819 = vpop.f32.mrf.mxu0
        %v4820 = vadd.f32 %v4541, %v4819
        %v4821 = vpop.f32.mrf.mxu0
        %v4822 = vadd.f32 %v4541, %v4821
        %4823 = vmatmul.bf16.gmra.mxu0 %v4499
        %v4824 = vpop.f32.mrf.mxu0
        %v4825 = vadd.f32 %v4541, %v4824
        %v4826 = vpop.f32.mrf.mxu0
        %v4827 = vadd.f32 %v4541, %v4826
        %4828 = vmatmul.bf16.gmra.mxu0 %v4500
        %v4829 = vpop.f32.mrf.mxu0
        %v4830 = vadd.f32 %v4541, %v4829
        %v4831 = vpop.f32.mrf.mxu0
        %v4832 = vadd.f32 %v4541, %v4831
        %4833 = vmatmul.bf16.gmra.mxu0 %v4501
        %v4834 = vpop.f32.mrf.mxu0
        %v4835 = vadd.f32 %v4541, %v4834
        %v4836 = vpop.f32.mrf.mxu0
        %v4837 = vadd.f32 %v4541, %v4836
        %4838 = vmatmul.bf16.gmra.mxu0 %v4502
        %v4839 = vpop.f32.mrf.mxu0
        %v4840 = vadd.f32 %v4541, %v4839
        %v4841 = vpop.f32.mrf.mxu0
        %v4842 = vadd.f32 %v4541, %v4841
        %4843 = vmatmul.bf16.gmra.mxu0 %v4503
        %v4844 = vpop.f32.mrf.mxu0
        %v4845 = vadd.f32 %v4541, %v4844
        %v4846 = vpop.f32.mrf.mxu0
        %v4847 = vadd.f32 %v4541, %v4846
        %4848 = vmatmul.bf16.gmra.mxu0 %v4504
        %v4849 = vpop.f32.mrf.mxu0
        %v4850 = vadd.f32 %v4541, %v4849
        %v4851 = vpop.f32.mrf.mxu0
        %v4852 = vadd.f32 %v4541, %v4851
        %4853 = vdwg.mxu0
        %4854 = vmatpush.bf16.msra.mxu0 %v4674
        %4855 = vmatpush.bf16.msra.mxu0 %v4670
        %4856 = vmatpush.bf16.msra.mxu0 %v4666
        %4857 = vmatpush.bf16.msra.mxu0 %v4662
        %4858 = vmatpush.bf16.msra.mxu0 %v4658
        %4859 = vmatpush.bf16.msra.mxu0 %v4654
        %4860 = vmatpush.bf16.msra.mxu0 %v4650
        %4861 = vmatpush.bf16.msra.mxu0 %v4646
        %4862 = vmatmul.bf16.gmra.mxu0 %v4497
        %v4863 = vpop.f32.mrf.mxu0
        %v4864 = vadd.f32 %v4542, %v4863
        %v4865 = vpop.f32.mrf.mxu0
        %v4866 = vadd.f32 %v4542, %v4865
        %4867 = vmatmul.bf16.gmra.mxu0 %v4498
        %v4868 = vpop.f32.mrf.mxu0
        %v4869 = vadd.f32 %v4542, %v4868
        %v4870 = vpop.f32.mrf.mxu0
        %v4871 = vadd.f32 %v4542, %v4870
        %4872 = vmatmul.bf16.gmra.mxu0 %v4499
        %v4873 = vpop.f32.mrf.mxu0
        %v4874 = vadd.f32 %v4542, %v4873
        %v4875 = vpop.f32.mrf.mxu0
        %v4876 = vadd.f32 %v4542, %v4875
        %4877 = vmatmul.bf16.gmra.mxu0 %v4500
        %v4878 = vpop.f32.mrf.mxu0
        %v4879 = vadd.f32 %v4542, %v4878
        %v4880 = vpop.f32.mrf.mxu0
        %v4881 = vadd.f32 %v4542, %v4880
        %4882 = vmatmul.bf16.gmra.mxu0 %v4501
        %v4883 = vpop.f32.mrf.mxu0
        %v4884 = vadd.f32 %v4542, %v4883
        %v4885 = vpop.f32.mrf.mxu0
        %v4886 = vadd.f32 %v4542, %v4885
        %4887 = vmatmul.bf16.gmra.mxu0 %v4502
        %v4888 = vpop.f32.mrf.mxu0
        %v4889 = vadd.f32 %v4542, %v4888
        %v4890 = vpop.f32.mrf.mxu0
        %v4891 = vadd.f32 %v4542, %v4890
        %4892 = vmatmul.bf16.gmra.mxu0 %v4503
        %v4893 = vpop.f32.mrf.mxu0
        %v4894 = vadd.f32 %v4542, %v4893
        %v4895 = vpop.f32.mrf.mxu0
        %v4896 = vadd.f32 %v4542, %v4895
        %4897 = vmatmul.bf16.gmra.mxu0 %v4504
        %v4898 = vpop.f32.mrf.mxu0
        %v4899 = vadd.f32 %v4542, %v4898
        %v4900 = vpop.f32.mrf.mxu0
        %v4901 = vadd.f32 %v4542, %v4900
        %4902 = vdwg.mxu0
        %v4903 = vmax.f32 %v4717, 0.0
        %v4904 = vmax.f32 %v4766, 0.0
        %v4905 = vmax.f32 %v4815, 0.0
        %v4906 = vmax.f32 %v4864, 0.0
        %v4907 = vmax.f32 %v4719, 0.0
        %v4908 = vmax.f32 %v4768, 0.0
        %v4909 = vmax.f32 %v4817, 0.0
        %v4910 = vmax.f32 %v4866, 0.0
        %v4911 = vmax.f32 %v4722, 0.0
        %v4912 = vmax.f32 %v4771, 0.0
        %v4913 = vmax.f32 %v4820, 0.0
        %v4914 = vmax.f32 %v4869, 0.0
        %v4915 = vmax.f32 %v4724, 0.0
        %v4916 = vmax.f32 %v4773, 0.0
        %v4917 = vmax.f32 %v4822, 0.0
        %v4918 = vmax.f32 %v4871, 0.0
        %v4919 = vmax.f32 %v4727, 0.0
        %v4920 = vmax.f32 %v4776, 0.0
        %v4921 = vmax.f32 %v4825, 0.0
        %v4922 = vmax.f32 %v4874, 0.0
        %v4923 = vmax.f32 %v4729, 0.0
        %v4924 = vmax.f32 %v4778, 0.0
        %v4925 = vmax.f32 %v4827, 0.0
        %v4926 = vmax.f32 %v4876, 0.0
        %v4927 = vmax.f32 %v4732, 0.0
        %v4928 = vmax.f32 %v4781, 0.0
        %v4929 = vmax.f32 %v4830, 0.0
        %v4930 = vmax.f32 %v4879, 0.0
        %v4931 = vmax.f32 %v4734, 0.0
        %v4932 = vmax.f32 %v4783, 0.0
        %v4933 = vmax.f32 %v4832, 0.0
        %v4934 = vmax.f32 %v4881, 0.0
        %v4935 = vmax.f32 %v4737, 0.0
        %v4936 = vmax.f32 %v4786, 0.0
        %v4937 = vmax.f32 %v4835, 0.0
        %v4938 = vmax.f32 %v4884, 0.0
        %v4939 = vmax.f32 %v4739, 0.0
        %v4940 = vmax.f32 %v4788, 0.0
        %v4941 = vmax.f32 %v4837, 0.0
        %v4942 = vmax.f32 %v4886, 0.0
        %v4943 = vmax.f32 %v4742, 0.0
        %v4944 = vmax.f32 %v4791, 0.0
        %v4945 = vmax.f32 %v4840, 0.0
        %v4946 = vmax.f32 %v4889, 0.0
        %v4947 = vmax.f32 %v4744, 0.0
        %v4948 = vmax.f32 %v4793, 0.0
        %v4949 = vmax.f32 %v4842, 0.0
        %v4950 = vmax.f32 %v4891, 0.0
        %v4951 = vmax.f32 %v4747, 0.0
        %v4952 = vmax.f32 %v4796, 0.0
        %v4953 = vmax.f32 %v4845, 0.0
        %v4954 = vmax.f32 %v4894, 0.0
        %v4955 = vmax.f32 %v4749, 0.0
        %v4956 = vmax.f32 %v4798, 0.0
        %v4957 = vmax.f32 %v4847, 0.0
        %v4958 = vmax.f32 %v4896, 0.0
        %v4959 = vmax.f32 %v4752, 0.0
        %v4960 = vmax.f32 %v4801, 0.0
        %v4961 = vmax.f32 %v4850, 0.0
        %v4962 = vmax.f32 %v4899, 0.0
        %v4963 = vmax.f32 %v4754, 0.0
        %v4964 = vmax.f32 %v4803, 0.0
        %v4965 = vmax.f32 %v4852, 0.0
        %v4966 = vmax.f32 %v4901, 0.0
        %v4967 = vpack.c.bf16 %v4907, %v4903
        %v4968 = vpack.c.bf16 %v4908, %v4904
        %v4969 = vpack.c.bf16 %v4909, %v4905
        %v4970 = vpack.c.bf16 %v4910, %v4906
        %v4971 = vpack.c.bf16 %v4915, %v4911
        %v4972 = vpack.c.bf16 %v4916, %v4912
        %v4973 = vpack.c.bf16 %v4917, %v4913
        %v4974 = vpack.c.bf16 %v4918, %v4914
        %v4975 = vpack.c.bf16 %v4923, %v4919
        %v4976 = vpack.c.bf16 %v4924, %v4920
        %v4977 = vpack.c.bf16 %v4925, %v4921
        %v4978 = vpack.c.bf16 %v4926, %v4922
        %v4979 = vpack.c.bf16 %v4931, %v4927
        %v4980 = vpack.c.bf16 %v4932, %v4928
        %v4981 = vpack.c.bf16 %v4933, %v4929
        %v4982 = vpack.c.bf16 %v4934, %v4930
        %v4983 = vpack.c.bf16 %v4939, %v4935
        %v4984 = vpack.c.bf16 %v4940, %v4936
        %v4985 = vpack.c.bf16 %v4941, %v4937
        %v4986 = vpack.c.bf16 %v4942, %v4938
        %v4987 = vpack.c.bf16 %v4947, %v4943
        %v4988 = vpack.c.bf16 %v4948, %v4944
        %v4989 = vpack.c.bf16 %v4949, %v4945
        %v4990 = vpack.c.bf16 %v4950, %v4946
        %v4991 = vpack.c.bf16 %v4955, %v4951
        %v4992 = vpack.c.bf16 %v4956, %v4952
        %v4993 = vpack.c.bf16 %v4957, %v4953
        %v4994 = vpack.c.bf16 %v4958, %v4954
        %v4995 = vpack.c.bf16 %v4963, %v4959
        %v4996 = vpack.c.bf16 %v4964, %v4960
        %v4997 = vpack.c.bf16 %v4965, %v4961
        %v4998 = vpack.c.bf16 %v4966, %v4962
        %v4999 = vld [vmem:[#allocation7] sm:$0xf]
        %v5000 = vld [vmem:[#allocation7 + $0x4] sm:$0xf]
        %v5001 = vld [vmem:[#allocation7 + $0x8] sm:$0xf]
        %v5002 = vld [vmem:[#allocation7 + $0xc] sm:$0xf]
        %v5003 = vld [vmem:[#allocation7 + $0x10] sm:$0xf]
        %v5004 = vld [vmem:[#allocation7 + $0x14] sm:$0xf]
        %v5005 = vld [vmem:[#allocation7 + $0x18] sm:$0xf]
        %v5006 = vld [vmem:[#allocation7 + $0x1c] sm:$0xf]
        %v5007 = vld [vmem:[#allocation7 + $0x20] sm:$0xf]
        %v5008 = vld [vmem:[#allocation7 + $0x24] sm:$0xf]
        %v5009 = vld [vmem:[#allocation7 + $0x28] sm:$0xf]
        %v5010 = vld [vmem:[#allocation7 + $0x2c] sm:$0xf]
        %v5011 = vld [vmem:[#allocation7 + $0x30] sm:$0xf]
        %v5012 = vld [vmem:[#allocation7 + $0x34] sm:$0xf]
        %v5013 = vld [vmem:[#allocation7 + $0x38] sm:$0xf]
        %v5014 = vld [vmem:[#allocation7 + $0x3c] sm:$0xf]
        %v5015 = vld [vmem:[#allocation7 + $0x40] sm:$0xf]
        %v5016 = vld [vmem:[#allocation7 + $0x44] sm:$0xf]
        %v5017 = vld [vmem:[#allocation7 + $0x48] sm:$0xf]
        %v5018 = vld [vmem:[#allocation7 + $0x4c] sm:$0xf]
        %v5019 = vld [vmem:[#allocation7 + $0x50] sm:$0xf]
        %v5020 = vld [vmem:[#allocation7 + $0x54] sm:$0xf]
        %v5021 = vld [vmem:[#allocation7 + $0x58] sm:$0xf]
        %v5022 = vld [vmem:[#allocation7 + $0x5c] sm:$0xf]
        %v5023 = vld [vmem:[#allocation7 + $0x60] sm:$0xf]
        %v5024 = vld [vmem:[#allocation7 + $0x64] sm:$0xf]
        %v5025 = vld [vmem:[#allocation7 + $0x68] sm:$0xf]
        %v5026 = vld [vmem:[#allocation7 + $0x6c] sm:$0xf]
        %v5027 = vld [vmem:[#allocation7 + $0x70] sm:$0xf]
        %v5028 = vld [vmem:[#allocation7 + $0x74] sm:$0xf]
        %v5029 = vld [vmem:[#allocation7 + $0x78] sm:$0xf]
        %v5030 = vld [vmem:[#allocation7 + $0x7c] sm:$0xf]
        %v5031 = vld [vmem:[#allocation7 + $0x80] sm:$0xf]
        %v5032 = vld [vmem:[#allocation7 + $0x84] sm:$0xf]
        %v5033 = vld [vmem:[#allocation7 + $0x88] sm:$0xf]
        %v5034 = vld [vmem:[#allocation7 + $0x8c] sm:$0xf]
        %v5035 = vld [vmem:[#allocation7 + $0x90] sm:$0xf]
        %v5036 = vld [vmem:[#allocation7 + $0x94] sm:$0xf]
        %v5037 = vld [vmem:[#allocation7 + $0x98] sm:$0xf]
        %v5038 = vld [vmem:[#allocation7 + $0x9c] sm:$0xf]
        %v5039 = vld [vmem:[#allocation7 + $0xa0] sm:$0xf]
        %v5040 = vld [vmem:[#allocation7 + $0xa4] sm:$0xf]
        %v5041 = vld [vmem:[#allocation7 + $0xa8] sm:$0xf]
        %v5042 = vld [vmem:[#allocation7 + $0xac] sm:$0xf]
        %v5043 = vld [vmem:[#allocation7 + $0xb0] sm:$0xf]
        %v5044 = vld [vmem:[#allocation7 + $0xb4] sm:$0xf]
        %v5045 = vld [vmem:[#allocation7 + $0xb8] sm:$0xf]
        %v5046 = vld [vmem:[#allocation7 + $0xbc] sm:$0xf]
        %v5047 = vld [vmem:[#allocation7 + $0xc0] sm:$0xf]
        %v5048 = vld [vmem:[#allocation7 + $0xc4] sm:$0xf]
        %v5049 = vld [vmem:[#allocation7 + $0xc8] sm:$0xf]
        %v5050 = vld [vmem:[#allocation7 + $0xcc] sm:$0xf]
        %v5051 = vld [vmem:[#allocation7 + $0xd0] sm:$0xf]
        %v5052 = vld [vmem:[#allocation7 + $0xd4] sm:$0xf]
        %v5053 = vld [vmem:[#allocation7 + $0xd8] sm:$0xf]
        %v5054 = vld [vmem:[#allocation7 + $0xdc] sm:$0xf]
        %v5055 = vld [vmem:[#allocation7 + $0xe0] sm:$0xf]
        %v5056 = vld [vmem:[#allocation7 + $0xe4] sm:$0xf]
        %v5057 = vld [vmem:[#allocation7 + $0xe8] sm:$0xf]
        %v5058 = vld [vmem:[#allocation7 + $0xec] sm:$0xf]
        %v5059 = vld [vmem:[#allocation7 + $0xf0] sm:$0xf]
        %v5060 = vld [vmem:[#allocation7 + $0xf4] sm:$0xf]
        %v5061 = vld [vmem:[#allocation7 + $0xf8] sm:$0xf]
        %v5062 = vld [vmem:[#allocation7 + $0xfc] sm:$0xf]
        %v5063 = vld [vmem:[#allocation9] sm:$0x1]
        %v5065 = vperm.slane %v5063, 0
        %v5131 = vunpack.c.l.b16 %v4999
        %v5132 = vunpack.c.l.b16 %v5000
        %v5133 = vunpack.c.l.b16 %v5001
        %v5134 = vunpack.c.l.b16 %v5002
        %v5135 = vunpack.c.l.b16 %v5003
        %v5136 = vunpack.c.l.b16 %v5004
        %v5137 = vunpack.c.l.b16 %v5005
        %v5138 = vunpack.c.l.b16 %v5006
        %v5139 = vunpack.c.l.b16 %v5007
        %v5140 = vunpack.c.l.b16 %v5008
        %v5141 = vunpack.c.l.b16 %v5009
        %v5142 = vunpack.c.l.b16 %v5010
        %v5143 = vunpack.c.l.b16 %v5011
        %v5144 = vunpack.c.l.b16 %v5012
        %v5145 = vunpack.c.l.b16 %v5013
        %v5146 = vunpack.c.l.b16 %v5014
        %v5147 = vunpack.c.l.b16 %v5015
        %v5148 = vunpack.c.l.b16 %v5016
        %v5149 = vunpack.c.l.b16 %v5017
        %v5150 = vunpack.c.l.b16 %v5018
        %v5151 = vunpack.c.l.b16 %v5019
        %v5152 = vunpack.c.l.b16 %v5020
        %v5153 = vunpack.c.l.b16 %v5021
        %v5154 = vunpack.c.l.b16 %v5022
        %v5155 = vunpack.c.l.b16 %v5023
        %v5156 = vunpack.c.l.b16 %v5024
        %v5157 = vunpack.c.l.b16 %v5025
        %v5158 = vunpack.c.l.b16 %v5026
        %v5159 = vunpack.c.l.b16 %v5027
        %v5160 = vunpack.c.l.b16 %v5028
        %v5161 = vunpack.c.l.b16 %v5029
        %v5162 = vunpack.c.l.b16 %v5030
        %v5163 = vunpack.c.l.b16 %v5031
        %v5164 = vunpack.c.l.b16 %v5032
        %v5165 = vunpack.c.l.b16 %v5033
        %v5166 = vunpack.c.l.b16 %v5034
        %v5167 = vunpack.c.l.b16 %v5035
        %v5168 = vunpack.c.l.b16 %v5036
        %v5169 = vunpack.c.l.b16 %v5037
        %v5170 = vunpack.c.l.b16 %v5038
        %v5171 = vunpack.c.l.b16 %v5039
        %v5172 = vunpack.c.l.b16 %v5040
        %v5173 = vunpack.c.l.b16 %v5041
        %v5174 = vunpack.c.l.b16 %v5042
        %v5175 = vunpack.c.l.b16 %v5043
        %v5176 = vunpack.c.l.b16 %v5044
        %v5177 = vunpack.c.l.b16 %v5045
        %v5178 = vunpack.c.l.b16 %v5046
        %v5179 = vunpack.c.l.b16 %v5047
        %v5180 = vunpack.c.l.b16 %v5048
        %v5181 = vunpack.c.l.b16 %v5049
        %v5182 = vunpack.c.l.b16 %v5050
        %v5183 = vunpack.c.l.b16 %v5051
        %v5184 = vunpack.c.l.b16 %v5052
        %v5185 = vunpack.c.l.b16 %v5053
        %v5186 = vunpack.c.l.b16 %v5054
        %v5187 = vunpack.c.l.b16 %v5055
        %v5188 = vunpack.c.l.b16 %v5056
        %v5189 = vunpack.c.l.b16 %v5057
        %v5190 = vunpack.c.l.b16 %v5058
        %v5191 = vunpack.c.l.b16 %v5059
        %v5192 = vunpack.c.l.b16 %v5060
        %v5193 = vunpack.c.l.b16 %v5061
        %v5194 = vunpack.c.l.b16 %v5062
        %v5195 = vpack.c.b16 %v5132, %v5131
        %v5196 = vpack.c.b16 %v5134, %v5133
        %v5197 = vpack.c.b16 %v5136, %v5135
        %v5198 = vpack.c.b16 %v5138, %v5137
        %v5199 = vpack.c.b16 %v5140, %v5139
        %v5200 = vpack.c.b16 %v5142, %v5141
        %v5201 = vpack.c.b16 %v5144, %v5143
        %v5202 = vpack.c.b16 %v5146, %v5145
        %v5203 = vpack.c.b16 %v5148, %v5147
        %v5204 = vpack.c.b16 %v5150, %v5149
        %v5205 = vpack.c.b16 %v5152, %v5151
        %v5206 = vpack.c.b16 %v5154, %v5153
        %v5207 = vpack.c.b16 %v5156, %v5155
        %v5208 = vpack.c.b16 %v5158, %v5157
        %v5209 = vpack.c.b16 %v5160, %v5159
        %v5210 = vpack.c.b16 %v5162, %v5161
        %v5211 = vpack.c.b16 %v5164, %v5163
        %v5212 = vpack.c.b16 %v5166, %v5165
        %v5213 = vpack.c.b16 %v5168, %v5167
        %v5214 = vpack.c.b16 %v5170, %v5169
        %v5215 = vpack.c.b16 %v5172, %v5171
        %v5216 = vpack.c.b16 %v5174, %v5173
        %v5217 = vpack.c.b16 %v5176, %v5175
        %v5218 = vpack.c.b16 %v5178, %v5177
        %v5219 = vpack.c.b16 %v5180, %v5179
        %v5220 = vpack.c.b16 %v5182, %v5181
        %v5221 = vpack.c.b16 %v5184, %v5183
        %v5222 = vpack.c.b16 %v5186, %v5185
        %v5223 = vpack.c.b16 %v5188, %v5187
        %v5224 = vpack.c.b16 %v5190, %v5189
        %v5225 = vpack.c.b16 %v5192, %v5191
        %v5226 = vpack.c.b16 %v5194, %v5193
        %5259 = vmatpush.bf16.msra.mxu0 %v5202
        %5260 = vmatpush.bf16.msra.mxu0 %v5201
        %5261 = vmatpush.bf16.msra.mxu0 %v5200
        %5262 = vmatpush.bf16.msra.mxu0 %v5199
        %5263 = vmatpush.bf16.msra.mxu0 %v5198
        %5264 = vmatpush.bf16.msra.mxu0 %v5197
        %5265 = vmatpush.bf16.msra.mxu0 %v5196
        %5266 = vmatpush.bf16.msra.mxu0 %v5195
        %5267 = vmatmul.bf16.gmra.mxu0 %v4967
        %v5268 = vpop.f32.mrf.mxu0
        %v5269 = vadd.f32 %v5065, %v5268
        %v5270 = vpop.f32.mrf.mxu0
        %v5271 = vadd.f32 %v5065, %v5270
        %5272 = vmatmul.bf16.gmra.mxu0 %v4971
        %v5273 = vpop.f32.mrf.mxu0
        %v5274 = vadd.f32 %v5065, %v5273
        %v5275 = vpop.f32.mrf.mxu0
        %v5276 = vadd.f32 %v5065, %v5275
        %5277 = vmatmul.bf16.gmra.mxu0 %v4975
        %v5278 = vpop.f32.mrf.mxu0
        %v5279 = vadd.f32 %v5065, %v5278
        %v5280 = vpop.f32.mrf.mxu0
        %v5281 = vadd.f32 %v5065, %v5280
        %5282 = vmatmul.bf16.gmra.mxu0 %v4979
        %v5283 = vpop.f32.mrf.mxu0
        %v5284 = vadd.f32 %v5065, %v5283
        %v5285 = vpop.f32.mrf.mxu0
        %v5286 = vadd.f32 %v5065, %v5285
        %5287 = vmatmul.bf16.gmra.mxu0 %v4983
        %v5288 = vpop.f32.mrf.mxu0
        %v5289 = vadd.f32 %v5065, %v5288
        %v5290 = vpop.f32.mrf.mxu0
        %v5291 = vadd.f32 %v5065, %v5290
        %5292 = vmatmul.bf16.gmra.mxu0 %v4987
        %v5293 = vpop.f32.mrf.mxu0
        %v5294 = vadd.f32 %v5065, %v5293
        %v5295 = vpop.f32.mrf.mxu0
        %v5296 = vadd.f32 %v5065, %v5295
        %5297 = vmatmul.bf16.gmra.mxu0 %v4991
        %v5298 = vpop.f32.mrf.mxu0
        %v5299 = vadd.f32 %v5065, %v5298
        %v5300 = vpop.f32.mrf.mxu0
        %v5301 = vadd.f32 %v5065, %v5300
        %5302 = vmatmul.bf16.gmra.mxu0 %v4995
        %v5303 = vpop.f32.mrf.mxu0
        %v5304 = vadd.f32 %v5065, %v5303
        %v5305 = vpop.f32.mrf.mxu0
        %v5306 = vadd.f32 %v5065, %v5305
        %5307 = vdwg.mxu0
        %5308 = vmatpush.bf16.msra.mxu0 %v5210
        %5309 = vmatpush.bf16.msra.mxu0 %v5209
        %5310 = vmatpush.bf16.msra.mxu0 %v5208
        %5311 = vmatpush.bf16.msra.mxu0 %v5207
        %5312 = vmatpush.bf16.msra.mxu0 %v5206
        %5313 = vmatpush.bf16.msra.mxu0 %v5205
        %5314 = vmatpush.bf16.msra.mxu0 %v5204
        %5315 = vmatpush.bf16.msra.mxu0 %v5203
        %5316 = vmatmul.bf16.gmra.mxu0 %v4968
        %v5317 = vpop.f32.mrf.mxu0
        %v5318 = vadd.f32 %v5269, %v5317
        %v5319 = vpop.f32.mrf.mxu0
        %v5320 = vadd.f32 %v5271, %v5319
        %5321 = vmatmul.bf16.gmra.mxu0 %v4972
        %v5322 = vpop.f32.mrf.mxu0
        %v5323 = vadd.f32 %v5274, %v5322
        %v5324 = vpop.f32.mrf.mxu0
        %v5325 = vadd.f32 %v5276, %v5324
        %5326 = vmatmul.bf16.gmra.mxu0 %v4976
        %v5327 = vpop.f32.mrf.mxu0
        %v5328 = vadd.f32 %v5279, %v5327
        %v5329 = vpop.f32.mrf.mxu0
        %v5330 = vadd.f32 %v5281, %v5329
        %5331 = vmatmul.bf16.gmra.mxu0 %v4980
        %v5332 = vpop.f32.mrf.mxu0
        %v5333 = vadd.f32 %v5284, %v5332
        %v5334 = vpop.f32.mrf.mxu0
        %v5335 = vadd.f32 %v5286, %v5334
        %5336 = vmatmul.bf16.gmra.mxu0 %v4984
        %v5337 = vpop.f32.mrf.mxu0
        %v5338 = vadd.f32 %v5289, %v5337
        %v5339 = vpop.f32.mrf.mxu0
        %v5340 = vadd.f32 %v5291, %v5339
        %5341 = vmatmul.bf16.gmra.mxu0 %v4988
        %v5342 = vpop.f32.mrf.mxu0
        %v5343 = vadd.f32 %v5294, %v5342
        %v5344 = vpop.f32.mrf.mxu0
        %v5345 = vadd.f32 %v5296, %v5344
        %5346 = vmatmul.bf16.gmra.mxu0 %v4992
        %v5347 = vpop.f32.mrf.mxu0
        %v5348 = vadd.f32 %v5299, %v5347
        %v5349 = vpop.f32.mrf.mxu0
        %v5350 = vadd.f32 %v5301, %v5349
        %5351 = vmatmul.bf16.gmra.mxu0 %v4996
        %v5352 = vpop.f32.mrf.mxu0
        %v5353 = vadd.f32 %v5304, %v5352
        %v5354 = vpop.f32.mrf.mxu0
        %v5355 = vadd.f32 %v5306, %v5354
        %5356 = vdwg.mxu0
        %5357 = vmatpush.bf16.msra.mxu0 %v5218
        %5358 = vmatpush.bf16.msra.mxu0 %v5217
        %5359 = vmatpush.bf16.msra.mxu0 %v5216
        %5360 = vmatpush.bf16.msra.mxu0 %v5215
        %5361 = vmatpush.bf16.msra.mxu0 %v5214
        %5362 = vmatpush.bf16.msra.mxu0 %v5213
        %5363 = vmatpush.bf16.msra.mxu0 %v5212
        %5364 = vmatpush.bf16.msra.mxu0 %v5211
        %5365 = vmatmul.bf16.gmra.mxu0 %v4969
        %v5366 = vpop.f32.mrf.mxu0
        %v5367 = vadd.f32 %v5318, %v5366
        %v5368 = vpop.f32.mrf.mxu0
        %v5369 = vadd.f32 %v5320, %v5368
        %5370 = vmatmul.bf16.gmra.mxu0 %v4973
        %v5371 = vpop.f32.mrf.mxu0
        %v5372 = vadd.f32 %v5323, %v5371
        %v5373 = vpop.f32.mrf.mxu0
        %v5374 = vadd.f32 %v5325, %v5373
        %5375 = vmatmul.bf16.gmra.mxu0 %v4977
        %v5376 = vpop.f32.mrf.mxu0
        %v5377 = vadd.f32 %v5328, %v5376
        %v5378 = vpop.f32.mrf.mxu0
        %v5379 = vadd.f32 %v5330, %v5378
        %5380 = vmatmul.bf16.gmra.mxu0 %v4981
        %v5381 = vpop.f32.mrf.mxu0
        %v5382 = vadd.f32 %v5333, %v5381
        %v5383 = vpop.f32.mrf.mxu0
        %v5384 = vadd.f32 %v5335, %v5383
        %5385 = vmatmul.bf16.gmra.mxu0 %v4985
        %v5386 = vpop.f32.mrf.mxu0
        %v5387 = vadd.f32 %v5338, %v5386
        %v5388 = vpop.f32.mrf.mxu0
        %v5389 = vadd.f32 %v5340, %v5388
        %5390 = vmatmul.bf16.gmra.mxu0 %v4989
        %v5391 = vpop.f32.mrf.mxu0
        %v5392 = vadd.f32 %v5343, %v5391
        %v5393 = vpop.f32.mrf.mxu0
        %v5394 = vadd.f32 %v5345, %v5393
        %5395 = vmatmul.bf16.gmra.mxu0 %v4993
        %v5396 = vpop.f32.mrf.mxu0
        %v5397 = vadd.f32 %v5348, %v5396
        %v5398 = vpop.f32.mrf.mxu0
        %v5399 = vadd.f32 %v5350, %v5398
        %5400 = vmatmul.bf16.gmra.mxu0 %v4997
        %v5401 = vpop.f32.mrf.mxu0
        %v5402 = vadd.f32 %v5353, %v5401
        %v5403 = vpop.f32.mrf.mxu0
        %v5404 = vadd.f32 %v5355, %v5403
        %5405 = vdwg.mxu0
        %5406 = vmatpush.bf16.msra.mxu0 %v5226
        %5407 = vmatpush.bf16.msra.mxu0 %v5225
        %5408 = vmatpush.bf16.msra.mxu0 %v5224
        %5409 = vmatpush.bf16.msra.mxu0 %v5223
        %5410 = vmatpush.bf16.msra.mxu0 %v5222
        %5411 = vmatpush.bf16.msra.mxu0 %v5221
        %5412 = vmatpush.bf16.msra.mxu0 %v5220
        %5413 = vmatpush.bf16.msra.mxu0 %v5219
        %5414 = vmatmul.bf16.gmra.mxu0 %v4970
        %v5415 = vpop.f32.mrf.mxu0
        %v5416 = vadd.f32 %v5367, %v5415
        %v5417 = vpop.f32.mrf.mxu0
        %v5418 = vadd.f32 %v5369, %v5417
        %5419 = vmatmul.bf16.gmra.mxu0 %v4974
        %v5420 = vpop.f32.mrf.mxu0
        %v5421 = vadd.f32 %v5372, %v5420
        %v5422 = vpop.f32.mrf.mxu0
        %v5423 = vadd.f32 %v5374, %v5422
        %5424 = vmatmul.bf16.gmra.mxu0 %v4978
        %v5425 = vpop.f32.mrf.mxu0
        %v5426 = vadd.f32 %v5377, %v5425
        %v5427 = vpop.f32.mrf.mxu0
        %v5428 = vadd.f32 %v5379, %v5427
        %5429 = vmatmul.bf16.gmra.mxu0 %v4982
        %v5430 = vpop.f32.mrf.mxu0
        %v5431 = vadd.f32 %v5382, %v5430
        %v5432 = vpop.f32.mrf.mxu0
        %v5433 = vadd.f32 %v5384, %v5432
        %5434 = vmatmul.bf16.gmra.mxu0 %v4986
        %v5435 = vpop.f32.mrf.mxu0
        %v5436 = vadd.f32 %v5387, %v5435
        %v5437 = vpop.f32.mrf.mxu0
        %v5438 = vadd.f32 %v5389, %v5437
        %5439 = vmatmul.bf16.gmra.mxu0 %v4990
        %v5440 = vpop.f32.mrf.mxu0
        %v5441 = vadd.f32 %v5392, %v5440
        %v5442 = vpop.f32.mrf.mxu0
        %v5443 = vadd.f32 %v5394, %v5442
        %5444 = vmatmul.bf16.gmra.mxu0 %v4994
        %v5445 = vpop.f32.mrf.mxu0
        %v5446 = vadd.f32 %v5397, %v5445
        %v5447 = vpop.f32.mrf.mxu0
        %v5448 = vadd.f32 %v5399, %v5447
        %5449 = vmatmul.bf16.gmra.mxu0 %v4998
        %v5450 = vpop.f32.mrf.mxu0
        %v5451 = vadd.f32 %v5402, %v5450
        %v5452 = vpop.f32.mrf.mxu0
        %v5453 = vadd.f32 %v5404, %v5452
        %5454 = vdwg.mxu0
        %v5455 = vadd.f32 %v4481, %v5416
        %v5456 = vadd.f32 %v4482, %v5418
        %v5457 = vadd.f32 %v4483, %v5421
        %v5458 = vadd.f32 %v4484, %v5423
        %v5459 = vadd.f32 %v4485, %v5426
        %v5460 = vadd.f32 %v4486, %v5428
        %v5461 = vadd.f32 %v4487, %v5431
        %v5462 = vadd.f32 %v4488, %v5433
        %v5463 = vadd.f32 %v4489, %v5436
        %v5464 = vadd.f32 %v4490, %v5438
        %v5465 = vadd.f32 %v4491, %v5441
        %v5466 = vadd.f32 %v4492, %v5443
        %v5467 = vadd.f32 %v4493, %v5446
        %v5468 = vadd.f32 %v4494, %v5448
        %v5469 = vadd.f32 %v4495, %v5451
        %v5470 = vadd.f32 %v4496, %v5453
        %v5471 = vld [vmem:[%s9] sm:$0x1]
        %v5472 = vld [vmem:[#allocation4] sm:$0x1]
        %5473 = vadd.xlane.f32.xlu0 %v5455
        %v5474 = vpop.xlane.xlu0 %5473
        %5475 = vadd.xlane.f32.xlu0 %v5456
        %v5476 = vpop.xlane.xlu0 %5475
        %5477 = vadd.xlane.f32.xlu0 %v5457
        %v5478 = vpop.xlane.xlu0 %5477
        %5479 = vadd.xlane.f32.xlu0 %v5458
        %v5480 = vpop.xlane.xlu0 %5479
        %5481 = vadd.xlane.f32.xlu0 %v5459
        %v5482 = vpop.xlane.xlu0 %5481
        %5483 = vadd.xlane.f32.xlu0 %v5460
        %v5484 = vpop.xlane.xlu0 %5483
        %5485 = vadd.xlane.f32.xlu0 %v5461
        %v5486 = vpop.xlane.xlu0 %5485
        %5487 = vadd.xlane.f32.xlu0 %v5462
        %v5488 = vpop.xlane.xlu0 %5487
        %5489 = vadd.xlane.f32.xlu0 %v5463
        %v5490 = vpop.xlane.xlu0 %5489
        %5491 = vadd.xlane.f32.xlu0 %v5464
        %v5492 = vpop.xlane.xlu0 %5491
        %5493 = vadd.xlane.f32.xlu0 %v5465
        %v5494 = vpop.xlane.xlu0 %5493
        %5495 = vadd.xlane.f32.xlu0 %v5466
        %v5496 = vpop.xlane.xlu0 %5495
        %5497 = vadd.xlane.f32.xlu0 %v5467
        %v5498 = vpop.xlane.xlu0 %5497
        %5499 = vadd.xlane.f32.xlu0 %v5468
        %v5500 = vpop.xlane.xlu0 %5499
        %5501 = vadd.xlane.f32.xlu0 %v5469
        %v5502 = vpop.xlane.xlu0 %5501
        %5503 = vadd.xlane.f32.xlu0 %v5470
        %v5504 = vpop.xlane.xlu0 %5503
        %v5505 = vmul.f32 %v5474, %v4170
        %v5506 = vmul.f32 %v5476, %v4170
        %v5507 = vmul.f32 %v5478, %v4170
        %v5508 = vmul.f32 %v5480, %v4170
        %v5509 = vmul.f32 %v5482, %v4170
        %v5510 = vmul.f32 %v5484, %v4170
        %v5511 = vmul.f32 %v5486, %v4170
        %v5512 = vmul.f32 %v5488, %v4170
        %v5513 = vmul.f32 %v5490, %v4170
        %v5514 = vmul.f32 %v5492, %v4170
        %v5515 = vmul.f32 %v5494, %v4170
        %v5516 = vmul.f32 %v5496, %v4170
        %v5517 = vmul.f32 %v5498, %v4170
        %v5518 = vmul.f32 %v5500, %v4170
        %v5519 = vmul.f32 %v5502, %v4170
        %v5520 = vmul.f32 %v5504, %v4170
        %v5521 = vsub.f32 %v5455, %v5505
        %v5522 = vsub.f32 %v5456, %v5506
        %v5523 = vsub.f32 %v5457, %v5507
        %v5524 = vsub.f32 %v5458, %v5508
        %v5525 = vsub.f32 %v5459, %v5509
        %v5526 = vsub.f32 %v5460, %v5510
        %v5527 = vsub.f32 %v5461, %v5511
        %v5528 = vsub.f32 %v5462, %v5512
        %v5529 = vsub.f32 %v5463, %v5513
        %v5530 = vsub.f32 %v5464, %v5514
        %v5531 = vsub.f32 %v5465, %v5515
        %v5532 = vsub.f32 %v5466, %v5516
        %v5533 = vsub.f32 %v5467, %v5517
        %v5534 = vsub.f32 %v5468, %v5518
        %v5535 = vsub.f32 %v5469, %v5519
        %v5536 = vsub.f32 %v5470, %v5520
        %v5537 = vmul.f32 %v5521, %v5521
        %v5538 = vmul.f32 %v5522, %v5522
        %v5539 = vmul.f32 %v5523, %v5523
        %v5540 = vmul.f32 %v5524, %v5524
        %v5541 = vmul.f32 %v5525, %v5525
        %v5542 = vmul.f32 %v5526, %v5526
        %v5543 = vmul.f32 %v5527, %v5527
        %v5544 = vmul.f32 %v5528, %v5528
        %v5545 = vmul.f32 %v5529, %v5529
        %v5546 = vmul.f32 %v5530, %v5530
        %v5547 = vmul.f32 %v5531, %v5531
        %v5548 = vmul.f32 %v5532, %v5532
        %v5549 = vmul.f32 %v5533, %v5533
        %v5550 = vmul.f32 %v5534, %v5534
        %v5551 = vmul.f32 %v5535, %v5535
        %v5552 = vmul.f32 %v5536, %v5536
        %5553 = vadd.xlane.f32.xlu0 %v5537
        %v5554 = vpop.xlane.xlu0 %5553
        %5555 = vadd.xlane.f32.xlu0 %v5538
        %v5556 = vpop.xlane.xlu0 %5555
        %5557 = vadd.xlane.f32.xlu0 %v5539
        %v5558 = vpop.xlane.xlu0 %5557
        %5559 = vadd.xlane.f32.xlu0 %v5540
        %v5560 = vpop.xlane.xlu0 %5559
        %5561 = vadd.xlane.f32.xlu0 %v5541
        %v5562 = vpop.xlane.xlu0 %5561
        %5563 = vadd.xlane.f32.xlu0 %v5542
        %v5564 = vpop.xlane.xlu0 %5563
        %5565 = vadd.xlane.f32.xlu0 %v5543
        %v5566 = vpop.xlane.xlu0 %5565
        %5567 = vadd.xlane.f32.xlu0 %v5544
        %v5568 = vpop.xlane.xlu0 %5567
        %5569 = vadd.xlane.f32.xlu0 %v5545
        %v5570 = vpop.xlane.xlu0 %5569
        %5571 = vadd.xlane.f32.xlu0 %v5546
        %v5572 = vpop.xlane.xlu0 %5571
        %5573 = vadd.xlane.f32.xlu0 %v5547
        %v5574 = vpop.xlane.xlu0 %5573
        %5575 = vadd.xlane.f32.xlu0 %v5548
        %v5576 = vpop.xlane.xlu0 %5575
        %5577 = vadd.xlane.f32.xlu0 %v5549
        %v5578 = vpop.xlane.xlu0 %5577
        %5579 = vadd.xlane.f32.xlu0 %v5550
        %v5580 = vpop.xlane.xlu0 %5579
        %5581 = vadd.xlane.f32.xlu0 %v5551
        %v5582 = vpop.xlane.xlu0 %5581
        %5583 = vadd.xlane.f32.xlu0 %v5552
        %v5584 = vpop.xlane.xlu0 %5583
        %v5585 = vmul.f32 %v5554, %v4170
        %v5586 = vmul.f32 %v5556, %v4170
        %v5587 = vmul.f32 %v5558, %v4170
        %v5588 = vmul.f32 %v5560, %v4170
        %v5589 = vmul.f32 %v5562, %v4170
        %v5590 = vmul.f32 %v5564, %v4170
        %v5591 = vmul.f32 %v5566, %v4170
        %v5592 = vmul.f32 %v5568, %v4170
        %v5593 = vmul.f32 %v5570, %v4170
        %v5594 = vmul.f32 %v5572, %v4170
        %v5595 = vmul.f32 %v5574, %v4170
        %v5596 = vmul.f32 %v5576, %v4170
        %v5597 = vmul.f32 %v5578, %v4170
        %v5598 = vmul.f32 %v5580, %v4170
        %v5599 = vmul.f32 %v5582, %v4170
        %v5600 = vmul.f32 %v5584, %v4170
        %v5601 = vadd.f32 %v5585, 1e-05
        %v5602 = vadd.f32 %v5586, 1e-05
        %v5603 = vadd.f32 %v5587, 1e-05
        %v5604 = vadd.f32 %v5588, 1e-05
        %v5605 = vadd.f32 %v5589, 1e-05
        %v5606 = vadd.f32 %v5590, 1e-05
        %v5607 = vadd.f32 %v5591, 1e-05
        %v5608 = vadd.f32 %v5592, 1e-05
        %v5609 = vadd.f32 %v5593, 1e-05
        %v5610 = vadd.f32 %v5594, 1e-05
        %v5611 = vadd.f32 %v5595, 1e-05
        %v5612 = vadd.f32 %v5596, 1e-05
        %v5613 = vadd.f32 %v5597, 1e-05
        %v5614 = vadd.f32 %v5598, 1e-05
        %v5615 = vadd.f32 %v5599, 1e-05
        %v5616 = vadd.f32 %v5600, 1e-05
        %v5617 = vrsqrt.pop %v5601
        %v5618 = vmul.f32 %v5617, %v5601
        %v5619 = vmul.f32 %v5618, %v5617
        %v5620 = vmul.f32 0.5, %v5619
        %v5621 = vsub.f32 1.5, %v5620
        %v5622 = vmul.f32 %v5617, %v5621
        %vm5623 = vweird.f32 %v5601
        %vm5624 = vweird.f32 %v5617
        %vm5625 = vmor %vm5623, %vm5624
        %v5626 = vsel %vm5625, %v5617, %v5622
        %v5627 = vrsqrt.pop %v5602
        %v5628 = vmul.f32 %v5627, %v5602
        %v5629 = vmul.f32 %v5628, %v5627
        %v5630 = vmul.f32 0.5, %v5629
        %v5631 = vsub.f32 1.5, %v5630
        %v5632 = vmul.f32 %v5627, %v5631
        %vm5633 = vweird.f32 %v5602
        %vm5634 = vweird.f32 %v5627
        %vm5635 = vmor %vm5633, %vm5634
        %v5636 = vsel %vm5635, %v5627, %v5632
        %v5637 = vrsqrt.pop %v5603
        %v5638 = vmul.f32 %v5637, %v5603
        %v5639 = vmul.f32 %v5638, %v5637
        %v5640 = vmul.f32 0.5, %v5639
        %v5641 = vsub.f32 1.5, %v5640
        %v5642 = vmul.f32 %v5637, %v5641
        %vm5643 = vweird.f32 %v5603
        %vm5644 = vweird.f32 %v5637
        %vm5645 = vmor %vm5643, %vm5644
        %v5646 = vsel %vm5645, %v5637, %v5642
        %v5647 = vrsqrt.pop %v5604
        %v5648 = vmul.f32 %v5647, %v5604
        %v5649 = vmul.f32 %v5648, %v5647
        %v5650 = vmul.f32 0.5, %v5649
        %v5651 = vsub.f32 1.5, %v5650
        %v5652 = vmul.f32 %v5647, %v5651
        %vm5653 = vweird.f32 %v5604
        %vm5654 = vweird.f32 %v5647
        %vm5655 = vmor %vm5653, %vm5654
        %v5656 = vsel %vm5655, %v5647, %v5652
        %v5657 = vrsqrt.pop %v5605
        %v5658 = vmul.f32 %v5657, %v5605
        %v5659 = vmul.f32 %v5658, %v5657
        %v5660 = vmul.f32 0.5, %v5659
        %v5661 = vsub.f32 1.5, %v5660
        %v5662 = vmul.f32 %v5657, %v5661
        %vm5663 = vweird.f32 %v5605
        %vm5664 = vweird.f32 %v5657
        %vm5665 = vmor %vm5663, %vm5664
        %v5666 = vsel %vm5665, %v5657, %v5662
        %v5667 = vrsqrt.pop %v5606
        %v5668 = vmul.f32 %v5667, %v5606
        %v5669 = vmul.f32 %v5668, %v5667
        %v5670 = vmul.f32 0.5, %v5669
        %v5671 = vsub.f32 1.5, %v5670
        %v5672 = vmul.f32 %v5667, %v5671
        %vm5673 = vweird.f32 %v5606
        %vm5674 = vweird.f32 %v5667
        %vm5675 = vmor %vm5673, %vm5674
        %v5676 = vsel %vm5675, %v5667, %v5672
        %v5677 = vrsqrt.pop %v5607
        %v5678 = vmul.f32 %v5677, %v5607
        %v5679 = vmul.f32 %v5678, %v5677
        %v5680 = vmul.f32 0.5, %v5679
        %v5681 = vsub.f32 1.5, %v5680
        %v5682 = vmul.f32 %v5677, %v5681
        %vm5683 = vweird.f32 %v5607
        %vm5684 = vweird.f32 %v5677
        %vm5685 = vmor %vm5683, %vm5684
        %v5686 = vsel %vm5685, %v5677, %v5682
        %v5687 = vrsqrt.pop %v5608
        %v5688 = vmul.f32 %v5687, %v5608
        %v5689 = vmul.f32 %v5688, %v5687
        %v5690 = vmul.f32 0.5, %v5689
        %v5691 = vsub.f32 1.5, %v5690
        %v5692 = vmul.f32 %v5687, %v5691
        %vm5693 = vweird.f32 %v5608
        %vm5694 = vweird.f32 %v5687
        %vm5695 = vmor %vm5693, %vm5694
        %v5696 = vsel %vm5695, %v5687, %v5692
        %v5697 = vrsqrt.pop %v5609
        %v5698 = vmul.f32 %v5697, %v5609
        %v5699 = vmul.f32 %v5698, %v5697
        %v5700 = vmul.f32 0.5, %v5699
        %v5701 = vsub.f32 1.5, %v5700
        %v5702 = vmul.f32 %v5697, %v5701
        %vm5703 = vweird.f32 %v5609
        %vm5704 = vweird.f32 %v5697
        %vm5705 = vmor %vm5703, %vm5704
        %v5706 = vsel %vm5705, %v5697, %v5702
        %v5707 = vrsqrt.pop %v5610
        %v5708 = vmul.f32 %v5707, %v5610
        %v5709 = vmul.f32 %v5708, %v5707
        %v5710 = vmul.f32 0.5, %v5709
        %v5711 = vsub.f32 1.5, %v5710
        %v5712 = vmul.f32 %v5707, %v5711
        %vm5713 = vweird.f32 %v5610
        %vm5714 = vweird.f32 %v5707
        %vm5715 = vmor %vm5713, %vm5714
        %v5716 = vsel %vm5715, %v5707, %v5712
        %v5717 = vrsqrt.pop %v5611
        %v5718 = vmul.f32 %v5717, %v5611
        %v5719 = vmul.f32 %v5718, %v5717
        %v5720 = vmul.f32 0.5, %v5719
        %v5721 = vsub.f32 1.5, %v5720
        %v5722 = vmul.f32 %v5717, %v5721
        %vm5723 = vweird.f32 %v5611
        %vm5724 = vweird.f32 %v5717
        %vm5725 = vmor %vm5723, %vm5724
        %v5726 = vsel %vm5725, %v5717, %v5722
        %v5727 = vrsqrt.pop %v5612
        %v5728 = vmul.f32 %v5727, %v5612
        %v5729 = vmul.f32 %v5728, %v5727
        %v5730 = vmul.f32 0.5, %v5729
        %v5731 = vsub.f32 1.5, %v5730
        %v5732 = vmul.f32 %v5727, %v5731
        %vm5733 = vweird.f32 %v5612
        %vm5734 = vweird.f32 %v5727
        %vm5735 = vmor %vm5733, %vm5734
        %v5736 = vsel %vm5735, %v5727, %v5732
        %v5737 = vrsqrt.pop %v5613
        %v5738 = vmul.f32 %v5737, %v5613
        %v5739 = vmul.f32 %v5738, %v5737
        %v5740 = vmul.f32 0.5, %v5739
        %v5741 = vsub.f32 1.5, %v5740
        %v5742 = vmul.f32 %v5737, %v5741
        %vm5743 = vweird.f32 %v5613
        %vm5744 = vweird.f32 %v5737
        %vm5745 = vmor %vm5743, %vm5744
        %v5746 = vsel %vm5745, %v5737, %v5742
        %v5747 = vrsqrt.pop %v5614
        %v5748 = vmul.f32 %v5747, %v5614
        %v5749 = vmul.f32 %v5748, %v5747
        %v5750 = vmul.f32 0.5, %v5749
        %v5751 = vsub.f32 1.5, %v5750
        %v5752 = vmul.f32 %v5747, %v5751
        %vm5753 = vweird.f32 %v5614
        %vm5754 = vweird.f32 %v5747
        %vm5755 = vmor %vm5753, %vm5754
        %v5756 = vsel %vm5755, %v5747, %v5752
        %v5757 = vrsqrt.pop %v5615
        %v5758 = vmul.f32 %v5757, %v5615
        %v5759 = vmul.f32 %v5758, %v5757
        %v5760 = vmul.f32 0.5, %v5759
        %v5761 = vsub.f32 1.5, %v5760
        %v5762 = vmul.f32 %v5757, %v5761
        %vm5763 = vweird.f32 %v5615
        %vm5764 = vweird.f32 %v5757
        %vm5765 = vmor %vm5763, %vm5764
        %v5766 = vsel %vm5765, %v5757, %v5762
        %v5767 = vrsqrt.pop %v5616
        %v5768 = vmul.f32 %v5767, %v5616
        %v5769 = vmul.f32 %v5768, %v5767
        %v5770 = vmul.f32 0.5, %v5769
        %v5771 = vsub.f32 1.5, %v5770
        %v5772 = vmul.f32 %v5767, %v5771
        %vm5773 = vweird.f32 %v5616
        %vm5774 = vweird.f32 %v5767
        %vm5775 = vmor %vm5773, %vm5774
        %v5776 = vsel %vm5775, %v5767, %v5772
        %v5777 = vmul.f32 %v5521, %v5626
        %v5778 = vmul.f32 %v5522, %v5636
        %v5779 = vmul.f32 %v5523, %v5646
        %v5780 = vmul.f32 %v5524, %v5656
        %v5781 = vmul.f32 %v5525, %v5666
        %v5782 = vmul.f32 %v5526, %v5676
        %v5783 = vmul.f32 %v5527, %v5686
        %v5784 = vmul.f32 %v5528, %v5696
        %v5785 = vmul.f32 %v5529, %v5706
        %v5786 = vmul.f32 %v5530, %v5716
        %v5787 = vmul.f32 %v5531, %v5726
        %v5788 = vmul.f32 %v5532, %v5736
        %v5789 = vmul.f32 %v5533, %v5746
        %v5790 = vmul.f32 %v5534, %v5756
        %v5791 = vmul.f32 %v5535, %v5766
        %v5792 = vmul.f32 %v5536, %v5776
        %v5794 = vperm.slane %v5471, 0
        %v5796 = vmul.f32 %v5777, %v5794
        %v5797 = vmul.f32 %v5778, %v5794
        %v5798 = vmul.f32 %v5779, %v5794
        %v5799 = vmul.f32 %v5780, %v5794
        %v5800 = vmul.f32 %v5781, %v5794
        %v5801 = vmul.f32 %v5782, %v5794
        %v5802 = vmul.f32 %v5783, %v5794
        %v5803 = vmul.f32 %v5784, %v5794
        %v5804 = vmul.f32 %v5785, %v5794
        %v5805 = vmul.f32 %v5786, %v5794
        %v5806 = vmul.f32 %v5787, %v5794
        %v5807 = vmul.f32 %v5788, %v5794
        %v5808 = vmul.f32 %v5789, %v5794
        %v5809 = vmul.f32 %v5790, %v5794
        %v5810 = vmul.f32 %v5791, %v5794
        %v5811 = vmul.f32 %v5792, %v5794
        %v5813 = vperm.slane %v5472, 0
        %v5815 = vadd.f32 %v5796, %v5813
        %v5816 = vadd.f32 %v5797, %v5813
        %v5817 = vadd.f32 %v5798, %v5813
        %v5818 = vadd.f32 %v5799, %v5813
        %v5819 = vadd.f32 %v5800, %v5813
        %v5820 = vadd.f32 %v5801, %v5813
        %v5821 = vadd.f32 %v5802, %v5813
        %v5822 = vadd.f32 %v5803, %v5813
        %v5823 = vadd.f32 %v5804, %v5813
        %v5824 = vadd.f32 %v5805, %v5813
        %v5825 = vadd.f32 %v5806, %v5813
        %v5826 = vadd.f32 %v5807, %v5813
        %v5827 = vadd.f32 %v5808, %v5813
        %v5828 = vadd.f32 %v5809, %v5813
        %v5829 = vadd.f32 %v5810, %v5813
        %v5830 = vadd.f32 %v5811, %v5813
        %v5831 = vpack.c.bf16 %v5816, %v5815
        %v5832 = vpack.c.bf16 %v5818, %v5817
        %v5833 = vpack.c.bf16 %v5820, %v5819
        %v5834 = vpack.c.bf16 %v5822, %v5821
        %v5835 = vpack.c.bf16 %v5824, %v5823
        %v5836 = vpack.c.bf16 %v5826, %v5825
        %v5837 = vpack.c.bf16 %v5828, %v5827
        %v5838 = vpack.c.bf16 %v5830, %v5829
        %s5839 = scalar_lea.vmem [#allocation2], 192
        %v5840 = vld [vmem:[%s5839] sm:$0xff]
        %v5841 = vld [vmem:[%s5839 + $0x8] sm:$0xf]
        %v5842 = vld [vmem:[%s5839 + $0xc] sm:$0xff]
        %v5843 = vld [vmem:[%s5839 + $0x14] sm:$0xf]
        %v5844 = vld [vmem:[%s5839 + $0x18] sm:$0xff]
        %v5845 = vld [vmem:[%s5839 + $0x20] sm:$0xf]
        %v5846 = vld [vmem:[%s5839 + $0x24] sm:$0xff]
        %v5847 = vld [vmem:[%s5839 + $0x2c] sm:$0xf]
        %v5848 = vld [vmem:[%s5839 + $0x30] sm:$0xff]
        %v5849 = vld [vmem:[%s5839 + $0x38] sm:$0xf]
        %v5850 = vld [vmem:[%s5839 + $0x3c] sm:$0xff]
        %v5851 = vld [vmem:[%s5839 + $0x44] sm:$0xf]
        %v5852 = vld [vmem:[%s5839 + $0x48] sm:$0xff]
        %v5853 = vld [vmem:[%s5839 + $0x50] sm:$0xf]
        %v5854 = vld [vmem:[%s5839 + $0x54] sm:$0xff]
        %v5855 = vld [vmem:[%s5839 + $0x5c] sm:$0xf]
        %v5856 = vld [vmem:[%s5839 + $0x60] sm:$0xff]
        %v5857 = vld [vmem:[%s5839 + $0x68] sm:$0xf]
        %v5858 = vld [vmem:[%s5839 + $0x6c] sm:$0xff]
        %v5859 = vld [vmem:[%s5839 + $0x74] sm:$0xf]
        %v5860 = vld [vmem:[%s5839 + $0x78] sm:$0xff]
        %v5861 = vld [vmem:[%s5839 + $0x80] sm:$0xf]
        %v5862 = vld [vmem:[%s5839 + $0x84] sm:$0xff]
        %v5863 = vld [vmem:[%s5839 + $0x8c] sm:$0xf]
        %v5864 = vld [vmem:[%s5839 + $0x90] sm:$0xff]
        %v5865 = vld [vmem:[%s5839 + $0x98] sm:$0xf]
        %v5866 = vld [vmem:[%s5839 + $0x9c] sm:$0xff]
        %v5867 = vld [vmem:[%s5839 + $0xa4] sm:$0xf]
        %v5868 = vld [vmem:[%s5839 + $0xa8] sm:$0xff]
        %v5869 = vld [vmem:[%s5839 + $0xb0] sm:$0xf]
        %v5870 = vld [vmem:[%s5839 + $0xb4] sm:$0xff]
        %v5871 = vld [vmem:[%s5839 + $0xbc] sm:$0xf]
        %s5872 = scalar_lea.vmem %s4, 3
        %v5873 = vld [vmem:[%s5872] sm:$0x7]
        %v5875 = vperm.slane %v5873, 0
        %v5876 = vperm.slane %v5873, 1
        %v5877 = vperm.slane %v5873, 2
        %v5913 = vunpack.c.l.b16 %v5840
        %v5914 = vunpack.c.h.b16 %v5840
        %v5915 = vunpack.c.l.b16 %v5841
        %v5916 = vunpack.c.l.b16 %v5842
        %v5917 = vunpack.c.h.b16 %v5842
        %v5918 = vunpack.c.l.b16 %v5843
        %v5919 = vunpack.c.l.b16 %v5844
        %v5920 = vunpack.c.h.b16 %v5844
        %v5921 = vunpack.c.l.b16 %v5845
        %v5922 = vunpack.c.l.b16 %v5846
        %v5923 = vunpack.c.h.b16 %v5846
        %v5924 = vunpack.c.l.b16 %v5847
        %v5925 = vunpack.c.l.b16 %v5848
        %v5926 = vunpack.c.h.b16 %v5848
        %v5927 = vunpack.c.l.b16 %v5849
        %v5928 = vunpack.c.l.b16 %v5850
        %v5929 = vunpack.c.h.b16 %v5850
        %v5930 = vunpack.c.l.b16 %v5851
        %v5931 = vunpack.c.l.b16 %v5852
        %v5932 = vunpack.c.h.b16 %v5852
        %v5933 = vunpack.c.l.b16 %v5853
        %v5934 = vunpack.c.l.b16 %v5854
        %v5935 = vunpack.c.h.b16 %v5854
        %v5936 = vunpack.c.l.b16 %v5855
        %v5937 = vunpack.c.l.b16 %v5856
        %v5938 = vunpack.c.h.b16 %v5856
        %v5939 = vunpack.c.l.b16 %v5857
        %v5940 = vunpack.c.l.b16 %v5858
        %v5941 = vunpack.c.h.b16 %v5858
        %v5942 = vunpack.c.l.b16 %v5859
        %v5943 = vunpack.c.l.b16 %v5860
        %v5944 = vunpack.c.h.b16 %v5860
        %v5945 = vunpack.c.l.b16 %v5861
        %v5946 = vunpack.c.l.b16 %v5862
        %v5947 = vunpack.c.h.b16 %v5862
        %v5948 = vunpack.c.l.b16 %v5863
        %v5949 = vunpack.c.l.b16 %v5864
        %v5950 = vunpack.c.h.b16 %v5864
        %v5951 = vunpack.c.l.b16 %v5865
        %v5952 = vunpack.c.l.b16 %v5866
        %v5953 = vunpack.c.h.b16 %v5866
        %v5954 = vunpack.c.l.b16 %v5867
        %v5955 = vunpack.c.l.b16 %v5868
        %v5956 = vunpack.c.h.b16 %v5868
        %v5957 = vunpack.c.l.b16 %v5869
        %v5958 = vunpack.c.l.b16 %v5870
        %v5959 = vunpack.c.h.b16 %v5870
        %v5960 = vunpack.c.l.b16 %v5871
        %v5961 = vpack.c.b16 %v5916, %v5913
        %v5962 = vpack.c.b16 %v5917, %v5914
        %v5963 = vpack.c.b16 %v5918, %v5915
        %v5964 = vpack.c.b16 %v5922, %v5919
        %v5965 = vpack.c.b16 %v5923, %v5920
        %v5966 = vpack.c.b16 %v5924, %v5921
        %v5967 = vpack.c.b16 %v5928, %v5925
        %v5968 = vpack.c.b16 %v5929, %v5926
        %v5969 = vpack.c.b16 %v5930, %v5927
        %v5970 = vpack.c.b16 %v5934, %v5931
        %v5971 = vpack.c.b16 %v5935, %v5932
        %v5972 = vpack.c.b16 %v5936, %v5933
        %v5973 = vpack.c.b16 %v5940, %v5937
        %v5974 = vpack.c.b16 %v5941, %v5938
        %v5975 = vpack.c.b16 %v5942, %v5939
        %v5976 = vpack.c.b16 %v5946, %v5943
        %v5977 = vpack.c.b16 %v5947, %v5944
        %v5978 = vpack.c.b16 %v5948, %v5945
        %v5979 = vpack.c.b16 %v5952, %v5949
        %v5980 = vpack.c.b16 %v5953, %v5950
        %v5981 = vpack.c.b16 %v5954, %v5951
        %v5982 = vpack.c.b16 %v5958, %v5955
        %v5983 = vpack.c.b16 %v5959, %v5956
        %v5984 = vpack.c.b16 %v5960, %v5957
        %6009 = vmatpush.bf16.msra.mxu0 %v5982
        %6010 = vmatpush.bf16.msra.mxu0 %v5979
        %6011 = vmatpush.bf16.msra.mxu0 %v5976
        %6012 = vmatpush.bf16.msra.mxu0 %v5973
        %6013 = vmatpush.bf16.msra.mxu0 %v5970
        %6014 = vmatpush.bf16.msra.mxu0 %v5967
        %6015 = vmatpush.bf16.msra.mxu0 %v5964
        %6016 = vmatpush.bf16.msra.mxu0 %v5961
        %6017 = vmatmul.bf16.gmra.mxu0 %v5831
        %v6018 = vpop.f32.mrf.mxu0
        %v6019 = vadd.f32 %v5875, %v6018
        %v6020 = vpop.f32.mrf.mxu0
        %v6021 = vadd.f32 %v5875, %v6020
        %6022 = vmatmul.bf16.gmra.mxu0 %v5832
        %v6023 = vpop.f32.mrf.mxu0
        %v6024 = vadd.f32 %v5875, %v6023
        %v6025 = vpop.f32.mrf.mxu0
        %v6026 = vadd.f32 %v5875, %v6025
        %6027 = vmatmul.bf16.gmra.mxu0 %v5833
        %v6028 = vpop.f32.mrf.mxu0
        %v6029 = vadd.f32 %v5875, %v6028
        %v6030 = vpop.f32.mrf.mxu0
        %v6031 = vadd.f32 %v5875, %v6030
        %6032 = vmatmul.bf16.gmra.mxu0 %v5834
        %v6033 = vpop.f32.mrf.mxu0
        %v6034 = vadd.f32 %v5875, %v6033
        %v6035 = vpop.f32.mrf.mxu0
        %v6036 = vadd.f32 %v5875, %v6035
        %6037 = vmatmul.bf16.gmra.mxu0 %v5835
        %v6038 = vpop.f32.mrf.mxu0
        %v6039 = vadd.f32 %v5875, %v6038
        %v6040 = vpop.f32.mrf.mxu0
        %v6041 = vadd.f32 %v5875, %v6040
        %6042 = vmatmul.bf16.gmra.mxu0 %v5836
        %v6043 = vpop.f32.mrf.mxu0
        %v6044 = vadd.f32 %v5875, %v6043
        %v6045 = vpop.f32.mrf.mxu0
        %v6046 = vadd.f32 %v5875, %v6045
        %6047 = vmatmul.bf16.gmra.mxu0 %v5837
        %v6048 = vpop.f32.mrf.mxu0
        %v6049 = vadd.f32 %v5875, %v6048
        %v6050 = vpop.f32.mrf.mxu0
        %v6051 = vadd.f32 %v5875, %v6050
        %6052 = vmatmul.bf16.gmra.mxu0 %v5838
        %v6053 = vpop.f32.mrf.mxu0
        %v6054 = vadd.f32 %v5875, %v6053
        %v6055 = vpop.f32.mrf.mxu0
        %v6056 = vadd.f32 %v5875, %v6055
        %6057 = vdwg.mxu0
        %6058 = vmatpush.bf16.msra.mxu0 %v5983
        %6059 = vmatpush.bf16.msra.mxu0 %v5980
        %6060 = vmatpush.bf16.msra.mxu0 %v5977
        %6061 = vmatpush.bf16.msra.mxu0 %v5974
        %6062 = vmatpush.bf16.msra.mxu0 %v5971
        %6063 = vmatpush.bf16.msra.mxu0 %v5968
        %6064 = vmatpush.bf16.msra.mxu0 %v5965
        %6065 = vmatpush.bf16.msra.mxu0 %v5962
        %6066 = vmatmul.bf16.gmra.mxu0 %v5831
        %v6067 = vpop.f32.mrf.mxu0
        %v6068 = vadd.f32 %v5876, %v6067
        %v6069 = vpop.f32.mrf.mxu0
        %v6070 = vadd.f32 %v5876, %v6069
        %6071 = vmatmul.bf16.gmra.mxu0 %v5832
        %v6072 = vpop.f32.mrf.mxu0
        %v6073 = vadd.f32 %v5876, %v6072
        %v6074 = vpop.f32.mrf.mxu0
        %v6075 = vadd.f32 %v5876, %v6074
        %6076 = vmatmul.bf16.gmra.mxu0 %v5833
        %v6077 = vpop.f32.mrf.mxu0
        %v6078 = vadd.f32 %v5876, %v6077
        %v6079 = vpop.f32.mrf.mxu0
        %v6080 = vadd.f32 %v5876, %v6079
        %6081 = vmatmul.bf16.gmra.mxu0 %v5834
        %v6082 = vpop.f32.mrf.mxu0
        %v6083 = vadd.f32 %v5876, %v6082
        %v6084 = vpop.f32.mrf.mxu0
        %v6085 = vadd.f32 %v5876, %v6084
        %6086 = vmatmul.bf16.gmra.mxu0 %v5835
        %v6087 = vpop.f32.mrf.mxu0
        %v6088 = vadd.f32 %v5876, %v6087
        %v6089 = vpop.f32.mrf.mxu0
        %v6090 = vadd.f32 %v5876, %v6089
        %6091 = vmatmul.bf16.gmra.mxu0 %v5836
        %v6092 = vpop.f32.mrf.mxu0
        %v6093 = vadd.f32 %v5876, %v6092
        %v6094 = vpop.f32.mrf.mxu0
        %v6095 = vadd.f32 %v5876, %v6094
        %6096 = vmatmul.bf16.gmra.mxu0 %v5837
        %v6097 = vpop.f32.mrf.mxu0
        %v6098 = vadd.f32 %v5876, %v6097
        %v6099 = vpop.f32.mrf.mxu0
        %v6100 = vadd.f32 %v5876, %v6099
        %6101 = vmatmul.bf16.gmra.mxu0 %v5838
        %v6102 = vpop.f32.mrf.mxu0
        %v6103 = vadd.f32 %v5876, %v6102
        %v6104 = vpop.f32.mrf.mxu0
        %v6105 = vadd.f32 %v5876, %v6104
        %6106 = vdwg.mxu0
        %6107 = vmatpush.bf16.msra.mxu0 %v5984
        %6108 = vmatpush.bf16.msra.mxu0 %v5981
        %6109 = vmatpush.bf16.msra.mxu0 %v5978
        %6110 = vmatpush.bf16.msra.mxu0 %v5975
        %6111 = vmatpush.bf16.msra.mxu0 %v5972
        %6112 = vmatpush.bf16.msra.mxu0 %v5969
        %6113 = vmatpush.bf16.msra.mxu0 %v5966
        %6114 = vmatpush.bf16.msra.mxu0 %v5963
        %6115 = vmatmul.bf16.gmra.mxu0 %v5831
        %v6116 = vpop.f32.mrf.mxu0
        %v6117 = vadd.f32 %v5877, %v6116
        %v6118 = vpop.f32.mrf.mxu0
        %v6119 = vadd.f32 %v5877, %v6118
        %6120 = vmatmul.bf16.gmra.mxu0 %v5832
        %v6121 = vpop.f32.mrf.mxu0
        %v6122 = vadd.f32 %v5877, %v6121
        %v6123 = vpop.f32.mrf.mxu0
        %v6124 = vadd.f32 %v5877, %v6123
        %6125 = vmatmul.bf16.gmra.mxu0 %v5833
        %v6126 = vpop.f32.mrf.mxu0
        %v6127 = vadd.f32 %v5877, %v6126
        %v6128 = vpop.f32.mrf.mxu0
        %v6129 = vadd.f32 %v5877, %v6128
        %6130 = vmatmul.bf16.gmra.mxu0 %v5834
        %v6131 = vpop.f32.mrf.mxu0
        %v6132 = vadd.f32 %v5877, %v6131
        %v6133 = vpop.f32.mrf.mxu0
        %v6134 = vadd.f32 %v5877, %v6133
        %6135 = vmatmul.bf16.gmra.mxu0 %v5835
        %v6136 = vpop.f32.mrf.mxu0
        %v6137 = vadd.f32 %v5877, %v6136
        %v6138 = vpop.f32.mrf.mxu0
        %v6139 = vadd.f32 %v5877, %v6138
        %6140 = vmatmul.bf16.gmra.mxu0 %v5836
        %v6141 = vpop.f32.mrf.mxu0
        %v6142 = vadd.f32 %v5877, %v6141
        %v6143 = vpop.f32.mrf.mxu0
        %v6144 = vadd.f32 %v5877, %v6143
        %6145 = vmatmul.bf16.gmra.mxu0 %v5837
        %v6146 = vpop.f32.mrf.mxu0
        %v6147 = vadd.f32 %v5877, %v6146
        %v6148 = vpop.f32.mrf.mxu0
        %v6149 = vadd.f32 %v5877, %v6148
        %6150 = vmatmul.bf16.gmra.mxu0 %v5838
        %v6151 = vpop.f32.mrf.mxu0
        %v6152 = vadd.f32 %v5877, %v6151
        %v6153 = vpop.f32.mrf.mxu0
        %v6154 = vadd.f32 %v5877, %v6153
        %6155 = vdwg.mxu0
        %v6156 = vmul.f32 %v6019, 0.17677669
        %v6157 = vmul.f32 %v6021, 0.17677669
        %v6158 = vmul.f32 %v6024, 0.17677669
        %v6159 = vmul.f32 %v6026, 0.17677669
        %v6160 = vmul.f32 %v6029, 0.17677669
        %v6161 = vmul.f32 %v6031, 0.17677669
        %v6162 = vmul.f32 %v6034, 0.17677669
        %v6163 = vmul.f32 %v6036, 0.17677669
        %v6164 = vmul.f32 %v6039, 0.17677669
        %v6165 = vmul.f32 %v6041, 0.17677669
        %v6166 = vmul.f32 %v6044, 0.17677669
        %v6167 = vmul.f32 %v6046, 0.17677669
        %v6168 = vmul.f32 %v6049, 0.17677669
        %v6169 = vmul.f32 %v6051, 0.17677669
        %v6170 = vmul.f32 %v6054, 0.17677669
        %v6171 = vmul.f32 %v6056, 0.17677669
        %v6172 = vpack.c.bf16 %v6156, %v6156
        %v6173 = vpack.c.bf16 %v6157, %v6157
        %v6174 = vpack.c.bf16 %v6158, %v6158
        %v6175 = vpack.c.bf16 %v6159, %v6159
        %v6176 = vpack.c.bf16 %v6160, %v6160
        %v6177 = vpack.c.bf16 %v6161, %v6161
        %v6178 = vpack.c.bf16 %v6162, %v6162
        %v6179 = vpack.c.bf16 %v6163, %v6163
        %v6180 = vpack.c.bf16 %v6164, %v6164
        %v6181 = vpack.c.bf16 %v6165, %v6165
        %v6182 = vpack.c.bf16 %v6166, %v6166
        %v6183 = vpack.c.bf16 %v6167, %v6167
        %v6184 = vpack.c.bf16 %v6168, %v6168
        %v6185 = vpack.c.bf16 %v6169, %v6169
        %v6186 = vpack.c.bf16 %v6170, %v6170
        %v6187 = vpack.c.bf16 %v6171, %v6171
        %v6188 = vpack.c.bf16 %v6068, %v6068
        %v6189 = vpack.c.bf16 %v6070, %v6070
        %v6190 = vpack.c.bf16 %v6073, %v6073
        %v6191 = vpack.c.bf16 %v6075, %v6075
        %v6192 = vpack.c.bf16 %v6078, %v6078
        %v6193 = vpack.c.bf16 %v6080, %v6080
        %v6194 = vpack.c.bf16 %v6083, %v6083
        %v6195 = vpack.c.bf16 %v6085, %v6085
        %v6196 = vpack.c.bf16 %v6088, %v6088
        %v6197 = vpack.c.bf16 %v6090, %v6090
        %v6198 = vpack.c.bf16 %v6093, %v6093
        %v6199 = vpack.c.bf16 %v6095, %v6095
        %v6200 = vpack.c.bf16 %v6098, %v6098
        %v6201 = vpack.c.bf16 %v6100, %v6100
        %v6202 = vpack.c.bf16 %v6103, %v6103
        %v6203 = vpack.c.bf16 %v6105, %v6105
        %v6204 = vpack.c.bf16 %v6117, %v6117
        %v6205 = vpack.c.bf16 %v6119, %v6119
        %v6206 = vpack.c.bf16 %v6122, %v6122
        %v6207 = vpack.c.bf16 %v6124, %v6124
        %v6208 = vpack.c.bf16 %v6127, %v6127
        %v6209 = vpack.c.bf16 %v6129, %v6129
        %v6210 = vpack.c.bf16 %v6132, %v6132
        %v6211 = vpack.c.bf16 %v6134, %v6134
        %v6212 = vpack.c.bf16 %v6137, %v6137
        %v6213 = vpack.c.bf16 %v6139, %v6139
        %v6214 = vpack.c.bf16 %v6142, %v6142
        %v6215 = vpack.c.bf16 %v6144, %v6144
        %v6216 = vpack.c.bf16 %v6147, %v6147
        %v6217 = vpack.c.bf16 %v6149, %v6149
        %v6218 = vpack.c.bf16 %v6152, %v6152
        %v6219 = vpack.c.bf16 %v6154, %v6154
        %v6220 = vunpack.c.l.bf16 %v6188
        %v6221 = vunpack.c.l.bf16 %v6189
        %v6222 = vunpack.c.l.bf16 %v6190
        %v6223 = vunpack.c.l.bf16 %v6191
        %v6224 = vunpack.c.l.bf16 %v6192
        %v6225 = vunpack.c.l.bf16 %v6193
        %v6226 = vunpack.c.l.bf16 %v6194
        %v6227 = vunpack.c.l.bf16 %v6195
        %v6228 = vunpack.c.l.bf16 %v6196
        %v6229 = vunpack.c.l.bf16 %v6197
        %v6230 = vunpack.c.l.bf16 %v6198
        %v6231 = vunpack.c.l.bf16 %v6199
        %v6232 = vunpack.c.l.bf16 %v6200
        %v6233 = vunpack.c.l.bf16 %v6201
        %v6234 = vunpack.c.l.bf16 %v6202
        %v6235 = vunpack.c.l.bf16 %v6203
        %v6236 = vmul.f32 %v6220, %v1310
        %v6237 = vmul.f32 %v6221, %v1310
        %v6238 = vmul.f32 %v6222, %v1310
        %v6239 = vmul.f32 %v6223, %v1310
        %v6240 = vmul.f32 %v6224, %v1310
        %v6241 = vmul.f32 %v6225, %v1310
        %v6242 = vmul.f32 %v6226, %v1310
        %v6243 = vmul.f32 %v6227, %v1310
        %v6244 = vmul.f32 %v6228, %v1310
        %v6245 = vmul.f32 %v6229, %v1310
        %v6246 = vmul.f32 %v6230, %v1310
        %v6247 = vmul.f32 %v6231, %v1310
        %v6248 = vmul.f32 %v6232, %v1310
        %v6249 = vmul.f32 %v6233, %v1310
        %v6250 = vmul.f32 %v6234, %v1310
        %v6251 = vmul.f32 %v6235, %v1310
        %v6252 = vpack.c.bf16 %v6236, %v6236
        %v6253 = vpack.c.bf16 %v6237, %v6237
        %v6254 = vpack.c.bf16 %v6238, %v6238
        %v6255 = vpack.c.bf16 %v6239, %v6239
        %v6256 = vpack.c.bf16 %v6240, %v6240
        %v6257 = vpack.c.bf16 %v6241, %v6241
        %v6258 = vpack.c.bf16 %v6242, %v6242
        %v6259 = vpack.c.bf16 %v6243, %v6243
        %v6260 = vpack.c.bf16 %v6244, %v6244
        %v6261 = vpack.c.bf16 %v6245, %v6245
        %v6262 = vpack.c.bf16 %v6246, %v6246
        %v6263 = vpack.c.bf16 %v6247, %v6247
        %v6264 = vpack.c.bf16 %v6248, %v6248
        %v6265 = vpack.c.bf16 %v6249, %v6249
        %v6266 = vpack.c.bf16 %v6250, %v6250
        %v6267 = vpack.c.bf16 %v6251, %v6251
        %v6270 = vunpack.c.l.b16 %v6172
        %v6271 = vunpack.c.l.b16 %v6173
        %v6272 = vpack.c.b16 %v6271, %v6270
        %v6276 = vunpack.c.l.b16 %v6252
        %v6277 = vunpack.c.l.b16 %v6253
        %v6278 = vpack.c.b16 %v6277, %v6276
        %6280 = vmatpush.bf16.xpose.msra.mxu0 0
        %6281 = vmatpush.bf16.xpose.msra.mxu0 0
        %6282 = vmatpush.bf16.xpose.msra.mxu0 0
        %6283 = vmatpush.bf16.xpose.msra.mxu0 0
        %6284 = vmatpush.bf16.xpose.msra.mxu0 0
        %6285 = vmatpush.bf16.xpose.msra.mxu0 0
        %6286 = vmatpush.bf16.xpose.msra.mxu0 0
        %6287 = vmatpush.bf16.xpose.msra.mxu0 %v6278
        %6288 = vmatmul.bf16.gmra.mxu0 %v6272
        %v6289 = vpop.f32.mrf.mxu0
        %v6290 = vadd.f32 0.0, %v6289
        %v6291 = vpop.f32.mrf.mxu0
        %v6292 = vadd.f32 0.0, %v6291
        %6293 = vdwg.mxu0
        %v6296 = vunpack.c.l.b16 %v6174
        %v6297 = vunpack.c.l.b16 %v6175
        %v6298 = vpack.c.b16 %v6297, %v6296
        %v6302 = vunpack.c.l.b16 %v6254
        %v6303 = vunpack.c.l.b16 %v6255
        %v6304 = vpack.c.b16 %v6303, %v6302
        %6306 = vmatpush.bf16.xpose.msra.mxu0 0
        %6307 = vmatpush.bf16.xpose.msra.mxu0 0
        %6308 = vmatpush.bf16.xpose.msra.mxu0 0
        %6309 = vmatpush.bf16.xpose.msra.mxu0 0
        %6310 = vmatpush.bf16.xpose.msra.mxu0 0
        %6311 = vmatpush.bf16.xpose.msra.mxu0 0
        %6312 = vmatpush.bf16.xpose.msra.mxu0 0
        %6313 = vmatpush.bf16.xpose.msra.mxu0 %v6304
        %6314 = vmatmul.bf16.gmra.mxu0 %v6298
        %v6315 = vpop.f32.mrf.mxu0
        %v6316 = vadd.f32 0.0, %v6315
        %v6317 = vpop.f32.mrf.mxu0
        %v6318 = vadd.f32 0.0, %v6317
        %6319 = vdwg.mxu0
        %v6322 = vunpack.c.l.b16 %v6176
        %v6323 = vunpack.c.l.b16 %v6177
        %v6324 = vpack.c.b16 %v6323, %v6322
        %v6328 = vunpack.c.l.b16 %v6256
        %v6329 = vunpack.c.l.b16 %v6257
        %v6330 = vpack.c.b16 %v6329, %v6328
        %6332 = vmatpush.bf16.xpose.msra.mxu0 0
        %6333 = vmatpush.bf16.xpose.msra.mxu0 0
        %6334 = vmatpush.bf16.xpose.msra.mxu0 0
        %6335 = vmatpush.bf16.xpose.msra.mxu0 0
        %6336 = vmatpush.bf16.xpose.msra.mxu0 0
        %6337 = vmatpush.bf16.xpose.msra.mxu0 0
        %6338 = vmatpush.bf16.xpose.msra.mxu0 0
        %6339 = vmatpush.bf16.xpose.msra.mxu0 %v6330
        %6340 = vmatmul.bf16.gmra.mxu0 %v6324
        %v6341 = vpop.f32.mrf.mxu0
        %v6342 = vadd.f32 0.0, %v6341
        %v6343 = vpop.f32.mrf.mxu0
        %v6344 = vadd.f32 0.0, %v6343
        %6345 = vdwg.mxu0
        %v6348 = vunpack.c.l.b16 %v6178
        %v6349 = vunpack.c.l.b16 %v6179
        %v6350 = vpack.c.b16 %v6349, %v6348
        %v6354 = vunpack.c.l.b16 %v6258
        %v6355 = vunpack.c.l.b16 %v6259
        %v6356 = vpack.c.b16 %v6355, %v6354
        %6358 = vmatpush.bf16.xpose.msra.mxu0 0
        %6359 = vmatpush.bf16.xpose.msra.mxu0 0
        %6360 = vmatpush.bf16.xpose.msra.mxu0 0
        %6361 = vmatpush.bf16.xpose.msra.mxu0 0
        %6362 = vmatpush.bf16.xpose.msra.mxu0 0
        %6363 = vmatpush.bf16.xpose.msra.mxu0 0
        %6364 = vmatpush.bf16.xpose.msra.mxu0 0
        %6365 = vmatpush.bf16.xpose.msra.mxu0 %v6356
        %6366 = vmatmul.bf16.gmra.mxu0 %v6350
        %v6367 = vpop.f32.mrf.mxu0
        %v6368 = vadd.f32 0.0, %v6367
        %v6369 = vpop.f32.mrf.mxu0
        %v6370 = vadd.f32 0.0, %v6369
        %6371 = vdwg.mxu0
        %v6374 = vunpack.c.l.b16 %v6180
        %v6375 = vunpack.c.l.b16 %v6181
        %v6376 = vpack.c.b16 %v6375, %v6374
        %v6380 = vunpack.c.l.b16 %v6260
        %v6381 = vunpack.c.l.b16 %v6261
        %v6382 = vpack.c.b16 %v6381, %v6380
        %6384 = vmatpush.bf16.xpose.msra.mxu0 0
        %6385 = vmatpush.bf16.xpose.msra.mxu0 0
        %6386 = vmatpush.bf16.xpose.msra.mxu0 0
        %6387 = vmatpush.bf16.xpose.msra.mxu0 0
        %6388 = vmatpush.bf16.xpose.msra.mxu0 0
        %6389 = vmatpush.bf16.xpose.msra.mxu0 0
        %6390 = vmatpush.bf16.xpose.msra.mxu0 0
        %6391 = vmatpush.bf16.xpose.msra.mxu0 %v6382
        %6392 = vmatmul.bf16.gmra.mxu0 %v6376
        %v6393 = vpop.f32.mrf.mxu0
        %v6394 = vadd.f32 0.0, %v6393
        %v6395 = vpop.f32.mrf.mxu0
        %v6396 = vadd.f32 0.0, %v6395
        %6397 = vdwg.mxu0
        %v6400 = vunpack.c.l.b16 %v6182
        %v6401 = vunpack.c.l.b16 %v6183
        %v6402 = vpack.c.b16 %v6401, %v6400
        %v6406 = vunpack.c.l.b16 %v6262
        %v6407 = vunpack.c.l.b16 %v6263
        %v6408 = vpack.c.b16 %v6407, %v6406
        %6410 = vmatpush.bf16.xpose.msra.mxu0 0
        %6411 = vmatpush.bf16.xpose.msra.mxu0 0
        %6412 = vmatpush.bf16.xpose.msra.mxu0 0
        %6413 = vmatpush.bf16.xpose.msra.mxu0 0
        %6414 = vmatpush.bf16.xpose.msra.mxu0 0
        %6415 = vmatpush.bf16.xpose.msra.mxu0 0
        %6416 = vmatpush.bf16.xpose.msra.mxu0 0
        %6417 = vmatpush.bf16.xpose.msra.mxu0 %v6408
        %6418 = vmatmul.bf16.gmra.mxu0 %v6402
        %v6419 = vpop.f32.mrf.mxu0
        %v6420 = vadd.f32 0.0, %v6419
        %v6421 = vpop.f32.mrf.mxu0
        %v6422 = vadd.f32 0.0, %v6421
        %6423 = vdwg.mxu0
        %v6426 = vunpack.c.l.b16 %v6184
        %v6427 = vunpack.c.l.b16 %v6185
        %v6428 = vpack.c.b16 %v6427, %v6426
        %v6432 = vunpack.c.l.b16 %v6264
        %v6433 = vunpack.c.l.b16 %v6265
        %v6434 = vpack.c.b16 %v6433, %v6432
        %6436 = vmatpush.bf16.xpose.msra.mxu0 0
        %6437 = vmatpush.bf16.xpose.msra.mxu0 0
        %6438 = vmatpush.bf16.xpose.msra.mxu0 0
        %6439 = vmatpush.bf16.xpose.msra.mxu0 0
        %6440 = vmatpush.bf16.xpose.msra.mxu0 0
        %6441 = vmatpush.bf16.xpose.msra.mxu0 0
        %6442 = vmatpush.bf16.xpose.msra.mxu0 0
        %6443 = vmatpush.bf16.xpose.msra.mxu0 %v6434
        %6444 = vmatmul.bf16.gmra.mxu0 %v6428
        %v6445 = vpop.f32.mrf.mxu0
        %v6446 = vadd.f32 0.0, %v6445
        %v6447 = vpop.f32.mrf.mxu0
        %v6448 = vadd.f32 0.0, %v6447
        %6449 = vdwg.mxu0
        %v6452 = vunpack.c.l.b16 %v6186
        %v6453 = vunpack.c.l.b16 %v6187
        %v6454 = vpack.c.b16 %v6453, %v6452
        %v6458 = vunpack.c.l.b16 %v6266
        %v6459 = vunpack.c.l.b16 %v6267
        %v6460 = vpack.c.b16 %v6459, %v6458
        %6462 = vmatpush.bf16.xpose.msra.mxu0 0
        %6463 = vmatpush.bf16.xpose.msra.mxu0 0
        %6464 = vmatpush.bf16.xpose.msra.mxu0 0
        %6465 = vmatpush.bf16.xpose.msra.mxu0 0
        %6466 = vmatpush.bf16.xpose.msra.mxu0 0
        %6467 = vmatpush.bf16.xpose.msra.mxu0 0
        %6468 = vmatpush.bf16.xpose.msra.mxu0 0
        %6469 = vmatpush.bf16.xpose.msra.mxu0 %v6460
        %6470 = vmatmul.bf16.gmra.mxu0 %v6454
        %v6471 = vpop.f32.mrf.mxu0
        %v6472 = vadd.f32 0.0, %v6471
        %v6473 = vpop.f32.mrf.mxu0
        %v6474 = vadd.f32 0.0, %v6473
        %6475 = vdwg.mxu0
        %v6476 = vsel %vm1551, %v6290, -inf
        %6477 = vmax.xlane.f32.xlu0 %v6476
        %v6478 = vpop.xlane.xlu0 %6477
        %v6479 = vsel %vm1551, %v6292, -inf
        %6480 = vmax.xlane.f32.xlu0 %v6479
        %v6481 = vpop.xlane.xlu0 %6480
        %v6482 = vsel %vm1551, %v6316, -inf
        %6483 = vmax.xlane.f32.xlu0 %v6482
        %v6484 = vpop.xlane.xlu0 %6483
        %v6485 = vsel %vm1551, %v6318, -inf
        %6486 = vmax.xlane.f32.xlu0 %v6485
        %v6487 = vpop.xlane.xlu0 %6486
        %v6488 = vsel %vm1551, %v6342, -inf
        %6489 = vmax.xlane.f32.xlu0 %v6488
        %v6490 = vpop.xlane.xlu0 %6489
        %v6491 = vsel %vm1551, %v6344, -inf
        %6492 = vmax.xlane.f32.xlu0 %v6491
        %v6493 = vpop.xlane.xlu0 %6492
        %v6494 = vsel %vm1551, %v6368, -inf
        %6495 = vmax.xlane.f32.xlu0 %v6494
        %v6496 = vpop.xlane.xlu0 %6495
        %v6497 = vsel %vm1551, %v6370, -inf
        %6498 = vmax.xlane.f32.xlu0 %v6497
        %v6499 = vpop.xlane.xlu0 %6498
        %v6500 = vsel %vm1551, %v6394, -inf
        %6501 = vmax.xlane.f32.xlu0 %v6500
        %v6502 = vpop.xlane.xlu0 %6501
        %v6503 = vsel %vm1551, %v6396, -inf
        %6504 = vmax.xlane.f32.xlu0 %v6503
        %v6505 = vpop.xlane.xlu0 %6504
        %v6506 = vsel %vm1551, %v6420, -inf
        %6507 = vmax.xlane.f32.xlu0 %v6506
        %v6508 = vpop.xlane.xlu0 %6507
        %v6509 = vsel %vm1551, %v6422, -inf
        %6510 = vmax.xlane.f32.xlu0 %v6509
        %v6511 = vpop.xlane.xlu0 %6510
        %v6512 = vsel %vm1551, %v6446, -inf
        %6513 = vmax.xlane.f32.xlu0 %v6512
        %v6514 = vpop.xlane.xlu0 %6513
        %v6515 = vsel %vm1551, %v6448, -inf
        %6516 = vmax.xlane.f32.xlu0 %v6515
        %v6517 = vpop.xlane.xlu0 %6516
        %v6518 = vsel %vm1551, %v6472, -inf
        %6519 = vmax.xlane.f32.xlu0 %v6518
        %v6520 = vpop.xlane.xlu0 %6519
        %v6521 = vsel %vm1551, %v6474, -inf
        %6522 = vmax.xlane.f32.xlu0 %v6521
        %v6523 = vpop.xlane.xlu0 %6522
        %v6524 = vsub.f32 %v6290, %v6478
        %v6525 = vsub.f32 %v6292, %v6481
        %v6526 = vsub.f32 %v6316, %v6484
        %v6527 = vsub.f32 %v6318, %v6487
        %v6528 = vsub.f32 %v6342, %v6490
        %v6529 = vsub.f32 %v6344, %v6493
        %v6530 = vsub.f32 %v6368, %v6496
        %v6531 = vsub.f32 %v6370, %v6499
        %v6532 = vsub.f32 %v6394, %v6502
        %v6533 = vsub.f32 %v6396, %v6505
        %v6534 = vsub.f32 %v6420, %v6508
        %v6535 = vsub.f32 %v6422, %v6511
        %v6536 = vsub.f32 %v6446, %v6514
        %v6537 = vsub.f32 %v6448, %v6517
        %v6538 = vsub.f32 %v6472, %v6520
        %v6539 = vsub.f32 %v6474, %v6523
        %v6540 = vmul.f32 %v6524, 1.442695
        %v6541 = vpow.pop %v6540
        %v6542 = vmul.f32 %v6525, 1.442695
        %v6543 = vpow.pop %v6542
        %v6544 = vmul.f32 %v6526, 1.442695
        %v6545 = vpow.pop %v6544
        %v6546 = vmul.f32 %v6527, 1.442695
        %v6547 = vpow.pop %v6546
        %v6548 = vmul.f32 %v6528, 1.442695
        %v6549 = vpow.pop %v6548
        %v6550 = vmul.f32 %v6529, 1.442695
        %v6551 = vpow.pop %v6550
        %v6552 = vmul.f32 %v6530, 1.442695
        %v6553 = vpow.pop %v6552
        %v6554 = vmul.f32 %v6531, 1.442695
        %v6555 = vpow.pop %v6554
        %v6556 = vmul.f32 %v6532, 1.442695
        %v6557 = vpow.pop %v6556
        %v6558 = vmul.f32 %v6533, 1.442695
        %v6559 = vpow.pop %v6558
        %v6560 = vmul.f32 %v6534, 1.442695
        %v6561 = vpow.pop %v6560
        %v6562 = vmul.f32 %v6535, 1.442695
        %v6563 = vpow.pop %v6562
        %v6564 = vmul.f32 %v6536, 1.442695
        %v6565 = vpow.pop %v6564
        %v6566 = vmul.f32 %v6537, 1.442695
        %v6567 = vpow.pop %v6566
        %v6568 = vmul.f32 %v6538, 1.442695
        %v6569 = vpow.pop %v6568
        %v6570 = vmul.f32 %v6539, 1.442695
        %v6571 = vpow.pop %v6570
        %v6572 = vsel %vm1551, %v6541, 0.0
        %6573 = vadd.xlane.f32.xlu0 %v6572
        %v6574 = vpop.xlane.xlu0 %6573
        %v6575 = vsel %vm1551, %v6543, 0.0
        %6576 = vadd.xlane.f32.xlu0 %v6575
        %v6577 = vpop.xlane.xlu0 %6576
        %v6578 = vsel %vm1551, %v6545, 0.0
        %6579 = vadd.xlane.f32.xlu0 %v6578
        %v6580 = vpop.xlane.xlu0 %6579
        %v6581 = vsel %vm1551, %v6547, 0.0
        %6582 = vadd.xlane.f32.xlu0 %v6581
        %v6583 = vpop.xlane.xlu0 %6582
        %v6584 = vsel %vm1551, %v6549, 0.0
        %6585 = vadd.xlane.f32.xlu0 %v6584
        %v6586 = vpop.xlane.xlu0 %6585
        %v6587 = vsel %vm1551, %v6551, 0.0
        %6588 = vadd.xlane.f32.xlu0 %v6587
        %v6589 = vpop.xlane.xlu0 %6588
        %v6590 = vsel %vm1551, %v6553, 0.0
        %6591 = vadd.xlane.f32.xlu0 %v6590
        %v6592 = vpop.xlane.xlu0 %6591
        %v6593 = vsel %vm1551, %v6555, 0.0
        %6594 = vadd.xlane.f32.xlu0 %v6593
        %v6595 = vpop.xlane.xlu0 %6594
        %v6596 = vsel %vm1551, %v6557, 0.0
        %6597 = vadd.xlane.f32.xlu0 %v6596
        %v6598 = vpop.xlane.xlu0 %6597
        %v6599 = vsel %vm1551, %v6559, 0.0
        %6600 = vadd.xlane.f32.xlu0 %v6599
        %v6601 = vpop.xlane.xlu0 %6600
        %v6602 = vsel %vm1551, %v6561, 0.0
        %6603 = vadd.xlane.f32.xlu0 %v6602
        %v6604 = vpop.xlane.xlu0 %6603
        %v6605 = vsel %vm1551, %v6563, 0.0
        %6606 = vadd.xlane.f32.xlu0 %v6605
        %v6607 = vpop.xlane.xlu0 %6606
        %v6608 = vsel %vm1551, %v6565, 0.0
        %6609 = vadd.xlane.f32.xlu0 %v6608
        %v6610 = vpop.xlane.xlu0 %6609
        %v6611 = vsel %vm1551, %v6567, 0.0
        %6612 = vadd.xlane.f32.xlu0 %v6611
        %v6613 = vpop.xlane.xlu0 %6612
        %v6614 = vsel %vm1551, %v6569, 0.0
        %6615 = vadd.xlane.f32.xlu0 %v6614
        %v6616 = vpop.xlane.xlu0 %6615
        %v6617 = vsel %vm1551, %v6571, 0.0
        %6618 = vadd.xlane.f32.xlu0 %v6617
        %v6619 = vpop.xlane.xlu0 %6618
        %v6620 = vrcp.pop %v6574
        %v6621 = vrcp.pop %v6577
        %v6622 = vrcp.pop %v6580
        %v6623 = vrcp.pop %v6583
        %v6624 = vrcp.pop %v6586
        %v6625 = vrcp.pop %v6589
        %v6626 = vrcp.pop %v6592
        %v6627 = vrcp.pop %v6595
        %v6628 = vrcp.pop %v6598
        %v6629 = vrcp.pop %v6601
        %v6630 = vrcp.pop %v6604
        %v6631 = vrcp.pop %v6607
        %v6632 = vrcp.pop %v6610
        %v6633 = vrcp.pop %v6613
        %v6634 = vrcp.pop %v6616
        %v6635 = vrcp.pop %v6619
        %v6636 = vmul.f32 %v6541, %v6620
        %v6637 = vmul.f32 %v6543, %v6621
        %v6638 = vmul.f32 %v6545, %v6622
        %v6639 = vmul.f32 %v6547, %v6623
        %v6640 = vmul.f32 %v6549, %v6624
        %v6641 = vmul.f32 %v6551, %v6625
        %v6642 = vmul.f32 %v6553, %v6626
        %v6643 = vmul.f32 %v6555, %v6627
        %v6644 = vmul.f32 %v6557, %v6628
        %v6645 = vmul.f32 %v6559, %v6629
        %v6646 = vmul.f32 %v6561, %v6630
        %v6647 = vmul.f32 %v6563, %v6631
        %v6648 = vmul.f32 %v6565, %v6632
        %v6649 = vmul.f32 %v6567, %v6633
        %v6650 = vmul.f32 %v6569, %v6634
        %v6651 = vmul.f32 %v6571, %v6635
        %v6652 = vpack.c.bf16 %v6636, %v6636
        %v6653 = vpack.c.bf16 %v6637, %v6637
        %v6654 = vpack.c.bf16 %v6638, %v6638
        %v6655 = vpack.c.bf16 %v6639, %v6639
        %v6656 = vpack.c.bf16 %v6640, %v6640
        %v6657 = vpack.c.bf16 %v6641, %v6641
        %v6658 = vpack.c.bf16 %v6642, %v6642
        %v6659 = vpack.c.bf16 %v6643, %v6643
        %v6660 = vpack.c.bf16 %v6644, %v6644
        %v6661 = vpack.c.bf16 %v6645, %v6645
        %v6662 = vpack.c.bf16 %v6646, %v6646
        %v6663 = vpack.c.bf16 %v6647, %v6647
        %v6664 = vpack.c.bf16 %v6648, %v6648
        %v6665 = vpack.c.bf16 %v6649, %v6649
        %v6666 = vpack.c.bf16 %v6650, %v6650
        %v6667 = vpack.c.bf16 %v6651, %v6651
        %v6668 = vunpack.c.l.bf16 %v6204
        %v6669 = vunpack.c.l.bf16 %v6205
        %v6670 = vunpack.c.l.bf16 %v6206
        %v6671 = vunpack.c.l.bf16 %v6207
        %v6672 = vunpack.c.l.bf16 %v6208
        %v6673 = vunpack.c.l.bf16 %v6209
        %v6674 = vunpack.c.l.bf16 %v6210
        %v6675 = vunpack.c.l.bf16 %v6211
        %v6676 = vunpack.c.l.bf16 %v6212
        %v6677 = vunpack.c.l.bf16 %v6213
        %v6678 = vunpack.c.l.bf16 %v6214
        %v6679 = vunpack.c.l.bf16 %v6215
        %v6680 = vunpack.c.l.bf16 %v6216
        %v6681 = vunpack.c.l.bf16 %v6217
        %v6682 = vunpack.c.l.bf16 %v6218
        %v6683 = vunpack.c.l.bf16 %v6219
        %v6684 = vmul.f32 %v6668, %v1310
        %v6685 = vmul.f32 %v6669, %v1310
        %v6686 = vmul.f32 %v6670, %v1310
        %v6687 = vmul.f32 %v6671, %v1310
        %v6688 = vmul.f32 %v6672, %v1310
        %v6689 = vmul.f32 %v6673, %v1310
        %v6690 = vmul.f32 %v6674, %v1310
        %v6691 = vmul.f32 %v6675, %v1310
        %v6692 = vmul.f32 %v6676, %v1310
        %v6693 = vmul.f32 %v6677, %v1310
        %v6694 = vmul.f32 %v6678, %v1310
        %v6695 = vmul.f32 %v6679, %v1310
        %v6696 = vmul.f32 %v6680, %v1310
        %v6697 = vmul.f32 %v6681, %v1310
        %v6698 = vmul.f32 %v6682, %v1310
        %v6699 = vmul.f32 %v6683, %v1310
        %v6700 = vpack.c.bf16 %v6684, %v6684
        %v6701 = vpack.c.bf16 %v6685, %v6685
        %v6702 = vpack.c.bf16 %v6686, %v6686
        %v6703 = vpack.c.bf16 %v6687, %v6687
        %v6704 = vpack.c.bf16 %v6688, %v6688
        %v6705 = vpack.c.bf16 %v6689, %v6689
        %v6706 = vpack.c.bf16 %v6690, %v6690
        %v6707 = vpack.c.bf16 %v6691, %v6691
        %v6708 = vpack.c.bf16 %v6692, %v6692
        %v6709 = vpack.c.bf16 %v6693, %v6693
        %v6710 = vpack.c.bf16 %v6694, %v6694
        %v6711 = vpack.c.bf16 %v6695, %v6695
        %v6712 = vpack.c.bf16 %v6696, %v6696
        %v6713 = vpack.c.bf16 %v6697, %v6697
        %v6714 = vpack.c.bf16 %v6698, %v6698
        %v6715 = vpack.c.bf16 %v6699, %v6699
        %v6716 = vmul.f32 %v6220, %v1798
        %v6717 = vmul.f32 %v6221, %v1798
        %v6718 = vmul.f32 %v6222, %v1798
        %v6719 = vmul.f32 %v6223, %v1798
        %v6720 = vmul.f32 %v6224, %v1798
        %v6721 = vmul.f32 %v6225, %v1798
        %v6722 = vmul.f32 %v6226, %v1798
        %v6723 = vmul.f32 %v6227, %v1798
        %v6724 = vmul.f32 %v6228, %v1798
        %v6725 = vmul.f32 %v6229, %v1798
        %v6726 = vmul.f32 %v6230, %v1798
        %v6727 = vmul.f32 %v6231, %v1798
        %v6728 = vmul.f32 %v6232, %v1798
        %v6729 = vmul.f32 %v6233, %v1798
        %v6730 = vmul.f32 %v6234, %v1798
        %v6731 = vmul.f32 %v6235, %v1798
        %v6732 = vpack.c.bf16 %v6716, %v6716
        %v6733 = vpack.c.bf16 %v6717, %v6717
        %v6734 = vpack.c.bf16 %v6718, %v6718
        %v6735 = vpack.c.bf16 %v6719, %v6719
        %v6736 = vpack.c.bf16 %v6720, %v6720
        %v6737 = vpack.c.bf16 %v6721, %v6721
        %v6738 = vpack.c.bf16 %v6722, %v6722
        %v6739 = vpack.c.bf16 %v6723, %v6723
        %v6740 = vpack.c.bf16 %v6724, %v6724
        %v6741 = vpack.c.bf16 %v6725, %v6725
        %v6742 = vpack.c.bf16 %v6726, %v6726
        %v6743 = vpack.c.bf16 %v6727, %v6727
        %v6744 = vpack.c.bf16 %v6728, %v6728
        %v6745 = vpack.c.bf16 %v6729, %v6729
        %v6746 = vpack.c.bf16 %v6730, %v6730
        %v6747 = vpack.c.bf16 %v6731, %v6731
        %v6750 = vunpack.c.l.b16 %v6732
        %v6751 = vunpack.c.l.b16 %v6733
        %v6752 = vpack.c.b16 %v6751, %v6750
        %6754 = vmatpush.bf16.xpose.msra.mxu0 0
        %6755 = vmatpush.bf16.xpose.msra.mxu0 0
        %6756 = vmatpush.bf16.xpose.msra.mxu0 0
        %6757 = vmatpush.bf16.xpose.msra.mxu0 0
        %6758 = vmatpush.bf16.xpose.msra.mxu0 0
        %6759 = vmatpush.bf16.xpose.msra.mxu0 0
        %6760 = vmatpush.bf16.xpose.msra.mxu0 0
        %6761 = vmatpush.bf16.xpose.msra.mxu0 %v6752
        %6762 = vmatmul.bf16.gmra.mxu0 %v6272
        %v6763 = vpop.f32.mrf.mxu0
        %v6764 = vadd.f32 0.0, %v6763
        %v6765 = vpop.f32.mrf.mxu0
        %v6766 = vadd.f32 0.0, %v6765
        %6767 = vdwg.mxu0
        %v6770 = vunpack.c.l.b16 %v6734
        %v6771 = vunpack.c.l.b16 %v6735
        %v6772 = vpack.c.b16 %v6771, %v6770
        %6774 = vmatpush.bf16.xpose.msra.mxu0 0
        %6775 = vmatpush.bf16.xpose.msra.mxu0 0
        %6776 = vmatpush.bf16.xpose.msra.mxu0 0
        %6777 = vmatpush.bf16.xpose.msra.mxu0 0
        %6778 = vmatpush.bf16.xpose.msra.mxu0 0
        %6779 = vmatpush.bf16.xpose.msra.mxu0 0
        %6780 = vmatpush.bf16.xpose.msra.mxu0 0
        %6781 = vmatpush.bf16.xpose.msra.mxu0 %v6772
        %6782 = vmatmul.bf16.gmra.mxu0 %v6298
        %v6783 = vpop.f32.mrf.mxu0
        %v6784 = vadd.f32 0.0, %v6783
        %v6785 = vpop.f32.mrf.mxu0
        %v6786 = vadd.f32 0.0, %v6785
        %6787 = vdwg.mxu0
        %v6790 = vunpack.c.l.b16 %v6736
        %v6791 = vunpack.c.l.b16 %v6737
        %v6792 = vpack.c.b16 %v6791, %v6790
        %6794 = vmatpush.bf16.xpose.msra.mxu0 0
        %6795 = vmatpush.bf16.xpose.msra.mxu0 0
        %6796 = vmatpush.bf16.xpose.msra.mxu0 0
        %6797 = vmatpush.bf16.xpose.msra.mxu0 0
        %6798 = vmatpush.bf16.xpose.msra.mxu0 0
        %6799 = vmatpush.bf16.xpose.msra.mxu0 0
        %6800 = vmatpush.bf16.xpose.msra.mxu0 0
        %6801 = vmatpush.bf16.xpose.msra.mxu0 %v6792
        %6802 = vmatmul.bf16.gmra.mxu0 %v6324
        %v6803 = vpop.f32.mrf.mxu0
        %v6804 = vadd.f32 0.0, %v6803
        %v6805 = vpop.f32.mrf.mxu0
        %v6806 = vadd.f32 0.0, %v6805
        %6807 = vdwg.mxu0
        %v6810 = vunpack.c.l.b16 %v6738
        %v6811 = vunpack.c.l.b16 %v6739
        %v6812 = vpack.c.b16 %v6811, %v6810
        %6814 = vmatpush.bf16.xpose.msra.mxu0 0
        %6815 = vmatpush.bf16.xpose.msra.mxu0 0
        %6816 = vmatpush.bf16.xpose.msra.mxu0 0
        %6817 = vmatpush.bf16.xpose.msra.mxu0 0
        %6818 = vmatpush.bf16.xpose.msra.mxu0 0
        %6819 = vmatpush.bf16.xpose.msra.mxu0 0
        %6820 = vmatpush.bf16.xpose.msra.mxu0 0
        %6821 = vmatpush.bf16.xpose.msra.mxu0 %v6812
        %6822 = vmatmul.bf16.gmra.mxu0 %v6350
        %v6823 = vpop.f32.mrf.mxu0
        %v6824 = vadd.f32 0.0, %v6823
        %v6825 = vpop.f32.mrf.mxu0
        %v6826 = vadd.f32 0.0, %v6825
        %6827 = vdwg.mxu0
        %v6830 = vunpack.c.l.b16 %v6740
        %v6831 = vunpack.c.l.b16 %v6741
        %v6832 = vpack.c.b16 %v6831, %v6830
        %6834 = vmatpush.bf16.xpose.msra.mxu0 0
        %6835 = vmatpush.bf16.xpose.msra.mxu0 0
        %6836 = vmatpush.bf16.xpose.msra.mxu0 0
        %6837 = vmatpush.bf16.xpose.msra.mxu0 0
        %6838 = vmatpush.bf16.xpose.msra.mxu0 0
        %6839 = vmatpush.bf16.xpose.msra.mxu0 0
        %6840 = vmatpush.bf16.xpose.msra.mxu0 0
        %6841 = vmatpush.bf16.xpose.msra.mxu0 %v6832
        %6842 = vmatmul.bf16.gmra.mxu0 %v6376
        %v6843 = vpop.f32.mrf.mxu0
        %v6844 = vadd.f32 0.0, %v6843
        %v6845 = vpop.f32.mrf.mxu0
        %v6846 = vadd.f32 0.0, %v6845
        %6847 = vdwg.mxu0
        %v6850 = vunpack.c.l.b16 %v6742
        %v6851 = vunpack.c.l.b16 %v6743
        %v6852 = vpack.c.b16 %v6851, %v6850
        %6854 = vmatpush.bf16.xpose.msra.mxu0 0
        %6855 = vmatpush.bf16.xpose.msra.mxu0 0
        %6856 = vmatpush.bf16.xpose.msra.mxu0 0
        %6857 = vmatpush.bf16.xpose.msra.mxu0 0
        %6858 = vmatpush.bf16.xpose.msra.mxu0 0
        %6859 = vmatpush.bf16.xpose.msra.mxu0 0
        %6860 = vmatpush.bf16.xpose.msra.mxu0 0
        %6861 = vmatpush.bf16.xpose.msra.mxu0 %v6852
        %6862 = vmatmul.bf16.gmra.mxu0 %v6402
        %v6863 = vpop.f32.mrf.mxu0
        %v6864 = vadd.f32 0.0, %v6863
        %v6865 = vpop.f32.mrf.mxu0
        %v6866 = vadd.f32 0.0, %v6865
        %6867 = vdwg.mxu0
        %v6870 = vunpack.c.l.b16 %v6744
        %v6871 = vunpack.c.l.b16 %v6745
        %v6872 = vpack.c.b16 %v6871, %v6870
        %6874 = vmatpush.bf16.xpose.msra.mxu0 0
        %6875 = vmatpush.bf16.xpose.msra.mxu0 0
        %6876 = vmatpush.bf16.xpose.msra.mxu0 0
        %6877 = vmatpush.bf16.xpose.msra.mxu0 0
        %6878 = vmatpush.bf16.xpose.msra.mxu0 0
        %6879 = vmatpush.bf16.xpose.msra.mxu0 0
        %6880 = vmatpush.bf16.xpose.msra.mxu0 0
        %6881 = vmatpush.bf16.xpose.msra.mxu0 %v6872
        %6882 = vmatmul.bf16.gmra.mxu0 %v6428
        %v6883 = vpop.f32.mrf.mxu0
        %v6884 = vadd.f32 0.0, %v6883
        %v6885 = vpop.f32.mrf.mxu0
        %v6886 = vadd.f32 0.0, %v6885
        %6887 = vdwg.mxu0
        %v6890 = vunpack.c.l.b16 %v6746
        %v6891 = vunpack.c.l.b16 %v6747
        %v6892 = vpack.c.b16 %v6891, %v6890
        %6894 = vmatpush.bf16.xpose.msra.mxu0 0
        %6895 = vmatpush.bf16.xpose.msra.mxu0 0
        %6896 = vmatpush.bf16.xpose.msra.mxu0 0
        %6897 = vmatpush.bf16.xpose.msra.mxu0 0
        %6898 = vmatpush.bf16.xpose.msra.mxu0 0
        %6899 = vmatpush.bf16.xpose.msra.mxu0 0
        %6900 = vmatpush.bf16.xpose.msra.mxu0 0
        %6901 = vmatpush.bf16.xpose.msra.mxu0 %v6892
        %6902 = vmatmul.bf16.gmra.mxu0 %v6454
        %v6903 = vpop.f32.mrf.mxu0
        %v6904 = vadd.f32 0.0, %v6903
        %v6905 = vpop.f32.mrf.mxu0
        %v6906 = vadd.f32 0.0, %v6905
        %6907 = vdwg.mxu0
        %v6908 = vsel %vm1551, %v6764, -inf
        %6909 = vmax.xlane.f32.xlu0 %v6908
        %v6910 = vpop.xlane.xlu0 %6909
        %v6911 = vsel %vm1551, %v6766, -inf
        %6912 = vmax.xlane.f32.xlu0 %v6911
        %v6913 = vpop.xlane.xlu0 %6912
        %v6914 = vsel %vm1551, %v6784, -inf
        %6915 = vmax.xlane.f32.xlu0 %v6914
        %v6916 = vpop.xlane.xlu0 %6915
        %v6917 = vsel %vm1551, %v6786, -inf
        %6918 = vmax.xlane.f32.xlu0 %v6917
        %v6919 = vpop.xlane.xlu0 %6918
        %v6920 = vsel %vm1551, %v6804, -inf
        %6921 = vmax.xlane.f32.xlu0 %v6920
        %v6922 = vpop.xlane.xlu0 %6921
        %v6923 = vsel %vm1551, %v6806, -inf
        %6924 = vmax.xlane.f32.xlu0 %v6923
        %v6925 = vpop.xlane.xlu0 %6924
        %v6926 = vsel %vm1551, %v6824, -inf
        %6927 = vmax.xlane.f32.xlu0 %v6926
        %v6928 = vpop.xlane.xlu0 %6927
        %v6929 = vsel %vm1551, %v6826, -inf
        %6930 = vmax.xlane.f32.xlu0 %v6929
        %v6931 = vpop.xlane.xlu0 %6930
        %v6932 = vsel %vm1551, %v6844, -inf
        %6933 = vmax.xlane.f32.xlu0 %v6932
        %v6934 = vpop.xlane.xlu0 %6933
        %v6935 = vsel %vm1551, %v6846, -inf
        %6936 = vmax.xlane.f32.xlu0 %v6935
        %v6937 = vpop.xlane.xlu0 %6936
        %v6938 = vsel %vm1551, %v6864, -inf
        %6939 = vmax.xlane.f32.xlu0 %v6938
        %v6940 = vpop.xlane.xlu0 %6939
        %v6941 = vsel %vm1551, %v6866, -inf
        %6942 = vmax.xlane.f32.xlu0 %v6941
        %v6943 = vpop.xlane.xlu0 %6942
        %v6944 = vsel %vm1551, %v6884, -inf
        %6945 = vmax.xlane.f32.xlu0 %v6944
        %v6946 = vpop.xlane.xlu0 %6945
        %v6947 = vsel %vm1551, %v6886, -inf
        %6948 = vmax.xlane.f32.xlu0 %v6947
        %v6949 = vpop.xlane.xlu0 %6948
        %v6950 = vsel %vm1551, %v6904, -inf
        %6951 = vmax.xlane.f32.xlu0 %v6950
        %v6952 = vpop.xlane.xlu0 %6951
        %v6953 = vsel %vm1551, %v6906, -inf
        %6954 = vmax.xlane.f32.xlu0 %v6953
        %v6955 = vpop.xlane.xlu0 %6954
        %v6956 = vsub.f32 %v6764, %v6910
        %v6957 = vsub.f32 %v6766, %v6913
        %v6958 = vsub.f32 %v6784, %v6916
        %v6959 = vsub.f32 %v6786, %v6919
        %v6960 = vsub.f32 %v6804, %v6922
        %v6961 = vsub.f32 %v6806, %v6925
        %v6962 = vsub.f32 %v6824, %v6928
        %v6963 = vsub.f32 %v6826, %v6931
        %v6964 = vsub.f32 %v6844, %v6934
        %v6965 = vsub.f32 %v6846, %v6937
        %v6966 = vsub.f32 %v6864, %v6940
        %v6967 = vsub.f32 %v6866, %v6943
        %v6968 = vsub.f32 %v6884, %v6946
        %v6969 = vsub.f32 %v6886, %v6949
        %v6970 = vsub.f32 %v6904, %v6952
        %v6971 = vsub.f32 %v6906, %v6955
        %v6972 = vmul.f32 %v6956, 1.442695
        %v6973 = vpow.pop %v6972
        %v6974 = vmul.f32 %v6957, 1.442695
        %v6975 = vpow.pop %v6974
        %v6976 = vmul.f32 %v6958, 1.442695
        %v6977 = vpow.pop %v6976
        %v6978 = vmul.f32 %v6959, 1.442695
        %v6979 = vpow.pop %v6978
        %v6980 = vmul.f32 %v6960, 1.442695
        %v6981 = vpow.pop %v6980
        %v6982 = vmul.f32 %v6961, 1.442695
        %v6983 = vpow.pop %v6982
        %v6984 = vmul.f32 %v6962, 1.442695
        %v6985 = vpow.pop %v6984
        %v6986 = vmul.f32 %v6963, 1.442695
        %v6987 = vpow.pop %v6986
        %v6988 = vmul.f32 %v6964, 1.442695
        %v6989 = vpow.pop %v6988
        %v6990 = vmul.f32 %v6965, 1.442695
        %v6991 = vpow.pop %v6990
        %v6992 = vmul.f32 %v6966, 1.442695
        %v6993 = vpow.pop %v6992
        %v6994 = vmul.f32 %v6967, 1.442695
        %v6995 = vpow.pop %v6994
        %v6996 = vmul.f32 %v6968, 1.442695
        %v6997 = vpow.pop %v6996
        %v6998 = vmul.f32 %v6969, 1.442695
        %v6999 = vpow.pop %v6998
        %v7000 = vmul.f32 %v6970, 1.442695
        %v7001 = vpow.pop %v7000
        %v7002 = vmul.f32 %v6971, 1.442695
        %v7003 = vpow.pop %v7002
        %v7004 = vsel %vm1551, %v6973, 0.0
        %7005 = vadd.xlane.f32.xlu0 %v7004
        %v7006 = vpop.xlane.xlu0 %7005
        %v7007 = vsel %vm1551, %v6975, 0.0
        %7008 = vadd.xlane.f32.xlu0 %v7007
        %v7009 = vpop.xlane.xlu0 %7008
        %v7010 = vsel %vm1551, %v6977, 0.0
        %7011 = vadd.xlane.f32.xlu0 %v7010
        %v7012 = vpop.xlane.xlu0 %7011
        %v7013 = vsel %vm1551, %v6979, 0.0
        %7014 = vadd.xlane.f32.xlu0 %v7013
        %v7015 = vpop.xlane.xlu0 %7014
        %v7016 = vsel %vm1551, %v6981, 0.0
        %7017 = vadd.xlane.f32.xlu0 %v7016
        %v7018 = vpop.xlane.xlu0 %7017
        %v7019 = vsel %vm1551, %v6983, 0.0
        %7020 = vadd.xlane.f32.xlu0 %v7019
        %v7021 = vpop.xlane.xlu0 %7020
        %v7022 = vsel %vm1551, %v6985, 0.0
        %7023 = vadd.xlane.f32.xlu0 %v7022
        %v7024 = vpop.xlane.xlu0 %7023
        %v7025 = vsel %vm1551, %v6987, 0.0
        %7026 = vadd.xlane.f32.xlu0 %v7025
        %v7027 = vpop.xlane.xlu0 %7026
        %v7028 = vsel %vm1551, %v6989, 0.0
        %7029 = vadd.xlane.f32.xlu0 %v7028
        %v7030 = vpop.xlane.xlu0 %7029
        %v7031 = vsel %vm1551, %v6991, 0.0
        %7032 = vadd.xlane.f32.xlu0 %v7031
        %v7033 = vpop.xlane.xlu0 %7032
        %v7034 = vsel %vm1551, %v6993, 0.0
        %7035 = vadd.xlane.f32.xlu0 %v7034
        %v7036 = vpop.xlane.xlu0 %7035
        %v7037 = vsel %vm1551, %v6995, 0.0
        %7038 = vadd.xlane.f32.xlu0 %v7037
        %v7039 = vpop.xlane.xlu0 %7038
        %v7040 = vsel %vm1551, %v6997, 0.0
        %7041 = vadd.xlane.f32.xlu0 %v7040
        %v7042 = vpop.xlane.xlu0 %7041
        %v7043 = vsel %vm1551, %v6999, 0.0
        %7044 = vadd.xlane.f32.xlu0 %v7043
        %v7045 = vpop.xlane.xlu0 %7044
        %v7046 = vsel %vm1551, %v7001, 0.0
        %7047 = vadd.xlane.f32.xlu0 %v7046
        %v7048 = vpop.xlane.xlu0 %7047
        %v7049 = vsel %vm1551, %v7003, 0.0
        %7050 = vadd.xlane.f32.xlu0 %v7049
        %v7051 = vpop.xlane.xlu0 %7050
        %v7052 = vrcp.pop %v7006
        %v7053 = vrcp.pop %v7009
        %v7054 = vrcp.pop %v7012
        %v7055 = vrcp.pop %v7015
        %v7056 = vrcp.pop %v7018
        %v7057 = vrcp.pop %v7021
        %v7058 = vrcp.pop %v7024
        %v7059 = vrcp.pop %v7027
        %v7060 = vrcp.pop %v7030
        %v7061 = vrcp.pop %v7033
        %v7062 = vrcp.pop %v7036
        %v7063 = vrcp.pop %v7039
        %v7064 = vrcp.pop %v7042
        %v7065 = vrcp.pop %v7045
        %v7066 = vrcp.pop %v7048
        %v7067 = vrcp.pop %v7051
        %v7068 = vmul.f32 %v6973, %v7052
        %v7069 = vmul.f32 %v6975, %v7053
        %v7070 = vmul.f32 %v6977, %v7054
        %v7071 = vmul.f32 %v6979, %v7055
        %v7072 = vmul.f32 %v6981, %v7056
        %v7073 = vmul.f32 %v6983, %v7057
        %v7074 = vmul.f32 %v6985, %v7058
        %v7075 = vmul.f32 %v6987, %v7059
        %v7076 = vmul.f32 %v6989, %v7060
        %v7077 = vmul.f32 %v6991, %v7061
        %v7078 = vmul.f32 %v6993, %v7062
        %v7079 = vmul.f32 %v6995, %v7063
        %v7080 = vmul.f32 %v6997, %v7064
        %v7081 = vmul.f32 %v6999, %v7065
        %v7082 = vmul.f32 %v7001, %v7066
        %v7083 = vmul.f32 %v7003, %v7067
        %v7084 = vpack.c.bf16 %v7068, %v7068
        %v7085 = vpack.c.bf16 %v7069, %v7069
        %v7086 = vpack.c.bf16 %v7070, %v7070
        %v7087 = vpack.c.bf16 %v7071, %v7071
        %v7088 = vpack.c.bf16 %v7072, %v7072
        %v7089 = vpack.c.bf16 %v7073, %v7073
        %v7090 = vpack.c.bf16 %v7074, %v7074
        %v7091 = vpack.c.bf16 %v7075, %v7075
        %v7092 = vpack.c.bf16 %v7076, %v7076
        %v7093 = vpack.c.bf16 %v7077, %v7077
        %v7094 = vpack.c.bf16 %v7078, %v7078
        %v7095 = vpack.c.bf16 %v7079, %v7079
        %v7096 = vpack.c.bf16 %v7080, %v7080
        %v7097 = vpack.c.bf16 %v7081, %v7081
        %v7098 = vpack.c.bf16 %v7082, %v7082
        %v7099 = vpack.c.bf16 %v7083, %v7083
        %v7100 = vmul.f32 %v6668, %v1798
        %v7101 = vmul.f32 %v6669, %v1798
        %v7102 = vmul.f32 %v6670, %v1798
        %v7103 = vmul.f32 %v6671, %v1798
        %v7104 = vmul.f32 %v6672, %v1798
        %v7105 = vmul.f32 %v6673, %v1798
        %v7106 = vmul.f32 %v6674, %v1798
        %v7107 = vmul.f32 %v6675, %v1798
        %v7108 = vmul.f32 %v6676, %v1798
        %v7109 = vmul.f32 %v6677, %v1798
        %v7110 = vmul.f32 %v6678, %v1798
        %v7111 = vmul.f32 %v6679, %v1798
        %v7112 = vmul.f32 %v6680, %v1798
        %v7113 = vmul.f32 %v6681, %v1798
        %v7114 = vmul.f32 %v6682, %v1798
        %v7115 = vmul.f32 %v6683, %v1798
        %v7116 = vpack.c.bf16 %v7100, %v7100
        %v7117 = vpack.c.bf16 %v7101, %v7101
        %v7118 = vpack.c.bf16 %v7102, %v7102
        %v7119 = vpack.c.bf16 %v7103, %v7103
        %v7120 = vpack.c.bf16 %v7104, %v7104
        %v7121 = vpack.c.bf16 %v7105, %v7105
        %v7122 = vpack.c.bf16 %v7106, %v7106
        %v7123 = vpack.c.bf16 %v7107, %v7107
        %v7124 = vpack.c.bf16 %v7108, %v7108
        %v7125 = vpack.c.bf16 %v7109, %v7109
        %v7126 = vpack.c.bf16 %v7110, %v7110
        %v7127 = vpack.c.bf16 %v7111, %v7111
        %v7128 = vpack.c.bf16 %v7112, %v7112
        %v7129 = vpack.c.bf16 %v7113, %v7113
        %v7130 = vpack.c.bf16 %v7114, %v7114
        %v7131 = vpack.c.bf16 %v7115, %v7115
        %v7134 = vunpack.c.l.b16 %v7084
        %v7135 = vunpack.c.l.b16 %v7085
        %v7136 = vpack.c.b16 %v7135, %v7134
        %v7139 = vunpack.c.l.b16 %v7116
        %v7140 = vunpack.c.l.b16 %v7117
        %v7141 = vpack.c.b16 %v7140, %v7139
        %v7144 = vsel %vm1551, %v7136, 0
        %7146 = vmatpush.bf16.msra.mxu0 0
        %7147 = vmatpush.bf16.msra.mxu0 0
        %7148 = vmatpush.bf16.msra.mxu0 0
        %7149 = vmatpush.bf16.msra.mxu0 0
        %7150 = vmatpush.bf16.msra.mxu0 0
        %7151 = vmatpush.bf16.msra.mxu0 0
        %7152 = vmatpush.bf16.msra.mxu0 0
        %7153 = vmatpush.bf16.msra.mxu0 %v7141
        %7154 = vmatmul.bf16.gmra.mxu0 %v7144
        %v7155 = vpop.f32.mrf.mxu0
        %v7156 = vadd.f32 0.0, %v7155
        %v7157 = vpop.f32.mrf.mxu0
        %v7158 = vadd.f32 0.0, %v7157
        %7159 = vdwg.mxu0
        %v7162 = vunpack.c.l.b16 %v7086
        %v7163 = vunpack.c.l.b16 %v7087
        %v7164 = vpack.c.b16 %v7163, %v7162
        %v7167 = vunpack.c.l.b16 %v7118
        %v7168 = vunpack.c.l.b16 %v7119
        %v7169 = vpack.c.b16 %v7168, %v7167
        %v7172 = vsel %vm1551, %v7164, 0
        %7174 = vmatpush.bf16.msra.mxu0 0
        %7175 = vmatpush.bf16.msra.mxu0 0
        %7176 = vmatpush.bf16.msra.mxu0 0
        %7177 = vmatpush.bf16.msra.mxu0 0
        %7178 = vmatpush.bf16.msra.mxu0 0
        %7179 = vmatpush.bf16.msra.mxu0 0
        %7180 = vmatpush.bf16.msra.mxu0 0
        %7181 = vmatpush.bf16.msra.mxu0 %v7169
        %7182 = vmatmul.bf16.gmra.mxu0 %v7172
        %v7183 = vpop.f32.mrf.mxu0
        %v7184 = vadd.f32 0.0, %v7183
        %v7185 = vpop.f32.mrf.mxu0
        %v7186 = vadd.f32 0.0, %v7185
        %7187 = vdwg.mxu0
        %v7190 = vunpack.c.l.b16 %v7088
        %v7191 = vunpack.c.l.b16 %v7089
        %v7192 = vpack.c.b16 %v7191, %v7190
        %v7195 = vunpack.c.l.b16 %v7120
        %v7196 = vunpack.c.l.b16 %v7121
        %v7197 = vpack.c.b16 %v7196, %v7195
        %v7200 = vsel %vm1551, %v7192, 0
        %7202 = vmatpush.bf16.msra.mxu0 0
        %7203 = vmatpush.bf16.msra.mxu0 0
        %7204 = vmatpush.bf16.msra.mxu0 0
        %7205 = vmatpush.bf16.msra.mxu0 0
        %7206 = vmatpush.bf16.msra.mxu0 0
        %7207 = vmatpush.bf16.msra.mxu0 0
        %7208 = vmatpush.bf16.msra.mxu0 0
        %7209 = vmatpush.bf16.msra.mxu0 %v7197
        %7210 = vmatmul.bf16.gmra.mxu0 %v7200
        %v7211 = vpop.f32.mrf.mxu0
        %v7212 = vadd.f32 0.0, %v7211
        %v7213 = vpop.f32.mrf.mxu0
        %v7214 = vadd.f32 0.0, %v7213
        %7215 = vdwg.mxu0
        %v7218 = vunpack.c.l.b16 %v7090
        %v7219 = vunpack.c.l.b16 %v7091
        %v7220 = vpack.c.b16 %v7219, %v7218
        %v7223 = vunpack.c.l.b16 %v7122
        %v7224 = vunpack.c.l.b16 %v7123
        %v7225 = vpack.c.b16 %v7224, %v7223
        %v7228 = vsel %vm1551, %v7220, 0
        %7230 = vmatpush.bf16.msra.mxu0 0
        %7231 = vmatpush.bf16.msra.mxu0 0
        %7232 = vmatpush.bf16.msra.mxu0 0
        %7233 = vmatpush.bf16.msra.mxu0 0
        %7234 = vmatpush.bf16.msra.mxu0 0
        %7235 = vmatpush.bf16.msra.mxu0 0
        %7236 = vmatpush.bf16.msra.mxu0 0
        %7237 = vmatpush.bf16.msra.mxu0 %v7225
        %7238 = vmatmul.bf16.gmra.mxu0 %v7228
        %v7239 = vpop.f32.mrf.mxu0
        %v7240 = vadd.f32 0.0, %v7239
        %v7241 = vpop.f32.mrf.mxu0
        %v7242 = vadd.f32 0.0, %v7241
        %7243 = vdwg.mxu0
        %v7246 = vunpack.c.l.b16 %v7092
        %v7247 = vunpack.c.l.b16 %v7093
        %v7248 = vpack.c.b16 %v7247, %v7246
        %v7251 = vunpack.c.l.b16 %v7124
        %v7252 = vunpack.c.l.b16 %v7125
        %v7253 = vpack.c.b16 %v7252, %v7251
        %v7256 = vsel %vm1551, %v7248, 0
        %7258 = vmatpush.bf16.msra.mxu0 0
        %7259 = vmatpush.bf16.msra.mxu0 0
        %7260 = vmatpush.bf16.msra.mxu0 0
        %7261 = vmatpush.bf16.msra.mxu0 0
        %7262 = vmatpush.bf16.msra.mxu0 0
        %7263 = vmatpush.bf16.msra.mxu0 0
        %7264 = vmatpush.bf16.msra.mxu0 0
        %7265 = vmatpush.bf16.msra.mxu0 %v7253
        %7266 = vmatmul.bf16.gmra.mxu0 %v7256
        %v7267 = vpop.f32.mrf.mxu0
        %v7268 = vadd.f32 0.0, %v7267
        %v7269 = vpop.f32.mrf.mxu0
        %v7270 = vadd.f32 0.0, %v7269
        %7271 = vdwg.mxu0
        %v7274 = vunpack.c.l.b16 %v7094
        %v7275 = vunpack.c.l.b16 %v7095
        %v7276 = vpack.c.b16 %v7275, %v7274
        %v7279 = vunpack.c.l.b16 %v7126
        %v7280 = vunpack.c.l.b16 %v7127
        %v7281 = vpack.c.b16 %v7280, %v7279
        %v7284 = vsel %vm1551, %v7276, 0
        %7286 = vmatpush.bf16.msra.mxu0 0
        %7287 = vmatpush.bf16.msra.mxu0 0
        %7288 = vmatpush.bf16.msra.mxu0 0
        %7289 = vmatpush.bf16.msra.mxu0 0
        %7290 = vmatpush.bf16.msra.mxu0 0
        %7291 = vmatpush.bf16.msra.mxu0 0
        %7292 = vmatpush.bf16.msra.mxu0 0
        %7293 = vmatpush.bf16.msra.mxu0 %v7281
        %7294 = vmatmul.bf16.gmra.mxu0 %v7284
        %v7295 = vpop.f32.mrf.mxu0
        %v7296 = vadd.f32 0.0, %v7295
        %v7297 = vpop.f32.mrf.mxu0
        %v7298 = vadd.f32 0.0, %v7297
        %7299 = vdwg.mxu0
        %v7302 = vunpack.c.l.b16 %v7096
        %v7303 = vunpack.c.l.b16 %v7097
        %v7304 = vpack.c.b16 %v7303, %v7302
        %v7307 = vunpack.c.l.b16 %v7128
        %v7308 = vunpack.c.l.b16 %v7129
        %v7309 = vpack.c.b16 %v7308, %v7307
        %v7312 = vsel %vm1551, %v7304, 0
        %7314 = vmatpush.bf16.msra.mxu0 0
        %7315 = vmatpush.bf16.msra.mxu0 0
        %7316 = vmatpush.bf16.msra.mxu0 0
        %7317 = vmatpush.bf16.msra.mxu0 0
        %7318 = vmatpush.bf16.msra.mxu0 0
        %7319 = vmatpush.bf16.msra.mxu0 0
        %7320 = vmatpush.bf16.msra.mxu0 0
        %7321 = vmatpush.bf16.msra.mxu0 %v7309
        %7322 = vmatmul.bf16.gmra.mxu0 %v7312
        %v7323 = vpop.f32.mrf.mxu0
        %v7324 = vadd.f32 0.0, %v7323
        %v7325 = vpop.f32.mrf.mxu0
        %v7326 = vadd.f32 0.0, %v7325
        %7327 = vdwg.mxu0
        %v7330 = vunpack.c.l.b16 %v7098
        %v7331 = vunpack.c.l.b16 %v7099
        %v7332 = vpack.c.b16 %v7331, %v7330
        %v7335 = vunpack.c.l.b16 %v7130
        %v7336 = vunpack.c.l.b16 %v7131
        %v7337 = vpack.c.b16 %v7336, %v7335
        %v7340 = vsel %vm1551, %v7332, 0
        %7342 = vmatpush.bf16.msra.mxu0 0
        %7343 = vmatpush.bf16.msra.mxu0 0
        %7344 = vmatpush.bf16.msra.mxu0 0
        %7345 = vmatpush.bf16.msra.mxu0 0
        %7346 = vmatpush.bf16.msra.mxu0 0
        %7347 = vmatpush.bf16.msra.mxu0 0
        %7348 = vmatpush.bf16.msra.mxu0 0
        %7349 = vmatpush.bf16.msra.mxu0 %v7337
        %7350 = vmatmul.bf16.gmra.mxu0 %v7340
        %v7351 = vpop.f32.mrf.mxu0
        %v7352 = vadd.f32 0.0, %v7351
        %v7353 = vpop.f32.mrf.mxu0
        %v7354 = vadd.f32 0.0, %v7353
        %7355 = vdwg.mxu0
        %v7358 = vunpack.c.l.b16 %v6652
        %v7359 = vunpack.c.l.b16 %v6653
        %v7360 = vpack.c.b16 %v7359, %v7358
        %v7363 = vunpack.c.l.b16 %v6700
        %v7364 = vunpack.c.l.b16 %v6701
        %v7365 = vpack.c.b16 %v7364, %v7363
        %v7368 = vsel %vm1551, %v7360, 0
        %7370 = vmatpush.bf16.msra.mxu0 0
        %7371 = vmatpush.bf16.msra.mxu0 0
        %7372 = vmatpush.bf16.msra.mxu0 0
        %7373 = vmatpush.bf16.msra.mxu0 0
        %7374 = vmatpush.bf16.msra.mxu0 0
        %7375 = vmatpush.bf16.msra.mxu0 0
        %7376 = vmatpush.bf16.msra.mxu0 0
        %7377 = vmatpush.bf16.msra.mxu0 %v7365
        %7378 = vmatmul.bf16.gmra.mxu0 %v7368
        %v7379 = vpop.f32.mrf.mxu0
        %v7380 = vadd.f32 %v7156, %v7379
        %v7381 = vpop.f32.mrf.mxu0
        %v7382 = vadd.f32 %v7158, %v7381
        %7383 = vdwg.mxu0
        %v7386 = vunpack.c.l.b16 %v6654
        %v7387 = vunpack.c.l.b16 %v6655
        %v7388 = vpack.c.b16 %v7387, %v7386
        %v7391 = vunpack.c.l.b16 %v6702
        %v7392 = vunpack.c.l.b16 %v6703
        %v7393 = vpack.c.b16 %v7392, %v7391
        %v7396 = vsel %vm1551, %v7388, 0
        %7398 = vmatpush.bf16.msra.mxu0 0
        %7399 = vmatpush.bf16.msra.mxu0 0
        %7400 = vmatpush.bf16.msra.mxu0 0
        %7401 = vmatpush.bf16.msra.mxu0 0
        %7402 = vmatpush.bf16.msra.mxu0 0
        %7403 = vmatpush.bf16.msra.mxu0 0
        %7404 = vmatpush.bf16.msra.mxu0 0
        %7405 = vmatpush.bf16.msra.mxu0 %v7393
        %7406 = vmatmul.bf16.gmra.mxu0 %v7396
        %v7407 = vpop.f32.mrf.mxu0
        %v7408 = vadd.f32 %v7184, %v7407
        %v7409 = vpop.f32.mrf.mxu0
        %v7410 = vadd.f32 %v7186, %v7409
        %7411 = vdwg.mxu0
        %v7414 = vunpack.c.l.b16 %v6656
        %v7415 = vunpack.c.l.b16 %v6657
        %v7416 = vpack.c.b16 %v7415, %v7414
        %v7419 = vunpack.c.l.b16 %v6704
        %v7420 = vunpack.c.l.b16 %v6705
        %v7421 = vpack.c.b16 %v7420, %v7419
        %v7424 = vsel %vm1551, %v7416, 0
        %7426 = vmatpush.bf16.msra.mxu0 0
        %7427 = vmatpush.bf16.msra.mxu0 0
        %7428 = vmatpush.bf16.msra.mxu0 0
        %7429 = vmatpush.bf16.msra.mxu0 0
        %7430 = vmatpush.bf16.msra.mxu0 0
        %7431 = vmatpush.bf16.msra.mxu0 0
        %7432 = vmatpush.bf16.msra.mxu0 0
        %7433 = vmatpush.bf16.msra.mxu0 %v7421
        %7434 = vmatmul.bf16.gmra.mxu0 %v7424
        %v7435 = vpop.f32.mrf.mxu0
        %v7436 = vadd.f32 %v7212, %v7435
        %v7437 = vpop.f32.mrf.mxu0
        %v7438 = vadd.f32 %v7214, %v7437
        %7439 = vdwg.mxu0
        %v7442 = vunpack.c.l.b16 %v6658
        %v7443 = vunpack.c.l.b16 %v6659
        %v7444 = vpack.c.b16 %v7443, %v7442
        %v7447 = vunpack.c.l.b16 %v6706
        %v7448 = vunpack.c.l.b16 %v6707
        %v7449 = vpack.c.b16 %v7448, %v7447
        %v7452 = vsel %vm1551, %v7444, 0
        %7454 = vmatpush.bf16.msra.mxu0 0
        %7455 = vmatpush.bf16.msra.mxu0 0
        %7456 = vmatpush.bf16.msra.mxu0 0
        %7457 = vmatpush.bf16.msra.mxu0 0
        %7458 = vmatpush.bf16.msra.mxu0 0
        %7459 = vmatpush.bf16.msra.mxu0 0
        %7460 = vmatpush.bf16.msra.mxu0 0
        %7461 = vmatpush.bf16.msra.mxu0 %v7449
        %7462 = vmatmul.bf16.gmra.mxu0 %v7452
        %v7463 = vpop.f32.mrf.mxu0
        %v7464 = vadd.f32 %v7240, %v7463
        %v7465 = vpop.f32.mrf.mxu0
        %v7466 = vadd.f32 %v7242, %v7465
        %7467 = vdwg.mxu0
        %v7470 = vunpack.c.l.b16 %v6660
        %v7471 = vunpack.c.l.b16 %v6661
        %v7472 = vpack.c.b16 %v7471, %v7470
        %v7475 = vunpack.c.l.b16 %v6708
        %v7476 = vunpack.c.l.b16 %v6709
        %v7477 = vpack.c.b16 %v7476, %v7475
        %v7480 = vsel %vm1551, %v7472, 0
        %7482 = vmatpush.bf16.msra.mxu0 0
        %7483 = vmatpush.bf16.msra.mxu0 0
        %7484 = vmatpush.bf16.msra.mxu0 0
        %7485 = vmatpush.bf16.msra.mxu0 0
        %7486 = vmatpush.bf16.msra.mxu0 0
        %7487 = vmatpush.bf16.msra.mxu0 0
        %7488 = vmatpush.bf16.msra.mxu0 0
        %7489 = vmatpush.bf16.msra.mxu0 %v7477
        %7490 = vmatmul.bf16.gmra.mxu0 %v7480
        %v7491 = vpop.f32.mrf.mxu0
        %v7492 = vadd.f32 %v7268, %v7491
        %v7493 = vpop.f32.mrf.mxu0
        %v7494 = vadd.f32 %v7270, %v7493
        %7495 = vdwg.mxu0
        %v7498 = vunpack.c.l.b16 %v6662
        %v7499 = vunpack.c.l.b16 %v6663
        %v7500 = vpack.c.b16 %v7499, %v7498
        %v7503 = vunpack.c.l.b16 %v6710
        %v7504 = vunpack.c.l.b16 %v6711
        %v7505 = vpack.c.b16 %v7504, %v7503
        %v7508 = vsel %vm1551, %v7500, 0
        %7510 = vmatpush.bf16.msra.mxu0 0
        %7511 = vmatpush.bf16.msra.mxu0 0
        %7512 = vmatpush.bf16.msra.mxu0 0
        %7513 = vmatpush.bf16.msra.mxu0 0
        %7514 = vmatpush.bf16.msra.mxu0 0
        %7515 = vmatpush.bf16.msra.mxu0 0
        %7516 = vmatpush.bf16.msra.mxu0 0
        %7517 = vmatpush.bf16.msra.mxu0 %v7505
        %7518 = vmatmul.bf16.gmra.mxu0 %v7508
        %v7519 = vpop.f32.mrf.mxu0
        %v7520 = vadd.f32 %v7296, %v7519
        %v7521 = vpop.f32.mrf.mxu0
        %v7522 = vadd.f32 %v7298, %v7521
        %7523 = vdwg.mxu0
        %v7526 = vunpack.c.l.b16 %v6664
        %v7527 = vunpack.c.l.b16 %v6665
        %v7528 = vpack.c.b16 %v7527, %v7526
        %v7531 = vunpack.c.l.b16 %v6712
        %v7532 = vunpack.c.l.b16 %v6713
        %v7533 = vpack.c.b16 %v7532, %v7531
        %v7536 = vsel %vm1551, %v7528, 0
        %7538 = vmatpush.bf16.msra.mxu0 0
        %7539 = vmatpush.bf16.msra.mxu0 0
        %7540 = vmatpush.bf16.msra.mxu0 0
        %7541 = vmatpush.bf16.msra.mxu0 0
        %7542 = vmatpush.bf16.msra.mxu0 0
        %7543 = vmatpush.bf16.msra.mxu0 0
        %7544 = vmatpush.bf16.msra.mxu0 0
        %7545 = vmatpush.bf16.msra.mxu0 %v7533
        %7546 = vmatmul.bf16.gmra.mxu0 %v7536
        %v7547 = vpop.f32.mrf.mxu0
        %v7548 = vadd.f32 %v7324, %v7547
        %v7549 = vpop.f32.mrf.mxu0
        %v7550 = vadd.f32 %v7326, %v7549
        %7551 = vdwg.mxu0
        %v7554 = vunpack.c.l.b16 %v6666
        %v7555 = vunpack.c.l.b16 %v6667
        %v7556 = vpack.c.b16 %v7555, %v7554
        %v7559 = vunpack.c.l.b16 %v6714
        %v7560 = vunpack.c.l.b16 %v6715
        %v7561 = vpack.c.b16 %v7560, %v7559
        %v7564 = vsel %vm1551, %v7556, 0
        %7566 = vmatpush.bf16.msra.mxu0 0
        %7567 = vmatpush.bf16.msra.mxu0 0
        %7568 = vmatpush.bf16.msra.mxu0 0
        %7569 = vmatpush.bf16.msra.mxu0 0
        %7570 = vmatpush.bf16.msra.mxu0 0
        %7571 = vmatpush.bf16.msra.mxu0 0
        %7572 = vmatpush.bf16.msra.mxu0 0
        %7573 = vmatpush.bf16.msra.mxu0 %v7561
        %7574 = vmatmul.bf16.gmra.mxu0 %v7564
        %v7575 = vpop.f32.mrf.mxu0
        %v7576 = vadd.f32 %v7352, %v7575
        %v7577 = vpop.f32.mrf.mxu0
        %v7578 = vadd.f32 %v7354, %v7577
        %7579 = vdwg.mxu0
        %v7580 = vmul.f32 %v6220, %v2669
        %v7581 = vmul.f32 %v6221, %v2669
        %v7582 = vmul.f32 %v6222, %v2669
        %v7583 = vmul.f32 %v6223, %v2669
        %v7584 = vmul.f32 %v6224, %v2669
        %v7585 = vmul.f32 %v6225, %v2669
        %v7586 = vmul.f32 %v6226, %v2669
        %v7587 = vmul.f32 %v6227, %v2669
        %v7588 = vmul.f32 %v6228, %v2669
        %v7589 = vmul.f32 %v6229, %v2669
        %v7590 = vmul.f32 %v6230, %v2669
        %v7591 = vmul.f32 %v6231, %v2669
        %v7592 = vmul.f32 %v6232, %v2669
        %v7593 = vmul.f32 %v6233, %v2669
        %v7594 = vmul.f32 %v6234, %v2669
        %v7595 = vmul.f32 %v6235, %v2669
        %v7596 = vpack.c.bf16 %v7580, %v7580
        %v7597 = vpack.c.bf16 %v7581, %v7581
        %v7598 = vpack.c.bf16 %v7582, %v7582
        %v7599 = vpack.c.bf16 %v7583, %v7583
        %v7600 = vpack.c.bf16 %v7584, %v7584
        %v7601 = vpack.c.bf16 %v7585, %v7585
        %v7602 = vpack.c.bf16 %v7586, %v7586
        %v7603 = vpack.c.bf16 %v7587, %v7587
        %v7604 = vpack.c.bf16 %v7588, %v7588
        %v7605 = vpack.c.bf16 %v7589, %v7589
        %v7606 = vpack.c.bf16 %v7590, %v7590
        %v7607 = vpack.c.bf16 %v7591, %v7591
        %v7608 = vpack.c.bf16 %v7592, %v7592
        %v7609 = vpack.c.bf16 %v7593, %v7593
        %v7610 = vpack.c.bf16 %v7594, %v7594
        %v7611 = vpack.c.bf16 %v7595, %v7595
        %v7614 = vunpack.c.l.b16 %v7596
        %v7615 = vunpack.c.l.b16 %v7597
        %v7616 = vpack.c.b16 %v7615, %v7614
        %7618 = vmatpush.bf16.xpose.msra.mxu0 0
        %7619 = vmatpush.bf16.xpose.msra.mxu0 0
        %7620 = vmatpush.bf16.xpose.msra.mxu0 0
        %7621 = vmatpush.bf16.xpose.msra.mxu0 0
        %7622 = vmatpush.bf16.xpose.msra.mxu0 0
        %7623 = vmatpush.bf16.xpose.msra.mxu0 0
        %7624 = vmatpush.bf16.xpose.msra.mxu0 0
        %7625 = vmatpush.bf16.xpose.msra.mxu0 %v7616
        %7626 = vmatmul.bf16.gmra.mxu0 %v6272
        %v7627 = vpop.f32.mrf.mxu0
        %v7628 = vadd.f32 0.0, %v7627
        %v7629 = vpop.f32.mrf.mxu0
        %v7630 = vadd.f32 0.0, %v7629
        %7631 = vdwg.mxu0
        %v7634 = vunpack.c.l.b16 %v7598
        %v7635 = vunpack.c.l.b16 %v7599
        %v7636 = vpack.c.b16 %v7635, %v7634
        %7638 = vmatpush.bf16.xpose.msra.mxu0 0
        %7639 = vmatpush.bf16.xpose.msra.mxu0 0
        %7640 = vmatpush.bf16.xpose.msra.mxu0 0
        %7641 = vmatpush.bf16.xpose.msra.mxu0 0
        %7642 = vmatpush.bf16.xpose.msra.mxu0 0
        %7643 = vmatpush.bf16.xpose.msra.mxu0 0
        %7644 = vmatpush.bf16.xpose.msra.mxu0 0
        %7645 = vmatpush.bf16.xpose.msra.mxu0 %v7636
        %7646 = vmatmul.bf16.gmra.mxu0 %v6298
        %v7647 = vpop.f32.mrf.mxu0
        %v7648 = vadd.f32 0.0, %v7647
        %v7649 = vpop.f32.mrf.mxu0
        %v7650 = vadd.f32 0.0, %v7649
        %7651 = vdwg.mxu0
        %v7654 = vunpack.c.l.b16 %v7600
        %v7655 = vunpack.c.l.b16 %v7601
        %v7656 = vpack.c.b16 %v7655, %v7654
        %7658 = vmatpush.bf16.xpose.msra.mxu0 0
        %7659 = vmatpush.bf16.xpose.msra.mxu0 0
        %7660 = vmatpush.bf16.xpose.msra.mxu0 0
        %7661 = vmatpush.bf16.xpose.msra.mxu0 0
        %7662 = vmatpush.bf16.xpose.msra.mxu0 0
        %7663 = vmatpush.bf16.xpose.msra.mxu0 0
        %7664 = vmatpush.bf16.xpose.msra.mxu0 0
        %7665 = vmatpush.bf16.xpose.msra.mxu0 %v7656
        %7666 = vmatmul.bf16.gmra.mxu0 %v6324
        %v7667 = vpop.f32.mrf.mxu0
        %v7668 = vadd.f32 0.0, %v7667
        %v7669 = vpop.f32.mrf.mxu0
        %v7670 = vadd.f32 0.0, %v7669
        %7671 = vdwg.mxu0
        %v7674 = vunpack.c.l.b16 %v7602
        %v7675 = vunpack.c.l.b16 %v7603
        %v7676 = vpack.c.b16 %v7675, %v7674
        %7678 = vmatpush.bf16.xpose.msra.mxu0 0
        %7679 = vmatpush.bf16.xpose.msra.mxu0 0
        %7680 = vmatpush.bf16.xpose.msra.mxu0 0
        %7681 = vmatpush.bf16.xpose.msra.mxu0 0
        %7682 = vmatpush.bf16.xpose.msra.mxu0 0
        %7683 = vmatpush.bf16.xpose.msra.mxu0 0
        %7684 = vmatpush.bf16.xpose.msra.mxu0 0
        %7685 = vmatpush.bf16.xpose.msra.mxu0 %v7676
        %7686 = vmatmul.bf16.gmra.mxu0 %v6350
        %v7687 = vpop.f32.mrf.mxu0
        %v7688 = vadd.f32 0.0, %v7687
        %v7689 = vpop.f32.mrf.mxu0
        %v7690 = vadd.f32 0.0, %v7689
        %7691 = vdwg.mxu0
        %v7694 = vunpack.c.l.b16 %v7604
        %v7695 = vunpack.c.l.b16 %v7605
        %v7696 = vpack.c.b16 %v7695, %v7694
        %7698 = vmatpush.bf16.xpose.msra.mxu0 0
        %7699 = vmatpush.bf16.xpose.msra.mxu0 0
        %7700 = vmatpush.bf16.xpose.msra.mxu0 0
        %7701 = vmatpush.bf16.xpose.msra.mxu0 0
        %7702 = vmatpush.bf16.xpose.msra.mxu0 0
        %7703 = vmatpush.bf16.xpose.msra.mxu0 0
        %7704 = vmatpush.bf16.xpose.msra.mxu0 0
        %7705 = vmatpush.bf16.xpose.msra.mxu0 %v7696
        %7706 = vmatmul.bf16.gmra.mxu0 %v6376
        %v7707 = vpop.f32.mrf.mxu0
        %v7708 = vadd.f32 0.0, %v7707
        %v7709 = vpop.f32.mrf.mxu0
        %v7710 = vadd.f32 0.0, %v7709
        %7711 = vdwg.mxu0
        %v7714 = vunpack.c.l.b16 %v7606
        %v7715 = vunpack.c.l.b16 %v7607
        %v7716 = vpack.c.b16 %v7715, %v7714
        %7718 = vmatpush.bf16.xpose.msra.mxu0 0
        %7719 = vmatpush.bf16.xpose.msra.mxu0 0
        %7720 = vmatpush.bf16.xpose.msra.mxu0 0
        %7721 = vmatpush.bf16.xpose.msra.mxu0 0
        %7722 = vmatpush.bf16.xpose.msra.mxu0 0
        %7723 = vmatpush.bf16.xpose.msra.mxu0 0
        %7724 = vmatpush.bf16.xpose.msra.mxu0 0
        %7725 = vmatpush.bf16.xpose.msra.mxu0 %v7716
        %7726 = vmatmul.bf16.gmra.mxu0 %v6402
        %v7727 = vpop.f32.mrf.mxu0
        %v7728 = vadd.f32 0.0, %v7727
        %v7729 = vpop.f32.mrf.mxu0
        %v7730 = vadd.f32 0.0, %v7729
        %7731 = vdwg.mxu0
        %v7734 = vunpack.c.l.b16 %v7608
        %v7735 = vunpack.c.l.b16 %v7609
        %v7736 = vpack.c.b16 %v7735, %v7734
        %7738 = vmatpush.bf16.xpose.msra.mxu0 0
        %7739 = vmatpush.bf16.xpose.msra.mxu0 0
        %7740 = vmatpush.bf16.xpose.msra.mxu0 0
        %7741 = vmatpush.bf16.xpose.msra.mxu0 0
        %7742 = vmatpush.bf16.xpose.msra.mxu0 0
        %7743 = vmatpush.bf16.xpose.msra.mxu0 0
        %7744 = vmatpush.bf16.xpose.msra.mxu0 0
        %7745 = vmatpush.bf16.xpose.msra.mxu0 %v7736
        %7746 = vmatmul.bf16.gmra.mxu0 %v6428
        %v7747 = vpop.f32.mrf.mxu0
        %v7748 = vadd.f32 0.0, %v7747
        %v7749 = vpop.f32.mrf.mxu0
        %v7750 = vadd.f32 0.0, %v7749
        %7751 = vdwg.mxu0
        %v7754 = vunpack.c.l.b16 %v7610
        %v7755 = vunpack.c.l.b16 %v7611
        %v7756 = vpack.c.b16 %v7755, %v7754
        %7758 = vmatpush.bf16.xpose.msra.mxu0 0
        %7759 = vmatpush.bf16.xpose.msra.mxu0 0
        %7760 = vmatpush.bf16.xpose.msra.mxu0 0
        %7761 = vmatpush.bf16.xpose.msra.mxu0 0
        %7762 = vmatpush.bf16.xpose.msra.mxu0 0
        %7763 = vmatpush.bf16.xpose.msra.mxu0 0
        %7764 = vmatpush.bf16.xpose.msra.mxu0 0
        %7765 = vmatpush.bf16.xpose.msra.mxu0 %v7756
        %7766 = vmatmul.bf16.gmra.mxu0 %v6454
        %v7767 = vpop.f32.mrf.mxu0
        %v7768 = vadd.f32 0.0, %v7767
        %v7769 = vpop.f32.mrf.mxu0
        %v7770 = vadd.f32 0.0, %v7769
        %7771 = vdwg.mxu0
        %v7772 = vsel %vm1551, %v7628, -inf
        %7773 = vmax.xlane.f32.xlu0 %v7772
        %v7774 = vpop.xlane.xlu0 %7773
        %v7775 = vsel %vm1551, %v7630, -inf
        %7776 = vmax.xlane.f32.xlu0 %v7775
        %v7777 = vpop.xlane.xlu0 %7776
        %v7778 = vsel %vm1551, %v7648, -inf
        %7779 = vmax.xlane.f32.xlu0 %v7778
        %v7780 = vpop.xlane.xlu0 %7779
        %v7781 = vsel %vm1551, %v7650, -inf
        %7782 = vmax.xlane.f32.xlu0 %v7781
        %v7783 = vpop.xlane.xlu0 %7782
        %v7784 = vsel %vm1551, %v7668, -inf
        %7785 = vmax.xlane.f32.xlu0 %v7784
        %v7786 = vpop.xlane.xlu0 %7785
        %v7787 = vsel %vm1551, %v7670, -inf
        %7788 = vmax.xlane.f32.xlu0 %v7787
        %v7789 = vpop.xlane.xlu0 %7788
        %v7790 = vsel %vm1551, %v7688, -inf
        %7791 = vmax.xlane.f32.xlu0 %v7790
        %v7792 = vpop.xlane.xlu0 %7791
        %v7793 = vsel %vm1551, %v7690, -inf
        %7794 = vmax.xlane.f32.xlu0 %v7793
        %v7795 = vpop.xlane.xlu0 %7794
        %v7796 = vsel %vm1551, %v7708, -inf
        %7797 = vmax.xlane.f32.xlu0 %v7796
        %v7798 = vpop.xlane.xlu0 %7797
        %v7799 = vsel %vm1551, %v7710, -inf
        %7800 = vmax.xlane.f32.xlu0 %v7799
        %v7801 = vpop.xlane.xlu0 %7800
        %v7802 = vsel %vm1551, %v7728, -inf
        %7803 = vmax.xlane.f32.xlu0 %v7802
        %v7804 = vpop.xlane.xlu0 %7803
        %v7805 = vsel %vm1551, %v7730, -inf
        %7806 = vmax.xlane.f32.xlu0 %v7805
        %v7807 = vpop.xlane.xlu0 %7806
        %v7808 = vsel %vm1551, %v7748, -inf
        %7809 = vmax.xlane.f32.xlu0 %v7808
        %v7810 = vpop.xlane.xlu0 %7809
        %v7811 = vsel %vm1551, %v7750, -inf
        %7812 = vmax.xlane.f32.xlu0 %v7811
        %v7813 = vpop.xlane.xlu0 %7812
        %v7814 = vsel %vm1551, %v7768, -inf
        %7815 = vmax.xlane.f32.xlu0 %v7814
        %v7816 = vpop.xlane.xlu0 %7815
        %v7817 = vsel %vm1551, %v7770, -inf
        %7818 = vmax.xlane.f32.xlu0 %v7817
        %v7819 = vpop.xlane.xlu0 %7818
        %v7820 = vsub.f32 %v7628, %v7774
        %v7821 = vsub.f32 %v7630, %v7777
        %v7822 = vsub.f32 %v7648, %v7780
        %v7823 = vsub.f32 %v7650, %v7783
        %v7824 = vsub.f32 %v7668, %v7786
        %v7825 = vsub.f32 %v7670, %v7789
        %v7826 = vsub.f32 %v7688, %v7792
        %v7827 = vsub.f32 %v7690, %v7795
        %v7828 = vsub.f32 %v7708, %v7798
        %v7829 = vsub.f32 %v7710, %v7801
        %v7830 = vsub.f32 %v7728, %v7804
        %v7831 = vsub.f32 %v7730, %v7807
        %v7832 = vsub.f32 %v7748, %v7810
        %v7833 = vsub.f32 %v7750, %v7813
        %v7834 = vsub.f32 %v7768, %v7816
        %v7835 = vsub.f32 %v7770, %v7819
        %v7836 = vmul.f32 %v7820, 1.442695
        %v7837 = vpow.pop %v7836
        %v7838 = vmul.f32 %v7821, 1.442695
        %v7839 = vpow.pop %v7838
        %v7840 = vmul.f32 %v7822, 1.442695
        %v7841 = vpow.pop %v7840
        %v7842 = vmul.f32 %v7823, 1.442695
        %v7843 = vpow.pop %v7842
        %v7844 = vmul.f32 %v7824, 1.442695
        %v7845 = vpow.pop %v7844
        %v7846 = vmul.f32 %v7825, 1.442695
        %v7847 = vpow.pop %v7846
        %v7848 = vmul.f32 %v7826, 1.442695
        %v7849 = vpow.pop %v7848
        %v7850 = vmul.f32 %v7827, 1.442695
        %v7851 = vpow.pop %v7850
        %v7852 = vmul.f32 %v7828, 1.442695
        %v7853 = vpow.pop %v7852
        %v7854 = vmul.f32 %v7829, 1.442695
        %v7855 = vpow.pop %v7854
        %v7856 = vmul.f32 %v7830, 1.442695
        %v7857 = vpow.pop %v7856
        %v7858 = vmul.f32 %v7831, 1.442695
        %v7859 = vpow.pop %v7858
        %v7860 = vmul.f32 %v7832, 1.442695
        %v7861 = vpow.pop %v7860
        %v7862 = vmul.f32 %v7833, 1.442695
        %v7863 = vpow.pop %v7862
        %v7864 = vmul.f32 %v7834, 1.442695
        %v7865 = vpow.pop %v7864
        %v7866 = vmul.f32 %v7835, 1.442695
        %v7867 = vpow.pop %v7866
        %v7868 = vsel %vm1551, %v7837, 0.0
        %7869 = vadd.xlane.f32.xlu0 %v7868
        %v7870 = vpop.xlane.xlu0 %7869
        %v7871 = vsel %vm1551, %v7839, 0.0
        %7872 = vadd.xlane.f32.xlu0 %v7871
        %v7873 = vpop.xlane.xlu0 %7872
        %v7874 = vsel %vm1551, %v7841, 0.0
        %7875 = vadd.xlane.f32.xlu0 %v7874
        %v7876 = vpop.xlane.xlu0 %7875
        %v7877 = vsel %vm1551, %v7843, 0.0
        %7878 = vadd.xlane.f32.xlu0 %v7877
        %v7879 = vpop.xlane.xlu0 %7878
        %v7880 = vsel %vm1551, %v7845, 0.0
        %7881 = vadd.xlane.f32.xlu0 %v7880
        %v7882 = vpop.xlane.xlu0 %7881
        %v7883 = vsel %vm1551, %v7847, 0.0
        %7884 = vadd.xlane.f32.xlu0 %v7883
        %v7885 = vpop.xlane.xlu0 %7884
        %v7886 = vsel %vm1551, %v7849, 0.0
        %7887 = vadd.xlane.f32.xlu0 %v7886
        %v7888 = vpop.xlane.xlu0 %7887
        %v7889 = vsel %vm1551, %v7851, 0.0
        %7890 = vadd.xlane.f32.xlu0 %v7889
        %v7891 = vpop.xlane.xlu0 %7890
        %v7892 = vsel %vm1551, %v7853, 0.0
        %7893 = vadd.xlane.f32.xlu0 %v7892
        %v7894 = vpop.xlane.xlu0 %7893
        %v7895 = vsel %vm1551, %v7855, 0.0
        %7896 = vadd.xlane.f32.xlu0 %v7895
        %v7897 = vpop.xlane.xlu0 %7896
        %v7898 = vsel %vm1551, %v7857, 0.0
        %7899 = vadd.xlane.f32.xlu0 %v7898
        %v7900 = vpop.xlane.xlu0 %7899
        %v7901 = vsel %vm1551, %v7859, 0.0
        %7902 = vadd.xlane.f32.xlu0 %v7901
        %v7903 = vpop.xlane.xlu0 %7902
        %v7904 = vsel %vm1551, %v7861, 0.0
        %7905 = vadd.xlane.f32.xlu0 %v7904
        %v7906 = vpop.xlane.xlu0 %7905
        %v7907 = vsel %vm1551, %v7863, 0.0
        %7908 = vadd.xlane.f32.xlu0 %v7907
        %v7909 = vpop.xlane.xlu0 %7908
        %v7910 = vsel %vm1551, %v7865, 0.0
        %7911 = vadd.xlane.f32.xlu0 %v7910
        %v7912 = vpop.xlane.xlu0 %7911
        %v7913 = vsel %vm1551, %v7867, 0.0
        %7914 = vadd.xlane.f32.xlu0 %v7913
        %v7915 = vpop.xlane.xlu0 %7914
        %v7916 = vrcp.pop %v7870
        %v7917 = vrcp.pop %v7873
        %v7918 = vrcp.pop %v7876
        %v7919 = vrcp.pop %v7879
        %v7920 = vrcp.pop %v7882
        %v7921 = vrcp.pop %v7885
        %v7922 = vrcp.pop %v7888
        %v7923 = vrcp.pop %v7891
        %v7924 = vrcp.pop %v7894
        %v7925 = vrcp.pop %v7897
        %v7926 = vrcp.pop %v7900
        %v7927 = vrcp.pop %v7903
        %v7928 = vrcp.pop %v7906
        %v7929 = vrcp.pop %v7909
        %v7930 = vrcp.pop %v7912
        %v7931 = vrcp.pop %v7915
        %v7932 = vmul.f32 %v7837, %v7916
        %v7933 = vmul.f32 %v7839, %v7917
        %v7934 = vmul.f32 %v7841, %v7918
        %v7935 = vmul.f32 %v7843, %v7919
        %v7936 = vmul.f32 %v7845, %v7920
        %v7937 = vmul.f32 %v7847, %v7921
        %v7938 = vmul.f32 %v7849, %v7922
        %v7939 = vmul.f32 %v7851, %v7923
        %v7940 = vmul.f32 %v7853, %v7924
        %v7941 = vmul.f32 %v7855, %v7925
        %v7942 = vmul.f32 %v7857, %v7926
        %v7943 = vmul.f32 %v7859, %v7927
        %v7944 = vmul.f32 %v7861, %v7928
        %v7945 = vmul.f32 %v7863, %v7929
        %v7946 = vmul.f32 %v7865, %v7930
        %v7947 = vmul.f32 %v7867, %v7931
        %v7948 = vpack.c.bf16 %v7932, %v7932
        %v7949 = vpack.c.bf16 %v7933, %v7933
        %v7950 = vpack.c.bf16 %v7934, %v7934
        %v7951 = vpack.c.bf16 %v7935, %v7935
        %v7952 = vpack.c.bf16 %v7936, %v7936
        %v7953 = vpack.c.bf16 %v7937, %v7937
        %v7954 = vpack.c.bf16 %v7938, %v7938
        %v7955 = vpack.c.bf16 %v7939, %v7939
        %v7956 = vpack.c.bf16 %v7940, %v7940
        %v7957 = vpack.c.bf16 %v7941, %v7941
        %v7958 = vpack.c.bf16 %v7942, %v7942
        %v7959 = vpack.c.bf16 %v7943, %v7943
        %v7960 = vpack.c.bf16 %v7944, %v7944
        %v7961 = vpack.c.bf16 %v7945, %v7945
        %v7962 = vpack.c.bf16 %v7946, %v7946
        %v7963 = vpack.c.bf16 %v7947, %v7947
        %v7964 = vmul.f32 %v6668, %v2669
        %v7965 = vmul.f32 %v6669, %v2669
        %v7966 = vmul.f32 %v6670, %v2669
        %v7967 = vmul.f32 %v6671, %v2669
        %v7968 = vmul.f32 %v6672, %v2669
        %v7969 = vmul.f32 %v6673, %v2669
        %v7970 = vmul.f32 %v6674, %v2669
        %v7971 = vmul.f32 %v6675, %v2669
        %v7972 = vmul.f32 %v6676, %v2669
        %v7973 = vmul.f32 %v6677, %v2669
        %v7974 = vmul.f32 %v6678, %v2669
        %v7975 = vmul.f32 %v6679, %v2669
        %v7976 = vmul.f32 %v6680, %v2669
        %v7977 = vmul.f32 %v6681, %v2669
        %v7978 = vmul.f32 %v6682, %v2669
        %v7979 = vmul.f32 %v6683, %v2669
        %v7980 = vpack.c.bf16 %v7964, %v7964
        %v7981 = vpack.c.bf16 %v7965, %v7965
        %v7982 = vpack.c.bf16 %v7966, %v7966
        %v7983 = vpack.c.bf16 %v7967, %v7967
        %v7984 = vpack.c.bf16 %v7968, %v7968
        %v7985 = vpack.c.bf16 %v7969, %v7969
        %v7986 = vpack.c.bf16 %v7970, %v7970
        %v7987 = vpack.c.bf16 %v7971, %v7971
        %v7988 = vpack.c.bf16 %v7972, %v7972
        %v7989 = vpack.c.bf16 %v7973, %v7973
        %v7990 = vpack.c.bf16 %v7974, %v7974
        %v7991 = vpack.c.bf16 %v7975, %v7975
        %v7992 = vpack.c.bf16 %v7976, %v7976
        %v7993 = vpack.c.bf16 %v7977, %v7977
        %v7994 = vpack.c.bf16 %v7978, %v7978
        %v7995 = vpack.c.bf16 %v7979, %v7979
        %v7998 = vunpack.c.l.b16 %v7948
        %v7999 = vunpack.c.l.b16 %v7949
        %v8000 = vpack.c.b16 %v7999, %v7998
        %v8003 = vunpack.c.l.b16 %v7980
        %v8004 = vunpack.c.l.b16 %v7981
        %v8005 = vpack.c.b16 %v8004, %v8003
        %v8008 = vsel %vm1551, %v8000, 0
        %8010 = vmatpush.bf16.msra.mxu0 0
        %8011 = vmatpush.bf16.msra.mxu0 0
        %8012 = vmatpush.bf16.msra.mxu0 0
        %8013 = vmatpush.bf16.msra.mxu0 0
        %8014 = vmatpush.bf16.msra.mxu0 0
        %8015 = vmatpush.bf16.msra.mxu0 0
        %8016 = vmatpush.bf16.msra.mxu0 0
        %8017 = vmatpush.bf16.msra.mxu0 %v8005
        %8018 = vmatmul.bf16.gmra.mxu0 %v8008
        %v8019 = vpop.f32.mrf.mxu0
        %v8020 = vadd.f32 0.0, %v8019
        %v8021 = vpop.f32.mrf.mxu0
        %v8022 = vadd.f32 0.0, %v8021
        %8023 = vdwg.mxu0
        %v8026 = vunpack.c.l.b16 %v7950
        %v8027 = vunpack.c.l.b16 %v7951
        %v8028 = vpack.c.b16 %v8027, %v8026
        %v8031 = vunpack.c.l.b16 %v7982
        %v8032 = vunpack.c.l.b16 %v7983
        %v8033 = vpack.c.b16 %v8032, %v8031
        %v8036 = vsel %vm1551, %v8028, 0
        %8038 = vmatpush.bf16.msra.mxu0 0
        %8039 = vmatpush.bf16.msra.mxu0 0
        %8040 = vmatpush.bf16.msra.mxu0 0
        %8041 = vmatpush.bf16.msra.mxu0 0
        %8042 = vmatpush.bf16.msra.mxu0 0
        %8043 = vmatpush.bf16.msra.mxu0 0
        %8044 = vmatpush.bf16.msra.mxu0 0
        %8045 = vmatpush.bf16.msra.mxu0 %v8033
        %8046 = vmatmul.bf16.gmra.mxu0 %v8036
        %v8047 = vpop.f32.mrf.mxu0
        %v8048 = vadd.f32 0.0, %v8047
        %v8049 = vpop.f32.mrf.mxu0
        %v8050 = vadd.f32 0.0, %v8049
        %8051 = vdwg.mxu0
        %v8054 = vunpack.c.l.b16 %v7952
        %v8055 = vunpack.c.l.b16 %v7953
        %v8056 = vpack.c.b16 %v8055, %v8054
        %v8059 = vunpack.c.l.b16 %v7984
        %v8060 = vunpack.c.l.b16 %v7985
        %v8061 = vpack.c.b16 %v8060, %v8059
        %v8064 = vsel %vm1551, %v8056, 0
        %8066 = vmatpush.bf16.msra.mxu0 0
        %8067 = vmatpush.bf16.msra.mxu0 0
        %8068 = vmatpush.bf16.msra.mxu0 0
        %8069 = vmatpush.bf16.msra.mxu0 0
        %8070 = vmatpush.bf16.msra.mxu0 0
        %8071 = vmatpush.bf16.msra.mxu0 0
        %8072 = vmatpush.bf16.msra.mxu0 0
        %8073 = vmatpush.bf16.msra.mxu0 %v8061
        %8074 = vmatmul.bf16.gmra.mxu0 %v8064
        %v8075 = vpop.f32.mrf.mxu0
        %v8076 = vadd.f32 0.0, %v8075
        %v8077 = vpop.f32.mrf.mxu0
        %v8078 = vadd.f32 0.0, %v8077
        %8079 = vdwg.mxu0
        %v8082 = vunpack.c.l.b16 %v7954
        %v8083 = vunpack.c.l.b16 %v7955
        %v8084 = vpack.c.b16 %v8083, %v8082
        %v8087 = vunpack.c.l.b16 %v7986
        %v8088 = vunpack.c.l.b16 %v7987
        %v8089 = vpack.c.b16 %v8088, %v8087
        %v8092 = vsel %vm1551, %v8084, 0
        %8094 = vmatpush.bf16.msra.mxu0 0
        %8095 = vmatpush.bf16.msra.mxu0 0
        %8096 = vmatpush.bf16.msra.mxu0 0
        %8097 = vmatpush.bf16.msra.mxu0 0
        %8098 = vmatpush.bf16.msra.mxu0 0
        %8099 = vmatpush.bf16.msra.mxu0 0
        %8100 = vmatpush.bf16.msra.mxu0 0
        %8101 = vmatpush.bf16.msra.mxu0 %v8089
        %8102 = vmatmul.bf16.gmra.mxu0 %v8092
        %v8103 = vpop.f32.mrf.mxu0
        %v8104 = vadd.f32 0.0, %v8103
        %v8105 = vpop.f32.mrf.mxu0
        %v8106 = vadd.f32 0.0, %v8105
        %8107 = vdwg.mxu0
        %v8110 = vunpack.c.l.b16 %v7956
        %v8111 = vunpack.c.l.b16 %v7957
        %v8112 = vpack.c.b16 %v8111, %v8110
        %v8115 = vunpack.c.l.b16 %v7988
        %v8116 = vunpack.c.l.b16 %v7989
        %v8117 = vpack.c.b16 %v8116, %v8115
        %v8120 = vsel %vm1551, %v8112, 0
        %8122 = vmatpush.bf16.msra.mxu0 0
        %8123 = vmatpush.bf16.msra.mxu0 0
        %8124 = vmatpush.bf16.msra.mxu0 0
        %8125 = vmatpush.bf16.msra.mxu0 0
        %8126 = vmatpush.bf16.msra.mxu0 0
        %8127 = vmatpush.bf16.msra.mxu0 0
        %8128 = vmatpush.bf16.msra.mxu0 0
        %8129 = vmatpush.bf16.msra.mxu0 %v8117
        %8130 = vmatmul.bf16.gmra.mxu0 %v8120
        %v8131 = vpop.f32.mrf.mxu0
        %v8132 = vadd.f32 0.0, %v8131
        %v8133 = vpop.f32.mrf.mxu0
        %v8134 = vadd.f32 0.0, %v8133
        %8135 = vdwg.mxu0
        %v8138 = vunpack.c.l.b16 %v7958
        %v8139 = vunpack.c.l.b16 %v7959
        %v8140 = vpack.c.b16 %v8139, %v8138
        %v8143 = vunpack.c.l.b16 %v7990
        %v8144 = vunpack.c.l.b16 %v7991
        %v8145 = vpack.c.b16 %v8144, %v8143
        %v8148 = vsel %vm1551, %v8140, 0
        %8150 = vmatpush.bf16.msra.mxu0 0
        %8151 = vmatpush.bf16.msra.mxu0 0
        %8152 = vmatpush.bf16.msra.mxu0 0
        %8153 = vmatpush.bf16.msra.mxu0 0
        %8154 = vmatpush.bf16.msra.mxu0 0
        %8155 = vmatpush.bf16.msra.mxu0 0
        %8156 = vmatpush.bf16.msra.mxu0 0
        %8157 = vmatpush.bf16.msra.mxu0 %v8145
        %8158 = vmatmul.bf16.gmra.mxu0 %v8148
        %v8159 = vpop.f32.mrf.mxu0
        %v8160 = vadd.f32 0.0, %v8159
        %v8161 = vpop.f32.mrf.mxu0
        %v8162 = vadd.f32 0.0, %v8161
        %8163 = vdwg.mxu0
        %v8166 = vunpack.c.l.b16 %v7960
        %v8167 = vunpack.c.l.b16 %v7961
        %v8168 = vpack.c.b16 %v8167, %v8166
        %v8171 = vunpack.c.l.b16 %v7992
        %v8172 = vunpack.c.l.b16 %v7993
        %v8173 = vpack.c.b16 %v8172, %v8171
        %v8176 = vsel %vm1551, %v8168, 0
        %8178 = vmatpush.bf16.msra.mxu0 0
        %8179 = vmatpush.bf16.msra.mxu0 0
        %8180 = vmatpush.bf16.msra.mxu0 0
        %8181 = vmatpush.bf16.msra.mxu0 0
        %8182 = vmatpush.bf16.msra.mxu0 0
        %8183 = vmatpush.bf16.msra.mxu0 0
        %8184 = vmatpush.bf16.msra.mxu0 0
        %8185 = vmatpush.bf16.msra.mxu0 %v8173
        %8186 = vmatmul.bf16.gmra.mxu0 %v8176
        %v8187 = vpop.f32.mrf.mxu0
        %v8188 = vadd.f32 0.0, %v8187
        %v8189 = vpop.f32.mrf.mxu0
        %v8190 = vadd.f32 0.0, %v8189
        %8191 = vdwg.mxu0
        %v8194 = vunpack.c.l.b16 %v7962
        %v8195 = vunpack.c.l.b16 %v7963
        %v8196 = vpack.c.b16 %v8195, %v8194
        %v8199 = vunpack.c.l.b16 %v7994
        %v8200 = vunpack.c.l.b16 %v7995
        %v8201 = vpack.c.b16 %v8200, %v8199
        %v8204 = vsel %vm1551, %v8196, 0
        %8206 = vmatpush.bf16.msra.mxu0 0
        %8207 = vmatpush.bf16.msra.mxu0 0
        %8208 = vmatpush.bf16.msra.mxu0 0
        %8209 = vmatpush.bf16.msra.mxu0 0
        %8210 = vmatpush.bf16.msra.mxu0 0
        %8211 = vmatpush.bf16.msra.mxu0 0
        %8212 = vmatpush.bf16.msra.mxu0 0
        %8213 = vmatpush.bf16.msra.mxu0 %v8201
        %8214 = vmatmul.bf16.gmra.mxu0 %v8204
        %v8215 = vpop.f32.mrf.mxu0
        %v8216 = vadd.f32 0.0, %v8215
        %v8217 = vpop.f32.mrf.mxu0
        %v8218 = vadd.f32 0.0, %v8217
        %8219 = vdwg.mxu0
        %v8220 = vadd.f32 %v7380, %v8020
        %v8221 = vadd.f32 %v7382, %v8022
        %v8222 = vadd.f32 %v7408, %v8048
        %v8223 = vadd.f32 %v7410, %v8050
        %v8224 = vadd.f32 %v7436, %v8076
        %v8225 = vadd.f32 %v7438, %v8078
        %v8226 = vadd.f32 %v7464, %v8104
        %v8227 = vadd.f32 %v7466, %v8106
        %v8228 = vadd.f32 %v7492, %v8132
        %v8229 = vadd.f32 %v7494, %v8134
        %v8230 = vadd.f32 %v7520, %v8160
        %v8231 = vadd.f32 %v7522, %v8162
        %v8232 = vadd.f32 %v7548, %v8188
        %v8233 = vadd.f32 %v7550, %v8190
        %v8234 = vadd.f32 %v7576, %v8216
        %v8235 = vadd.f32 %v7578, %v8218
        %v8236 = vmul.f32 %v6220, %v3332
        %v8237 = vmul.f32 %v6221, %v3332
        %v8238 = vmul.f32 %v6222, %v3332
        %v8239 = vmul.f32 %v6223, %v3332
        %v8240 = vmul.f32 %v6224, %v3332
        %v8241 = vmul.f32 %v6225, %v3332
        %v8242 = vmul.f32 %v6226, %v3332
        %v8243 = vmul.f32 %v6227, %v3332
        %v8244 = vmul.f32 %v6228, %v3332
        %v8245 = vmul.f32 %v6229, %v3332
        %v8246 = vmul.f32 %v6230, %v3332
        %v8247 = vmul.f32 %v6231, %v3332
        %v8248 = vmul.f32 %v6232, %v3332
        %v8249 = vmul.f32 %v6233, %v3332
        %v8250 = vmul.f32 %v6234, %v3332
        %v8251 = vmul.f32 %v6235, %v3332
        %v8252 = vpack.c.bf16 %v8236, %v8236
        %v8253 = vpack.c.bf16 %v8237, %v8237
        %v8254 = vpack.c.bf16 %v8238, %v8238
        %v8255 = vpack.c.bf16 %v8239, %v8239
        %v8256 = vpack.c.bf16 %v8240, %v8240
        %v8257 = vpack.c.bf16 %v8241, %v8241
        %v8258 = vpack.c.bf16 %v8242, %v8242
        %v8259 = vpack.c.bf16 %v8243, %v8243
        %v8260 = vpack.c.bf16 %v8244, %v8244
        %v8261 = vpack.c.bf16 %v8245, %v8245
        %v8262 = vpack.c.bf16 %v8246, %v8246
        %v8263 = vpack.c.bf16 %v8247, %v8247
        %v8264 = vpack.c.bf16 %v8248, %v8248
        %v8265 = vpack.c.bf16 %v8249, %v8249
        %v8266 = vpack.c.bf16 %v8250, %v8250
        %v8267 = vpack.c.bf16 %v8251, %v8251
        %v8270 = vunpack.c.l.b16 %v8252
        %v8271 = vunpack.c.l.b16 %v8253
        %v8272 = vpack.c.b16 %v8271, %v8270
        %8274 = vmatpush.bf16.xpose.msra.mxu0 0
        %8275 = vmatpush.bf16.xpose.msra.mxu0 0
        %8276 = vmatpush.bf16.xpose.msra.mxu0 0
        %8277 = vmatpush.bf16.xpose.msra.mxu0 0
        %8278 = vmatpush.bf16.xpose.msra.mxu0 0
        %8279 = vmatpush.bf16.xpose.msra.mxu0 0
        %8280 = vmatpush.bf16.xpose.msra.mxu0 0
        %8281 = vmatpush.bf16.xpose.msra.mxu0 %v8272
        %8282 = vmatmul.bf16.gmra.mxu0 %v6272
        %v8283 = vpop.f32.mrf.mxu0
        %v8284 = vadd.f32 0.0, %v8283
        %v8285 = vpop.f32.mrf.mxu0
        %v8286 = vadd.f32 0.0, %v8285
        %8287 = vdwg.mxu0
        %v8290 = vunpack.c.l.b16 %v8254
        %v8291 = vunpack.c.l.b16 %v8255
        %v8292 = vpack.c.b16 %v8291, %v8290
        %8294 = vmatpush.bf16.xpose.msra.mxu0 0
        %8295 = vmatpush.bf16.xpose.msra.mxu0 0
        %8296 = vmatpush.bf16.xpose.msra.mxu0 0
        %8297 = vmatpush.bf16.xpose.msra.mxu0 0
        %8298 = vmatpush.bf16.xpose.msra.mxu0 0
        %8299 = vmatpush.bf16.xpose.msra.mxu0 0
        %8300 = vmatpush.bf16.xpose.msra.mxu0 0
        %8301 = vmatpush.bf16.xpose.msra.mxu0 %v8292
        %8302 = vmatmul.bf16.gmra.mxu0 %v6298
        %v8303 = vpop.f32.mrf.mxu0
        %v8304 = vadd.f32 0.0, %v8303
        %v8305 = vpop.f32.mrf.mxu0
        %v8306 = vadd.f32 0.0, %v8305
        %8307 = vdwg.mxu0
        %v8310 = vunpack.c.l.b16 %v8256
        %v8311 = vunpack.c.l.b16 %v8257
        %v8312 = vpack.c.b16 %v8311, %v8310
        %8314 = vmatpush.bf16.xpose.msra.mxu0 0
        %8315 = vmatpush.bf16.xpose.msra.mxu0 0
        %8316 = vmatpush.bf16.xpose.msra.mxu0 0
        %8317 = vmatpush.bf16.xpose.msra.mxu0 0
        %8318 = vmatpush.bf16.xpose.msra.mxu0 0
        %8319 = vmatpush.bf16.xpose.msra.mxu0 0
        %8320 = vmatpush.bf16.xpose.msra.mxu0 0
        %8321 = vmatpush.bf16.xpose.msra.mxu0 %v8312
        %8322 = vmatmul.bf16.gmra.mxu0 %v6324
        %v8323 = vpop.f32.mrf.mxu0
        %v8324 = vadd.f32 0.0, %v8323
        %v8325 = vpop.f32.mrf.mxu0
        %v8326 = vadd.f32 0.0, %v8325
        %8327 = vdwg.mxu0
        %v8330 = vunpack.c.l.b16 %v8258
        %v8331 = vunpack.c.l.b16 %v8259
        %v8332 = vpack.c.b16 %v8331, %v8330
        %8334 = vmatpush.bf16.xpose.msra.mxu0 0
        %8335 = vmatpush.bf16.xpose.msra.mxu0 0
        %8336 = vmatpush.bf16.xpose.msra.mxu0 0
        %8337 = vmatpush.bf16.xpose.msra.mxu0 0
        %8338 = vmatpush.bf16.xpose.msra.mxu0 0
        %8339 = vmatpush.bf16.xpose.msra.mxu0 0
        %8340 = vmatpush.bf16.xpose.msra.mxu0 0
        %8341 = vmatpush.bf16.xpose.msra.mxu0 %v8332
        %8342 = vmatmul.bf16.gmra.mxu0 %v6350
        %v8343 = vpop.f32.mrf.mxu0
        %v8344 = vadd.f32 0.0, %v8343
        %v8345 = vpop.f32.mrf.mxu0
        %v8346 = vadd.f32 0.0, %v8345
        %8347 = vdwg.mxu0
        %v8350 = vunpack.c.l.b16 %v8260
        %v8351 = vunpack.c.l.b16 %v8261
        %v8352 = vpack.c.b16 %v8351, %v8350
        %8354 = vmatpush.bf16.xpose.msra.mxu0 0
        %8355 = vmatpush.bf16.xpose.msra.mxu0 0
        %8356 = vmatpush.bf16.xpose.msra.mxu0 0
        %8357 = vmatpush.bf16.xpose.msra.mxu0 0
        %8358 = vmatpush.bf16.xpose.msra.mxu0 0
        %8359 = vmatpush.bf16.xpose.msra.mxu0 0
        %8360 = vmatpush.bf16.xpose.msra.mxu0 0
        %8361 = vmatpush.bf16.xpose.msra.mxu0 %v8352
        %8362 = vmatmul.bf16.gmra.mxu0 %v6376
        %v8363 = vpop.f32.mrf.mxu0
        %v8364 = vadd.f32 0.0, %v8363
        %v8365 = vpop.f32.mrf.mxu0
        %v8366 = vadd.f32 0.0, %v8365
        %8367 = vdwg.mxu0
        %v8370 = vunpack.c.l.b16 %v8262
        %v8371 = vunpack.c.l.b16 %v8263
        %v8372 = vpack.c.b16 %v8371, %v8370
        %8374 = vmatpush.bf16.xpose.msra.mxu0 0
        %8375 = vmatpush.bf16.xpose.msra.mxu0 0
        %8376 = vmatpush.bf16.xpose.msra.mxu0 0
        %8377 = vmatpush.bf16.xpose.msra.mxu0 0
        %8378 = vmatpush.bf16.xpose.msra.mxu0 0
        %8379 = vmatpush.bf16.xpose.msra.mxu0 0
        %8380 = vmatpush.bf16.xpose.msra.mxu0 0
        %8381 = vmatpush.bf16.xpose.msra.mxu0 %v8372
        %8382 = vmatmul.bf16.gmra.mxu0 %v6402
        %v8383 = vpop.f32.mrf.mxu0
        %v8384 = vadd.f32 0.0, %v8383
        %v8385 = vpop.f32.mrf.mxu0
        %v8386 = vadd.f32 0.0, %v8385
        %8387 = vdwg.mxu0
        %v8390 = vunpack.c.l.b16 %v8264
        %v8391 = vunpack.c.l.b16 %v8265
        %v8392 = vpack.c.b16 %v8391, %v8390
        %8394 = vmatpush.bf16.xpose.msra.mxu0 0
        %8395 = vmatpush.bf16.xpose.msra.mxu0 0
        %8396 = vmatpush.bf16.xpose.msra.mxu0 0
        %8397 = vmatpush.bf16.xpose.msra.mxu0 0
        %8398 = vmatpush.bf16.xpose.msra.mxu0 0
        %8399 = vmatpush.bf16.xpose.msra.mxu0 0
        %8400 = vmatpush.bf16.xpose.msra.mxu0 0
        %8401 = vmatpush.bf16.xpose.msra.mxu0 %v8392
        %8402 = vmatmul.bf16.gmra.mxu0 %v6428
        %v8403 = vpop.f32.mrf.mxu0
        %v8404 = vadd.f32 0.0, %v8403
        %v8405 = vpop.f32.mrf.mxu0
        %v8406 = vadd.f32 0.0, %v8405
        %8407 = vdwg.mxu0
        %v8410 = vunpack.c.l.b16 %v8266
        %v8411 = vunpack.c.l.b16 %v8267
        %v8412 = vpack.c.b16 %v8411, %v8410
        %8414 = vmatpush.bf16.xpose.msra.mxu0 0
        %8415 = vmatpush.bf16.xpose.msra.mxu0 0
        %8416 = vmatpush.bf16.xpose.msra.mxu0 0
        %8417 = vmatpush.bf16.xpose.msra.mxu0 0
        %8418 = vmatpush.bf16.xpose.msra.mxu0 0
        %8419 = vmatpush.bf16.xpose.msra.mxu0 0
        %8420 = vmatpush.bf16.xpose.msra.mxu0 0
        %8421 = vmatpush.bf16.xpose.msra.mxu0 %v8412
        %8422 = vmatmul.bf16.gmra.mxu0 %v6454
        %v8423 = vpop.f32.mrf.mxu0
        %v8424 = vadd.f32 0.0, %v8423
        %v8425 = vpop.f32.mrf.mxu0
        %v8426 = vadd.f32 0.0, %v8425
        %8427 = vdwg.mxu0
        %v8428 = vsel %vm1551, %v8284, -inf
        %8429 = vmax.xlane.f32.xlu0 %v8428
        %v8430 = vpop.xlane.xlu0 %8429
        %v8431 = vsel %vm1551, %v8286, -inf
        %8432 = vmax.xlane.f32.xlu0 %v8431
        %v8433 = vpop.xlane.xlu0 %8432
        %v8434 = vsel %vm1551, %v8304, -inf
        %8435 = vmax.xlane.f32.xlu0 %v8434
        %v8436 = vpop.xlane.xlu0 %8435
        %v8437 = vsel %vm1551, %v8306, -inf
        %8438 = vmax.xlane.f32.xlu0 %v8437
        %v8439 = vpop.xlane.xlu0 %8438
        %v8440 = vsel %vm1551, %v8324, -inf
        %8441 = vmax.xlane.f32.xlu0 %v8440
        %v8442 = vpop.xlane.xlu0 %8441
        %v8443 = vsel %vm1551, %v8326, -inf
        %8444 = vmax.xlane.f32.xlu0 %v8443
        %v8445 = vpop.xlane.xlu0 %8444
        %v8446 = vsel %vm1551, %v8344, -inf
        %8447 = vmax.xlane.f32.xlu0 %v8446
        %v8448 = vpop.xlane.xlu0 %8447
        %v8449 = vsel %vm1551, %v8346, -inf
        %8450 = vmax.xlane.f32.xlu0 %v8449
        %v8451 = vpop.xlane.xlu0 %8450
        %v8452 = vsel %vm1551, %v8364, -inf
        %8453 = vmax.xlane.f32.xlu0 %v8452
        %v8454 = vpop.xlane.xlu0 %8453
        %v8455 = vsel %vm1551, %v8366, -inf
        %8456 = vmax.xlane.f32.xlu0 %v8455
        %v8457 = vpop.xlane.xlu0 %8456
        %v8458 = vsel %vm1551, %v8384, -inf
        %8459 = vmax.xlane.f32.xlu0 %v8458
        %v8460 = vpop.xlane.xlu0 %8459
        %v8461 = vsel %vm1551, %v8386, -inf
        %8462 = vmax.xlane.f32.xlu0 %v8461
        %v8463 = vpop.xlane.xlu0 %8462
        %v8464 = vsel %vm1551, %v8404, -inf
        %8465 = vmax.xlane.f32.xlu0 %v8464
        %v8466 = vpop.xlane.xlu0 %8465
        %v8467 = vsel %vm1551, %v8406, -inf
        %8468 = vmax.xlane.f32.xlu0 %v8467
        %v8469 = vpop.xlane.xlu0 %8468
        %v8470 = vsel %vm1551, %v8424, -inf
        %8471 = vmax.xlane.f32.xlu0 %v8470
        %v8472 = vpop.xlane.xlu0 %8471
        %v8473 = vsel %vm1551, %v8426, -inf
        %8474 = vmax.xlane.f32.xlu0 %v8473
        %v8475 = vpop.xlane.xlu0 %8474
        %v8476 = vsub.f32 %v8284, %v8430
        %v8477 = vsub.f32 %v8286, %v8433
        %v8478 = vsub.f32 %v8304, %v8436
        %v8479 = vsub.f32 %v8306, %v8439
        %v8480 = vsub.f32 %v8324, %v8442
        %v8481 = vsub.f32 %v8326, %v8445
        %v8482 = vsub.f32 %v8344, %v8448
        %v8483 = vsub.f32 %v8346, %v8451
        %v8484 = vsub.f32 %v8364, %v8454
        %v8485 = vsub.f32 %v8366, %v8457
        %v8486 = vsub.f32 %v8384, %v8460
        %v8487 = vsub.f32 %v8386, %v8463
        %v8488 = vsub.f32 %v8404, %v8466
        %v8489 = vsub.f32 %v8406, %v8469
        %v8490 = vsub.f32 %v8424, %v8472
        %v8491 = vsub.f32 %v8426, %v8475
        %v8492 = vmul.f32 %v8476, 1.442695
        %v8493 = vpow.pop %v8492
        %v8494 = vmul.f32 %v8477, 1.442695
        %v8495 = vpow.pop %v8494
        %v8496 = vmul.f32 %v8478, 1.442695
        %v8497 = vpow.pop %v8496
        %v8498 = vmul.f32 %v8479, 1.442695
        %v8499 = vpow.pop %v8498
        %v8500 = vmul.f32 %v8480, 1.442695
        %v8501 = vpow.pop %v8500
        %v8502 = vmul.f32 %v8481, 1.442695
        %v8503 = vpow.pop %v8502
        %v8504 = vmul.f32 %v8482, 1.442695
        %v8505 = vpow.pop %v8504
        %v8506 = vmul.f32 %v8483, 1.442695
        %v8507 = vpow.pop %v8506
        %v8508 = vmul.f32 %v8484, 1.442695
        %v8509 = vpow.pop %v8508
        %v8510 = vmul.f32 %v8485, 1.442695
        %v8511 = vpow.pop %v8510
        %v8512 = vmul.f32 %v8486, 1.442695
        %v8513 = vpow.pop %v8512
        %v8514 = vmul.f32 %v8487, 1.442695
        %v8515 = vpow.pop %v8514
        %v8516 = vmul.f32 %v8488, 1.442695
        %v8517 = vpow.pop %v8516
        %v8518 = vmul.f32 %v8489, 1.442695
        %v8519 = vpow.pop %v8518
        %v8520 = vmul.f32 %v8490, 1.442695
        %v8521 = vpow.pop %v8520
        %v8522 = vmul.f32 %v8491, 1.442695
        %v8523 = vpow.pop %v8522
        %v8524 = vsel %vm1551, %v8493, 0.0
        %8525 = vadd.xlane.f32.xlu0 %v8524
        %v8526 = vpop.xlane.xlu0 %8525
        %v8527 = vsel %vm1551, %v8495, 0.0
        %8528 = vadd.xlane.f32.xlu0 %v8527
        %v8529 = vpop.xlane.xlu0 %8528
        %v8530 = vsel %vm1551, %v8497, 0.0
        %8531 = vadd.xlane.f32.xlu0 %v8530
        %v8532 = vpop.xlane.xlu0 %8531
        %v8533 = vsel %vm1551, %v8499, 0.0
        %8534 = vadd.xlane.f32.xlu0 %v8533
        %v8535 = vpop.xlane.xlu0 %8534
        %v8536 = vsel %vm1551, %v8501, 0.0
        %8537 = vadd.xlane.f32.xlu0 %v8536
        %v8538 = vpop.xlane.xlu0 %8537
        %v8539 = vsel %vm1551, %v8503, 0.0
        %8540 = vadd.xlane.f32.xlu0 %v8539
        %v8541 = vpop.xlane.xlu0 %8540
        %v8542 = vsel %vm1551, %v8505, 0.0
        %8543 = vadd.xlane.f32.xlu0 %v8542
        %v8544 = vpop.xlane.xlu0 %8543
        %v8545 = vsel %vm1551, %v8507, 0.0
        %8546 = vadd.xlane.f32.xlu0 %v8545
        %v8547 = vpop.xlane.xlu0 %8546
        %v8548 = vsel %vm1551, %v8509, 0.0
        %8549 = vadd.xlane.f32.xlu0 %v8548
        %v8550 = vpop.xlane.xlu0 %8549
        %v8551 = vsel %vm1551, %v8511, 0.0
        %8552 = vadd.xlane.f32.xlu0 %v8551
        %v8553 = vpop.xlane.xlu0 %8552
        %v8554 = vsel %vm1551, %v8513, 0.0
        %8555 = vadd.xlane.f32.xlu0 %v8554
        %v8556 = vpop.xlane.xlu0 %8555
        %v8557 = vsel %vm1551, %v8515, 0.0
        %8558 = vadd.xlane.f32.xlu0 %v8557
        %v8559 = vpop.xlane.xlu0 %8558
        %v8560 = vsel %vm1551, %v8517, 0.0
        %8561 = vadd.xlane.f32.xlu0 %v8560
        %v8562 = vpop.xlane.xlu0 %8561
        %v8563 = vsel %vm1551, %v8519, 0.0
        %8564 = vadd.xlane.f32.xlu0 %v8563
        %v8565 = vpop.xlane.xlu0 %8564
        %v8566 = vsel %vm1551, %v8521, 0.0
        %8567 = vadd.xlane.f32.xlu0 %v8566
        %v8568 = vpop.xlane.xlu0 %8567
        %v8569 = vsel %vm1551, %v8523, 0.0
        %8570 = vadd.xlane.f32.xlu0 %v8569
        %v8571 = vpop.xlane.xlu0 %8570
        %v8572 = vrcp.pop %v8526
        %v8573 = vrcp.pop %v8529
        %v8574 = vrcp.pop %v8532
        %v8575 = vrcp.pop %v8535
        %v8576 = vrcp.pop %v8538
        %v8577 = vrcp.pop %v8541
        %v8578 = vrcp.pop %v8544
        %v8579 = vrcp.pop %v8547
        %v8580 = vrcp.pop %v8550
        %v8581 = vrcp.pop %v8553
        %v8582 = vrcp.pop %v8556
        %v8583 = vrcp.pop %v8559
        %v8584 = vrcp.pop %v8562
        %v8585 = vrcp.pop %v8565
        %v8586 = vrcp.pop %v8568
        %v8587 = vrcp.pop %v8571
        %v8588 = vmul.f32 %v8493, %v8572
        %v8589 = vmul.f32 %v8495, %v8573
        %v8590 = vmul.f32 %v8497, %v8574
        %v8591 = vmul.f32 %v8499, %v8575
        %v8592 = vmul.f32 %v8501, %v8576
        %v8593 = vmul.f32 %v8503, %v8577
        %v8594 = vmul.f32 %v8505, %v8578
        %v8595 = vmul.f32 %v8507, %v8579
        %v8596 = vmul.f32 %v8509, %v8580
        %v8597 = vmul.f32 %v8511, %v8581
        %v8598 = vmul.f32 %v8513, %v8582
        %v8599 = vmul.f32 %v8515, %v8583
        %v8600 = vmul.f32 %v8517, %v8584
        %v8601 = vmul.f32 %v8519, %v8585
        %v8602 = vmul.f32 %v8521, %v8586
        %v8603 = vmul.f32 %v8523, %v8587
        %v8604 = vpack.c.bf16 %v8588, %v8588
        %v8605 = vpack.c.bf16 %v8589, %v8589
        %v8606 = vpack.c.bf16 %v8590, %v8590
        %v8607 = vpack.c.bf16 %v8591, %v8591
        %v8608 = vpack.c.bf16 %v8592, %v8592
        %v8609 = vpack.c.bf16 %v8593, %v8593
        %v8610 = vpack.c.bf16 %v8594, %v8594
        %v8611 = vpack.c.bf16 %v8595, %v8595
        %v8612 = vpack.c.bf16 %v8596, %v8596
        %v8613 = vpack.c.bf16 %v8597, %v8597
        %v8614 = vpack.c.bf16 %v8598, %v8598
        %v8615 = vpack.c.bf16 %v8599, %v8599
        %v8616 = vpack.c.bf16 %v8600, %v8600
        %v8617 = vpack.c.bf16 %v8601, %v8601
        %v8618 = vpack.c.bf16 %v8602, %v8602
        %v8619 = vpack.c.bf16 %v8603, %v8603
        %v8620 = vmul.f32 %v6668, %v3332
        %v8621 = vmul.f32 %v6669, %v3332
        %v8622 = vmul.f32 %v6670, %v3332
        %v8623 = vmul.f32 %v6671, %v3332
        %v8624 = vmul.f32 %v6672, %v3332
        %v8625 = vmul.f32 %v6673, %v3332
        %v8626 = vmul.f32 %v6674, %v3332
        %v8627 = vmul.f32 %v6675, %v3332
        %v8628 = vmul.f32 %v6676, %v3332
        %v8629 = vmul.f32 %v6677, %v3332
        %v8630 = vmul.f32 %v6678, %v3332
        %v8631 = vmul.f32 %v6679, %v3332
        %v8632 = vmul.f32 %v6680, %v3332
        %v8633 = vmul.f32 %v6681, %v3332
        %v8634 = vmul.f32 %v6682, %v3332
        %v8635 = vmul.f32 %v6683, %v3332
        %v8636 = vpack.c.bf16 %v8620, %v8620
        %v8637 = vpack.c.bf16 %v8621, %v8621
        %v8638 = vpack.c.bf16 %v8622, %v8622
        %v8639 = vpack.c.bf16 %v8623, %v8623
        %v8640 = vpack.c.bf16 %v8624, %v8624
        %v8641 = vpack.c.bf16 %v8625, %v8625
        %v8642 = vpack.c.bf16 %v8626, %v8626
        %v8643 = vpack.c.bf16 %v8627, %v8627
        %v8644 = vpack.c.bf16 %v8628, %v8628
        %v8645 = vpack.c.bf16 %v8629, %v8629
        %v8646 = vpack.c.bf16 %v8630, %v8630
        %v8647 = vpack.c.bf16 %v8631, %v8631
        %v8648 = vpack.c.bf16 %v8632, %v8632
        %v8649 = vpack.c.bf16 %v8633, %v8633
        %v8650 = vpack.c.bf16 %v8634, %v8634
        %v8651 = vpack.c.bf16 %v8635, %v8635
        %v8654 = vunpack.c.l.b16 %v8604
        %v8655 = vunpack.c.l.b16 %v8605
        %v8656 = vpack.c.b16 %v8655, %v8654
        %v8659 = vunpack.c.l.b16 %v8636
        %v8660 = vunpack.c.l.b16 %v8637
        %v8661 = vpack.c.b16 %v8660, %v8659
        %v8664 = vsel %vm1551, %v8656, 0
        %8666 = vmatpush.bf16.msra.mxu0 0
        %8667 = vmatpush.bf16.msra.mxu0 0
        %8668 = vmatpush.bf16.msra.mxu0 0
        %8669 = vmatpush.bf16.msra.mxu0 0
        %8670 = vmatpush.bf16.msra.mxu0 0
        %8671 = vmatpush.bf16.msra.mxu0 0
        %8672 = vmatpush.bf16.msra.mxu0 0
        %8673 = vmatpush.bf16.msra.mxu0 %v8661
        %8674 = vmatmul.bf16.gmra.mxu0 %v8664
        %v8675 = vpop.f32.mrf.mxu0
        %v8676 = vadd.f32 0.0, %v8675
        %v8677 = vpop.f32.mrf.mxu0
        %v8678 = vadd.f32 0.0, %v8677
        %8679 = vdwg.mxu0
        %v8682 = vunpack.c.l.b16 %v8606
        %v8683 = vunpack.c.l.b16 %v8607
        %v8684 = vpack.c.b16 %v8683, %v8682
        %v8687 = vunpack.c.l.b16 %v8638
        %v8688 = vunpack.c.l.b16 %v8639
        %v8689 = vpack.c.b16 %v8688, %v8687
        %v8692 = vsel %vm1551, %v8684, 0
        %8694 = vmatpush.bf16.msra.mxu0 0
        %8695 = vmatpush.bf16.msra.mxu0 0
        %8696 = vmatpush.bf16.msra.mxu0 0
        %8697 = vmatpush.bf16.msra.mxu0 0
        %8698 = vmatpush.bf16.msra.mxu0 0
        %8699 = vmatpush.bf16.msra.mxu0 0
        %8700 = vmatpush.bf16.msra.mxu0 0
        %8701 = vmatpush.bf16.msra.mxu0 %v8689
        %8702 = vmatmul.bf16.gmra.mxu0 %v8692
        %v8703 = vpop.f32.mrf.mxu0
        %v8704 = vadd.f32 0.0, %v8703
        %v8705 = vpop.f32.mrf.mxu0
        %v8706 = vadd.f32 0.0, %v8705
        %8707 = vdwg.mxu0
        %v8710 = vunpack.c.l.b16 %v8608
        %v8711 = vunpack.c.l.b16 %v8609
        %v8712 = vpack.c.b16 %v8711, %v8710
        %v8715 = vunpack.c.l.b16 %v8640
        %v8716 = vunpack.c.l.b16 %v8641
        %v8717 = vpack.c.b16 %v8716, %v8715
        %v8720 = vsel %vm1551, %v8712, 0
        %8722 = vmatpush.bf16.msra.mxu0 0
        %8723 = vmatpush.bf16.msra.mxu0 0
        %8724 = vmatpush.bf16.msra.mxu0 0
        %8725 = vmatpush.bf16.msra.mxu0 0
        %8726 = vmatpush.bf16.msra.mxu0 0
        %8727 = vmatpush.bf16.msra.mxu0 0
        %8728 = vmatpush.bf16.msra.mxu0 0
        %8729 = vmatpush.bf16.msra.mxu0 %v8717
        %8730 = vmatmul.bf16.gmra.mxu0 %v8720
        %v8731 = vpop.f32.mrf.mxu0
        %v8732 = vadd.f32 0.0, %v8731
        %v8733 = vpop.f32.mrf.mxu0
        %v8734 = vadd.f32 0.0, %v8733
        %8735 = vdwg.mxu0
        %v8738 = vunpack.c.l.b16 %v8610
        %v8739 = vunpack.c.l.b16 %v8611
        %v8740 = vpack.c.b16 %v8739, %v8738
        %v8743 = vunpack.c.l.b16 %v8642
        %v8744 = vunpack.c.l.b16 %v8643
        %v8745 = vpack.c.b16 %v8744, %v8743
        %v8748 = vsel %vm1551, %v8740, 0
        %8750 = vmatpush.bf16.msra.mxu0 0
        %8751 = vmatpush.bf16.msra.mxu0 0
        %8752 = vmatpush.bf16.msra.mxu0 0
        %8753 = vmatpush.bf16.msra.mxu0 0
        %8754 = vmatpush.bf16.msra.mxu0 0
        %8755 = vmatpush.bf16.msra.mxu0 0
        %8756 = vmatpush.bf16.msra.mxu0 0
        %8757 = vmatpush.bf16.msra.mxu0 %v8745
        %8758 = vmatmul.bf16.gmra.mxu0 %v8748
        %v8759 = vpop.f32.mrf.mxu0
        %v8760 = vadd.f32 0.0, %v8759
        %v8761 = vpop.f32.mrf.mxu0
        %v8762 = vadd.f32 0.0, %v8761
        %8763 = vdwg.mxu0
        %v8766 = vunpack.c.l.b16 %v8612
        %v8767 = vunpack.c.l.b16 %v8613
        %v8768 = vpack.c.b16 %v8767, %v8766
        %v8771 = vunpack.c.l.b16 %v8644
        %v8772 = vunpack.c.l.b16 %v8645
        %v8773 = vpack.c.b16 %v8772, %v8771
        %v8776 = vsel %vm1551, %v8768, 0
        %8778 = vmatpush.bf16.msra.mxu0 0
        %8779 = vmatpush.bf16.msra.mxu0 0
        %8780 = vmatpush.bf16.msra.mxu0 0
        %8781 = vmatpush.bf16.msra.mxu0 0
        %8782 = vmatpush.bf16.msra.mxu0 0
        %8783 = vmatpush.bf16.msra.mxu0 0
        %8784 = vmatpush.bf16.msra.mxu0 0
        %8785 = vmatpush.bf16.msra.mxu0 %v8773
        %8786 = vmatmul.bf16.gmra.mxu0 %v8776
        %v8787 = vpop.f32.mrf.mxu0
        %v8788 = vadd.f32 0.0, %v8787
        %v8789 = vpop.f32.mrf.mxu0
        %v8790 = vadd.f32 0.0, %v8789
        %8791 = vdwg.mxu0
        %v8794 = vunpack.c.l.b16 %v8614
        %v8795 = vunpack.c.l.b16 %v8615
        %v8796 = vpack.c.b16 %v8795, %v8794
        %v8799 = vunpack.c.l.b16 %v8646
        %v8800 = vunpack.c.l.b16 %v8647
        %v8801 = vpack.c.b16 %v8800, %v8799
        %v8804 = vsel %vm1551, %v8796, 0
        %8806 = vmatpush.bf16.msra.mxu0 0
        %8807 = vmatpush.bf16.msra.mxu0 0
        %8808 = vmatpush.bf16.msra.mxu0 0
        %8809 = vmatpush.bf16.msra.mxu0 0
        %8810 = vmatpush.bf16.msra.mxu0 0
        %8811 = vmatpush.bf16.msra.mxu0 0
        %8812 = vmatpush.bf16.msra.mxu0 0
        %8813 = vmatpush.bf16.msra.mxu0 %v8801
        %8814 = vmatmul.bf16.gmra.mxu0 %v8804
        %v8815 = vpop.f32.mrf.mxu0
        %v8816 = vadd.f32 0.0, %v8815
        %v8817 = vpop.f32.mrf.mxu0
        %v8818 = vadd.f32 0.0, %v8817
        %8819 = vdwg.mxu0
        %v8822 = vunpack.c.l.b16 %v8616
        %v8823 = vunpack.c.l.b16 %v8617
        %v8824 = vpack.c.b16 %v8823, %v8822
        %v8827 = vunpack.c.l.b16 %v8648
        %v8828 = vunpack.c.l.b16 %v8649
        %v8829 = vpack.c.b16 %v8828, %v8827
        %v8832 = vsel %vm1551, %v8824, 0
        %8834 = vmatpush.bf16.msra.mxu0 0
        %8835 = vmatpush.bf16.msra.mxu0 0
        %8836 = vmatpush.bf16.msra.mxu0 0
        %8837 = vmatpush.bf16.msra.mxu0 0
        %8838 = vmatpush.bf16.msra.mxu0 0
        %8839 = vmatpush.bf16.msra.mxu0 0
        %8840 = vmatpush.bf16.msra.mxu0 0
        %8841 = vmatpush.bf16.msra.mxu0 %v8829
        %8842 = vmatmul.bf16.gmra.mxu0 %v8832
        %v8843 = vpop.f32.mrf.mxu0
        %v8844 = vadd.f32 0.0, %v8843
        %v8845 = vpop.f32.mrf.mxu0
        %v8846 = vadd.f32 0.0, %v8845
        %8847 = vdwg.mxu0
        %v8850 = vunpack.c.l.b16 %v8618
        %v8851 = vunpack.c.l.b16 %v8619
        %v8852 = vpack.c.b16 %v8851, %v8850
        %v8855 = vunpack.c.l.b16 %v8650
        %v8856 = vunpack.c.l.b16 %v8651
        %v8857 = vpack.c.b16 %v8856, %v8855
        %v8860 = vsel %vm1551, %v8852, 0
        %8862 = vmatpush.bf16.msra.mxu0 0
        %8863 = vmatpush.bf16.msra.mxu0 0
        %8864 = vmatpush.bf16.msra.mxu0 0
        %8865 = vmatpush.bf16.msra.mxu0 0
        %8866 = vmatpush.bf16.msra.mxu0 0
        %8867 = vmatpush.bf16.msra.mxu0 0
        %8868 = vmatpush.bf16.msra.mxu0 0
        %8869 = vmatpush.bf16.msra.mxu0 %v8857
        %8870 = vmatmul.bf16.gmra.mxu0 %v8860
        %v8871 = vpop.f32.mrf.mxu0
        %v8872 = vadd.f32 0.0, %v8871
        %v8873 = vpop.f32.mrf.mxu0
        %v8874 = vadd.f32 0.0, %v8873
        %8875 = vdwg.mxu0
        %v8876 = vadd.f32 %v8220, %v8676
        %v8877 = vadd.f32 %v8221, %v8678
        %v8878 = vadd.f32 %v8222, %v8704
        %v8879 = vadd.f32 %v8223, %v8706
        %v8880 = vadd.f32 %v8224, %v8732
        %v8881 = vadd.f32 %v8225, %v8734
        %v8882 = vadd.f32 %v8226, %v8760
        %v8883 = vadd.f32 %v8227, %v8762
        %v8884 = vadd.f32 %v8228, %v8788
        %v8885 = vadd.f32 %v8229, %v8790
        %v8886 = vadd.f32 %v8230, %v8816
        %v8887 = vadd.f32 %v8231, %v8818
        %v8888 = vadd.f32 %v8232, %v8844
        %v8889 = vadd.f32 %v8233, %v8846
        %v8890 = vadd.f32 %v8234, %v8872
        %v8891 = vadd.f32 %v8235, %v8874
        %v8892 = vpack.c.bf16 %v8877, %v8876
        %v8893 = vpack.c.bf16 %v8879, %v8878
        %v8894 = vpack.c.bf16 %v8881, %v8880
        %v8895 = vpack.c.bf16 %v8883, %v8882
        %v8896 = vpack.c.bf16 %v8885, %v8884
        %v8897 = vpack.c.bf16 %v8887, %v8886
        %v8898 = vpack.c.bf16 %v8889, %v8888
        %v8899 = vpack.c.bf16 %v8891, %v8890
        %s8900 = scalar_lea.vmem %s5, 64
        %v8901 = vld [vmem:[%s8900] sm:$0xf]
        %v8902 = vld [vmem:[%s8900 + $0x4] sm:$0xf]
        %v8903 = vld [vmem:[%s8900 + $0x8] sm:$0xf]
        %v8904 = vld [vmem:[%s8900 + $0xc] sm:$0xf]
        %v8905 = vld [vmem:[%s8900 + $0x10] sm:$0xf]
        %v8906 = vld [vmem:[%s8900 + $0x14] sm:$0xf]
        %v8907 = vld [vmem:[%s8900 + $0x18] sm:$0xf]
        %v8908 = vld [vmem:[%s8900 + $0x1c] sm:$0xf]
        %v8909 = vld [vmem:[%s8900 + $0x20] sm:$0xf]
        %v8910 = vld [vmem:[%s8900 + $0x24] sm:$0xf]
        %v8911 = vld [vmem:[%s8900 + $0x28] sm:$0xf]
        %v8912 = vld [vmem:[%s8900 + $0x2c] sm:$0xf]
        %v8913 = vld [vmem:[%s8900 + $0x30] sm:$0xf]
        %v8914 = vld [vmem:[%s8900 + $0x34] sm:$0xf]
        %v8915 = vld [vmem:[%s8900 + $0x38] sm:$0xf]
        %v8916 = vld [vmem:[%s8900 + $0x3c] sm:$0xf]
        %s8917 = scalar_lea.vmem %s6, 1
        %v8918 = vld [vmem:[%s8917] sm:$0x1]
        %v8920 = vperm.slane %v8918, 0
        %v8938 = vunpack.c.l.b16 %v8901
        %v8939 = vunpack.c.l.b16 %v8902
        %v8940 = vunpack.c.l.b16 %v8903
        %v8941 = vunpack.c.l.b16 %v8904
        %v8942 = vunpack.c.l.b16 %v8905
        %v8943 = vunpack.c.l.b16 %v8906
        %v8944 = vunpack.c.l.b16 %v8907
        %v8945 = vunpack.c.l.b16 %v8908
        %v8946 = vunpack.c.l.b16 %v8909
        %v8947 = vunpack.c.l.b16 %v8910
        %v8948 = vunpack.c.l.b16 %v8911
        %v8949 = vunpack.c.l.b16 %v8912
        %v8950 = vunpack.c.l.b16 %v8913
        %v8951 = vunpack.c.l.b16 %v8914
        %v8952 = vunpack.c.l.b16 %v8915
        %v8953 = vunpack.c.l.b16 %v8916
        %v8954 = vpack.c.b16 %v8939, %v8938
        %v8955 = vpack.c.b16 %v8941, %v8940
        %v8956 = vpack.c.b16 %v8943, %v8942
        %v8957 = vpack.c.b16 %v8945, %v8944
        %v8958 = vpack.c.b16 %v8947, %v8946
        %v8959 = vpack.c.b16 %v8949, %v8948
        %v8960 = vpack.c.b16 %v8951, %v8950
        %v8961 = vpack.c.b16 %v8953, %v8952
        %8970 = vmatpush.bf16.msra.mxu0 %v8961
        %8971 = vmatpush.bf16.msra.mxu0 %v8960
        %8972 = vmatpush.bf16.msra.mxu0 %v8959
        %8973 = vmatpush.bf16.msra.mxu0 %v8958
        %8974 = vmatpush.bf16.msra.mxu0 %v8957
        %8975 = vmatpush.bf16.msra.mxu0 %v8956
        %8976 = vmatpush.bf16.msra.mxu0 %v8955
        %8977 = vmatpush.bf16.msra.mxu0 %v8954
        %8978 = vmatmul.bf16.gmra.mxu0 %v8892
        %v8979 = vpop.f32.mrf.mxu0
        %v8980 = vadd.f32 %v8920, %v8979
        %v8981 = vpop.f32.mrf.mxu0
        %v8982 = vadd.f32 %v8920, %v8981
        %8983 = vmatmul.bf16.gmra.mxu0 %v8893
        %v8984 = vpop.f32.mrf.mxu0
        %v8985 = vadd.f32 %v8920, %v8984
        %v8986 = vpop.f32.mrf.mxu0
        %v8987 = vadd.f32 %v8920, %v8986
        %8988 = vmatmul.bf16.gmra.mxu0 %v8894
        %v8989 = vpop.f32.mrf.mxu0
        %v8990 = vadd.f32 %v8920, %v8989
        %v8991 = vpop.f32.mrf.mxu0
        %v8992 = vadd.f32 %v8920, %v8991
        %8993 = vmatmul.bf16.gmra.mxu0 %v8895
        %v8994 = vpop.f32.mrf.mxu0
        %v8995 = vadd.f32 %v8920, %v8994
        %v8996 = vpop.f32.mrf.mxu0
        %v8997 = vadd.f32 %v8920, %v8996
        %8998 = vmatmul.bf16.gmra.mxu0 %v8896
        %v8999 = vpop.f32.mrf.mxu0
        %v9000 = vadd.f32 %v8920, %v8999
        %v9001 = vpop.f32.mrf.mxu0
        %v9002 = vadd.f32 %v8920, %v9001
        %9003 = vmatmul.bf16.gmra.mxu0 %v8897
        %v9004 = vpop.f32.mrf.mxu0
        %v9005 = vadd.f32 %v8920, %v9004
        %v9006 = vpop.f32.mrf.mxu0
        %v9007 = vadd.f32 %v8920, %v9006
        %9008 = vmatmul.bf16.gmra.mxu0 %v8898
        %v9009 = vpop.f32.mrf.mxu0
        %v9010 = vadd.f32 %v8920, %v9009
        %v9011 = vpop.f32.mrf.mxu0
        %v9012 = vadd.f32 %v8920, %v9011
        %9013 = vmatmul.bf16.gmra.mxu0 %v8899
        %v9014 = vpop.f32.mrf.mxu0
        %v9015 = vadd.f32 %v8920, %v9014
        %v9016 = vpop.f32.mrf.mxu0
        %v9017 = vadd.f32 %v8920, %v9016
        %9018 = vdwg.mxu0
        %v9019 = vadd.f32 %v5815, %v8980
        %v9020 = vadd.f32 %v5816, %v8982
        %v9021 = vadd.f32 %v5817, %v8985
        %v9022 = vadd.f32 %v5818, %v8987
        %v9023 = vadd.f32 %v5819, %v8990
        %v9024 = vadd.f32 %v5820, %v8992
        %v9025 = vadd.f32 %v5821, %v8995
        %v9026 = vadd.f32 %v5822, %v8997
        %v9027 = vadd.f32 %v5823, %v9000
        %v9028 = vadd.f32 %v5824, %v9002
        %v9029 = vadd.f32 %v5825, %v9005
        %v9030 = vadd.f32 %v5826, %v9007
        %v9031 = vadd.f32 %v5827, %v9010
        %v9032 = vadd.f32 %v5828, %v9012
        %v9033 = vadd.f32 %v5829, %v9015
        %v9034 = vadd.f32 %v5830, %v9017
        %s9035 = scalar_lea.vmem %s7, 1
        %v9036 = vld [vmem:[%s9035] sm:$0x1]
        %s9037 = scalar_lea.vmem %s8, 1
        %v9038 = vld [vmem:[%s9037] sm:$0x1]
        %9039 = vadd.xlane.f32.xlu0 %v9019
        %v9040 = vpop.xlane.xlu0 %9039
        %9041 = vadd.xlane.f32.xlu0 %v9020
        %v9042 = vpop.xlane.xlu0 %9041
        %9043 = vadd.xlane.f32.xlu0 %v9021
        %v9044 = vpop.xlane.xlu0 %9043
        %9045 = vadd.xlane.f32.xlu0 %v9022
        %v9046 = vpop.xlane.xlu0 %9045
        %9047 = vadd.xlane.f32.xlu0 %v9023
        %v9048 = vpop.xlane.xlu0 %9047
        %9049 = vadd.xlane.f32.xlu0 %v9024
        %v9050 = vpop.xlane.xlu0 %9049
        %9051 = vadd.xlane.f32.xlu0 %v9025
        %v9052 = vpop.xlane.xlu0 %9051
        %9053 = vadd.xlane.f32.xlu0 %v9026
        %v9054 = vpop.xlane.xlu0 %9053
        %9055 = vadd.xlane.f32.xlu0 %v9027
        %v9056 = vpop.xlane.xlu0 %9055
        %9057 = vadd.xlane.f32.xlu0 %v9028
        %v9058 = vpop.xlane.xlu0 %9057
        %9059 = vadd.xlane.f32.xlu0 %v9029
        %v9060 = vpop.xlane.xlu0 %9059
        %9061 = vadd.xlane.f32.xlu0 %v9030
        %v9062 = vpop.xlane.xlu0 %9061
        %9063 = vadd.xlane.f32.xlu0 %v9031
        %v9064 = vpop.xlane.xlu0 %9063
        %9065 = vadd.xlane.f32.xlu0 %v9032
        %v9066 = vpop.xlane.xlu0 %9065
        %9067 = vadd.xlane.f32.xlu0 %v9033
        %v9068 = vpop.xlane.xlu0 %9067
        %9069 = vadd.xlane.f32.xlu0 %v9034
        %v9070 = vpop.xlane.xlu0 %9069
        %v9071 = vmul.f32 %v9040, %v4170
        %v9072 = vmul.f32 %v9042, %v4170
        %v9073 = vmul.f32 %v9044, %v4170
        %v9074 = vmul.f32 %v9046, %v4170
        %v9075 = vmul.f32 %v9048, %v4170
        %v9076 = vmul.f32 %v9050, %v4170
        %v9077 = vmul.f32 %v9052, %v4170
        %v9078 = vmul.f32 %v9054, %v4170
        %v9079 = vmul.f32 %v9056, %v4170
        %v9080 = vmul.f32 %v9058, %v4170
        %v9081 = vmul.f32 %v9060, %v4170
        %v9082 = vmul.f32 %v9062, %v4170
        %v9083 = vmul.f32 %v9064, %v4170
        %v9084 = vmul.f32 %v9066, %v4170
        %v9085 = vmul.f32 %v9068, %v4170
        %v9086 = vmul.f32 %v9070, %v4170
        %v9087 = vsub.f32 %v9019, %v9071
        %v9088 = vsub.f32 %v9020, %v9072
        %v9089 = vsub.f32 %v9021, %v9073
        %v9090 = vsub.f32 %v9022, %v9074
        %v9091 = vsub.f32 %v9023, %v9075
        %v9092 = vsub.f32 %v9024, %v9076
        %v9093 = vsub.f32 %v9025, %v9077
        %v9094 = vsub.f32 %v9026, %v9078
        %v9095 = vsub.f32 %v9027, %v9079
        %v9096 = vsub.f32 %v9028, %v9080
        %v9097 = vsub.f32 %v9029, %v9081
        %v9098 = vsub.f32 %v9030, %v9082
        %v9099 = vsub.f32 %v9031, %v9083
        %v9100 = vsub.f32 %v9032, %v9084
        %v9101 = vsub.f32 %v9033, %v9085
        %v9102 = vsub.f32 %v9034, %v9086
        %v9103 = vmul.f32 %v9087, %v9087
        %v9104 = vmul.f32 %v9088, %v9088
        %v9105 = vmul.f32 %v9089, %v9089
        %v9106 = vmul.f32 %v9090, %v9090
        %v9107 = vmul.f32 %v9091, %v9091
        %v9108 = vmul.f32 %v9092, %v9092
        %v9109 = vmul.f32 %v9093, %v9093
        %v9110 = vmul.f32 %v9094, %v9094
        %v9111 = vmul.f32 %v9095, %v9095
        %v9112 = vmul.f32 %v9096, %v9096
        %v9113 = vmul.f32 %v9097, %v9097
        %v9114 = vmul.f32 %v9098, %v9098
        %v9115 = vmul.f32 %v9099, %v9099
        %v9116 = vmul.f32 %v9100, %v9100
        %v9117 = vmul.f32 %v9101, %v9101
        %v9118 = vmul.f32 %v9102, %v9102
        %9119 = vadd.xlane.f32.xlu0 %v9103
        %v9120 = vpop.xlane.xlu0 %9119
        %9121 = vadd.xlane.f32.xlu0 %v9104
        %v9122 = vpop.xlane.xlu0 %9121
        %9123 = vadd.xlane.f32.xlu0 %v9105
        %v9124 = vpop.xlane.xlu0 %9123
        %9125 = vadd.xlane.f32.xlu0 %v9106
        %v9126 = vpop.xlane.xlu0 %9125
        %9127 = vadd.xlane.f32.xlu0 %v9107
        %v9128 = vpop.xlane.xlu0 %9127
        %9129 = vadd.xlane.f32.xlu0 %v9108
        %v9130 = vpop.xlane.xlu0 %9129
        %9131 = vadd.xlane.f32.xlu0 %v9109
        %v9132 = vpop.xlane.xlu0 %9131
        %9133 = vadd.xlane.f32.xlu0 %v9110
        %v9134 = vpop.xlane.xlu0 %9133
        %9135 = vadd.xlane.f32.xlu0 %v9111
        %v9136 = vpop.xlane.xlu0 %9135
        %9137 = vadd.xlane.f32.xlu0 %v9112
        %v9138 = vpop.xlane.xlu0 %9137
        %9139 = vadd.xlane.f32.xlu0 %v9113
        %v9140 = vpop.xlane.xlu0 %9139
        %9141 = vadd.xlane.f32.xlu0 %v9114
        %v9142 = vpop.xlane.xlu0 %9141
        %9143 = vadd.xlane.f32.xlu0 %v9115
        %v9144 = vpop.xlane.xlu0 %9143
        %9145 = vadd.xlane.f32.xlu0 %v9116
        %v9146 = vpop.xlane.xlu0 %9145
        %9147 = vadd.xlane.f32.xlu0 %v9117
        %v9148 = vpop.xlane.xlu0 %9147
        %9149 = vadd.xlane.f32.xlu0 %v9118
        %v9150 = vpop.xlane.xlu0 %9149
        %v9151 = vmul.f32 %v9120, %v4170
        %v9152 = vmul.f32 %v9122, %v4170
        %v9153 = vmul.f32 %v9124, %v4170
        %v9154 = vmul.f32 %v9126, %v4170
        %v9155 = vmul.f32 %v9128, %v4170
        %v9156 = vmul.f32 %v9130, %v4170
        %v9157 = vmul.f32 %v9132, %v4170
        %v9158 = vmul.f32 %v9134, %v4170
        %v9159 = vmul.f32 %v9136, %v4170
        %v9160 = vmul.f32 %v9138, %v4170
        %v9161 = vmul.f32 %v9140, %v4170
        %v9162 = vmul.f32 %v9142, %v4170
        %v9163 = vmul.f32 %v9144, %v4170
        %v9164 = vmul.f32 %v9146, %v4170
        %v9165 = vmul.f32 %v9148, %v4170
        %v9166 = vmul.f32 %v9150, %v4170
        %v9167 = vadd.f32 %v9151, 1e-05
        %v9168 = vadd.f32 %v9152, 1e-05
        %v9169 = vadd.f32 %v9153, 1e-05
        %v9170 = vadd.f32 %v9154, 1e-05
        %v9171 = vadd.f32 %v9155, 1e-05
        %v9172 = vadd.f32 %v9156, 1e-05
        %v9173 = vadd.f32 %v9157, 1e-05
        %v9174 = vadd.f32 %v9158, 1e-05
        %v9175 = vadd.f32 %v9159, 1e-05
        %v9176 = vadd.f32 %v9160, 1e-05
        %v9177 = vadd.f32 %v9161, 1e-05
        %v9178 = vadd.f32 %v9162, 1e-05
        %v9179 = vadd.f32 %v9163, 1e-05
        %v9180 = vadd.f32 %v9164, 1e-05
        %v9181 = vadd.f32 %v9165, 1e-05
        %v9182 = vadd.f32 %v9166, 1e-05
        %v9183 = vrsqrt.pop %v9167
        %v9184 = vmul.f32 %v9183, %v9167
        %v9185 = vmul.f32 %v9184, %v9183
        %v9186 = vmul.f32 0.5, %v9185
        %v9187 = vsub.f32 1.5, %v9186
        %v9188 = vmul.f32 %v9183, %v9187
        %vm9189 = vweird.f32 %v9167
        %vm9190 = vweird.f32 %v9183
        %vm9191 = vmor %vm9189, %vm9190
        %v9192 = vsel %vm9191, %v9183, %v9188
        %v9193 = vrsqrt.pop %v9168
        %v9194 = vmul.f32 %v9193, %v9168
        %v9195 = vmul.f32 %v9194, %v9193
        %v9196 = vmul.f32 0.5, %v9195
        %v9197 = vsub.f32 1.5, %v9196
        %v9198 = vmul.f32 %v9193, %v9197
        %vm9199 = vweird.f32 %v9168
        %vm9200 = vweird.f32 %v9193
        %vm9201 = vmor %vm9199, %vm9200
        %v9202 = vsel %vm9201, %v9193, %v9198
        %v9203 = vrsqrt.pop %v9169
        %v9204 = vmul.f32 %v9203, %v9169
        %v9205 = vmul.f32 %v9204, %v9203
        %v9206 = vmul.f32 0.5, %v9205
        %v9207 = vsub.f32 1.5, %v9206
        %v9208 = vmul.f32 %v9203, %v9207
        %vm9209 = vweird.f32 %v9169
        %vm9210 = vweird.f32 %v9203
        %vm9211 = vmor %vm9209, %vm9210
        %v9212 = vsel %vm9211, %v9203, %v9208
        %v9213 = vrsqrt.pop %v9170
        %v9214 = vmul.f32 %v9213, %v9170
        %v9215 = vmul.f32 %v9214, %v9213
        %v9216 = vmul.f32 0.5, %v9215
        %v9217 = vsub.f32 1.5, %v9216
        %v9218 = vmul.f32 %v9213, %v9217
        %vm9219 = vweird.f32 %v9170
        %vm9220 = vweird.f32 %v9213
        %vm9221 = vmor %vm9219, %vm9220
        %v9222 = vsel %vm9221, %v9213, %v9218
        %v9223 = vrsqrt.pop %v9171
        %v9224 = vmul.f32 %v9223, %v9171
        %v9225 = vmul.f32 %v9224, %v9223
        %v9226 = vmul.f32 0.5, %v9225
        %v9227 = vsub.f32 1.5, %v9226
        %v9228 = vmul.f32 %v9223, %v9227
        %vm9229 = vweird.f32 %v9171
        %vm9230 = vweird.f32 %v9223
        %vm9231 = vmor %vm9229, %vm9230
        %v9232 = vsel %vm9231, %v9223, %v9228
        %v9233 = vrsqrt.pop %v9172
        %v9234 = vmul.f32 %v9233, %v9172
        %v9235 = vmul.f32 %v9234, %v9233
        %v9236 = vmul.f32 0.5, %v9235
        %v9237 = vsub.f32 1.5, %v9236
        %v9238 = vmul.f32 %v9233, %v9237
        %vm9239 = vweird.f32 %v9172
        %vm9240 = vweird.f32 %v9233
        %vm9241 = vmor %vm9239, %vm9240
        %v9242 = vsel %vm9241, %v9233, %v9238
        %v9243 = vrsqrt.pop %v9173
        %v9244 = vmul.f32 %v9243, %v9173
        %v9245 = vmul.f32 %v9244, %v9243
        %v9246 = vmul.f32 0.5, %v9245
        %v9247 = vsub.f32 1.5, %v9246
        %v9248 = vmul.f32 %v9243, %v9247
        %vm9249 = vweird.f32 %v9173
        %vm9250 = vweird.f32 %v9243
        %vm9251 = vmor %vm9249, %vm9250
        %v9252 = vsel %vm9251, %v9243, %v9248
        %v9253 = vrsqrt.pop %v9174
        %v9254 = vmul.f32 %v9253, %v9174
        %v9255 = vmul.f32 %v9254, %v9253
        %v9256 = vmul.f32 0.5, %v9255
        %v9257 = vsub.f32 1.5, %v9256
        %v9258 = vmul.f32 %v9253, %v9257
        %vm9259 = vweird.f32 %v9174
        %vm9260 = vweird.f32 %v9253
        %vm9261 = vmor %vm9259, %vm9260
        %v9262 = vsel %vm9261, %v9253, %v9258
        %v9263 = vrsqrt.pop %v9175
        %v9264 = vmul.f32 %v9263, %v9175
        %v9265 = vmul.f32 %v9264, %v9263
        %v9266 = vmul.f32 0.5, %v9265
        %v9267 = vsub.f32 1.5, %v9266
        %v9268 = vmul.f32 %v9263, %v9267
        %vm9269 = vweird.f32 %v9175
        %vm9270 = vweird.f32 %v9263
        %vm9271 = vmor %vm9269, %vm9270
        %v9272 = vsel %vm9271, %v9263, %v9268
        %v9273 = vrsqrt.pop %v9176
        %v9274 = vmul.f32 %v9273, %v9176
        %v9275 = vmul.f32 %v9274, %v9273
        %v9276 = vmul.f32 0.5, %v9275
        %v9277 = vsub.f32 1.5, %v9276
        %v9278 = vmul.f32 %v9273, %v9277
        %vm9279 = vweird.f32 %v9176
        %vm9280 = vweird.f32 %v9273
        %vm9281 = vmor %vm9279, %vm9280
        %v9282 = vsel %vm9281, %v9273, %v9278
        %v9283 = vrsqrt.pop %v9177
        %v9284 = vmul.f32 %v9283, %v9177
        %v9285 = vmul.f32 %v9284, %v9283
        %v9286 = vmul.f32 0.5, %v9285
        %v9287 = vsub.f32 1.5, %v9286
        %v9288 = vmul.f32 %v9283, %v9287
        %vm9289 = vweird.f32 %v9177
        %vm9290 = vweird.f32 %v9283
        %vm9291 = vmor %vm9289, %vm9290
        %v9292 = vsel %vm9291, %v9283, %v9288
        %v9293 = vrsqrt.pop %v9178
        %v9294 = vmul.f32 %v9293, %v9178
        %v9295 = vmul.f32 %v9294, %v9293
        %v9296 = vmul.f32 0.5, %v9295
        %v9297 = vsub.f32 1.5, %v9296
        %v9298 = vmul.f32 %v9293, %v9297
        %vm9299 = vweird.f32 %v9178
        %vm9300 = vweird.f32 %v9293
        %vm9301 = vmor %vm9299, %vm9300
        %v9302 = vsel %vm9301, %v9293, %v9298
        %v9303 = vrsqrt.pop %v9179
        %v9304 = vmul.f32 %v9303, %v9179
        %v9305 = vmul.f32 %v9304, %v9303
        %v9306 = vmul.f32 0.5, %v9305
        %v9307 = vsub.f32 1.5, %v9306
        %v9308 = vmul.f32 %v9303, %v9307
        %vm9309 = vweird.f32 %v9179
        %vm9310 = vweird.f32 %v9303
        %vm9311 = vmor %vm9309, %vm9310
        %v9312 = vsel %vm9311, %v9303, %v9308
        %v9313 = vrsqrt.pop %v9180
        %v9314 = vmul.f32 %v9313, %v9180
        %v9315 = vmul.f32 %v9314, %v9313
        %v9316 = vmul.f32 0.5, %v9315
        %v9317 = vsub.f32 1.5, %v9316
        %v9318 = vmul.f32 %v9313, %v9317
        %vm9319 = vweird.f32 %v9180
        %vm9320 = vweird.f32 %v9313
        %vm9321 = vmor %vm9319, %vm9320
        %v9322 = vsel %vm9321, %v9313, %v9318
        %v9323 = vrsqrt.pop %v9181
        %v9324 = vmul.f32 %v9323, %v9181
        %v9325 = vmul.f32 %v9324, %v9323
        %v9326 = vmul.f32 0.5, %v9325
        %v9327 = vsub.f32 1.5, %v9326
        %v9328 = vmul.f32 %v9323, %v9327
        %vm9329 = vweird.f32 %v9181
        %vm9330 = vweird.f32 %v9323
        %vm9331 = vmor %vm9329, %vm9330
        %v9332 = vsel %vm9331, %v9323, %v9328
        %v9333 = vrsqrt.pop %v9182
        %v9334 = vmul.f32 %v9333, %v9182
        %v9335 = vmul.f32 %v9334, %v9333
        %v9336 = vmul.f32 0.5, %v9335
        %v9337 = vsub.f32 1.5, %v9336
        %v9338 = vmul.f32 %v9333, %v9337
        %vm9339 = vweird.f32 %v9182
        %vm9340 = vweird.f32 %v9333
        %vm9341 = vmor %vm9339, %vm9340
        %v9342 = vsel %vm9341, %v9333, %v9338
        %v9343 = vmul.f32 %v9087, %v9192
        %v9344 = vmul.f32 %v9088, %v9202
        %v9345 = vmul.f32 %v9089, %v9212
        %v9346 = vmul.f32 %v9090, %v9222
        %v9347 = vmul.f32 %v9091, %v9232
        %v9348 = vmul.f32 %v9092, %v9242
        %v9349 = vmul.f32 %v9093, %v9252
        %v9350 = vmul.f32 %v9094, %v9262
        %v9351 = vmul.f32 %v9095, %v9272
        %v9352 = vmul.f32 %v9096, %v9282
        %v9353 = vmul.f32 %v9097, %v9292
        %v9354 = vmul.f32 %v9098, %v9302
        %v9355 = vmul.f32 %v9099, %v9312
        %v9356 = vmul.f32 %v9100, %v9322
        %v9357 = vmul.f32 %v9101, %v9332
        %v9358 = vmul.f32 %v9102, %v9342
        %v9360 = vperm.slane %v9036, 0
        %v9362 = vmul.f32 %v9343, %v9360
        %v9363 = vmul.f32 %v9344, %v9360
        %v9364 = vmul.f32 %v9345, %v9360
        %v9365 = vmul.f32 %v9346, %v9360
        %v9366 = vmul.f32 %v9347, %v9360
        %v9367 = vmul.f32 %v9348, %v9360
        %v9368 = vmul.f32 %v9349, %v9360
        %v9369 = vmul.f32 %v9350, %v9360
        %v9370 = vmul.f32 %v9351, %v9360
        %v9371 = vmul.f32 %v9352, %v9360
        %v9372 = vmul.f32 %v9353, %v9360
        %v9373 = vmul.f32 %v9354, %v9360
        %v9374 = vmul.f32 %v9355, %v9360
        %v9375 = vmul.f32 %v9356, %v9360
        %v9376 = vmul.f32 %v9357, %v9360
        %v9377 = vmul.f32 %v9358, %v9360
        %v9379 = vperm.slane %v9038, 0
        %v9381 = vadd.f32 %v9362, %v9379
        %v9382 = vadd.f32 %v9363, %v9379
        %v9383 = vadd.f32 %v9364, %v9379
        %v9384 = vadd.f32 %v9365, %v9379
        %v9385 = vadd.f32 %v9366, %v9379
        %v9386 = vadd.f32 %v9367, %v9379
        %v9387 = vadd.f32 %v9368, %v9379
        %v9388 = vadd.f32 %v9369, %v9379
        %v9389 = vadd.f32 %v9370, %v9379
        %v9390 = vadd.f32 %v9371, %v9379
        %v9391 = vadd.f32 %v9372, %v9379
        %v9392 = vadd.f32 %v9373, %v9379
        %v9393 = vadd.f32 %v9374, %v9379
        %v9394 = vadd.f32 %v9375, %v9379
        %v9395 = vadd.f32 %v9376, %v9379
        %v9396 = vadd.f32 %v9377, %v9379
        %v9397 = vpack.c.bf16 %v9382, %v9381
        %v9398 = vpack.c.bf16 %v9384, %v9383
        %v9399 = vpack.c.bf16 %v9386, %v9385
        %v9400 = vpack.c.bf16 %v9388, %v9387
        %v9401 = vpack.c.bf16 %v9390, %v9389
        %v9402 = vpack.c.bf16 %v9392, %v9391
        %v9403 = vpack.c.bf16 %v9394, %v9393
        %v9404 = vpack.c.bf16 %v9396, %v9395
        %s9405 = scalar_lea.vmem [#allocation6], 256
        %v9406 = vld [vmem:[%s9405] sm:$0xff]
        %v9407 = vld [vmem:[%s9405 + $0x8] sm:$0xff]
        %v9408 = vld [vmem:[%s9405 + $0x10] sm:$0xff]
        %v9409 = vld [vmem:[%s9405 + $0x18] sm:$0xff]
        %v9410 = vld [vmem:[%s9405 + $0x20] sm:$0xff]
        %v9411 = vld [vmem:[%s9405 + $0x28] sm:$0xff]
        %v9412 = vld [vmem:[%s9405 + $0x30] sm:$0xff]
        %v9413 = vld [vmem:[%s9405 + $0x38] sm:$0xff]
        %v9414 = vld [vmem:[%s9405 + $0x40] sm:$0xff]
        %v9415 = vld [vmem:[%s9405 + $0x48] sm:$0xff]
        %v9416 = vld [vmem:[%s9405 + $0x50] sm:$0xff]
        %v9417 = vld [vmem:[%s9405 + $0x58] sm:$0xff]
        %v9418 = vld [vmem:[%s9405 + $0x60] sm:$0xff]
        %v9419 = vld [vmem:[%s9405 + $0x68] sm:$0xff]
        %v9420 = vld [vmem:[%s9405 + $0x70] sm:$0xff]
        %v9421 = vld [vmem:[%s9405 + $0x78] sm:$0xff]
        %v9422 = vld [vmem:[%s9405 + $0x80] sm:$0xff]
        %v9423 = vld [vmem:[%s9405 + $0x88] sm:$0xff]
        %v9424 = vld [vmem:[%s9405 + $0x90] sm:$0xff]
        %v9425 = vld [vmem:[%s9405 + $0x98] sm:$0xff]
        %v9426 = vld [vmem:[%s9405 + $0xa0] sm:$0xff]
        %v9427 = vld [vmem:[%s9405 + $0xa8] sm:$0xff]
        %v9428 = vld [vmem:[%s9405 + $0xb0] sm:$0xff]
        %v9429 = vld [vmem:[%s9405 + $0xb8] sm:$0xff]
        %v9430 = vld [vmem:[%s9405 + $0xc0] sm:$0xff]
        %v9431 = vld [vmem:[%s9405 + $0xc8] sm:$0xff]
        %v9432 = vld [vmem:[%s9405 + $0xd0] sm:$0xff]
        %v9433 = vld [vmem:[%s9405 + $0xd8] sm:$0xff]
        %v9434 = vld [vmem:[%s9405 + $0xe0] sm:$0xff]
        %v9435 = vld [vmem:[%s9405 + $0xe8] sm:$0xff]
        %v9436 = vld [vmem:[%s9405 + $0xf0] sm:$0xff]
        %v9437 = vld [vmem:[%s9405 + $0xf8] sm:$0xff]
        %s9438 = scalar_lea.vmem %s12, 4
        %v9439 = vld [vmem:[%s9438] sm:$0xf]
        %v9441 = vperm.slane %v9439, 0
        %v9442 = vperm.slane %v9439, 1
        %v9443 = vperm.slane %v9439, 2
        %v9444 = vperm.slane %v9439, 3
        %v9481 = vunpack.c.l.b16 %v9406
        %v9482 = vunpack.c.h.b16 %v9406
        %v9483 = vunpack.c.l.b16 %v9407
        %v9484 = vunpack.c.h.b16 %v9407
        %v9485 = vunpack.c.l.b16 %v9408
        %v9486 = vunpack.c.h.b16 %v9408
        %v9487 = vunpack.c.l.b16 %v9409
        %v9488 = vunpack.c.h.b16 %v9409
        %v9489 = vunpack.c.l.b16 %v9410
        %v9490 = vunpack.c.h.b16 %v9410
        %v9491 = vunpack.c.l.b16 %v9411
        %v9492 = vunpack.c.h.b16 %v9411
        %v9493 = vunpack.c.l.b16 %v9412
        %v9494 = vunpack.c.h.b16 %v9412
        %v9495 = vunpack.c.l.b16 %v9413
        %v9496 = vunpack.c.h.b16 %v9413
        %v9497 = vunpack.c.l.b16 %v9414
        %v9498 = vunpack.c.h.b16 %v9414
        %v9499 = vunpack.c.l.b16 %v9415
        %v9500 = vunpack.c.h.b16 %v9415
        %v9501 = vunpack.c.l.b16 %v9416
        %v9502 = vunpack.c.h.b16 %v9416
        %v9503 = vunpack.c.l.b16 %v9417
        %v9504 = vunpack.c.h.b16 %v9417
        %v9505 = vunpack.c.l.b16 %v9418
        %v9506 = vunpack.c.h.b16 %v9418
        %v9507 = vunpack.c.l.b16 %v9419
        %v9508 = vunpack.c.h.b16 %v9419
        %v9509 = vunpack.c.l.b16 %v9420
        %v9510 = vunpack.c.h.b16 %v9420
        %v9511 = vunpack.c.l.b16 %v9421
        %v9512 = vunpack.c.h.b16 %v9421
        %v9513 = vunpack.c.l.b16 %v9422
        %v9514 = vunpack.c.h.b16 %v9422
        %v9515 = vunpack.c.l.b16 %v9423
        %v9516 = vunpack.c.h.b16 %v9423
        %v9517 = vunpack.c.l.b16 %v9424
        %v9518 = vunpack.c.h.b16 %v9424
        %v9519 = vunpack.c.l.b16 %v9425
        %v9520 = vunpack.c.h.b16 %v9425
        %v9521 = vunpack.c.l.b16 %v9426
        %v9522 = vunpack.c.h.b16 %v9426
        %v9523 = vunpack.c.l.b16 %v9427
        %v9524 = vunpack.c.h.b16 %v9427
        %v9525 = vunpack.c.l.b16 %v9428
        %v9526 = vunpack.c.h.b16 %v9428
        %v9527 = vunpack.c.l.b16 %v9429
        %v9528 = vunpack.c.h.b16 %v9429
        %v9529 = vunpack.c.l.b16 %v9430
        %v9530 = vunpack.c.h.b16 %v9430
        %v9531 = vunpack.c.l.b16 %v9431
        %v9532 = vunpack.c.h.b16 %v9431
        %v9533 = vunpack.c.l.b16 %v9432
        %v9534 = vunpack.c.h.b16 %v9432
        %v9535 = vunpack.c.l.b16 %v9433
        %v9536 = vunpack.c.h.b16 %v9433
        %v9537 = vunpack.c.l.b16 %v9434
        %v9538 = vunpack.c.h.b16 %v9434
        %v9539 = vunpack.c.l.b16 %v9435
        %v9540 = vunpack.c.h.b16 %v9435
        %v9541 = vunpack.c.l.b16 %v9436
        %v9542 = vunpack.c.h.b16 %v9436
        %v9543 = vunpack.c.l.b16 %v9437
        %v9544 = vunpack.c.h.b16 %v9437
        %v9545 = vpack.c.b16 %v9485, %v9481
        %v9546 = vpack.c.b16 %v9486, %v9482
        %v9547 = vpack.c.b16 %v9487, %v9483
        %v9548 = vpack.c.b16 %v9488, %v9484
        %v9549 = vpack.c.b16 %v9493, %v9489
        %v9550 = vpack.c.b16 %v9494, %v9490
        %v9551 = vpack.c.b16 %v9495, %v9491
        %v9552 = vpack.c.b16 %v9496, %v9492
        %v9553 = vpack.c.b16 %v9501, %v9497
        %v9554 = vpack.c.b16 %v9502, %v9498
        %v9555 = vpack.c.b16 %v9503, %v9499
        %v9556 = vpack.c.b16 %v9504, %v9500
        %v9557 = vpack.c.b16 %v9509, %v9505
        %v9558 = vpack.c.b16 %v9510, %v9506
        %v9559 = vpack.c.b16 %v9511, %v9507
        %v9560 = vpack.c.b16 %v9512, %v9508
        %v9561 = vpack.c.b16 %v9517, %v9513
        %v9562 = vpack.c.b16 %v9518, %v9514
        %v9563 = vpack.c.b16 %v9519, %v9515
        %v9564 = vpack.c.b16 %v9520, %v9516
        %v9565 = vpack.c.b16 %v9525, %v9521
        %v9566 = vpack.c.b16 %v9526, %v9522
        %v9567 = vpack.c.b16 %v9527, %v9523
        %v9568 = vpack.c.b16 %v9528, %v9524
        %v9569 = vpack.c.b16 %v9533, %v9529
        %v9570 = vpack.c.b16 %v9534, %v9530
        %v9571 = vpack.c.b16 %v9535, %v9531
        %v9572 = vpack.c.b16 %v9536, %v9532
        %v9573 = vpack.c.b16 %v9541, %v9537
        %v9574 = vpack.c.b16 %v9542, %v9538
        %v9575 = vpack.c.b16 %v9543, %v9539
        %v9576 = vpack.c.b16 %v9544, %v9540
        %9609 = vmatpush.bf16.msra.mxu0 %v9573
        %9610 = vmatpush.bf16.msra.mxu0 %v9569
        %9611 = vmatpush.bf16.msra.mxu0 %v9565
        %9612 = vmatpush.bf16.msra.mxu0 %v9561
        %9613 = vmatpush.bf16.msra.mxu0 %v9557
        %9614 = vmatpush.bf16.msra.mxu0 %v9553
        %9615 = vmatpush.bf16.msra.mxu0 %v9549
        %9616 = vmatpush.bf16.msra.mxu0 %v9545
        %9617 = vmatmul.bf16.gmra.mxu0 %v9397
        %v9618 = vpop.f32.mrf.mxu0
        %v9619 = vadd.f32 %v9441, %v9618
        %v9620 = vpop.f32.mrf.mxu0
        %v9621 = vadd.f32 %v9441, %v9620
        %9622 = vmatmul.bf16.gmra.mxu0 %v9398
        %v9623 = vpop.f32.mrf.mxu0
        %v9624 = vadd.f32 %v9441, %v9623
        %v9625 = vpop.f32.mrf.mxu0
        %v9626 = vadd.f32 %v9441, %v9625
        %9627 = vmatmul.bf16.gmra.mxu0 %v9399
        %v9628 = vpop.f32.mrf.mxu0
        %v9629 = vadd.f32 %v9441, %v9628
        %v9630 = vpop.f32.mrf.mxu0
        %v9631 = vadd.f32 %v9441, %v9630
        %9632 = vmatmul.bf16.gmra.mxu0 %v9400
        %v9633 = vpop.f32.mrf.mxu0
        %v9634 = vadd.f32 %v9441, %v9633
        %v9635 = vpop.f32.mrf.mxu0
        %v9636 = vadd.f32 %v9441, %v9635
        %9637 = vmatmul.bf16.gmra.mxu0 %v9401
        %v9638 = vpop.f32.mrf.mxu0
        %v9639 = vadd.f32 %v9441, %v9638
        %v9640 = vpop.f32.mrf.mxu0
        %v9641 = vadd.f32 %v9441, %v9640
        %9642 = vmatmul.bf16.gmra.mxu0 %v9402
        %v9643 = vpop.f32.mrf.mxu0
        %v9644 = vadd.f32 %v9441, %v9643
        %v9645 = vpop.f32.mrf.mxu0
        %v9646 = vadd.f32 %v9441, %v9645
        %9647 = vmatmul.bf16.gmra.mxu0 %v9403
        %v9648 = vpop.f32.mrf.mxu0
        %v9649 = vadd.f32 %v9441, %v9648
        %v9650 = vpop.f32.mrf.mxu0
        %v9651 = vadd.f32 %v9441, %v9650
        %9652 = vmatmul.bf16.gmra.mxu0 %v9404
        %v9653 = vpop.f32.mrf.mxu0
        %v9654 = vadd.f32 %v9441, %v9653
        %v9655 = vpop.f32.mrf.mxu0
        %v9656 = vadd.f32 %v9441, %v9655
        %9657 = vdwg.mxu0
        %9658 = vmatpush.bf16.msra.mxu0 %v9574
        %9659 = vmatpush.bf16.msra.mxu0 %v9570
        %9660 = vmatpush.bf16.msra.mxu0 %v9566
        %9661 = vmatpush.bf16.msra.mxu0 %v9562
        %9662 = vmatpush.bf16.msra.mxu0 %v9558
        %9663 = vmatpush.bf16.msra.mxu0 %v9554
        %9664 = vmatpush.bf16.msra.mxu0 %v9550
        %9665 = vmatpush.bf16.msra.mxu0 %v9546
        %9666 = vmatmul.bf16.gmra.mxu0 %v9397
        %v9667 = vpop.f32.mrf.mxu0
        %v9668 = vadd.f32 %v9442, %v9667
        %v9669 = vpop.f32.mrf.mxu0
        %v9670 = vadd.f32 %v9442, %v9669
        %9671 = vmatmul.bf16.gmra.mxu0 %v9398
        %v9672 = vpop.f32.mrf.mxu0
        %v9673 = vadd.f32 %v9442, %v9672
        %v9674 = vpop.f32.mrf.mxu0
        %v9675 = vadd.f32 %v9442, %v9674
        %9676 = vmatmul.bf16.gmra.mxu0 %v9399
        %v9677 = vpop.f32.mrf.mxu0
        %v9678 = vadd.f32 %v9442, %v9677
        %v9679 = vpop.f32.mrf.mxu0
        %v9680 = vadd.f32 %v9442, %v9679
        %9681 = vmatmul.bf16.gmra.mxu0 %v9400
        %v9682 = vpop.f32.mrf.mxu0
        %v9683 = vadd.f32 %v9442, %v9682
        %v9684 = vpop.f32.mrf.mxu0
        %v9685 = vadd.f32 %v9442, %v9684
        %9686 = vmatmul.bf16.gmra.mxu0 %v9401
        %v9687 = vpop.f32.mrf.mxu0
        %v9688 = vadd.f32 %v9442, %v9687
        %v9689 = vpop.f32.mrf.mxu0
        %v9690 = vadd.f32 %v9442, %v9689
        %9691 = vmatmul.bf16.gmra.mxu0 %v9402
        %v9692 = vpop.f32.mrf.mxu0
        %v9693 = vadd.f32 %v9442, %v9692
        %v9694 = vpop.f32.mrf.mxu0
        %v9695 = vadd.f32 %v9442, %v9694
        %9696 = vmatmul.bf16.gmra.mxu0 %v9403
        %v9697 = vpop.f32.mrf.mxu0
        %v9698 = vadd.f32 %v9442, %v9697
        %v9699 = vpop.f32.mrf.mxu0
        %v9700 = vadd.f32 %v9442, %v9699
        %9701 = vmatmul.bf16.gmra.mxu0 %v9404
        %v9702 = vpop.f32.mrf.mxu0
        %v9703 = vadd.f32 %v9442, %v9702
        %v9704 = vpop.f32.mrf.mxu0
        %v9705 = vadd.f32 %v9442, %v9704
        %9706 = vdwg.mxu0
        %9707 = vmatpush.bf16.msra.mxu0 %v9575
        %9708 = vmatpush.bf16.msra.mxu0 %v9571
        %9709 = vmatpush.bf16.msra.mxu0 %v9567
        %9710 = vmatpush.bf16.msra.mxu0 %v9563
        %9711 = vmatpush.bf16.msra.mxu0 %v9559
        %9712 = vmatpush.bf16.msra.mxu0 %v9555
        %9713 = vmatpush.bf16.msra.mxu0 %v9551
        %9714 = vmatpush.bf16.msra.mxu0 %v9547
        %9715 = vmatmul.bf16.gmra.mxu0 %v9397
        %v9716 = vpop.f32.mrf.mxu0
        %v9717 = vadd.f32 %v9443, %v9716
        %v9718 = vpop.f32.mrf.mxu0
        %v9719 = vadd.f32 %v9443, %v9718
        %9720 = vmatmul.bf16.gmra.mxu0 %v9398
        %v9721 = vpop.f32.mrf.mxu0
        %v9722 = vadd.f32 %v9443, %v9721
        %v9723 = vpop.f32.mrf.mxu0
        %v9724 = vadd.f32 %v9443, %v9723
        %9725 = vmatmul.bf16.gmra.mxu0 %v9399
        %v9726 = vpop.f32.mrf.mxu0
        %v9727 = vadd.f32 %v9443, %v9726
        %v9728 = vpop.f32.mrf.mxu0
        %v9729 = vadd.f32 %v9443, %v9728
        %9730 = vmatmul.bf16.gmra.mxu0 %v9400
        %v9731 = vpop.f32.mrf.mxu0
        %v9732 = vadd.f32 %v9443, %v9731
        %v9733 = vpop.f32.mrf.mxu0
        %v9734 = vadd.f32 %v9443, %v9733
        %9735 = vmatmul.bf16.gmra.mxu0 %v9401
        %v9736 = vpop.f32.mrf.mxu0
        %v9737 = vadd.f32 %v9443, %v9736
        %v9738 = vpop.f32.mrf.mxu0
        %v9739 = vadd.f32 %v9443, %v9738
        %9740 = vmatmul.bf16.gmra.mxu0 %v9402
        %v9741 = vpop.f32.mrf.mxu0
        %v9742 = vadd.f32 %v9443, %v9741
        %v9743 = vpop.f32.mrf.mxu0
        %v9744 = vadd.f32 %v9443, %v9743
        %9745 = vmatmul.bf16.gmra.mxu0 %v9403
        %v9746 = vpop.f32.mrf.mxu0
        %v9747 = vadd.f32 %v9443, %v9746
        %v9748 = vpop.f32.mrf.mxu0
        %v9749 = vadd.f32 %v9443, %v9748
        %9750 = vmatmul.bf16.gmra.mxu0 %v9404
        %v9751 = vpop.f32.mrf.mxu0
        %v9752 = vadd.f32 %v9443, %v9751
        %v9753 = vpop.f32.mrf.mxu0
        %v9754 = vadd.f32 %v9443, %v9753
        %9755 = vdwg.mxu0
        %9756 = vmatpush.bf16.msra.mxu0 %v9576
        %9757 = vmatpush.bf16.msra.mxu0 %v9572
        %9758 = vmatpush.bf16.msra.mxu0 %v9568
        %9759 = vmatpush.bf16.msra.mxu0 %v9564
        %9760 = vmatpush.bf16.msra.mxu0 %v9560
        %9761 = vmatpush.bf16.msra.mxu0 %v9556
        %9762 = vmatpush.bf16.msra.mxu0 %v9552
        %9763 = vmatpush.bf16.msra.mxu0 %v9548
        %9764 = vmatmul.bf16.gmra.mxu0 %v9397
        %v9765 = vpop.f32.mrf.mxu0
        %v9766 = vadd.f32 %v9444, %v9765
        %v9767 = vpop.f32.mrf.mxu0
        %v9768 = vadd.f32 %v9444, %v9767
        %9769 = vmatmul.bf16.gmra.mxu0 %v9398
        %v9770 = vpop.f32.mrf.mxu0
        %v9771 = vadd.f32 %v9444, %v9770
        %v9772 = vpop.f32.mrf.mxu0
        %v9773 = vadd.f32 %v9444, %v9772
        %9774 = vmatmul.bf16.gmra.mxu0 %v9399
        %v9775 = vpop.f32.mrf.mxu0
        %v9776 = vadd.f32 %v9444, %v9775
        %v9777 = vpop.f32.mrf.mxu0
        %v9778 = vadd.f32 %v9444, %v9777
        %9779 = vmatmul.bf16.gmra.mxu0 %v9400
        %v9780 = vpop.f32.mrf.mxu0
        %v9781 = vadd.f32 %v9444, %v9780
        %v9782 = vpop.f32.mrf.mxu0
        %v9783 = vadd.f32 %v9444, %v9782
        %9784 = vmatmul.bf16.gmra.mxu0 %v9401
        %v9785 = vpop.f32.mrf.mxu0
        %v9786 = vadd.f32 %v9444, %v9785
        %v9787 = vpop.f32.mrf.mxu0
        %v9788 = vadd.f32 %v9444, %v9787
        %9789 = vmatmul.bf16.gmra.mxu0 %v9402
        %v9790 = vpop.f32.mrf.mxu0
        %v9791 = vadd.f32 %v9444, %v9790
        %v9792 = vpop.f32.mrf.mxu0
        %v9793 = vadd.f32 %v9444, %v9792
        %9794 = vmatmul.bf16.gmra.mxu0 %v9403
        %v9795 = vpop.f32.mrf.mxu0
        %v9796 = vadd.f32 %v9444, %v9795
        %v9797 = vpop.f32.mrf.mxu0
        %v9798 = vadd.f32 %v9444, %v9797
        %9799 = vmatmul.bf16.gmra.mxu0 %v9404
        %v9800 = vpop.f32.mrf.mxu0
        %v9801 = vadd.f32 %v9444, %v9800
        %v9802 = vpop.f32.mrf.mxu0
        %v9803 = vadd.f32 %v9444, %v9802
        %9804 = vdwg.mxu0
        %v9805 = vmax.f32 %v9619, 0.0
        %v9806 = vmax.f32 %v9668, 0.0
        %v9807 = vmax.f32 %v9717, 0.0
        %v9808 = vmax.f32 %v9766, 0.0
        %v9809 = vmax.f32 %v9621, 0.0
        %v9810 = vmax.f32 %v9670, 0.0
        %v9811 = vmax.f32 %v9719, 0.0
        %v9812 = vmax.f32 %v9768, 0.0
        %v9813 = vmax.f32 %v9624, 0.0
        %v9814 = vmax.f32 %v9673, 0.0
        %v9815 = vmax.f32 %v9722, 0.0
        %v9816 = vmax.f32 %v9771, 0.0
        %v9817 = vmax.f32 %v9626, 0.0
        %v9818 = vmax.f32 %v9675, 0.0
        %v9819 = vmax.f32 %v9724, 0.0
        %v9820 = vmax.f32 %v9773, 0.0
        %v9821 = vmax.f32 %v9629, 0.0
        %v9822 = vmax.f32 %v9678, 0.0
        %v9823 = vmax.f32 %v9727, 0.0
        %v9824 = vmax.f32 %v9776, 0.0
        %v9825 = vmax.f32 %v9631, 0.0
        %v9826 = vmax.f32 %v9680, 0.0
        %v9827 = vmax.f32 %v9729, 0.0
        %v9828 = vmax.f32 %v9778, 0.0
        %v9829 = vmax.f32 %v9634, 0.0
        %v9830 = vmax.f32 %v9683, 0.0
        %v9831 = vmax.f32 %v9732, 0.0
        %v9832 = vmax.f32 %v9781, 0.0
        %v9833 = vmax.f32 %v9636, 0.0
        %v9834 = vmax.f32 %v9685, 0.0
        %v9835 = vmax.f32 %v9734, 0.0
        %v9836 = vmax.f32 %v9783, 0.0
        %v9837 = vmax.f32 %v9639, 0.0
        %v9838 = vmax.f32 %v9688, 0.0
        %v9839 = vmax.f32 %v9737, 0.0
        %v9840 = vmax.f32 %v9786, 0.0
        %v9841 = vmax.f32 %v9641, 0.0
        %v9842 = vmax.f32 %v9690, 0.0
        %v9843 = vmax.f32 %v9739, 0.0
        %v9844 = vmax.f32 %v9788, 0.0
        %v9845 = vmax.f32 %v9644, 0.0
        %v9846 = vmax.f32 %v9693, 0.0
        %v9847 = vmax.f32 %v9742, 0.0
        %v9848 = vmax.f32 %v9791, 0.0
        %v9849 = vmax.f32 %v9646, 0.0
        %v9850 = vmax.f32 %v9695, 0.0
        %v9851 = vmax.f32 %v9744, 0.0
        %v9852 = vmax.f32 %v9793, 0.0
        %v9853 = vmax.f32 %v9649, 0.0
        %v9854 = vmax.f32 %v9698, 0.0
        %v9855 = vmax.f32 %v9747, 0.0
        %v9856 = vmax.f32 %v9796, 0.0
        %v9857 = vmax.f32 %v9651, 0.0
        %v9858 = vmax.f32 %v9700, 0.0
        %v9859 = vmax.f32 %v9749, 0.0
        %v9860 = vmax.f32 %v9798, 0.0
        %v9861 = vmax.f32 %v9654, 0.0
        %v9862 = vmax.f32 %v9703, 0.0
        %v9863 = vmax.f32 %v9752, 0.0
        %v9864 = vmax.f32 %v9801, 0.0
        %v9865 = vmax.f32 %v9656, 0.0
        %v9866 = vmax.f32 %v9705, 0.0
        %v9867 = vmax.f32 %v9754, 0.0
        %v9868 = vmax.f32 %v9803, 0.0
        %v9869 = vpack.c.bf16 %v9809, %v9805
        %v9870 = vpack.c.bf16 %v9810, %v9806
        %v9871 = vpack.c.bf16 %v9811, %v9807
        %v9872 = vpack.c.bf16 %v9812, %v9808
        %v9873 = vpack.c.bf16 %v9817, %v9813
        %v9874 = vpack.c.bf16 %v9818, %v9814
        %v9875 = vpack.c.bf16 %v9819, %v9815
        %v9876 = vpack.c.bf16 %v9820, %v9816
        %v9877 = vpack.c.bf16 %v9825, %v9821
        %v9878 = vpack.c.bf16 %v9826, %v9822
        %v9879 = vpack.c.bf16 %v9827, %v9823
        %v9880 = vpack.c.bf16 %v9828, %v9824
        %v9881 = vpack.c.bf16 %v9833, %v9829
        %v9882 = vpack.c.bf16 %v9834, %v9830
        %v9883 = vpack.c.bf16 %v9835, %v9831
        %v9884 = vpack.c.bf16 %v9836, %v9832
        %v9885 = vpack.c.bf16 %v9841, %v9837
        %v9886 = vpack.c.bf16 %v9842, %v9838
        %v9887 = vpack.c.bf16 %v9843, %v9839
        %v9888 = vpack.c.bf16 %v9844, %v9840
        %v9889 = vpack.c.bf16 %v9849, %v9845
        %v9890 = vpack.c.bf16 %v9850, %v9846
        %v9891 = vpack.c.bf16 %v9851, %v9847
        %v9892 = vpack.c.bf16 %v9852, %v9848
        %v9893 = vpack.c.bf16 %v9857, %v9853
        %v9894 = vpack.c.bf16 %v9858, %v9854
        %v9895 = vpack.c.bf16 %v9859, %v9855
        %v9896 = vpack.c.bf16 %v9860, %v9856
        %v9897 = vpack.c.bf16 %v9865, %v9861
        %v9898 = vpack.c.bf16 %v9866, %v9862
        %v9899 = vpack.c.bf16 %v9867, %v9863
        %v9900 = vpack.c.bf16 %v9868, %v9864
        %s9901 = scalar_lea.vmem [#allocation7], 256
        %v9902 = vld [vmem:[%s9901] sm:$0xf]
        %v9903 = vld [vmem:[%s9901 + $0x4] sm:$0xf]
        %v9904 = vld [vmem:[%s9901 + $0x8] sm:$0xf]
        %v9905 = vld [vmem:[%s9901 + $0xc] sm:$0xf]
        %v9906 = vld [vmem:[%s9901 + $0x10] sm:$0xf]
        %v9907 = vld [vmem:[%s9901 + $0x14] sm:$0xf]
        %v9908 = vld [vmem:[%s9901 + $0x18] sm:$0xf]
        %v9909 = vld [vmem:[%s9901 + $0x1c] sm:$0xf]
        %v9910 = vld [vmem:[%s9901 + $0x20] sm:$0xf]
        %v9911 = vld [vmem:[%s9901 + $0x24] sm:$0xf]
        %v9912 = vld [vmem:[%s9901 + $0x28] sm:$0xf]
        %v9913 = vld [vmem:[%s9901 + $0x2c] sm:$0xf]
        %v9914 = vld [vmem:[%s9901 + $0x30] sm:$0xf]
        %v9915 = vld [vmem:[%s9901 + $0x34] sm:$0xf]
        %v9916 = vld [vmem:[%s9901 + $0x38] sm:$0xf]
        %v9917 = vld [vmem:[%s9901 + $0x3c] sm:$0xf]
        %v9918 = vld [vmem:[%s9901 + $0x40] sm:$0xf]
        %v9919 = vld [vmem:[%s9901 + $0x44] sm:$0xf]
        %v9920 = vld [vmem:[%s9901 + $0x48] sm:$0xf]
        %v9921 = vld [vmem:[%s9901 + $0x4c] sm:$0xf]
        %v9922 = vld [vmem:[%s9901 + $0x50] sm:$0xf]
        %v9923 = vld [vmem:[%s9901 + $0x54] sm:$0xf]
        %v9924 = vld [vmem:[%s9901 + $0x58] sm:$0xf]
        %v9925 = vld [vmem:[%s9901 + $0x5c] sm:$0xf]
        %v9926 = vld [vmem:[%s9901 + $0x60] sm:$0xf]
        %v9927 = vld [vmem:[%s9901 + $0x64] sm:$0xf]
        %v9928 = vld [vmem:[%s9901 + $0x68] sm:$0xf]
        %v9929 = vld [vmem:[%s9901 + $0x6c] sm:$0xf]
        %v9930 = vld [vmem:[%s9901 + $0x70] sm:$0xf]
        %v9931 = vld [vmem:[%s9901 + $0x74] sm:$0xf]
        %v9932 = vld [vmem:[%s9901 + $0x78] sm:$0xf]
        %v9933 = vld [vmem:[%s9901 + $0x7c] sm:$0xf]
        %v9934 = vld [vmem:[%s9901 + $0x80] sm:$0xf]
        %v9935 = vld [vmem:[%s9901 + $0x84] sm:$0xf]
        %v9936 = vld [vmem:[%s9901 + $0x88] sm:$0xf]
        %v9937 = vld [vmem:[%s9901 + $0x8c] sm:$0xf]
        %v9938 = vld [vmem:[%s9901 + $0x90] sm:$0xf]
        %v9939 = vld [vmem:[%s9901 + $0x94] sm:$0xf]
        %v9940 = vld [vmem:[%s9901 + $0x98] sm:$0xf]
        %v9941 = vld [vmem:[%s9901 + $0x9c] sm:$0xf]
        %v9942 = vld [vmem:[%s9901 + $0xa0] sm:$0xf]
        %v9943 = vld [vmem:[%s9901 + $0xa4] sm:$0xf]
        %v9944 = vld [vmem:[%s9901 + $0xa8] sm:$0xf]
        %v9945 = vld [vmem:[%s9901 + $0xac] sm:$0xf]
        %v9946 = vld [vmem:[%s9901 + $0xb0] sm:$0xf]
        %v9947 = vld [vmem:[%s9901 + $0xb4] sm:$0xf]
        %v9948 = vld [vmem:[%s9901 + $0xb8] sm:$0xf]
        %v9949 = vld [vmem:[%s9901 + $0xbc] sm:$0xf]
        %v9950 = vld [vmem:[%s9901 + $0xc0] sm:$0xf]
        %v9951 = vld [vmem:[%s9901 + $0xc4] sm:$0xf]
        %v9952 = vld [vmem:[%s9901 + $0xc8] sm:$0xf]
        %v9953 = vld [vmem:[%s9901 + $0xcc] sm:$0xf]
        %v9954 = vld [vmem:[%s9901 + $0xd0] sm:$0xf]
        %v9955 = vld [vmem:[%s9901 + $0xd4] sm:$0xf]
        %v9956 = vld [vmem:[%s9901 + $0xd8] sm:$0xf]
        %v9957 = vld [vmem:[%s9901 + $0xdc] sm:$0xf]
        %v9958 = vld [vmem:[%s9901 + $0xe0] sm:$0xf]
        %v9959 = vld [vmem:[%s9901 + $0xe4] sm:$0xf]
        %v9960 = vld [vmem:[%s9901 + $0xe8] sm:$0xf]
        %v9961 = vld [vmem:[%s9901 + $0xec] sm:$0xf]
        %v9962 = vld [vmem:[%s9901 + $0xf0] sm:$0xf]
        %v9963 = vld [vmem:[%s9901 + $0xf4] sm:$0xf]
        %v9964 = vld [vmem:[%s9901 + $0xf8] sm:$0xf]
        %v9965 = vld [vmem:[%s9901 + $0xfc] sm:$0xf]
        %s9966 = scalar_lea.vmem [#allocation9], 1
        %v9967 = vld [vmem:[%s9966] sm:$0x1]
        %v9969 = vperm.slane %v9967, 0
        %v10035 = vunpack.c.l.b16 %v9902
        %v10036 = vunpack.c.l.b16 %v9903
        %v10037 = vunpack.c.l.b16 %v9904
        %v10038 = vunpack.c.l.b16 %v9905
        %v10039 = vunpack.c.l.b16 %v9906
        %v10040 = vunpack.c.l.b16 %v9907
        %v10041 = vunpack.c.l.b16 %v9908
        %v10042 = vunpack.c.l.b16 %v9909
        %v10043 = vunpack.c.l.b16 %v9910
        %v10044 = vunpack.c.l.b16 %v9911
        %v10045 = vunpack.c.l.b16 %v9912
        %v10046 = vunpack.c.l.b16 %v9913
        %v10047 = vunpack.c.l.b16 %v9914
        %v10048 = vunpack.c.l.b16 %v9915
        %v10049 = vunpack.c.l.b16 %v9916
        %v10050 = vunpack.c.l.b16 %v9917
        %v10051 = vunpack.c.l.b16 %v9918
        %v10052 = vunpack.c.l.b16 %v9919
        %v10053 = vunpack.c.l.b16 %v9920
        %v10054 = vunpack.c.l.b16 %v9921
        %v10055 = vunpack.c.l.b16 %v9922
        %v10056 = vunpack.c.l.b16 %v9923
        %v10057 = vunpack.c.l.b16 %v9924
        %v10058 = vunpack.c.l.b16 %v9925
        %v10059 = vunpack.c.l.b16 %v9926
        %v10060 = vunpack.c.l.b16 %v9927
        %v10061 = vunpack.c.l.b16 %v9928
        %v10062 = vunpack.c.l.b16 %v9929
        %v10063 = vunpack.c.l.b16 %v9930
        %v10064 = vunpack.c.l.b16 %v9931
        %v10065 = vunpack.c.l.b16 %v9932
        %v10066 = vunpack.c.l.b16 %v9933
        %v10067 = vunpack.c.l.b16 %v9934
        %v10068 = vunpack.c.l.b16 %v9935
        %v10069 = vunpack.c.l.b16 %v9936
        %v10070 = vunpack.c.l.b16 %v9937
        %v10071 = vunpack.c.l.b16 %v9938
        %v10072 = vunpack.c.l.b16 %v9939
        %v10073 = vunpack.c.l.b16 %v9940
        %v10074 = vunpack.c.l.b16 %v9941
        %v10075 = vunpack.c.l.b16 %v9942
        %v10076 = vunpack.c.l.b16 %v9943
        %v10077 = vunpack.c.l.b16 %v9944
        %v10078 = vunpack.c.l.b16 %v9945
        %v10079 = vunpack.c.l.b16 %v9946
        %v10080 = vunpack.c.l.b16 %v9947
        %v10081 = vunpack.c.l.b16 %v9948
        %v10082 = vunpack.c.l.b16 %v9949
        %v10083 = vunpack.c.l.b16 %v9950
        %v10084 = vunpack.c.l.b16 %v9951
        %v10085 = vunpack.c.l.b16 %v9952
        %v10086 = vunpack.c.l.b16 %v9953
        %v10087 = vunpack.c.l.b16 %v9954
        %v10088 = vunpack.c.l.b16 %v9955
        %v10089 = vunpack.c.l.b16 %v9956
        %v10090 = vunpack.c.l.b16 %v9957
        %v10091 = vunpack.c.l.b16 %v9958
        %v10092 = vunpack.c.l.b16 %v9959
        %v10093 = vunpack.c.l.b16 %v9960
        %v10094 = vunpack.c.l.b16 %v9961
        %v10095 = vunpack.c.l.b16 %v9962
        %v10096 = vunpack.c.l.b16 %v9963
        %v10097 = vunpack.c.l.b16 %v9964
        %v10098 = vunpack.c.l.b16 %v9965
        %v10099 = vpack.c.b16 %v10036, %v10035
        %v10100 = vpack.c.b16 %v10038, %v10037
        %v10101 = vpack.c.b16 %v10040, %v10039
        %v10102 = vpack.c.b16 %v10042, %v10041
        %v10103 = vpack.c.b16 %v10044, %v10043
        %v10104 = vpack.c.b16 %v10046, %v10045
        %v10105 = vpack.c.b16 %v10048, %v10047
        %v10106 = vpack.c.b16 %v10050, %v10049
        %v10107 = vpack.c.b16 %v10052, %v10051
        %v10108 = vpack.c.b16 %v10054, %v10053
        %v10109 = vpack.c.b16 %v10056, %v10055
        %v10110 = vpack.c.b16 %v10058, %v10057
        %v10111 = vpack.c.b16 %v10060, %v10059
        %v10112 = vpack.c.b16 %v10062, %v10061
        %v10113 = vpack.c.b16 %v10064, %v10063
        %v10114 = vpack.c.b16 %v10066, %v10065
        %v10115 = vpack.c.b16 %v10068, %v10067
        %v10116 = vpack.c.b16 %v10070, %v10069
        %v10117 = vpack.c.b16 %v10072, %v10071
        %v10118 = vpack.c.b16 %v10074, %v10073
        %v10119 = vpack.c.b16 %v10076, %v10075
        %v10120 = vpack.c.b16 %v10078, %v10077
        %v10121 = vpack.c.b16 %v10080, %v10079
        %v10122 = vpack.c.b16 %v10082, %v10081
        %v10123 = vpack.c.b16 %v10084, %v10083
        %v10124 = vpack.c.b16 %v10086, %v10085
        %v10125 = vpack.c.b16 %v10088, %v10087
        %v10126 = vpack.c.b16 %v10090, %v10089
        %v10127 = vpack.c.b16 %v10092, %v10091
        %v10128 = vpack.c.b16 %v10094, %v10093
        %v10129 = vpack.c.b16 %v10096, %v10095
        %v10130 = vpack.c.b16 %v10098, %v10097
        %10163 = vmatpush.bf16.msra.mxu0 %v10106
        %10164 = vmatpush.bf16.msra.mxu0 %v10105
        %10165 = vmatpush.bf16.msra.mxu0 %v10104
        %10166 = vmatpush.bf16.msra.mxu0 %v10103
        %10167 = vmatpush.bf16.msra.mxu0 %v10102
        %10168 = vmatpush.bf16.msra.mxu0 %v10101
        %10169 = vmatpush.bf16.msra.mxu0 %v10100
        %10170 = vmatpush.bf16.msra.mxu0 %v10099
        %10171 = vmatmul.bf16.gmra.mxu0 %v9869
        %v10172 = vpop.f32.mrf.mxu0
        %v10173 = vadd.f32 %v9969, %v10172
        %v10174 = vpop.f32.mrf.mxu0
        %v10175 = vadd.f32 %v9969, %v10174
        %10176 = vmatmul.bf16.gmra.mxu0 %v9873
        %v10177 = vpop.f32.mrf.mxu0
        %v10178 = vadd.f32 %v9969, %v10177
        %v10179 = vpop.f32.mrf.mxu0
        %v10180 = vadd.f32 %v9969, %v10179
        %10181 = vmatmul.bf16.gmra.mxu0 %v9877
        %v10182 = vpop.f32.mrf.mxu0
        %v10183 = vadd.f32 %v9969, %v10182
        %v10184 = vpop.f32.mrf.mxu0
        %v10185 = vadd.f32 %v9969, %v10184
        %10186 = vmatmul.bf16.gmra.mxu0 %v9881
        %v10187 = vpop.f32.mrf.mxu0
        %v10188 = vadd.f32 %v9969, %v10187
        %v10189 = vpop.f32.mrf.mxu0
        %v10190 = vadd.f32 %v9969, %v10189
        %10191 = vmatmul.bf16.gmra.mxu0 %v9885
        %v10192 = vpop.f32.mrf.mxu0
        %v10193 = vadd.f32 %v9969, %v10192
        %v10194 = vpop.f32.mrf.mxu0
        %v10195 = vadd.f32 %v9969, %v10194
        %10196 = vmatmul.bf16.gmra.mxu0 %v9889
        %v10197 = vpop.f32.mrf.mxu0
        %v10198 = vadd.f32 %v9969, %v10197
        %v10199 = vpop.f32.mrf.mxu0
        %v10200 = vadd.f32 %v9969, %v10199
        %10201 = vmatmul.bf16.gmra.mxu0 %v9893
        %v10202 = vpop.f32.mrf.mxu0
        %v10203 = vadd.f32 %v9969, %v10202
        %v10204 = vpop.f32.mrf.mxu0
        %v10205 = vadd.f32 %v9969, %v10204
        %10206 = vmatmul.bf16.gmra.mxu0 %v9897
        %v10207 = vpop.f32.mrf.mxu0
        %v10208 = vadd.f32 %v9969, %v10207
        %v10209 = vpop.f32.mrf.mxu0
        %v10210 = vadd.f32 %v9969, %v10209
        %10211 = vdwg.mxu0
        %10212 = vmatpush.bf16.msra.mxu0 %v10114
        %10213 = vmatpush.bf16.msra.mxu0 %v10113
        %10214 = vmatpush.bf16.msra.mxu0 %v10112
        %10215 = vmatpush.bf16.msra.mxu0 %v10111
        %10216 = vmatpush.bf16.msra.mxu0 %v10110
        %10217 = vmatpush.bf16.msra.mxu0 %v10109
        %10218 = vmatpush.bf16.msra.mxu0 %v10108
        %10219 = vmatpush.bf16.msra.mxu0 %v10107
        %10220 = vmatmul.bf16.gmra.mxu0 %v9870
        %v10221 = vpop.f32.mrf.mxu0
        %v10222 = vadd.f32 %v10173, %v10221
        %v10223 = vpop.f32.mrf.mxu0
        %v10224 = vadd.f32 %v10175, %v10223
        %10225 = vmatmul.bf16.gmra.mxu0 %v9874
        %v10226 = vpop.f32.mrf.mxu0
        %v10227 = vadd.f32 %v10178, %v10226
        %v10228 = vpop.f32.mrf.mxu0
        %v10229 = vadd.f32 %v10180, %v10228
        %10230 = vmatmul.bf16.gmra.mxu0 %v9878
        %v10231 = vpop.f32.mrf.mxu0
        %v10232 = vadd.f32 %v10183, %v10231
        %v10233 = vpop.f32.mrf.mxu0
        %v10234 = vadd.f32 %v10185, %v10233
        %10235 = vmatmul.bf16.gmra.mxu0 %v9882
        %v10236 = vpop.f32.mrf.mxu0
        %v10237 = vadd.f32 %v10188, %v10236
        %v10238 = vpop.f32.mrf.mxu0
        %v10239 = vadd.f32 %v10190, %v10238
        %10240 = vmatmul.bf16.gmra.mxu0 %v9886
        %v10241 = vpop.f32.mrf.mxu0
        %v10242 = vadd.f32 %v10193, %v10241
        %v10243 = vpop.f32.mrf.mxu0
        %v10244 = vadd.f32 %v10195, %v10243
        %10245 = vmatmul.bf16.gmra.mxu0 %v9890
        %v10246 = vpop.f32.mrf.mxu0
        %v10247 = vadd.f32 %v10198, %v10246
        %v10248 = vpop.f32.mrf.mxu0
        %v10249 = vadd.f32 %v10200, %v10248
        %10250 = vmatmul.bf16.gmra.mxu0 %v9894
        %v10251 = vpop.f32.mrf.mxu0
        %v10252 = vadd.f32 %v10203, %v10251
        %v10253 = vpop.f32.mrf.mxu0
        %v10254 = vadd.f32 %v10205, %v10253
        %10255 = vmatmul.bf16.gmra.mxu0 %v9898
        %v10256 = vpop.f32.mrf.mxu0
        %v10257 = vadd.f32 %v10208, %v10256
        %v10258 = vpop.f32.mrf.mxu0
        %v10259 = vadd.f32 %v10210, %v10258
        %10260 = vdwg.mxu0
        %10261 = vmatpush.bf16.msra.mxu0 %v10122
        %10262 = vmatpush.bf16.msra.mxu0 %v10121
        %10263 = vmatpush.bf16.msra.mxu0 %v10120
        %10264 = vmatpush.bf16.msra.mxu0 %v10119
        %10265 = vmatpush.bf16.msra.mxu0 %v10118
        %10266 = vmatpush.bf16.msra.mxu0 %v10117
        %10267 = vmatpush.bf16.msra.mxu0 %v10116
        %10268 = vmatpush.bf16.msra.mxu0 %v10115
        %10269 = vmatmul.bf16.gmra.mxu0 %v9871
        %v10270 = vpop.f32.mrf.mxu0
        %v10271 = vadd.f32 %v10222, %v10270
        %v10272 = vpop.f32.mrf.mxu0
        %v10273 = vadd.f32 %v10224, %v10272
        %10274 = vmatmul.bf16.gmra.mxu0 %v9875
        %v10275 = vpop.f32.mrf.mxu0
        %v10276 = vadd.f32 %v10227, %v10275
        %v10277 = vpop.f32.mrf.mxu0
        %v10278 = vadd.f32 %v10229, %v10277
        %10279 = vmatmul.bf16.gmra.mxu0 %v9879
        %v10280 = vpop.f32.mrf.mxu0
        %v10281 = vadd.f32 %v10232, %v10280
        %v10282 = vpop.f32.mrf.mxu0
        %v10283 = vadd.f32 %v10234, %v10282
        %10284 = vmatmul.bf16.gmra.mxu0 %v9883
        %v10285 = vpop.f32.mrf.mxu0
        %v10286 = vadd.f32 %v10237, %v10285
        %v10287 = vpop.f32.mrf.mxu0
        %v10288 = vadd.f32 %v10239, %v10287
        %10289 = vmatmul.bf16.gmra.mxu0 %v9887
        %v10290 = vpop.f32.mrf.mxu0
        %v10291 = vadd.f32 %v10242, %v10290
        %v10292 = vpop.f32.mrf.mxu0
        %v10293 = vadd.f32 %v10244, %v10292
        %10294 = vmatmul.bf16.gmra.mxu0 %v9891
        %v10295 = vpop.f32.mrf.mxu0
        %v10296 = vadd.f32 %v10247, %v10295
        %v10297 = vpop.f32.mrf.mxu0
        %v10298 = vadd.f32 %v10249, %v10297
        %10299 = vmatmul.bf16.gmra.mxu0 %v9895
        %v10300 = vpop.f32.mrf.mxu0
        %v10301 = vadd.f32 %v10252, %v10300
        %v10302 = vpop.f32.mrf.mxu0
        %v10303 = vadd.f32 %v10254, %v10302
        %10304 = vmatmul.bf16.gmra.mxu0 %v9899
        %v10305 = vpop.f32.mrf.mxu0
        %v10306 = vadd.f32 %v10257, %v10305
        %v10307 = vpop.f32.mrf.mxu0
        %v10308 = vadd.f32 %v10259, %v10307
        %10309 = vdwg.mxu0
        %10310 = vmatpush.bf16.msra.mxu0 %v10130
        %10311 = vmatpush.bf16.msra.mxu0 %v10129
        %10312 = vmatpush.bf16.msra.mxu0 %v10128
        %10313 = vmatpush.bf16.msra.mxu0 %v10127
        %10314 = vmatpush.bf16.msra.mxu0 %v10126
        %10315 = vmatpush.bf16.msra.mxu0 %v10125
        %10316 = vmatpush.bf16.msra.mxu0 %v10124
        %10317 = vmatpush.bf16.msra.mxu0 %v10123
        %10318 = vmatmul.bf16.gmra.mxu0 %v9872
        %v10319 = vpop.f32.mrf.mxu0
        %v10320 = vadd.f32 %v10271, %v10319
        %v10321 = vpop.f32.mrf.mxu0
        %v10322 = vadd.f32 %v10273, %v10321
        %10323 = vmatmul.bf16.gmra.mxu0 %v9876
        %v10324 = vpop.f32.mrf.mxu0
        %v10325 = vadd.f32 %v10276, %v10324
        %v10326 = vpop.f32.mrf.mxu0
        %v10327 = vadd.f32 %v10278, %v10326
        %10328 = vmatmul.bf16.gmra.mxu0 %v9880
        %v10329 = vpop.f32.mrf.mxu0
        %v10330 = vadd.f32 %v10281, %v10329
        %v10331 = vpop.f32.mrf.mxu0
        %v10332 = vadd.f32 %v10283, %v10331
        %10333 = vmatmul.bf16.gmra.mxu0 %v9884
        %v10334 = vpop.f32.mrf.mxu0
        %v10335 = vadd.f32 %v10286, %v10334
        %v10336 = vpop.f32.mrf.mxu0
        %v10337 = vadd.f32 %v10288, %v10336
        %10338 = vmatmul.bf16.gmra.mxu0 %v9888
        %v10339 = vpop.f32.mrf.mxu0
        %v10340 = vadd.f32 %v10291, %v10339
        %v10341 = vpop.f32.mrf.mxu0
        %v10342 = vadd.f32 %v10293, %v10341
        %10343 = vmatmul.bf16.gmra.mxu0 %v9892
        %v10344 = vpop.f32.mrf.mxu0
        %v10345 = vadd.f32 %v10296, %v10344
        %v10346 = vpop.f32.mrf.mxu0
        %v10347 = vadd.f32 %v10298, %v10346
        %10348 = vmatmul.bf16.gmra.mxu0 %v9896
        %v10349 = vpop.f32.mrf.mxu0
        %v10350 = vadd.f32 %v10301, %v10349
        %v10351 = vpop.f32.mrf.mxu0
        %v10352 = vadd.f32 %v10303, %v10351
        %10353 = vmatmul.bf16.gmra.mxu0 %v9900
        %v10354 = vpop.f32.mrf.mxu0
        %v10355 = vadd.f32 %v10306, %v10354
        %v10356 = vpop.f32.mrf.mxu0
        %v10357 = vadd.f32 %v10308, %v10356
        %10358 = vdwg.mxu0
        %v10359 = vadd.f32 %v9381, %v10320
        %v10360 = vadd.f32 %v9382, %v10322
        %v10361 = vadd.f32 %v9383, %v10325
        %v10362 = vadd.f32 %v9384, %v10327
        %v10363 = vadd.f32 %v9385, %v10330
        %v10364 = vadd.f32 %v9386, %v10332
        %v10365 = vadd.f32 %v9387, %v10335
        %v10366 = vadd.f32 %v9388, %v10337
        %v10367 = vadd.f32 %v9389, %v10340
        %v10368 = vadd.f32 %v9390, %v10342
        %v10369 = vadd.f32 %v9391, %v10345
        %v10370 = vadd.f32 %v9392, %v10347
        %v10371 = vadd.f32 %v9393, %v10350
        %v10372 = vadd.f32 %v9394, %v10352
        %v10373 = vadd.f32 %v9395, %v10355
        %v10374 = vadd.f32 %v9396, %v10357
        %s10375 = scalar_lea.vmem %s9, 1
        %v10376 = vld [vmem:[%s10375] sm:$0x1]
        %s10377 = scalar_lea.vmem [#allocation4], 1
        %v10378 = vld [vmem:[%s10377] sm:$0x1]
        %10379 = vadd.xlane.f32.xlu0 %v10359
        %v10380 = vpop.xlane.xlu0 %10379
        %10381 = vadd.xlane.f32.xlu0 %v10360
        %v10382 = vpop.xlane.xlu0 %10381
        %10383 = vadd.xlane.f32.xlu0 %v10361
        %v10384 = vpop.xlane.xlu0 %10383
        %10385 = vadd.xlane.f32.xlu0 %v10362
        %v10386 = vpop.xlane.xlu0 %10385
        %10387 = vadd.xlane.f32.xlu0 %v10363
        %v10388 = vpop.xlane.xlu0 %10387
        %10389 = vadd.xlane.f32.xlu0 %v10364
        %v10390 = vpop.xlane.xlu0 %10389
        %10391 = vadd.xlane.f32.xlu0 %v10365
        %v10392 = vpop.xlane.xlu0 %10391
        %10393 = vadd.xlane.f32.xlu0 %v10366
        %v10394 = vpop.xlane.xlu0 %10393
        %10395 = vadd.xlane.f32.xlu0 %v10367
        %v10396 = vpop.xlane.xlu0 %10395
        %10397 = vadd.xlane.f32.xlu0 %v10368
        %v10398 = vpop.xlane.xlu0 %10397
        %10399 = vadd.xlane.f32.xlu0 %v10369
        %v10400 = vpop.xlane.xlu0 %10399
        %10401 = vadd.xlane.f32.xlu0 %v10370
        %v10402 = vpop.xlane.xlu0 %10401
        %10403 = vadd.xlane.f32.xlu0 %v10371
        %v10404 = vpop.xlane.xlu0 %10403
        %10405 = vadd.xlane.f32.xlu0 %v10372
        %v10406 = vpop.xlane.xlu0 %10405
        %10407 = vadd.xlane.f32.xlu0 %v10373
        %v10408 = vpop.xlane.xlu0 %10407
        %10409 = vadd.xlane.f32.xlu0 %v10374
        %v10410 = vpop.xlane.xlu0 %10409
        %v10411 = vmul.f32 %v10380, %v4170
        %v10412 = vmul.f32 %v10382, %v4170
        %v10413 = vmul.f32 %v10384, %v4170
        %v10414 = vmul.f32 %v10386, %v4170
        %v10415 = vmul.f32 %v10388, %v4170
        %v10416 = vmul.f32 %v10390, %v4170
        %v10417 = vmul.f32 %v10392, %v4170
        %v10418 = vmul.f32 %v10394, %v4170
        %v10419 = vmul.f32 %v10396, %v4170
        %v10420 = vmul.f32 %v10398, %v4170
        %v10421 = vmul.f32 %v10400, %v4170
        %v10422 = vmul.f32 %v10402, %v4170
        %v10423 = vmul.f32 %v10404, %v4170
        %v10424 = vmul.f32 %v10406, %v4170
        %v10425 = vmul.f32 %v10408, %v4170
        %v10426 = vmul.f32 %v10410, %v4170
        %v10427 = vsub.f32 %v10359, %v10411
        %v10428 = vsub.f32 %v10360, %v10412
        %v10429 = vsub.f32 %v10361, %v10413
        %v10430 = vsub.f32 %v10362, %v10414
        %v10431 = vsub.f32 %v10363, %v10415
        %v10432 = vsub.f32 %v10364, %v10416
        %v10433 = vsub.f32 %v10365, %v10417
        %v10434 = vsub.f32 %v10366, %v10418
        %v10435 = vsub.f32 %v10367, %v10419
        %v10436 = vsub.f32 %v10368, %v10420
        %v10437 = vsub.f32 %v10369, %v10421
        %v10438 = vsub.f32 %v10370, %v10422
        %v10439 = vsub.f32 %v10371, %v10423
        %v10440 = vsub.f32 %v10372, %v10424
        %v10441 = vsub.f32 %v10373, %v10425
        %v10442 = vsub.f32 %v10374, %v10426
        %v10443 = vmul.f32 %v10427, %v10427
        %v10444 = vmul.f32 %v10428, %v10428
        %v10445 = vmul.f32 %v10429, %v10429
        %v10446 = vmul.f32 %v10430, %v10430
        %v10447 = vmul.f32 %v10431, %v10431
        %v10448 = vmul.f32 %v10432, %v10432
        %v10449 = vmul.f32 %v10433, %v10433
        %v10450 = vmul.f32 %v10434, %v10434
        %v10451 = vmul.f32 %v10435, %v10435
        %v10452 = vmul.f32 %v10436, %v10436
        %v10453 = vmul.f32 %v10437, %v10437
        %v10454 = vmul.f32 %v10438, %v10438
        %v10455 = vmul.f32 %v10439, %v10439
        %v10456 = vmul.f32 %v10440, %v10440
        %v10457 = vmul.f32 %v10441, %v10441
        %v10458 = vmul.f32 %v10442, %v10442
        %10459 = vadd.xlane.f32.xlu0 %v10443
        %v10460 = vpop.xlane.xlu0 %10459
        %10461 = vadd.xlane.f32.xlu0 %v10444
        %v10462 = vpop.xlane.xlu0 %10461
        %10463 = vadd.xlane.f32.xlu0 %v10445
        %v10464 = vpop.xlane.xlu0 %10463
        %10465 = vadd.xlane.f32.xlu0 %v10446
        %v10466 = vpop.xlane.xlu0 %10465
        %10467 = vadd.xlane.f32.xlu0 %v10447
        %v10468 = vpop.xlane.xlu0 %10467
        %10469 = vadd.xlane.f32.xlu0 %v10448
        %v10470 = vpop.xlane.xlu0 %10469
        %10471 = vadd.xlane.f32.xlu0 %v10449
        %v10472 = vpop.xlane.xlu0 %10471
        %10473 = vadd.xlane.f32.xlu0 %v10450
        %v10474 = vpop.xlane.xlu0 %10473
        %10475 = vadd.xlane.f32.xlu0 %v10451
        %v10476 = vpop.xlane.xlu0 %10475
        %10477 = vadd.xlane.f32.xlu0 %v10452
        %v10478 = vpop.xlane.xlu0 %10477
        %10479 = vadd.xlane.f32.xlu0 %v10453
        %v10480 = vpop.xlane.xlu0 %10479
        %10481 = vadd.xlane.f32.xlu0 %v10454
        %v10482 = vpop.xlane.xlu0 %10481
        %10483 = vadd.xlane.f32.xlu0 %v10455
        %v10484 = vpop.xlane.xlu0 %10483
        %10485 = vadd.xlane.f32.xlu0 %v10456
        %v10486 = vpop.xlane.xlu0 %10485
        %10487 = vadd.xlane.f32.xlu0 %v10457
        %v10488 = vpop.xlane.xlu0 %10487
        %10489 = vadd.xlane.f32.xlu0 %v10458
        %v10490 = vpop.xlane.xlu0 %10489
        %v10491 = vmul.f32 %v10460, %v4170
        %v10492 = vmul.f32 %v10462, %v4170
        %v10493 = vmul.f32 %v10464, %v4170
        %v10494 = vmul.f32 %v10466, %v4170
        %v10495 = vmul.f32 %v10468, %v4170
        %v10496 = vmul.f32 %v10470, %v4170
        %v10497 = vmul.f32 %v10472, %v4170
        %v10498 = vmul.f32 %v10474, %v4170
        %v10499 = vmul.f32 %v10476, %v4170
        %v10500 = vmul.f32 %v10478, %v4170
        %v10501 = vmul.f32 %v10480, %v4170
        %v10502 = vmul.f32 %v10482, %v4170
        %v10503 = vmul.f32 %v10484, %v4170
        %v10504 = vmul.f32 %v10486, %v4170
        %v10505 = vmul.f32 %v10488, %v4170
        %v10506 = vmul.f32 %v10490, %v4170
        %v10507 = vadd.f32 %v10491, 1e-05
        %v10508 = vadd.f32 %v10492, 1e-05
        %v10509 = vadd.f32 %v10493, 1e-05
        %v10510 = vadd.f32 %v10494, 1e-05
        %v10511 = vadd.f32 %v10495, 1e-05
        %v10512 = vadd.f32 %v10496, 1e-05
        %v10513 = vadd.f32 %v10497, 1e-05
        %v10514 = vadd.f32 %v10498, 1e-05
        %v10515 = vadd.f32 %v10499, 1e-05
        %v10516 = vadd.f32 %v10500, 1e-05
        %v10517 = vadd.f32 %v10501, 1e-05
        %v10518 = vadd.f32 %v10502, 1e-05
        %v10519 = vadd.f32 %v10503, 1e-05
        %v10520 = vadd.f32 %v10504, 1e-05
        %v10521 = vadd.f32 %v10505, 1e-05
        %v10522 = vadd.f32 %v10506, 1e-05
        %v10523 = vrsqrt.pop %v10507
        %v10524 = vmul.f32 %v10523, %v10507
        %v10525 = vmul.f32 %v10524, %v10523
        %v10526 = vmul.f32 0.5, %v10525
        %v10527 = vsub.f32 1.5, %v10526
        %v10528 = vmul.f32 %v10523, %v10527
        %vm10529 = vweird.f32 %v10507
        %vm10530 = vweird.f32 %v10523
        %vm10531 = vmor %vm10529, %vm10530
        %v10532 = vsel %vm10531, %v10523, %v10528
        %v10533 = vrsqrt.pop %v10508
        %v10534 = vmul.f32 %v10533, %v10508
        %v10535 = vmul.f32 %v10534, %v10533
        %v10536 = vmul.f32 0.5, %v10535
        %v10537 = vsub.f32 1.5, %v10536
        %v10538 = vmul.f32 %v10533, %v10537
        %vm10539 = vweird.f32 %v10508
        %vm10540 = vweird.f32 %v10533
        %vm10541 = vmor %vm10539, %vm10540
        %v10542 = vsel %vm10541, %v10533, %v10538
        %v10543 = vrsqrt.pop %v10509
        %v10544 = vmul.f32 %v10543, %v10509
        %v10545 = vmul.f32 %v10544, %v10543
        %v10546 = vmul.f32 0.5, %v10545
        %v10547 = vsub.f32 1.5, %v10546
        %v10548 = vmul.f32 %v10543, %v10547
        %vm10549 = vweird.f32 %v10509
        %vm10550 = vweird.f32 %v10543
        %vm10551 = vmor %vm10549, %vm10550
        %v10552 = vsel %vm10551, %v10543, %v10548
        %v10553 = vrsqrt.pop %v10510
        %v10554 = vmul.f32 %v10553, %v10510
        %v10555 = vmul.f32 %v10554, %v10553
        %v10556 = vmul.f32 0.5, %v10555
        %v10557 = vsub.f32 1.5, %v10556
        %v10558 = vmul.f32 %v10553, %v10557
        %vm10559 = vweird.f32 %v10510
        %vm10560 = vweird.f32 %v10553
        %vm10561 = vmor %vm10559, %vm10560
        %v10562 = vsel %vm10561, %v10553, %v10558
        %v10563 = vrsqrt.pop %v10511
        %v10564 = vmul.f32 %v10563, %v10511
        %v10565 = vmul.f32 %v10564, %v10563
        %v10566 = vmul.f32 0.5, %v10565
        %v10567 = vsub.f32 1.5, %v10566
        %v10568 = vmul.f32 %v10563, %v10567
        %vm10569 = vweird.f32 %v10511
        %vm10570 = vweird.f32 %v10563
        %vm10571 = vmor %vm10569, %vm10570
        %v10572 = vsel %vm10571, %v10563, %v10568
        %v10573 = vrsqrt.pop %v10512
        %v10574 = vmul.f32 %v10573, %v10512
        %v10575 = vmul.f32 %v10574, %v10573
        %v10576 = vmul.f32 0.5, %v10575
        %v10577 = vsub.f32 1.5, %v10576
        %v10578 = vmul.f32 %v10573, %v10577
        %vm10579 = vweird.f32 %v10512
        %vm10580 = vweird.f32 %v10573
        %vm10581 = vmor %vm10579, %vm10580
        %v10582 = vsel %vm10581, %v10573, %v10578
        %v10583 = vrsqrt.pop %v10513
        %v10584 = vmul.f32 %v10583, %v10513
        %v10585 = vmul.f32 %v10584, %v10583
        %v10586 = vmul.f32 0.5, %v10585
        %v10587 = vsub.f32 1.5, %v10586
        %v10588 = vmul.f32 %v10583, %v10587
        %vm10589 = vweird.f32 %v10513
        %vm10590 = vweird.f32 %v10583
        %vm10591 = vmor %vm10589, %vm10590
        %v10592 = vsel %vm10591, %v10583, %v10588
        %v10593 = vrsqrt.pop %v10514
        %v10594 = vmul.f32 %v10593, %v10514
        %v10595 = vmul.f32 %v10594, %v10593
        %v10596 = vmul.f32 0.5, %v10595
        %v10597 = vsub.f32 1.5, %v10596
        %v10598 = vmul.f32 %v10593, %v10597
        %vm10599 = vweird.f32 %v10514
        %vm10600 = vweird.f32 %v10593
        %vm10601 = vmor %vm10599, %vm10600
        %v10602 = vsel %vm10601, %v10593, %v10598
        %v10603 = vrsqrt.pop %v10515
        %v10604 = vmul.f32 %v10603, %v10515
        %v10605 = vmul.f32 %v10604, %v10603
        %v10606 = vmul.f32 0.5, %v10605
        %v10607 = vsub.f32 1.5, %v10606
        %v10608 = vmul.f32 %v10603, %v10607
        %vm10609 = vweird.f32 %v10515
        %vm10610 = vweird.f32 %v10603
        %vm10611 = vmor %vm10609, %vm10610
        %v10612 = vsel %vm10611, %v10603, %v10608
        %v10613 = vrsqrt.pop %v10516
        %v10614 = vmul.f32 %v10613, %v10516
        %v10615 = vmul.f32 %v10614, %v10613
        %v10616 = vmul.f32 0.5, %v10615
        %v10617 = vsub.f32 1.5, %v10616
        %v10618 = vmul.f32 %v10613, %v10617
        %vm10619 = vweird.f32 %v10516
        %vm10620 = vweird.f32 %v10613
        %vm10621 = vmor %vm10619, %vm10620
        %v10622 = vsel %vm10621, %v10613, %v10618
        %v10623 = vrsqrt.pop %v10517
        %v10624 = vmul.f32 %v10623, %v10517
        %v10625 = vmul.f32 %v10624, %v10623
        %v10626 = vmul.f32 0.5, %v10625
        %v10627 = vsub.f32 1.5, %v10626
        %v10628 = vmul.f32 %v10623, %v10627
        %vm10629 = vweird.f32 %v10517
        %vm10630 = vweird.f32 %v10623
        %vm10631 = vmor %vm10629, %vm10630
        %v10632 = vsel %vm10631, %v10623, %v10628
        %v10633 = vrsqrt.pop %v10518
        %v10634 = vmul.f32 %v10633, %v10518
        %v10635 = vmul.f32 %v10634, %v10633
        %v10636 = vmul.f32 0.5, %v10635
        %v10637 = vsub.f32 1.5, %v10636
        %v10638 = vmul.f32 %v10633, %v10637
        %vm10639 = vweird.f32 %v10518
        %vm10640 = vweird.f32 %v10633
        %vm10641 = vmor %vm10639, %vm10640
        %v10642 = vsel %vm10641, %v10633, %v10638
        %v10643 = vrsqrt.pop %v10519
        %v10644 = vmul.f32 %v10643, %v10519
        %v10645 = vmul.f32 %v10644, %v10643
        %v10646 = vmul.f32 0.5, %v10645
        %v10647 = vsub.f32 1.5, %v10646
        %v10648 = vmul.f32 %v10643, %v10647
        %vm10649 = vweird.f32 %v10519
        %vm10650 = vweird.f32 %v10643
        %vm10651 = vmor %vm10649, %vm10650
        %v10652 = vsel %vm10651, %v10643, %v10648
        %v10653 = vrsqrt.pop %v10520
        %v10654 = vmul.f32 %v10653, %v10520
        %v10655 = vmul.f32 %v10654, %v10653
        %v10656 = vmul.f32 0.5, %v10655
        %v10657 = vsub.f32 1.5, %v10656
        %v10658 = vmul.f32 %v10653, %v10657
        %vm10659 = vweird.f32 %v10520
        %vm10660 = vweird.f32 %v10653
        %vm10661 = vmor %vm10659, %vm10660
        %v10662 = vsel %vm10661, %v10653, %v10658
        %v10663 = vrsqrt.pop %v10521
        %v10664 = vmul.f32 %v10663, %v10521
        %v10665 = vmul.f32 %v10664, %v10663
        %v10666 = vmul.f32 0.5, %v10665
        %v10667 = vsub.f32 1.5, %v10666
        %v10668 = vmul.f32 %v10663, %v10667
        %vm10669 = vweird.f32 %v10521
        %vm10670 = vweird.f32 %v10663
        %vm10671 = vmor %vm10669, %vm10670
        %v10672 = vsel %vm10671, %v10663, %v10668
        %v10673 = vrsqrt.pop %v10522
        %v10674 = vmul.f32 %v10673, %v10522
        %v10675 = vmul.f32 %v10674, %v10673
        %v10676 = vmul.f32 0.5, %v10675
        %v10677 = vsub.f32 1.5, %v10676
        %v10678 = vmul.f32 %v10673, %v10677
        %vm10679 = vweird.f32 %v10522
        %vm10680 = vweird.f32 %v10673
        %vm10681 = vmor %vm10679, %vm10680
        %v10682 = vsel %vm10681, %v10673, %v10678
        %v10683 = vmul.f32 %v10427, %v10532
        %v10684 = vmul.f32 %v10428, %v10542
        %v10685 = vmul.f32 %v10429, %v10552
        %v10686 = vmul.f32 %v10430, %v10562
        %v10687 = vmul.f32 %v10431, %v10572
        %v10688 = vmul.f32 %v10432, %v10582
        %v10689 = vmul.f32 %v10433, %v10592
        %v10690 = vmul.f32 %v10434, %v10602
        %v10691 = vmul.f32 %v10435, %v10612
        %v10692 = vmul.f32 %v10436, %v10622
        %v10693 = vmul.f32 %v10437, %v10632
        %v10694 = vmul.f32 %v10438, %v10642
        %v10695 = vmul.f32 %v10439, %v10652
        %v10696 = vmul.f32 %v10440, %v10662
        %v10697 = vmul.f32 %v10441, %v10672
        %v10698 = vmul.f32 %v10442, %v10682
        %v10700 = vperm.slane %v10376, 0
        %v10702 = vmul.f32 %v10683, %v10700
        %v10703 = vmul.f32 %v10684, %v10700
        %v10704 = vmul.f32 %v10685, %v10700
        %v10705 = vmul.f32 %v10686, %v10700
        %v10706 = vmul.f32 %v10687, %v10700
        %v10707 = vmul.f32 %v10688, %v10700
        %v10708 = vmul.f32 %v10689, %v10700
        %v10709 = vmul.f32 %v10690, %v10700
        %v10710 = vmul.f32 %v10691, %v10700
        %v10711 = vmul.f32 %v10692, %v10700
        %v10712 = vmul.f32 %v10693, %v10700
        %v10713 = vmul.f32 %v10694, %v10700
        %v10714 = vmul.f32 %v10695, %v10700
        %v10715 = vmul.f32 %v10696, %v10700
        %v10716 = vmul.f32 %v10697, %v10700
        %v10717 = vmul.f32 %v10698, %v10700
        %v10719 = vperm.slane %v10378, 0
        %v10721 = vadd.f32 %v10702, %v10719
        %v10722 = vadd.f32 %v10703, %v10719
        %v10723 = vadd.f32 %v10704, %v10719
        %v10724 = vadd.f32 %v10705, %v10719
        %v10725 = vadd.f32 %v10706, %v10719
        %v10726 = vadd.f32 %v10707, %v10719
        %v10727 = vadd.f32 %v10708, %v10719
        %v10728 = vadd.f32 %v10709, %v10719
        %v10729 = vadd.f32 %v10710, %v10719
        %v10730 = vadd.f32 %v10711, %v10719
        %v10731 = vadd.f32 %v10712, %v10719
        %v10732 = vadd.f32 %v10713, %v10719
        %v10733 = vadd.f32 %v10714, %v10719
        %v10734 = vadd.f32 %v10715, %v10719
        %v10735 = vadd.f32 %v10716, %v10719
        %v10736 = vadd.f32 %v10717, %v10719
        %v10737 = vlaneseq
        %v10738 = vshrl.u32 %v10737, 7
        %v10739 = vmul.u32 %v10738, 16
        %vm10740 = vcmp.ge.s32.totalorder %v665, %v10739
        %v10741 = vadd.s32 %v10739, 16
        %vm10742 = vcmp.lt.s32.totalorder %v665, %v10741
        %vm10743 = vmand %vm10740, %vm10742
        %v10744 = vsel %vm10743, 0.0625, 0.0
        %10745 = vmatpush.msra.mxu0 %v10736
        %10746 = vmatpush.msra.mxu0 %v10735
        %10747 = vmatpush.msra.mxu0 %v10734
        %10748 = vmatpush.msra.mxu0 %v10733
        %10749 = vmatpush.msra.mxu0 %v10732
        %10750 = vmatpush.msra.mxu0 %v10731
        %10751 = vmatpush.msra.mxu0 %v10730
        %10752 = vmatpush.msra.mxu0 %v10729
        %10753 = vmatpush.msra.mxu0 %v10728
        %10754 = vmatpush.msra.mxu0 %v10727
        %10755 = vmatpush.msra.mxu0 %v10726
        %10756 = vmatpush.msra.mxu0 %v10725
        %10757 = vmatpush.msra.mxu0 %v10724
        %10758 = vmatpush.msra.mxu0 %v10723
        %10759 = vmatpush.msra.mxu0 %v10722
        %10760 = vmatpush.msra.mxu0 %v10721
        %10761 = vmatmul.f32.gmra.mxu0 %v10744
        %v10762 = vpop.f32.mrf.mxu0
        %v10763 = vadd.f32 0.0, %v10762
        %10764 = vdwg.mxu0
        %v10765 = vpack.c.bf16 %v10763, %v10763
        %v10766 = vld [vmem:[%s15] sm:$0xf]
        %v10767 = vld [vmem:[%s15 + $0x4] sm:$0xf]
        %v10768 = vld [vmem:[%s15 + $0x8] sm:$0xf]
        %v10769 = vld [vmem:[%s15 + $0xc] sm:$0xf]
        %v10770 = vld [vmem:[%s15 + $0x10] sm:$0xf]
        %v10771 = vld [vmem:[%s15 + $0x14] sm:$0xf]
        %v10772 = vld [vmem:[%s15 + $0x18] sm:$0xf]
        %v10773 = vld [vmem:[%s15 + $0x1c] sm:$0xf]
        %v10774 = vld [vmem:[%s15 + $0x20] sm:$0xf]
        %v10775 = vld [vmem:[%s15 + $0x24] sm:$0xf]
        %v10776 = vld [vmem:[%s15 + $0x28] sm:$0xf]
        %v10777 = vld [vmem:[%s15 + $0x2c] sm:$0xf]
        %v10778 = vld [vmem:[%s15 + $0x30] sm:$0xf]
        %v10779 = vld [vmem:[%s15 + $0x34] sm:$0xf]
        %v10780 = vld [vmem:[%s15 + $0x38] sm:$0xf]
        %v10781 = vld [vmem:[%s15 + $0x3c] sm:$0xf]
        %v10782 = vld [vmem:[#allocation10] sm:$0x1]
        %v10784 = vperm.slane %v10782, 0
        %v10802 = vunpack.c.l.b16 %v10766
        %v10803 = vunpack.c.l.b16 %v10767
        %v10804 = vunpack.c.l.b16 %v10768
        %v10805 = vunpack.c.l.b16 %v10769
        %v10806 = vunpack.c.l.b16 %v10770
        %v10807 = vunpack.c.l.b16 %v10771
        %v10808 = vunpack.c.l.b16 %v10772
        %v10809 = vunpack.c.l.b16 %v10773
        %v10810 = vunpack.c.l.b16 %v10774
        %v10811 = vunpack.c.l.b16 %v10775
        %v10812 = vunpack.c.l.b16 %v10776
        %v10813 = vunpack.c.l.b16 %v10777
        %v10814 = vunpack.c.l.b16 %v10778
        %v10815 = vunpack.c.l.b16 %v10779
        %v10816 = vunpack.c.l.b16 %v10780
        %v10817 = vunpack.c.l.b16 %v10781
        %v10818 = vpack.c.b16 %v10803, %v10802
        %v10819 = vpack.c.b16 %v10805, %v10804
        %v10820 = vpack.c.b16 %v10807, %v10806
        %v10821 = vpack.c.b16 %v10809, %v10808
        %v10822 = vpack.c.b16 %v10811, %v10810
        %v10823 = vpack.c.b16 %v10813, %v10812
        %v10824 = vpack.c.b16 %v10815, %v10814
        %v10825 = vpack.c.b16 %v10817, %v10816
        %10834 = vmatpush.bf16.msra.mxu0 %v10825
        %10835 = vmatpush.bf16.msra.mxu0 %v10824
        %10836 = vmatpush.bf16.msra.mxu0 %v10823
        %10837 = vmatpush.bf16.msra.mxu0 %v10822
        %10838 = vmatpush.bf16.msra.mxu0 %v10821
        %10839 = vmatpush.bf16.msra.mxu0 %v10820
        %10840 = vmatpush.bf16.msra.mxu0 %v10819
        %10841 = vmatpush.bf16.msra.mxu0 %v10818
        %10842 = vmatmul.bf16.gmra.mxu0 %v10765
        %v10843 = vpop.f32.mrf.mxu0
        %v10844 = vadd.f32 %v10784, %v10843
        %v10845 = vpop.f32.mrf.mxu0
        %10846 = vdwg.mxu0
        %10847 = vst [vmem:[%s646] sm:$0xff] %v10844
        %p10848 = scmp.lt.s32.totalorder %s32, 1
        %s10849 = scalar_select %p10848, %s32, 1
        %s10850 = smul.addr %s10849, 8
        %s10851 = scalar_lea.vmem %s17, %s10850
        // Predicated region
        $region113: #{transformer_forward.1} parent=87 // pred_check
          %p10852 = pneg %p412
        $region114: #{transformer_forward.1} parent=87 // pred_check_branch
          %10854 = sbr.rel (%p10852) target = $region116
        $region115: #{transformer_forward.1} parent=87 // pred_region
          _
        $region116: #{transformer_forward.1} parent=87 // pred_fallthru
          _
      $region88: #{transformer_forward.1} parent=5 // pred_fallthru
        _
      %p10855 = scmp.le.s32.totalorder 2, %s27
      // Predicated region
      $region117: #{transformer_forward.1} parent=5 // pred_check
        %p10856 = pneg %p10855
      $region118: #{transformer_forward.1} parent=5 // pred_check_branch
        %10858 = sbr.rel (%p10856) target = $region120
      $region119: #{transformer_forward.1} parent=5 // pred_region
        %s10859 = ssub.s32 %s27, 2
        // Predicated region
        $region121: #{transformer_forward.1} parent=119 // pred_check
          %p10860 = pneg %p418
        $region122: #{transformer_forward.1} parent=119 // pred_check_branch
          %10862 = sbr.rel (%p10860) target = $region124
        $region123: #{transformer_forward.1} parent=119 // pred_region
          %p10863 = scmp.lt.s32.totalorder %s33, 1
          %s10864 = scalar_select %p10863, %s33, 1
          %s10865 = smul.addr %s10864, 8
          %s10866 = scalar_lea.vmem %s17, %s10865
        $region124: #{transformer_forward.1} parent=119 // pred_fallthru
          _
      $region120: #{transformer_forward.1} parent=5 // pred_fallthru
        _
    $region6: #{transformer_forward.1} parent=1 // loop_footer
      %s31 = sadd.s32 1, %s27
    $region7: #{transformer_forward.1} parent=1 // loop_footer_branch
      %26 = sbr.rel target = $region3
    $region8: #{transformer_forward.1} parent=1 // loop_exit
      _
    %10867 = vsyncpa [#allocation3], 1
    %s10868 = scalar_lea.sflag [#allocation3], 1
    %10869 = vsyncpa %s10868, 1
    %10870 = vsyncpa [#allocation5], 1
    %10871 = vsyncpa [#allocation8], 1
    %10872 = vsyncpa [#allocation11], 1

</llo_original>
